<compile_context>
chip_gen: v6e
topology: v6e:2x2x1
jax: 0.10.0
libtpu: 0.0.40
codegen_flags: <defaults>
</compile_context>

<pallas_src>
import functools
import math

import jax
import jax.numpy as jnp
from jax import lax
from jax.experimental import pallas as pl
from jax.experimental.pallas import tpu as pltpu

EPS = 1e-5          # torch LayerNorm default
FF_DIM = 2048       # torch TransformerEncoder/DecoderLayer default dim_feedforward


# --------------------------------------------------------------------------
# In-kernel helpers (operate on VMEM values / refs)
# --------------------------------------------------------------------------
def _mm(a_f32, w_bf16):
    """MXU matmul: bf16 operands, f32 accumulation."""
    return jnp.dot(a_f32.astype(jnp.bfloat16), w_bf16,
                   preferred_element_type=jnp.float32)


def _add_layernorm(x, res, gamma, beta):
    """LayerNorm(x + res) over the last dim (biased variance, torch semantics)."""
    y = x + res
    mean = jnp.mean(y, axis=-1, keepdims=True)
    yc = y - mean
    var = jnp.mean(yc * yc, axis=-1, keepdims=True)
    return yc * lax.rsqrt(var + EPS) * gamma + beta


def _mha_into(q2d, k2d, v2d, out_ref, *, B, Sq, Sk, heads, scale):
    """Multi-head attention on flattened (B*S, E) activations.

    Head split happens on VMEM values (static slices); the per-(batch, head)
    context vectors are written directly into a VMEM scratch ref, avoiding
    the concatenate/relayout tree of a value-based merge.  Attention math is
    kept in f32 for numerical fidelity.
    """
    E = q2d.shape[-1]
    Dh = E // heads
    for b in range(B):                                   # static Python loops
        qb = q2d[b * Sq:(b + 1) * Sq, :]
        kb = k2d[b * Sk:(b + 1) * Sk, :]
        vb = v2d[b * Sk:(b + 1) * Sk, :]
        for h in range(heads):
            qh = qb[:, h * Dh:(h + 1) * Dh]              # (Sq, Dh)
            kh = kb[:, h * Dh:(h + 1) * Dh]              # (Sk, Dh)
            vh = vb[:, h * Dh:(h + 1) * Dh]              # (Sk, Dh)
            # q @ k^T via dot_general (contract last dims): no transposed copy.
            s = lax.dot_general(qh, kh, (((1,), (1,)), ((), ())),
                                preferred_element_type=jnp.float32) * scale
            m = jnp.max(s, axis=-1, keepdims=True)
            p = jnp.exp(s - m)
            denom = jnp.sum(p, axis=-1, keepdims=True)
            p = p * pl.reciprocal(denom, approx=True)    # EUP slot, ~free
            out_ref[b * Sq:(b + 1) * Sq, h * Dh:(h + 1) * Dh] = (
                jnp.dot(p, vh, preferred_element_type=jnp.float32))
    return out_ref[...]                                  # (B*Sq, E)


# --------------------------------------------------------------------------
# Fused per-layer Pallas kernels
# --------------------------------------------------------------------------
def _encoder_layer_kernel(x_ref, wqkv_ref, bqkv_ref, wo_ref, bo_ref,
                          ln1g_ref, ln1b_ref,
                          w1_ref, b1_ref, w2_ref, b2_ref,
                          ln2g_ref, ln2b_ref,
                          o_ref, attn_ref, *, B, S, heads, scale):
    x = x_ref[...]                                              # (B*S, E) f32
    E = x.shape[-1]
    # fused QKV projection (single (E, 3E) matmul)
    qkv = _mm(x, wqkv_ref[...]) + bqkv_ref[...]                 # (B*S, 3E)
    q, k, v = qkv[:, :E], qkv[:, E:2 * E], qkv[:, 2 * E:]
    a = _mha_into(q, k, v, attn_ref, B=B, Sq=S, Sk=S, heads=heads, scale=scale)
    # attention output projection fused with residual add + LayerNorm
    x1 = _add_layernorm(_mm(a, wo_ref[...]) + bo_ref[...], x,
                        ln1g_ref[...], ln1b_ref[...])
    # FFN fused with residual add + LayerNorm
    h = jnp.maximum(_mm(x1, w1_ref[...]) + b1_ref[...], 0.0)
    f = _mm(h, w2_ref[...]) + b2_ref[...]
    o_ref[...] = _add_layernorm(f, x1, ln2g_ref[...], ln2b_ref[...])


def _decoder_layer_kernel(x_ref, mem_ref,
                          s_wqkv_ref, s_bqkv_ref, s_wo_ref, s_bo_ref,
                          ln1g_ref, ln1b_ref,
                          c_wq_ref, c_bq_ref, c_wkv_ref, c_bkv_ref,
                          c_wo_ref, c_bo_ref,
                          ln2g_ref, ln2b_ref,
                          w1_ref, b1_ref, w2_ref, b2_ref,
                          ln3g_ref, ln3b_ref,
                          o_ref, attn_ref, *, B, S, Sm, heads, scale):
    x = x_ref[...]                                              # (B*S, E)
    mem = mem_ref[...]                                          # (B*Sm, E)
    E = x.shape[-1]
    # --- self attention (no mask: PyTorch code passes no tgt_mask) ---
    qkv = _mm(x, s_wqkv_ref[...]) + s_bqkv_ref[...]
    q, k, v = qkv[:, :E], qkv[:, E:2 * E], qkv[:, 2 * E:]
    a = _mha_into(q, k, v, attn_ref, B=B, Sq=S, Sk=S, heads=heads, scale=scale)
    x1 = _add_layernorm(_mm(a, s_wo_ref[...]) + s_bo_ref[...], x,
                        ln1g_ref[...], ln1b_ref[...])
    # --- cross attention (q from decoder, fused KV projection of memory) ---
    q2 = _mm(x1, c_wq_ref[...]) + c_bq_ref[...]
    kv = _mm(mem, c_wkv_ref[...]) + c_bkv_ref[...]
    k2, v2 = kv[:, :E], kv[:, E:]
    c = _mha_into(q2, k2, v2, attn_ref, B=B, Sq=S, Sk=Sm, heads=heads,
                  scale=scale)                                   # scratch reused
    x2 = _add_layernorm(_mm(c, c_wo_ref[...]) + c_bo_ref[...], x1,
                        ln2g_ref[...], ln2b_ref[...])
    # --- FFN ---
    h = jnp.maximum(_mm(x2, w1_ref[...]) + b1_ref[...], 0.0)
    f = _mm(h, w2_ref[...]) + b2_ref[...]
    o_ref[...] = _add_layernorm(f, x2, ln3g_ref[...], ln3b_ref[...])


def _call_fused(kernel, out_shape, scratch_shapes, *args):
    """pallas_call with whole-array VMEM blocks (single fused grid step)."""
    in_specs = [pl.BlockSpec(a.shape, lambda i, n=a.ndim: (0,) * n) for a in args]
    out_specs = pl.BlockSpec(out_shape.shape,
                             lambda i, n=len(out_shape.shape): (0,) * n)
    return pl.pallas_call(
        kernel,
        grid=(1,),
        in_specs=in_specs,
        out_specs=out_specs,
        out_shape=out_shape,
        scratch_shapes=scratch_shapes,
        compiler_params=pltpu.CompilerParams(
            dimension_semantics=("arbitrary",)),
    )(*args)


def encoder_layer(x2d, p, *, B, S, heads):
    M, E = x2d.shape
    scale = 1.0 / math.sqrt(E // heads)
    kernel = functools.partial(_encoder_layer_kernel,
                               B=B, S=S, heads=heads, scale=scale)
    return _call_fused(
        kernel, jax.ShapeDtypeStruct((M, E), jnp.float32),
        [pltpu.VMEM((M, E), jnp.float32)],               # attention scratch
        x2d,
        p["wqkv"], p["bqkv"], p["wo"], p["bo"], p["ln1_g"], p["ln1_b"],
        p["w1"], p["b1"], p["w2"], p["b2"], p["ln2_g"], p["ln2_b"])


def decoder_layer(x2d, mem2d, p, *, B, S, heads):
    M, E = x2d.shape
    scale = 1.0 / math.sqrt(E // heads)
    kernel = functools.partial(_decoder_layer_kernel,
                               B=B, S=S, Sm=S, heads=heads, scale=scale)
    return _call_fused(
        kernel, jax.ShapeDtypeStruct((M, E), jnp.float32),
        [pltpu.VMEM((M, E), jnp.float32)],               # attention scratch
        x2d, mem2d,
        p["s_wqkv"], p["s_bqkv"], p["s_wo"], p["s_bo"], p["ln1_g"], p["ln1_b"],
        p["c_wq"], p["c_bq"], p["c_wkv"], p["c_bkv"], p["c_wo"], p["c_bo"],
        p["ln2_g"], p["ln2_b"],
        p["w1"], p["b1"], p["w2"], p["b2"], p["ln3_g"], p["ln3_b"])


# --------------------------------------------------------------------------
# Tiled logits projection (M/N-tiled, pipelined, both grid axes parallel)
# --------------------------------------------------------------------------
def _linear_kernel(x_ref, w_ref, b_ref, o_ref):
    o_ref[...] = jnp.dot(x_ref[...].astype(jnp.bfloat16), w_ref[...],
                         preferred_element_type=jnp.float32) + b_ref[...]


def linear_tiled(x, w_bf16, b, *, tm=256, tn=512):
    """x:(M,K) f32, w:(K,N) bf16, b:(1,N) f32 -> (M,N) f32."""
    M, K = x.shape
    _, N = w_bf16.shape
    tm = min(tm, M)            # tile caps keep VMEM bounded (v7x: 64 MiB)
    tn = min(tn, N)
    grid = (pl.cdiv(M, tm), pl.cdiv(N, tn))
    return pl.pallas_call(
        _linear_kernel,
        grid=grid,
        in_specs=[
            pl.BlockSpec((tm, K), lambda i, j: (i, 0)),
            pl.BlockSpec((K, tn), lambda i, j: (0, j)),
            pl.BlockSpec((1, tn), lambda i, j: (0, j)),
        ],
        out_specs=pl.BlockSpec((tm, tn), lambda i, j: (i, j)),
        out_shape=jax.ShapeDtypeStruct((M, N), jnp.float32),
        compiler_params=pltpu.CompilerParams(
            dimension_semantics=("parallel", "parallel")),
    )(x, w_bf16, b)


# --------------------------------------------------------------------------
# Forward pass (glue: embedding gather + layer stacking)
# --------------------------------------------------------------------------
def transformer_forward(params, input_ids, heads):
    S, B = input_ids.shape
    E = params["embedding"].shape[1]
    # (S, B) ids -> batch-major so per-batch rows are contiguous in (B*S, E).
    # TODO(synk): at real sizes, fuse this gather with the first layer via a
    # PrefetchScalarGridSpec kernel (token ids in SMEM) instead of XLA gather.
    x = jnp.take(params["embedding"], input_ids.T, axis=0)      # (B, S, E)
    x2d = x.reshape(B * S, E)

    enc = x2d
    for p in params["encoder_layers"]:
        enc = encoder_layer(enc, p, B=B, S=S, heads=heads)
    memory = enc     # second self.encoder(x) call is identical (eval determinism)

    dec = enc
    for p in params["decoder_layers"]:
        dec = decoder_layer(dec, memory, p, B=B, S=S, heads=heads)

    logits2d = linear_tiled(dec, params["w_out"], params["b_out"])   # (B*S, V)
    V = logits2d.shape[-1]
    logits = logits2d.reshape(B, S, V).transpose(1, 0, 2)            # (S, B, V)
    return {"loss": 0.0, "logits": logits}


# --------------------------------------------------------------------------
# Deterministic synthetic parameter init (shapes from the module __init__)
# Matmul weights stored in bf16 (MXU operands); biases / LN params in f32.
# --------------------------------------------------------------------------
def init_params(key, vocab_size, E, N, ff):
    kit = iter(jax.random.split(key, 512))

    def nrm(shape, std=0.02, dtype=jnp.bfloat16):
        return (std * jax.random.normal(next(kit), shape,
                                        dtype=jnp.float32)).astype(dtype)

    def zeros(shape):
        return jnp.zeros(shape, jnp.float32)

    def ones(shape):
        return jnp.ones(shape, jnp.float32)

    def enc_layer():
        return dict(
            wqkv=nrm((E, 3 * E)), bqkv=zeros((1, 3 * E)),
            wo=nrm((E, E)), bo=zeros((1, E)),
            ln1_g=ones((1, E)), ln1_b=zeros((1, E)),
            w1=nrm((E, ff)), b1=zeros((1, ff)),
            w2=nrm((ff, E)), b2=zeros((1, E)),
            ln2_g=ones((1, E)), ln2_b=zeros((1, E)))

    def dec_layer():
        return dict(
            s_wqkv=nrm((E, 3 * E)), s_bqkv=zeros((1, 3 * E)),
            s_wo=nrm((E, E)), s_bo=zeros((1, E)),
            ln1_g=ones((1, E)), ln1_b=zeros((1, E)),
            c_wq=nrm((E, E)), c_bq=zeros((1, E)),
            c_wkv=nrm((E, 2 * E)), c_bkv=zeros((1, 2 * E)),
            c_wo=nrm((E, E)), c_bo=zeros((1, E)),
            ln2_g=ones((1, E)), ln2_b=zeros((1, E)),
            w1=nrm((E, ff)), b1=zeros((1, ff)),
            w2=nrm((ff, E)), b2=zeros((1, E)),
            ln3_g=ones((1, E)), ln3_b=zeros((1, E)))

    return dict(
        embedding=nrm((vocab_size, E), std=1.0, dtype=jnp.float32),
        encoder_layers=[enc_layer() for _ in range(N)],
        decoder_layers=[dec_layer() for _ in range(N)],
        w_out=nrm((E, vocab_size), std=0.01),   # init_weights: Linear std=0.01
        b_out=zeros((1, vocab_size)),
    )


# --------------------------------------------------------------------------
if __name__ == "__main__":
    vocab_size, embedding_dim, heads, N = 64, 32, 4, 4
    S, B = 8, 2

    key = jax.random.PRNGKey(0)
    pkey, dkey = jax.random.split(key)
    params = init_params(pkey, vocab_size, embedding_dim, N, FF_DIM)
    input_ids = jax.random.randint(dkey, (S, B), 0, vocab_size, dtype=jnp.int32)

    fwd = jax.jit(functools.partial(transformer_forward, heads=heads))
    out = fwd(params, input_ids)
    logits = jax.block_until_ready(out["logits"])

    assert logits.shape == (S, B, vocab_size), logits.shape
    assert bool(jnp.all(jnp.isfinite(logits)))
    print("KERNEL_OK")
</pallas_src>

<mosaic_0001>
module attributes {stable_mosaic.version = 11 : i64} {
  func.func @_encoder_layer_kernel(%arg0: i32, %arg1: memref<16x32xf32, #tpu.memory_space<vmem>>, %arg2: memref<32x96xbf16, #tpu.memory_space<vmem>>, %arg3: memref<1x96xf32, #tpu.memory_space<vmem>>, %arg4: memref<32x32xbf16, #tpu.memory_space<vmem>>, %arg5: memref<1x32xf32, #tpu.memory_space<vmem>>, %arg6: memref<1x32xf32, #tpu.memory_space<vmem>>, %arg7: memref<1x32xf32, #tpu.memory_space<vmem>>, %arg8: memref<32x2048xbf16, #tpu.memory_space<vmem>>, %arg9: memref<1x2048xf32, #tpu.memory_space<vmem>>, %arg10: memref<2048x32xbf16, #tpu.memory_space<vmem>>, %arg11: memref<1x32xf32, #tpu.memory_space<vmem>>, %arg12: memref<1x32xf32, #tpu.memory_space<vmem>>, %arg13: memref<1x32xf32, #tpu.memory_space<vmem>>, %arg14: memref<16x32xf32, #tpu.memory_space<vmem>>, %arg15: memref<16x32xf32, #tpu.memory_space<vmem>>) attributes {dimension_semantics = [#tpu.dimension_semantics<arbitrary>], iteration_bounds = array<i64: 1>, scalar_prefetch = 0 : i64, scratch_operands = 1 : i64, tpu.core_type = #tpu.core_type<tc>, window_params = [{pipeline_mode = #tpu.pipeline_mode<synchronous>, transform_indices = @transform_0, window_bounds = array<i64: 16, 32>}, {pipeline_mode = #tpu.pipeline_mode<synchronous>, transform_indices = @transform_1, window_bounds = array<i64: 32, 96>}, {pipeline_mode = #tpu.pipeline_mode<synchronous>, transform_indices = @transform_2, window_bounds = array<i64: 1, 96>}, {pipeline_mode = #tpu.pipeline_mode<synchronous>, transform_indices = @transform_3, window_bounds = array<i64: 32, 32>}, {pipeline_mode = #tpu.pipeline_mode<synchronous>, transform_indices = @transform_4, window_bounds = array<i64: 1, 32>}, {pipeline_mode = #tpu.pipeline_mode<synchronous>, transform_indices = @transform_5, window_bounds = array<i64: 1, 32>}, {pipeline_mode = #tpu.pipeline_mode<synchronous>, transform_indices = @transform_6, window_bounds = array<i64: 1, 32>}, {pipeline_mode = #tpu.pipeline_mode<synchronous>, transform_indices = @transform_7, window_bounds = array<i64: 32, 2048>}, {pipeline_mode = #tpu.pipeline_mode<synchronous>, transform_indices = @transform_8, window_bounds = array<i64: 1, 2048>}, {pipeline_mode = #tpu.pipeline_mode<synchronous>, transform_indices = @transform_9, window_bounds = array<i64: 2048, 32>}, {pipeline_mode = #tpu.pipeline_mode<synchronous>, transform_indices = @transform_10, window_bounds = array<i64: 1, 32>}, {pipeline_mode = #tpu.pipeline_mode<synchronous>, transform_indices = @transform_11, window_bounds = array<i64: 1, 32>}, {pipeline_mode = #tpu.pipeline_mode<synchronous>, transform_indices = @transform_12, window_bounds = array<i64: 1, 32>}, {pipeline_mode = #tpu.pipeline_mode<synchronous>, transform_indices = @transform_13, window_bounds = array<i64: 16, 32>}]} {
    %c0 = arith.constant 0 : index
    %c0_0 = arith.constant 0 : index
    %0 = vector.load %arg1[%c0, %c0_0] : memref<16x32xf32, #tpu.memory_space<vmem>>, vector<16x32xf32>
    %c0_1 = arith.constant 0 : index
    %c0_2 = arith.constant 0 : index
    %1 = vector.load %arg2[%c0_1, %c0_2] : memref<32x96xbf16, #tpu.memory_space<vmem>>, vector<32x96xbf16>
    %2 = arith.truncf %0 : vector<16x32xf32> to vector<16x32xbf16>
    %cst = arith.constant dense<0.000000e+00> : vector<16x96xf32>
    %3 = tpu.matmul %2, %1, %cst {dimension_numbers = #tpu.dot_dimension_numbers<[1], [0], [0], [1], [0, 0, 1, 1], [], []>} : vector<16x32xbf16>, vector<32x96xbf16>, vector<16x96xf32> -> vector<16x96xf32>
    %c0_3 = arith.constant 0 : index
    %c0_4 = arith.constant 0 : index
    %4 = vector.load %arg3[%c0_3, %c0_4] : memref<1x96xf32, #tpu.memory_space<vmem>>, vector<1x96xf32>
    %5 = vector.broadcast %4 : vector<1x96xf32> to vector<16x96xf32>
    %6 = arith.addf %3, %5 : vector<16x96xf32>
    %7 = vector.extract_strided_slice %6 {offsets = [0, 0], sizes = [16, 32], strides = [1, 1]} : vector<16x96xf32> to vector<16x32xf32>
    %8 = vector.extract_strided_slice %6 {offsets = [0, 32], sizes = [16, 32], strides = [1, 1]} : vector<16x96xf32> to vector<16x32xf32>
    %9 = vector.extract_strided_slice %6 {offsets = [0, 64], sizes = [16, 32], strides = [1, 1]} : vector<16x96xf32> to vector<16x32xf32>
    %10 = vector.extract_strided_slice %7 {offsets = [0, 0], sizes = [8, 32], strides = [1, 1]} : vector<16x32xf32> to vector<8x32xf32>
    %11 = vector.extract_strided_slice %8 {offsets = [0, 0], sizes = [8, 32], strides = [1, 1]} : vector<16x32xf32> to vector<8x32xf32>
    %12 = vector.extract_strided_slice %9 {offsets = [0, 0], sizes = [8, 32], strides = [1, 1]} : vector<16x32xf32> to vector<8x32xf32>
    %13 = vector.extract_strided_slice %10 {offsets = [0, 0], sizes = [8, 8], strides = [1, 1]} : vector<8x32xf32> to vector<8x8xf32>
    %14 = vector.extract_strided_slice %11 {offsets = [0, 0], sizes = [8, 8], strides = [1, 1]} : vector<8x32xf32> to vector<8x8xf32>
    %15 = vector.extract_strided_slice %12 {offsets = [0, 0], sizes = [8, 8], strides = [1, 1]} : vector<8x32xf32> to vector<8x8xf32>
    %cst_5 = arith.constant dense<0.000000e+00> : vector<8x8xf32>
    %16 = tpu.matmul %13, %14, %cst_5 {dimension_numbers = #tpu.dot_dimension_numbers<[1], [1], [0], [0], [0, 0, 1, 0], [], []>} : vector<8x8xf32>, vector<8x8xf32>, vector<8x8xf32> -> vector<8x8xf32>
    %cst_6 = arith.constant 0.353553385 : f32
    %17 = vector.broadcast %cst_6 : f32 to vector<8x8xf32>
    %18 = arith.mulf %16, %17 : vector<8x8xf32>
    %cst_7 = arith.constant dense<0xFF800000> : vector<8xf32>
    %19 = vector.multi_reduction <maximumf>, %18, %cst_7 [1] : vector<8x8xf32> to vector<8xf32>
    %20 = vector.shape_cast %19 : vector<8xf32> to vector<8x1xf32>
    %21 = vector.broadcast %20 : vector<8x1xf32> to vector<8x8xf32>
    %22 = arith.subf %18, %21 : vector<8x8xf32>
    %23 = math.exp %22 : vector<8x8xf32>
    %cst_8 = arith.constant dense<0.000000e+00> : vector<8xf32>
    %24 = vector.multi_reduction <add>, %23, %cst_8 [1] : vector<8x8xf32> to vector<8xf32>
    %25 = vector.shape_cast %24 : vector<8xf32> to vector<8x1xf32>
    %26 = tpu.reciprocal %25 {approx = true} : vector<8x1xf32> -> vector<8x1xf32>
    %27 = vector.broadcast %26 : vector<8x1xf32> to vector<8x8xf32>
    %28 = arith.mulf %23, %27 : vector<8x8xf32>
    %cst_9 = arith.constant dense<0.000000e+00> : vector<8x8xf32>
    %29 = tpu.matmul %28, %15, %cst_9 {dimension_numbers = #tpu.dot_dimension_numbers<[1], [0], [0], [1], [0, 0, 1, 1], [], []>} : vector<8x8xf32>, vector<8x8xf32>, vector<8x8xf32> -> vector<8x8xf32>
    %c0_10 = arith.constant 0 : index
    %c0_11 = arith.constant 0 : index
    %30 = vector.load %arg15[%c0_10, %c0_11] : memref<16x32xf32, #tpu.memory_space<vmem>>, vector<8x8xf32>
    tpu.vector_store %arg15[%c0_10, %c0_11], %29 {strides = array<i32>} : memref<16x32xf32, #tpu.memory_space<vmem>>, vector<8x8xf32>,
    %31 = vector.extract_strided_slice %10 {offsets = [0, 8], sizes = [8, 8], strides = [1, 1]} : vector<8x32xf32> to vector<8x8xf32>
    %32 = vector.extract_strided_slice %11 {offsets = [0, 8], sizes = [8, 8], strides = [1, 1]} : vector<8x32xf32> to vector<8x8xf32>
    %33 = vector.extract_strided_slice %12 {offsets = [0, 8], sizes = [8, 8], strides = [1, 1]} : vector<8x32xf32> to vector<8x8xf32>
    %cst_12 = arith.constant dense<0.000000e+00> : vector<8x8xf32>
    %34 = tpu.matmul %31, %32, %cst_12 {dimension_numbers = #tpu.dot_dimension_numbers<[1], [1], [0], [0], [0, 0, 1, 0], [], []>} : vector<8x8xf32>, vector<8x8xf32>, vector<8x8xf32> -> vector<8x8xf32>
    %cst_13 = arith.constant 0.353553385 : f32
    %35 = vector.broadcast %cst_13 : f32 to vector<8x8xf32>
    %36 = arith.mulf %34, %35 : vector<8x8xf32>
    %cst_14 = arith.constant dense<0xFF800000> : vector<8xf32>
    %37 = vector.multi_reduction <maximumf>, %36, %cst_14 [1] : vector<8x8xf32> to vector<8xf32>
    %38 = vector.shape_cast %37 : vector<8xf32> to vector<8x1xf32>
    %39 = vector.broadcast %38 : vector<8x1xf32> to vector<8x8xf32>
    %40 = arith.subf %36, %39 : vector<8x8xf32>
    %41 = math.exp %40 : vector<8x8xf32>
    %cst_15 = arith.constant dense<0.000000e+00> : vector<8xf32>
    %42 = vector.multi_reduction <add>, %41, %cst_15 [1] : vector<8x8xf32> to vector<8xf32>
    %43 = vector.shape_cast %42 : vector<8xf32> to vector<8x1xf32>
    %44 = tpu.reciprocal %43 {approx = true} : vector<8x1xf32> -> vector<8x1xf32>
    %45 = vector.broadcast %44 : vector<8x1xf32> to vector<8x8xf32>
    %46 = arith.mulf %41, %45 : vector<8x8xf32>
    %cst_16 = arith.constant dense<0.000000e+00> : vector<8x8xf32>
    %47 = tpu.matmul %46, %33, %cst_16 {dimension_numbers = #tpu.dot_dimension_numbers<[1], [0], [0], [1], [0, 0, 1, 1], [], []>} : vector<8x8xf32>, vector<8x8xf32>, vector<8x8xf32> -> vector<8x8xf32>
    %c0_17 = arith.constant 0 : index
    %c8 = arith.constant 8 : index
    %48 = vector.load %arg15[%c0_17, %c8] : memref<16x32xf32, #tpu.memory_space<vmem>>, vector<8x8xf32>
    tpu.vector_store %arg15[%c0_17, %c8], %47 {strides = array<i32>} : memref<16x32xf32, #tpu.memory_space<vmem>>, vector<8x8xf32>,
    %49 = vector.extract_strided_slice %10 {offsets = [0, 16], sizes = [8, 8], strides = [1, 1]} : vector<8x32xf32> to vector<8x8xf32>
    %50 = vector.extract_strided_slice %11 {offsets = [0, 16], sizes = [8, 8], strides = [1, 1]} : vector<8x32xf32> to vector<8x8xf32>
    %51 = vector.extract_strided_slice %12 {offsets = [0, 16], sizes = [8, 8], strides = [1, 1]} : vector<8x32xf32> to vector<8x8xf32>
    %cst_18 = arith.constant dense<0.000000e+00> : vector<8x8xf32>
    %52 = tpu.matmul %49, %50, %cst_18 {dimension_numbers = #tpu.dot_dimension_numbers<[1], [1], [0], [0], [0, 0, 1, 0], [], []>} : vector<8x8xf32>, vector<8x8xf32>, vector<8x8xf32> -> vector<8x8xf32>
    %cst_19 = arith.constant 0.353553385 : f32
    %53 = vector.broadcast %cst_19 : f32 to vector<8x8xf32>
    %54 = arith.mulf %52, %53 : vector<8x8xf32>
    %cst_20 = arith.constant dense<0xFF800000> : vector<8xf32>
    %55 = vector.multi_reduction <maximumf>, %54, %cst_20 [1] : vector<8x8xf32> to vector<8xf32>
    %56 = vector.shape_cast %55 : vector<8xf32> to vector<8x1xf32>
    %57 = vector.broadcast %56 : vector<8x1xf32> to vector<8x8xf32>
    %58 = arith.subf %54, %57 : vector<8x8xf32>
    %59 = math.exp %58 : vector<8x8xf32>
    %cst_21 = arith.constant dense<0.000000e+00> : vector<8xf32>
    %60 = vector.multi_reduction <add>, %59, %cst_21 [1] : vector<8x8xf32> to vector<8xf32>
    %61 = vector.shape_cast %60 : vector<8xf32> to vector<8x1xf32>
    %62 = tpu.reciprocal %61 {approx = true} : vector<8x1xf32> -> vector<8x1xf32>
    %63 = vector.broadcast %62 : vector<8x1xf32> to vector<8x8xf32>
    %64 = arith.mulf %59, %63 : vector<8x8xf32>
    %cst_22 = arith.constant dense<0.000000e+00> : vector<8x8xf32>
    %65 = tpu.matmul %64, %51, %cst_22 {dimension_numbers = #tpu.dot_dimension_numbers<[1], [0], [0], [1], [0, 0, 1, 1], [], []>} : vector<8x8xf32>, vector<8x8xf32>, vector<8x8xf32> -> vector<8x8xf32>
    %c0_23 = arith.constant 0 : index
    %c16 = arith.constant 16 : index
    %66 = vector.load %arg15[%c0_23, %c16] : memref<16x32xf32, #tpu.memory_space<vmem>>, vector<8x8xf32>
    tpu.vector_store %arg15[%c0_23, %c16], %65 {strides = array<i32>} : memref<16x32xf32, #tpu.memory_space<vmem>>, vector<8x8xf32>,
    %67 = vector.extract_strided_slice %10 {offsets = [0, 24], sizes = [8, 8], strides = [1, 1]} : vector<8x32xf32> to vector<8x8xf32>
    %68 = vector.extract_strided_slice %11 {offsets = [0, 24], sizes = [8, 8], strides = [1, 1]} : vector<8x32xf32> to vector<8x8xf32>
    %69 = vector.extract_strided_slice %12 {offsets = [0, 24], sizes = [8, 8], strides = [1, 1]} : vector<8x32xf32> to vector<8x8xf32>
    %cst_24 = arith.constant dense<0.000000e+00> : vector<8x8xf32>
    %70 = tpu.matmul %67, %68, %cst_24 {dimension_numbers = #tpu.dot_dimension_numbers<[1], [1], [0], [0], [0, 0, 1, 0], [], []>} : vector<8x8xf32>, vector<8x8xf32>, vector<8x8xf32> -> vector<8x8xf32>
    %cst_25 = arith.constant 0.353553385 : f32
    %71 = vector.broadcast %cst_25 : f32 to vector<8x8xf32>
    %72 = arith.mulf %70, %71 : vector<8x8xf32>
    %cst_26 = arith.constant dense<0xFF800000> : vector<8xf32>
    %73 = vector.multi_reduction <maximumf>, %72, %cst_26 [1] : vector<8x8xf32> to vector<8xf32>
    %74 = vector.shape_cast %73 : vector<8xf32> to vector<8x1xf32>
    %75 = vector.broadcast %74 : vector<8x1xf32> to vector<8x8xf32>
    %76 = arith.subf %72, %75 : vector<8x8xf32>
    %77 = math.exp %76 : vector<8x8xf32>
    %cst_27 = arith.constant dense<0.000000e+00> : vector<8xf32>
    %78 = vector.multi_reduction <add>, %77, %cst_27 [1] : vector<8x8xf32> to vector<8xf32>
    %79 = vector.shape_cast %78 : vector<8xf32> to vector<8x1xf32>
    %80 = tpu.reciprocal %79 {approx = true} : vector<8x1xf32> -> vector<8x1xf32>
    %81 = vector.broadcast %80 : vector<8x1xf32> to vector<8x8xf32>
    %82 = arith.mulf %77, %81 : vector<8x8xf32>
    %cst_28 = arith.constant dense<0.000000e+00> : vector<8x8xf32>
    %83 = tpu.matmul %82, %69, %cst_28 {dimension_numbers = #tpu.dot_dimension_numbers<[1], [0], [0], [1], [0, 0, 1, 1], [], []>} : vector<8x8xf32>, vector<8x8xf32>, vector<8x8xf32> -> vector<8x8xf32>
    %c0_29 = arith.constant 0 : index
    %c24 = arith.constant 24 : index
    %84 = vector.load %arg15[%c0_29, %c24] : memref<16x32xf32, #tpu.memory_space<vmem>>, vector<8x8xf32>
    tpu.vector_store %arg15[%c0_29, %c24], %83 {strides = array<i32>} : memref<16x32xf32, #tpu.memory_space<vmem>>, vector<8x8xf32>,
    %85 = vector.extract_strided_slice %7 {offsets = [8, 0], sizes = [8, 32], strides = [1, 1]} : vector<16x32xf32> to vector<8x32xf32>
    %86 = vector.extract_strided_slice %8 {offsets = [8, 0], sizes = [8, 32], strides = [1, 1]} : vector<16x32xf32> to vector<8x32xf32>
    %87 = vector.extract_strided_slice %9 {offsets = [8, 0], sizes = [8, 32], strides = [1, 1]} : vector<16x32xf32> to vector<8x32xf32>
    %88 = vector.extract_strided_slice %85 {offsets = [0, 0], sizes = [8, 8], strides = [1, 1]} : vector<8x32xf32> to vector<8x8xf32>
    %89 = vector.extract_strided_slice %86 {offsets = [0, 0], sizes = [8, 8], strides = [1, 1]} : vector<8x32xf32> to vector<8x8xf32>
    %90 = vector.extract_strided_slice %87 {offsets = [0, 0], sizes = [8, 8], strides = [1, 1]} : vector<8x32xf32> to vector<8x8xf32>
    %cst_30 = arith.constant dense<0.000000e+00> : vector<8x8xf32>
    %91 = tpu.matmul %88, %89, %cst_30 {dimension_numbers = #tpu.dot_dimension_numbers<[1], [1], [0], [0], [0, 0, 1, 0], [], []>} : vector<8x8xf32>, vector<8x8xf32>, vector<8x8xf32> -> vector<8x8xf32>
    %cst_31 = arith.constant 0.353553385 : f32
    %92 = vector.broadcast %cst_31 : f32 to vector<8x8xf32>
    %93 = arith.mulf %91, %92 : vector<8x8xf32>
    %cst_32 = arith.constant dense<0xFF800000> : vector<8xf32>
    %94 = vector.multi_reduction <maximumf>, %93, %cst_32 [1] : vector<8x8xf32> to vector<8xf32>
    %95 = vector.shape_cast %94 : vector<8xf32> to vector<8x1xf32>
    %96 = vector.broadcast %95 : vector<8x1xf32> to vector<8x8xf32>
    %97 = arith.subf %93, %96 : vector<8x8xf32>
    %98 = math.exp %97 : vector<8x8xf32>
    %cst_33 = arith.constant dense<0.000000e+00> : vector<8xf32>
    %99 = vector.multi_reduction <add>, %98, %cst_33 [1] : vector<8x8xf32> to vector<8xf32>
    %100 = vector.shape_cast %99 : vector<8xf32> to vector<8x1xf32>
    %101 = tpu.reciprocal %100 {approx = true} : vector<8x1xf32> -> vector<8x1xf32>
    %102 = vector.broadcast %101 : vector<8x1xf32> to vector<8x8xf32>
    %103 = arith.mulf %98, %102 : vector<8x8xf32>
    %cst_34 = arith.constant dense<0.000000e+00> : vector<8x8xf32>
    %104 = tpu.matmul %103, %90, %cst_34 {dimension_numbers = #tpu.dot_dimension_numbers<[1], [0], [0], [1], [0, 0, 1, 1], [], []>} : vector<8x8xf32>, vector<8x8xf32>, vector<8x8xf32> -> vector<8x8xf32>
    %c8_35 = arith.constant 8 : index
    %c0_36 = arith.constant 0 : index
    %105 = vector.load %arg15[%c8_35, %c0_36] : memref<16x32xf32, #tpu.memory_space<vmem>>, vector<8x8xf32>
    tpu.vector_store %arg15[%c8_35, %c0_36], %104 {strides = array<i32>} : memref<16x32xf32, #tpu.memory_space<vmem>>, vector<8x8xf32>,
    %106 = vector.extract_strided_slice %85 {offsets = [0, 8], sizes = [8, 8], strides = [1, 1]} : vector<8x32xf32> to vector<8x8xf32>
    %107 = vector.extract_strided_slice %86 {offsets = [0, 8], sizes = [8, 8], strides = [1, 1]} : vector<8x32xf32> to vector<8x8xf32>
    %108 = vector.extract_strided_slice %87 {offsets = [0, 8], sizes = [8, 8], strides = [1, 1]} : vector<8x32xf32> to vector<8x8xf32>
    %cst_37 = arith.constant dense<0.000000e+00> : vector<8x8xf32>
    %109 = tpu.matmul %106, %107, %cst_37 {dimension_numbers = #tpu.dot_dimension_numbers<[1], [1], [0], [0], [0, 0, 1, 0], [], []>} : vector<8x8xf32>, vector<8x8xf32>, vector<8x8xf32> -> vector<8x8xf32>
    %cst_38 = arith.constant 0.353553385 : f32
    %110 = vector.broadcast %cst_38 : f32 to vector<8x8xf32>
    %111 = arith.mulf %109, %110 : vector<8x8xf32>
    %cst_39 = arith.constant dense<0xFF800000> : vector<8xf32>
    %112 = vector.multi_reduction <maximumf>, %111, %cst_39 [1] : vector<8x8xf32> to vector<8xf32>
    %113 = vector.shape_cast %112 : vector<8xf32> to vector<8x1xf32>
    %114 = vector.broadcast %113 : vector<8x1xf32> to vector<8x8xf32>
    %115 = arith.subf %111, %114 : vector<8x8xf32>
    %116 = math.exp %115 : vector<8x8xf32>
    %cst_40 = arith.constant dense<0.000000e+00> : vector<8xf32>
    %117 = vector.multi_reduction <add>, %116, %cst_40 [1] : vector<8x8xf32> to vector<8xf32>
    %118 = vector.shape_cast %117 : vector<8xf32> to vector<8x1xf32>
    %119 = tpu.reciprocal %118 {approx = true} : vector<8x1xf32> -> vector<8x1xf32>
    %120 = vector.broadcast %119 : vector<8x1xf32> to vector<8x8xf32>
    %121 = arith.mulf %116, %120 : vector<8x8xf32>
    %cst_41 = arith.constant dense<0.000000e+00> : vector<8x8xf32>
    %122 = tpu.matmul %121, %108, %cst_41 {dimension_numbers = #tpu.dot_dimension_numbers<[1], [0], [0], [1], [0, 0, 1, 1], [], []>} : vector<8x8xf32>, vector<8x8xf32>, vector<8x8xf32> -> vector<8x8xf32>
    %c8_42 = arith.constant 8 : index
    %c8_43 = arith.constant 8 : index
    %123 = vector.load %arg15[%c8_42, %c8_43] : memref<16x32xf32, #tpu.memory_space<vmem>>, vector<8x8xf32>
    tpu.vector_store %arg15[%c8_42, %c8_43], %122 {strides = array<i32>} : memref<16x32xf32, #tpu.memory_space<vmem>>, vector<8x8xf32>,
    %124 = vector.extract_strided_slice %85 {offsets = [0, 16], sizes = [8, 8], strides = [1, 1]} : vector<8x32xf32> to vector<8x8xf32>
    %125 = vector.extract_strided_slice %86 {offsets = [0, 16], sizes = [8, 8], strides = [1, 1]} : vector<8x32xf32> to vector<8x8xf32>
    %126 = vector.extract_strided_slice %87 {offsets = [0, 16], sizes = [8, 8], strides = [1, 1]} : vector<8x32xf32> to vector<8x8xf32>
    %cst_44 = arith.constant dense<0.000000e+00> : vector<8x8xf32>
    %127 = tpu.matmul %124, %125, %cst_44 {dimension_numbers = #tpu.dot_dimension_numbers<[1], [1], [0], [0], [0, 0, 1, 0], [], []>} : vector<8x8xf32>, vector<8x8xf32>, vector<8x8xf32> -> vector<8x8xf32>
    %cst_45 = arith.constant 0.353553385 : f32
    %128 = vector.broadcast %cst_45 : f32 to vector<8x8xf32>
    %129 = arith.mulf %127, %128 : vector<8x8xf32>
    %cst_46 = arith.constant dense<0xFF800000> : vector<8xf32>
    %130 = vector.multi_reduction <maximumf>, %129, %cst_46 [1] : vector<8x8xf32> to vector<8xf32>
    %131 = vector.shape_cast %130 : vector<8xf32> to vector<8x1xf32>
    %132 = vector.broadcast %131 : vector<8x1xf32> to vector<8x8xf32>
    %133 = arith.subf %129, %132 : vector<8x8xf32>
    %134 = math.exp %133 : vector<8x8xf32>
    %cst_47 = arith.constant dense<0.000000e+00> : vector<8xf32>
    %135 = vector.multi_reduction <add>, %134, %cst_47 [1] : vector<8x8xf32> to vector<8xf32>
    %136 = vector.shape_cast %135 : vector<8xf32> to vector<8x1xf32>
    %137 = tpu.reciprocal %136 {approx = true} : vector<8x1xf32> -> vector<8x1xf32>
    %138 = vector.broadcast %137 : vector<8x1xf32> to vector<8x8xf32>
    %139 = arith.mulf %134, %138 : vector<8x8xf32>
    %cst_48 = arith.constant dense<0.000000e+00> : vector<8x8xf32>
    %140 = tpu.matmul %139, %126, %cst_48 {dimension_numbers = #tpu.dot_dimension_numbers<[1], [0], [0], [1], [0, 0, 1, 1], [], []>} : vector<8x8xf32>, vector<8x8xf32>, vector<8x8xf32> -> vector<8x8xf32>
    %c8_49 = arith.constant 8 : index
    %c16_50 = arith.constant 16 : index
    %141 = vector.load %arg15[%c8_49, %c16_50] : memref<16x32xf32, #tpu.memory_space<vmem>>, vector<8x8xf32>
    tpu.vector_store %arg15[%c8_49, %c16_50], %140 {strides = array<i32>} : memref<16x32xf32, #tpu.memory_space<vmem>>, vector<8x8xf32>,
    %142 = vector.extract_strided_slice %85 {offsets = [0, 24], sizes = [8, 8], strides = [1, 1]} : vector<8x32xf32> to vector<8x8xf32>
    %143 = vector.extract_strided_slice %86 {offsets = [0, 24], sizes = [8, 8], strides = [1, 1]} : vector<8x32xf32> to vector<8x8xf32>
    %144 = vector.extract_strided_slice %87 {offsets = [0, 24], sizes = [8, 8], strides = [1, 1]} : vector<8x32xf32> to vector<8x8xf32>
    %cst_51 = arith.constant dense<0.000000e+00> : vector<8x8xf32>
    %145 = tpu.matmul %142, %143, %cst_51 {dimension_numbers = #tpu.dot_dimension_numbers<[1], [1], [0], [0], [0, 0, 1, 0], [], []>} : vector<8x8xf32>, vector<8x8xf32>, vector<8x8xf32> -> vector<8x8xf32>
    %cst_52 = arith.constant 0.353553385 : f32
    %146 = vector.broadcast %cst_52 : f32 to vector<8x8xf32>
    %147 = arith.mulf %145, %146 : vector<8x8xf32>
    %cst_53 = arith.constant dense<0xFF800000> : vector<8xf32>
    %148 = vector.multi_reduction <maximumf>, %147, %cst_53 [1] : vector<8x8xf32> to vector<8xf32>
    %149 = vector.shape_cast %148 : vector<8xf32> to vector<8x1xf32>
    %150 = vector.broadcast %149 : vector<8x1xf32> to vector<8x8xf32>
    %151 = arith.subf %147, %150 : vector<8x8xf32>
    %152 = math.exp %151 : vector<8x8xf32>
    %cst_54 = arith.constant dense<0.000000e+00> : vector<8xf32>
    %153 = vector.multi_reduction <add>, %152, %cst_54 [1] : vector<8x8xf32> to vector<8xf32>
    %154 = vector.shape_cast %153 : vector<8xf32> to vector<8x1xf32>
    %155 = tpu.reciprocal %154 {approx = true} : vector<8x1xf32> -> vector<8x1xf32>
    %156 = vector.broadcast %155 : vector<8x1xf32> to vector<8x8xf32>
    %157 = arith.mulf %152, %156 : vector<8x8xf32>
    %cst_55 = arith.constant dense<0.000000e+00> : vector<8x8xf32>
    %158 = tpu.matmul %157, %144, %cst_55 {dimension_numbers = #tpu.dot_dimension_numbers<[1], [0], [0], [1], [0, 0, 1, 1], [], []>} : vector<8x8xf32>, vector<8x8xf32>, vector<8x8xf32> -> vector<8x8xf32>
    %c8_56 = arith.constant 8 : index
    %c24_57 = arith.constant 24 : index
    %159 = vector.load %arg15[%c8_56, %c24_57] : memref<16x32xf32, #tpu.memory_space<vmem>>, vector<8x8xf32>
    tpu.vector_store %arg15[%c8_56, %c24_57], %158 {strides = array<i32>} : memref<16x32xf32, #tpu.memory_space<vmem>>, vector<8x8xf32>,
    %c0_58 = arith.constant 0 : index
    %c0_59 = arith.constant 0 : index
    %160 = vector.load %arg15[%c0_58, %c0_59] : memref<16x32xf32, #tpu.memory_space<vmem>>, vector<16x32xf32>
    %c0_60 = arith.constant 0 : index
    %c0_61 = arith.constant 0 : index
    %161 = vector.load %arg4[%c0_60, %c0_61] : memref<32x32xbf16, #tpu.memory_space<vmem>>, vector<32x32xbf16>
    %162 = arith.truncf %160 : vector<16x32xf32> to vector<16x32xbf16>
    %cst_62 = arith.constant dense<0.000000e+00> : vector<16x32xf32>
    %163 = tpu.matmul %162, %161, %cst_62 {dimension_numbers = #tpu.dot_dimension_numbers<[1], [0], [0], [1], [0, 0, 1, 1], [], []>} : vector<16x32xbf16>, vector<32x32xbf16>, vector<16x32xf32> -> vector<16x32xf32>
    %c0_63 = arith.constant 0 : index
    %c0_64 = arith.constant 0 : index
    %164 = vector.load %arg5[%c0_63, %c0_64] : memref<1x32xf32, #tpu.memory_space<vmem>>, vector<1x32xf32>
    %165 = vector.broadcast %164 : vector<1x32xf32> to vector<16x32xf32>
    %166 = arith.addf %163, %165 : vector<16x32xf32>
    %c0_65 = arith.constant 0 : index
    %c0_66 = arith.constant 0 : index
    %167 = vector.load %arg6[%c0_65, %c0_66] : memref<1x32xf32, #tpu.memory_space<vmem>>, vector<1x32xf32>
    %c0_67 = arith.constant 0 : index
    %c0_68 = arith.constant 0 : index
    %168 = vector.load %arg7[%c0_67, %c0_68] : memref<1x32xf32, #tpu.memory_space<vmem>>, vector<1x32xf32>
    %169 = arith.addf %166, %0 : vector<16x32xf32>
    %cst_69 = arith.constant dense<0.000000e+00> : vector<16xf32>
    %170 = vector.multi_reduction <add>, %169, %cst_69 [1] : vector<16x32xf32> to vector<16xf32>
    %171 = vector.shape_cast %170 : vector<16xf32> to vector<16x1xf32>
    %cst_70 = arith.constant 3.200000e+01 : f32
    %172 = vector.broadcast %cst_70 : f32 to vector<16x1xf32>
    %173 = arith.divf %171, %172 : vector<16x1xf32>
    %174 = vector.broadcast %173 : vector<16x1xf32> to vector<16x32xf32>
    %175 = arith.subf %169, %174 : vector<16x32xf32>
    %176 = arith.mulf %175, %175 : vector<16x32xf32>
    %cst_71 = arith.constant dense<0.000000e+00> : vector<16xf32>
    %177 = vector.multi_reduction <add>, %176, %cst_71 [1] : vector<16x32xf32> to vector<16xf32>
    %178 = vector.shape_cast %177 : vector<16xf32> to vector<16x1xf32>
    %cst_72 = arith.constant 3.200000e+01 : f32
    %179 = vector.broadcast %cst_72 : f32 to vector<16x1xf32>
    %180 = arith.divf %178, %179 : vector<16x1xf32>
    %cst_73 = arith.constant 9.99999974E-6 : f32
    %181 = vector.broadcast %cst_73 : f32 to vector<16x1xf32>
    %182 = arith.addf %180, %181 : vector<16x1xf32>
    %183 = math.rsqrt %182 : vector<16x1xf32>
    %184 = vector.broadcast %183 : vector<16x1xf32> to vector<16x32xf32>
    %185 = arith.mulf %175, %184 : vector<16x32xf32>
    %186 = vector.broadcast %167 : vector<1x32xf32> to vector<16x32xf32>
    %187 = arith.mulf %185, %186 : vector<16x32xf32>
    %188 = vector.broadcast %168 : vector<1x32xf32> to vector<16x32xf32>
    %189 = arith.addf %187, %188 : vector<16x32xf32>
    %c0_74 = arith.constant 0 : index
    %c0_75 = arith.constant 0 : index
    %190 = vector.load %arg8[%c0_74, %c0_75] : memref<32x2048xbf16, #tpu.memory_space<vmem>>, vector<32x2048xbf16>
    %191 = arith.truncf %189 : vector<16x32xf32> to vector<16x32xbf16>
    %cst_76 = arith.constant dense<0.000000e+00> : vector<16x2048xf32>
    %192 = tpu.matmul %191, %190, %cst_76 {dimension_numbers = #tpu.dot_dimension_numbers<[1], [0], [0], [1], [0, 0, 1, 1], [], []>} : vector<16x32xbf16>, vector<32x2048xbf16>, vector<16x2048xf32> -> vector<16x2048xf32>
    %c0_77 = arith.constant 0 : index
    %c0_78 = arith.constant 0 : index
    %193 = vector.load %arg9[%c0_77, %c0_78] : memref<1x2048xf32, #tpu.memory_space<vmem>>, vector<1x2048xf32>
    %194 = vector.broadcast %193 : vector<1x2048xf32> to vector<16x2048xf32>
    %195 = arith.addf %192, %194 : vector<16x2048xf32>
    %cst_79 = arith.constant 0.000000e+00 : f32
    %196 = vector.broadcast %cst_79 : f32 to vector<16x2048xf32>
    %197 = arith.maximumf %195, %196 : vector<16x2048xf32>
    %c0_80 = arith.constant 0 : index
    %c0_81 = arith.constant 0 : index
    %198 = vector.load %arg10[%c0_80, %c0_81] : memref<2048x32xbf16, #tpu.memory_space<vmem>>, vector<2048x32xbf16>
    %199 = arith.truncf %197 : vector<16x2048xf32> to vector<16x2048xbf16>
    %cst_82 = arith.constant dense<0.000000e+00> : vector<16x32xf32>
    %200 = tpu.matmul %199, %198, %cst_82 {dimension_numbers = #tpu.dot_dimension_numbers<[1], [0], [0], [1], [0, 0, 1, 1], [], []>} : vector<16x2048xbf16>, vector<2048x32xbf16>, vector<16x32xf32> -> vector<16x32xf32>
    %c0_83 = arith.constant 0 : index
    %c0_84 = arith.constant 0 : index
    %201 = vector.load %arg11[%c0_83, %c0_84] : memref<1x32xf32, #tpu.memory_space<vmem>>, vector<1x32xf32>
    %202 = vector.broadcast %201 : vector<1x32xf32> to vector<16x32xf32>
    %203 = arith.addf %200, %202 : vector<16x32xf32>
    %c0_85 = arith.constant 0 : index
    %c0_86 = arith.constant 0 : index
    %204 = vector.load %arg12[%c0_85, %c0_86] : memref<1x32xf32, #tpu.memory_space<vmem>>, vector<1x32xf32>
    %c0_87 = arith.constant 0 : index
    %c0_88 = arith.constant 0 : index
    %205 = vector.load %arg13[%c0_87, %c0_88] : memref<1x32xf32, #tpu.memory_space<vmem>>, vector<1x32xf32>
    %206 = arith.addf %203, %189 : vector<16x32xf32>
    %cst_89 = arith.constant dense<0.000000e+00> : vector<16xf32>
    %207 = vector.multi_reduction <add>, %206, %cst_89 [1] : vector<16x32xf32> to vector<16xf32>
    %208 = vector.shape_cast %207 : vector<16xf32> to vector<16x1xf32>
    %cst_90 = arith.constant 3.200000e+01 : f32
    %209 = vector.broadcast %cst_90 : f32 to vector<16x1xf32>
    %210 = arith.divf %208, %209 : vector<16x1xf32>
    %211 = vector.broadcast %210 : vector<16x1xf32> to vector<16x32xf32>
    %212 = arith.subf %206, %211 : vector<16x32xf32>
    %213 = arith.mulf %212, %212 : vector<16x32xf32>
    %cst_91 = arith.constant dense<0.000000e+00> : vector<16xf32>
    %214 = vector.multi_reduction <add>, %213, %cst_91 [1] : vector<16x32xf32> to vector<16xf32>
    %215 = vector.shape_cast %214 : vector<16xf32> to vector<16x1xf32>
    %cst_92 = arith.constant 3.200000e+01 : f32
    %216 = vector.broadcast %cst_92 : f32 to vector<16x1xf32>
    %217 = arith.divf %215, %216 : vector<16x1xf32>
    %cst_93 = arith.constant 9.99999974E-6 : f32
    %218 = vector.broadcast %cst_93 : f32 to vector<16x1xf32>
    %219 = arith.addf %217, %218 : vector<16x1xf32>
    %220 = math.rsqrt %219 : vector<16x1xf32>
    %221 = vector.broadcast %220 : vector<16x1xf32> to vector<16x32xf32>
    %222 = arith.mulf %212, %221 : vector<16x32xf32>
    %223 = vector.broadcast %204 : vector<1x32xf32> to vector<16x32xf32>
    %224 = arith.mulf %222, %223 : vector<16x32xf32>
    %225 = vector.broadcast %205 : vector<1x32xf32> to vector<16x32xf32>
    %226 = arith.addf %224, %225 : vector<16x32xf32>
    %c0_94 = arith.constant 0 : index
    %c0_95 = arith.constant 0 : index
    %227 = vector.load %arg14[%c0_94, %c0_95] : memref<16x32xf32, #tpu.memory_space<vmem>>, vector<16x32xf32>
    tpu.vector_store %arg14[%c0_94, %c0_95], %226 {strides = array<i32>} : memref<16x32xf32, #tpu.memory_space<vmem>>, vector<16x32xf32>,
    return
  }
  func.func @transform_0(%arg0: i32) -> (i32, i32) {
    %c0_i32 = arith.constant 0 : i32
    %c0_i32_0 = arith.constant 0 : i32
    %c0_i32_1 = arith.constant 0 : i32
    return %c0_i32, %c0_i32_0 : i32, i32
  }
  func.func @transform_1(%arg0: i32) -> (i32, i32) {
    %c0_i32 = arith.constant 0 : i32
    %c0_i32_0 = arith.constant 0 : i32
    %c0_i32_1 = arith.constant 0 : i32
    return %c0_i32, %c0_i32_0 : i32, i32
  }
  func.func @transform_2(%arg0: i32) -> (i32, i32) {
    %c0_i32 = arith.constant 0 : i32
    %c0_i32_0 = arith.constant 0 : i32
    %c0_i32_1 = arith.constant 0 : i32
    return %c0_i32, %c0_i32_0 : i32, i32
  }
  func.func @transform_3(%arg0: i32) -> (i32, i32) {
    %c0_i32 = arith.constant 0 : i32
    %c0_i32_0 = arith.constant 0 : i32
    %c0_i32_1 = arith.constant 0 : i32
    return %c0_i32, %c0_i32_0 : i32, i32
  }
  func.func @transform_4(%arg0: i32) -> (i32, i32) {
    %c0_i32 = arith.constant 0 : i32
    %c0_i32_0 = arith.constant 0 : i32
    %c0_i32_1 = arith.constant 0 : i32
    return %c0_i32, %c0_i32_0 : i32, i32
  }
  func.func @transform_5(%arg0: i32) -> (i32, i32) {
    %c0_i32 = arith.constant 0 : i32
    %c0_i32_0 = arith.constant 0 : i32
    %c0_i32_1 = arith.constant 0 : i32
    return %c0_i32, %c0_i32_0 : i32, i32
  }
  func.func @transform_6(%arg0: i32) -> (i32, i32) {
    %c0_i32 = arith.constant 0 : i32
    %c0_i32_0 = arith.constant 0 : i32
    %c0_i32_1 = arith.constant 0 : i32
    return %c0_i32, %c0_i32_0 : i32, i32
  }
  func.func @transform_7(%arg0: i32) -> (i32, i32) {
    %c0_i32 = arith.constant 0 : i32
    %c0_i32_0 = arith.constant 0 : i32
    %c0_i32_1 = arith.constant 0 : i32
    return %c0_i32, %c0_i32_0 : i32, i32
  }
  func.func @transform_8(%arg0: i32) -> (i32, i32) {
    %c0_i32 = arith.constant 0 : i32
    %c0_i32_0 = arith.constant 0 : i32
    %c0_i32_1 = arith.constant 0 : i32
    return %c0_i32, %c0_i32_0 : i32, i32
  }
  func.func @transform_9(%arg0: i32) -> (i32, i32) {
    %c0_i32 = arith.constant 0 : i32
    %c0_i32_0 = arith.constant 0 : i32
    %c0_i32_1 = arith.constant 0 : i32
    return %c0_i32, %c0_i32_0 : i32, i32
  }
  func.func @transform_10(%arg0: i32) -> (i32, i32) {
    %c0_i32 = arith.constant 0 : i32
    %c0_i32_0 = arith.constant 0 : i32
    %c0_i32_1 = arith.constant 0 : i32
    return %c0_i32, %c0_i32_0 : i32, i32
  }
  func.func @transform_11(%arg0: i32) -> (i32, i32) {
    %c0_i32 = arith.constant 0 : i32
    %c0_i32_0 = arith.constant 0 : i32
    %c0_i32_1 = arith.constant 0 : i32
    return %c0_i32, %c0_i32_0 : i32, i32
  }
  func.func @transform_12(%arg0: i32) -> (i32, i32) {
    %c0_i32 = arith.constant 0 : i32
    %c0_i32_0 = arith.constant 0 : i32
    %c0_i32_1 = arith.constant 0 : i32
    return %c0_i32, %c0_i32_0 : i32, i32
  }
  func.func @transform_13(%arg0: i32) -> (i32, i32) {
    %c0_i32 = arith.constant 0 : i32
    %c0_i32_0 = arith.constant 0 : i32
    %c0_i32_1 = arith.constant 0 : i32
    return %c0_i32, %c0_i32_0 : i32, i32
  }
}

module attributes {stable_mosaic.version = 11 : i64} {
  func.func @_decoder_layer_kernel(%arg0: i32, %arg1: memref<16x32xf32, #tpu.memory_space<vmem>>, %arg2: memref<16x32xf32, #tpu.memory_space<vmem>>, %arg3: memref<32x96xbf16, #tpu.memory_space<vmem>>, %arg4: memref<1x96xf32, #tpu.memory_space<vmem>>, %arg5: memref<32x32xbf16, #tpu.memory_space<vmem>>, %arg6: memref<1x32xf32, #tpu.memory_space<vmem>>, %arg7: memref<1x32xf32, #tpu.memory_space<vmem>>, %arg8: memref<1x32xf32, #tpu.memory_space<vmem>>, %arg9: memref<32x32xbf16, #tpu.memory_space<vmem>>, %arg10: memref<1x32xf32, #tpu.memory_space<vmem>>, %arg11: memref<32x64xbf16, #tpu.memory_space<vmem>>, %arg12: memref<1x64xf32, #tpu.memory_space<vmem>>, %arg13: memref<32x32xbf16, #tpu.memory_space<vmem>>, %arg14: memref<1x32xf32, #tpu.memory_space<vmem>>, %arg15: memref<1x32xf32, #tpu.memory_space<vmem>>, %arg16: memref<1x32xf32, #tpu.memory_space<vmem>>, %arg17: memref<32x2048xbf16, #tpu.memory_space<vmem>>, %arg18: memref<1x2048xf32, #tpu.memory_space<vmem>>, %arg19: memref<2048x32xbf16, #tpu.memory_space<vmem>>, %arg20: memref<1x32xf32, #tpu.memory_space<vmem>>, %arg21: memref<1x32xf32, #tpu.memory_space<vmem>>, %arg22: memref<1x32xf32, #tpu.memory_space<vmem>>, %arg23: memref<16x32xf32, #tpu.memory_space<vmem>>, %arg24: memref<16x32xf32, #tpu.memory_space<vmem>>) attributes {dimension_semantics = [#tpu.dimension_semantics<arbitrary>], iteration_bounds = array<i64: 1>, scalar_prefetch = 0 : i64, scratch_operands = 1 : i64, tpu.core_type = #tpu.core_type<tc>, window_params = [{pipeline_mode = #tpu.pipeline_mode<synchronous>, transform_indices = @transform_0, window_bounds = array<i64: 16, 32>}, {pipeline_mode = #tpu.pipeline_mode<synchronous>, transform_indices = @transform_1, window_bounds = array<i64: 16, 32>}, {pipeline_mode = #tpu.pipeline_mode<synchronous>, transform_indices = @transform_2, window_bounds = array<i64: 32, 96>}, {pipeline_mode = #tpu.pipeline_mode<synchronous>, transform_indices = @transform_3, window_bounds = array<i64: 1, 96>}, {pipeline_mode = #tpu.pipeline_mode<synchronous>, transform_indices = @transform_4, window_bounds = array<i64: 32, 32>}, {pipeline_mode = #tpu.pipeline_mode<synchronous>, transform_indices = @transform_5, window_bounds = array<i64: 1, 32>}, {pipeline_mode = #tpu.pipeline_mode<synchronous>, transform_indices = @transform_6, window_bounds = array<i64: 1, 32>}, {pipeline_mode = #tpu.pipeline_mode<synchronous>, transform_indices = @transform_7, window_bounds = array<i64: 1, 32>}, {pipeline_mode = #tpu.pipeline_mode<synchronous>, transform_indices = @transform_8, window_bounds = array<i64: 32, 32>}, {pipeline_mode = #tpu.pipeline_mode<synchronous>, transform_indices = @transform_9, window_bounds = array<i64: 1, 32>}, {pipeline_mode = #tpu.pipeline_mode<synchronous>, transform_indices = @transform_10, window_bounds = array<i64: 32, 64>}, {pipeline_mode = #tpu.pipeline_mode<synchronous>, transform_indices = @transform_11, window_bounds = array<i64: 1, 64>}, {pipeline_mode = #tpu.pipeline_mode<synchronous>, transform_indices = @transform_12, window_bounds = array<i64: 32, 32>}, {pipeline_mode = #tpu.pipeline_mode<synchronous>, transform_indices = @transform_13, window_bounds = array<i64: 1, 32>}, {pipeline_mode = #tpu.pipeline_mode<synchronous>, transform_indices = @transform_14, window_bounds = array<i64: 1, 32>}, {pipeline_mode = #tpu.pipeline_mode<synchronous>, transform_indices = @transform_15, window_bounds = array<i64: 1, 32>}, {pipeline_mode = #tpu.pipeline_mode<synchronous>, transform_indices = @transform_16, window_bounds = array<i64: 32, 2048>}, {pipeline_mode = #tpu.pipeline_mode<synchronous>, transform_indices = @transform_17, window_bounds = array<i64: 1, 2048>}, {pipeline_mode = #tpu.pipeline_mode<synchronous>, transform_indices = @transform_18, window_bounds = array<i64: 2048, 32>}, {pipeline_mode = #tpu.pipeline_mode<synchronous>, transform_indices = @transform_19, window_bounds = array<i64: 1, 32>}, {pipeline_mode = #tpu.pipeline_mode<synchronous>, transform_indices = @transform_20, window_bounds = array<i64: 1, 32>}, {pipeline_mode = #tpu.pipeline_mode<synchronous>, transform_indices = @transform_21, window_bounds = array<i64: 1, 32>}, {pipeline_mode = #tpu.pipeline_mode<synchronous>, transform_indices = @transform_22, window_bounds = array<i64: 16, 32>}]} {
    %c0 = arith.constant 0 : index
    %c0_0 = arith.constant 0 : index
    %0 = vector.load %arg1[%c0, %c0_0] : memref<16x32xf32, #tpu.memory_space<vmem>>, vector<16x32xf32>
    %c0_1 = arith.constant 0 : index
    %c0_2 = arith.constant 0 : index
    %1 = vector.load %arg2[%c0_1, %c0_2] : memref<16x32xf32, #tpu.memory_space<vmem>>, vector<16x32xf32>
    %c0_3 = arith.constant 0 : index
    %c0_4 = arith.constant 0 : index
    %2 = vector.load %arg3[%c0_3, %c0_4] : memref<32x96xbf16, #tpu.memory_space<vmem>>, vector<32x96xbf16>
    %3 = arith.truncf %0 : vector<16x32xf32> to vector<16x32xbf16>
    %cst = arith.constant dense<0.000000e+00> : vector<16x96xf32>
    %4 = tpu.matmul %3, %2, %cst {dimension_numbers = #tpu.dot_dimension_numbers<[1], [0], [0], [1], [0, 0, 1, 1], [], []>} : vector<16x32xbf16>, vector<32x96xbf16>, vector<16x96xf32> -> vector<16x96xf32>
    %c0_5 = arith.constant 0 : index
    %c0_6 = arith.constant 0 : index
    %5 = vector.load %arg4[%c0_5, %c0_6] : memref<1x96xf32, #tpu.memory_space<vmem>>, vector<1x96xf32>
    %6 = vector.broadcast %5 : vector<1x96xf32> to vector<16x96xf32>
    %7 = arith.addf %4, %6 : vector<16x96xf32>
    %8 = vector.extract_strided_slice %7 {offsets = [0, 0], sizes = [16, 32], strides = [1, 1]} : vector<16x96xf32> to vector<16x32xf32>
    %9 = vector.extract_strided_slice %7 {offsets = [0, 32], sizes = [16, 32], strides = [1, 1]} : vector<16x96xf32> to vector<16x32xf32>
    %10 = vector.extract_strided_slice %7 {offsets = [0, 64], sizes = [16, 32], strides = [1, 1]} : vector<16x96xf32> to vector<16x32xf32>
    %11 = vector.extract_strided_slice %8 {offsets = [0, 0], sizes = [8, 32], strides = [1, 1]} : vector<16x32xf32> to vector<8x32xf32>
    %12 = vector.extract_strided_slice %9 {offsets = [0, 0], sizes = [8, 32], strides = [1, 1]} : vector<16x32xf32> to vector<8x32xf32>
    %13 = vector.extract_strided_slice %10 {offsets = [0, 0], sizes = [8, 32], strides = [1, 1]} : vector<16x32xf32> to vector<8x32xf32>
    %14 = vector.extract_strided_slice %11 {offsets = [0, 0], sizes = [8, 8], strides = [1, 1]} : vector<8x32xf32> to vector<8x8xf32>
    %15 = vector.extract_strided_slice %12 {offsets = [0, 0], sizes = [8, 8], strides = [1, 1]} : vector<8x32xf32> to vector<8x8xf32>
    %16 = vector.extract_strided_slice %13 {offsets = [0, 0], sizes = [8, 8], strides = [1, 1]} : vector<8x32xf32> to vector<8x8xf32>
    %cst_7 = arith.constant dense<0.000000e+00> : vector<8x8xf32>
    %17 = tpu.matmul %14, %15, %cst_7 {dimension_numbers = #tpu.dot_dimension_numbers<[1], [1], [0], [0], [0, 0, 1, 0], [], []>} : vector<8x8xf32>, vector<8x8xf32>, vector<8x8xf32> -> vector<8x8xf32>
    %cst_8 = arith.constant 0.353553385 : f32
    %18 = vector.broadcast %cst_8 : f32 to vector<8x8xf32>
    %19 = arith.mulf %17, %18 : vector<8x8xf32>
    %cst_9 = arith.constant dense<0xFF800000> : vector<8xf32>
    %20 = vector.multi_reduction <maximumf>, %19, %cst_9 [1] : vector<8x8xf32> to vector<8xf32>
    %21 = vector.shape_cast %20 : vector<8xf32> to vector<8x1xf32>
    %22 = vector.broadcast %21 : vector<8x1xf32> to vector<8x8xf32>
    %23 = arith.subf %19, %22 : vector<8x8xf32>
    %24 = math.exp %23 : vector<8x8xf32>
    %cst_10 = arith.constant dense<0.000000e+00> : vector<8xf32>
    %25 = vector.multi_reduction <add>, %24, %cst_10 [1] : vector<8x8xf32> to vector<8xf32>
    %26 = vector.shape_cast %25 : vector<8xf32> to vector<8x1xf32>
    %27 = tpu.reciprocal %26 {approx = true} : vector<8x1xf32> -> vector<8x1xf32>
    %28 = vector.broadcast %27 : vector<8x1xf32> to vector<8x8xf32>
    %29 = arith.mulf %24, %28 : vector<8x8xf32>
    %cst_11 = arith.constant dense<0.000000e+00> : vector<8x8xf32>
    %30 = tpu.matmul %29, %16, %cst_11 {dimension_numbers = #tpu.dot_dimension_numbers<[1], [0], [0], [1], [0, 0, 1, 1], [], []>} : vector<8x8xf32>, vector<8x8xf32>, vector<8x8xf32> -> vector<8x8xf32>
    %c0_12 = arith.constant 0 : index
    %c0_13 = arith.constant 0 : index
    %31 = vector.load %arg24[%c0_12, %c0_13] : memref<16x32xf32, #tpu.memory_space<vmem>>, vector<8x8xf32>
    tpu.vector_store %arg24[%c0_12, %c0_13], %30 {strides = array<i32>} : memref<16x32xf32, #tpu.memory_space<vmem>>, vector<8x8xf32>,
    %32 = vector.extract_strided_slice %11 {offsets = [0, 8], sizes = [8, 8], strides = [1, 1]} : vector<8x32xf32> to vector<8x8xf32>
    %33 = vector.extract_strided_slice %12 {offsets = [0, 8], sizes = [8, 8], strides = [1, 1]} : vector<8x32xf32> to vector<8x8xf32>
    %34 = vector.extract_strided_slice %13 {offsets = [0, 8], sizes = [8, 8], strides = [1, 1]} : vector<8x32xf32> to vector<8x8xf32>
    %cst_14 = arith.constant dense<0.000000e+00> : vector<8x8xf32>
    %35 = tpu.matmul %32, %33, %cst_14 {dimension_numbers = #tpu.dot_dimension_numbers<[1], [1], [0], [0], [0, 0, 1, 0], [], []>} : vector<8x8xf32>, vector<8x8xf32>, vector<8x8xf32> -> vector<8x8xf32>
    %cst_15 = arith.constant 0.353553385 : f32
    %36 = vector.broadcast %cst_15 : f32 to vector<8x8xf32>
    %37 = arith.mulf %35, %36 : vector<8x8xf32>
    %cst_16 = arith.constant dense<0xFF800000> : vector<8xf32>
    %38 = vector.multi_reduction <maximumf>, %37, %cst_16 [1] : vector<8x8xf32> to vector<8xf32>
    %39 = vector.shape_cast %38 : vector<8xf32> to vector<8x1xf32>
    %40 = vector.broadcast %39 : vector<8x1xf32> to vector<8x8xf32>
    %41 = arith.subf %37, %40 : vector<8x8xf32>
    %42 = math.exp %41 : vector<8x8xf32>
    %cst_17 = arith.constant dense<0.000000e+00> : vector<8xf32>
    %43 = vector.multi_reduction <add>, %42, %cst_17 [1] : vector<8x8xf32> to vector<8xf32>
    %44 = vector.shape_cast %43 : vector<8xf32> to vector<8x1xf32>
    %45 = tpu.reciprocal %44 {approx = true} : vector<8x1xf32> -> vector<8x1xf32>
    %46 = vector.broadcast %45 : vector<8x1xf32> to vector<8x8xf32>
    %47 = arith.mulf %42, %46 : vector<8x8xf32>
    %cst_18 = arith.constant dense<0.000000e+00> : vector<8x8xf32>
    %48 = tpu.matmul %47, %34, %cst_18 {dimension_numbers = #tpu.dot_dimension_numbers<[1], [0], [0], [1], [0, 0, 1, 1], [], []>} : vector<8x8xf32>, vector<8x8xf32>, vector<8x8xf32> -> vector<8x8xf32>
    %c0_19 = arith.constant 0 : index
    %c8 = arith.constant 8 : index
    %49 = vector.load %arg24[%c0_19, %c8] : memref<16x32xf32, #tpu.memory_space<vmem>>, vector<8x8xf32>
    tpu.vector_store %arg24[%c0_19, %c8], %48 {strides = array<i32>} : memref<16x32xf32, #tpu.memory_space<vmem>>, vector<8x8xf32>,
    %50 = vector.extract_strided_slice %11 {offsets = [0, 16], sizes = [8, 8], strides = [1, 1]} : vector<8x32xf32> to vector<8x8xf32>
    %51 = vector.extract_strided_slice %12 {offsets = [0, 16], sizes = [8, 8], strides = [1, 1]} : vector<8x32xf32> to vector<8x8xf32>
    %52 = vector.extract_strided_slice %13 {offsets = [0, 16], sizes = [8, 8], strides = [1, 1]} : vector<8x32xf32> to vector<8x8xf32>
    %cst_20 = arith.constant dense<0.000000e+00> : vector<8x8xf32>
    %53 = tpu.matmul %50, %51, %cst_20 {dimension_numbers = #tpu.dot_dimension_numbers<[1], [1], [0], [0], [0, 0, 1, 0], [], []>} : vector<8x8xf32>, vector<8x8xf32>, vector<8x8xf32> -> vector<8x8xf32>
    %cst_21 = arith.constant 0.353553385 : f32
    %54 = vector.broadcast %cst_21 : f32 to vector<8x8xf32>
    %55 = arith.mulf %53, %54 : vector<8x8xf32>
    %cst_22 = arith.constant dense<0xFF800000> : vector<8xf32>
    %56 = vector.multi_reduction <maximumf>, %55, %cst_22 [1] : vector<8x8xf32> to vector<8xf32>
    %57 = vector.shape_cast %56 : vector<8xf32> to vector<8x1xf32>
    %58 = vector.broadcast %57 : vector<8x1xf32> to vector<8x8xf32>
    %59 = arith.subf %55, %58 : vector<8x8xf32>
    %60 = math.exp %59 : vector<8x8xf32>
    %cst_23 = arith.constant dense<0.000000e+00> : vector<8xf32>
    %61 = vector.multi_reduction <add>, %60, %cst_23 [1] : vector<8x8xf32> to vector<8xf32>
    %62 = vector.shape_cast %61 : vector<8xf32> to vector<8x1xf32>
    %63 = tpu.reciprocal %62 {approx = true} : vector<8x1xf32> -> vector<8x1xf32>
    %64 = vector.broadcast %63 : vector<8x1xf32> to vector<8x8xf32>
    %65 = arith.mulf %60, %64 : vector<8x8xf32>
    %cst_24 = arith.constant dense<0.000000e+00> : vector<8x8xf32>
    %66 = tpu.matmul %65, %52, %cst_24 {dimension_numbers = #tpu.dot_dimension_numbers<[1], [0], [0], [1], [0, 0, 1, 1], [], []>} : vector<8x8xf32>, vector<8x8xf32>, vector<8x8xf32> -> vector<8x8xf32>
    %c0_25 = arith.constant 0 : index
    %c16 = arith.constant 16 : index
    %67 = vector.load %arg24[%c0_25, %c16] : memref<16x32xf32, #tpu.memory_space<vmem>>, vector<8x8xf32>
    tpu.vector_store %arg24[%c0_25, %c16], %66 {strides = array<i32>} : memref<16x32xf32, #tpu.memory_space<vmem>>, vector<8x8xf32>,
    %68 = vector.extract_strided_slice %11 {offsets = [0, 24], sizes = [8, 8], strides = [1, 1]} : vector<8x32xf32> to vector<8x8xf32>
    %69 = vector.extract_strided_slice %12 {offsets = [0, 24], sizes = [8, 8], strides = [1, 1]} : vector<8x32xf32> to vector<8x8xf32>
    %70 = vector.extract_strided_slice %13 {offsets = [0, 24], sizes = [8, 8], strides = [1, 1]} : vector<8x32xf32> to vector<8x8xf32>
    %cst_26 = arith.constant dense<0.000000e+00> : vector<8x8xf32>
    %71 = tpu.matmul %68, %69, %cst_26 {dimension_numbers = #tpu.dot_dimension_numbers<[1], [1], [0], [0], [0, 0, 1, 0], [], []>} : vector<8x8xf32>, vector<8x8xf32>, vector<8x8xf32> -> vector<8x8xf32>
    %cst_27 = arith.constant 0.353553385 : f32
    %72 = vector.broadcast %cst_27 : f32 to vector<8x8xf32>
    %73 = arith.mulf %71, %72 : vector<8x8xf32>
    %cst_28 = arith.constant dense<0xFF800000> : vector<8xf32>
    %74 = vector.multi_reduction <maximumf>, %73, %cst_28 [1] : vector<8x8xf32> to vector<8xf32>
    %75 = vector.shape_cast %74 : vector<8xf32> to vector<8x1xf32>
    %76 = vector.broadcast %75 : vector<8x1xf32> to vector<8x8xf32>
    %77 = arith.subf %73, %76 : vector<8x8xf32>
    %78 = math.exp %77 : vector<8x8xf32>
    %cst_29 = arith.constant dense<0.000000e+00> : vector<8xf32>
    %79 = vector.multi_reduction <add>, %78, %cst_29 [1] : vector<8x8xf32> to vector<8xf32>
    %80 = vector.shape_cast %79 : vector<8xf32> to vector<8x1xf32>
    %81 = tpu.reciprocal %80 {approx = true} : vector<8x1xf32> -> vector<8x1xf32>
    %82 = vector.broadcast %81 : vector<8x1xf32> to vector<8x8xf32>
    %83 = arith.mulf %78, %82 : vector<8x8xf32>
    %cst_30 = arith.constant dense<0.000000e+00> : vector<8x8xf32>
    %84 = tpu.matmul %83, %70, %cst_30 {dimension_numbers = #tpu.dot_dimension_numbers<[1], [0], [0], [1], [0, 0, 1, 1], [], []>} : vector<8x8xf32>, vector<8x8xf32>, vector<8x8xf32> -> vector<8x8xf32>
    %c0_31 = arith.constant 0 : index
    %c24 = arith.constant 24 : index
    %85 = vector.load %arg24[%c0_31, %c24] : memref<16x32xf32, #tpu.memory_space<vmem>>, vector<8x8xf32>
    tpu.vector_store %arg24[%c0_31, %c24], %84 {strides = array<i32>} : memref<16x32xf32, #tpu.memory_space<vmem>>, vector<8x8xf32>,
    %86 = vector.extract_strided_slice %8 {offsets = [8, 0], sizes = [8, 32], strides = [1, 1]} : vector<16x32xf32> to vector<8x32xf32>
    %87 = vector.extract_strided_slice %9 {offsets = [8, 0], sizes = [8, 32], strides = [1, 1]} : vector<16x32xf32> to vector<8x32xf32>
    %88 = vector.extract_strided_slice %10 {offsets = [8, 0], sizes = [8, 32], strides = [1, 1]} : vector<16x32xf32> to vector<8x32xf32>
    %89 = vector.extract_strided_slice %86 {offsets = [0, 0], sizes = [8, 8], strides = [1, 1]} : vector<8x32xf32> to vector<8x8xf32>
    %90 = vector.extract_strided_slice %87 {offsets = [0, 0], sizes = [8, 8], strides = [1, 1]} : vector<8x32xf32> to vector<8x8xf32>
    %91 = vector.extract_strided_slice %88 {offsets = [0, 0], sizes = [8, 8], strides = [1, 1]} : vector<8x32xf32> to vector<8x8xf32>
    %cst_32 = arith.constant dense<0.000000e+00> : vector<8x8xf32>
    %92 = tpu.matmul %89, %90, %cst_32 {dimension_numbers = #tpu.dot_dimension_numbers<[1], [1], [0], [0], [0, 0, 1, 0], [], []>} : vector<8x8xf32>, vector<8x8xf32>, vector<8x8xf32> -> vector<8x8xf32>
    %cst_33 = arith.constant 0.353553385 : f32
    %93 = vector.broadcast %cst_33 : f32 to vector<8x8xf32>
    %94 = arith.mulf %92, %93 : vector<8x8xf32>
    %cst_34 = arith.constant dense<0xFF800000> : vector<8xf32>
    %95 = vector.multi_reduction <maximumf>, %94, %cst_34 [1] : vector<8x8xf32> to vector<8xf32>
    %96 = vector.shape_cast %95 : vector<8xf32> to vector<8x1xf32>
    %97 = vector.broadcast %96 : vector<8x1xf32> to vector<8x8xf32>
    %98 = arith.subf %94, %97 : vector<8x8xf32>
    %99 = math.exp %98 : vector<8x8xf32>
    %cst_35 = arith.constant dense<0.000000e+00> : vector<8xf32>
    %100 = vector.multi_reduction <add>, %99, %cst_35 [1] : vector<8x8xf32> to vector<8xf32>
    %101 = vector.shape_cast %100 : vector<8xf32> to vector<8x1xf32>
    %102 = tpu.reciprocal %101 {approx = true} : vector<8x1xf32> -> vector<8x1xf32>
    %103 = vector.broadcast %102 : vector<8x1xf32> to vector<8x8xf32>
    %104 = arith.mulf %99, %103 : vector<8x8xf32>
    %cst_36 = arith.constant dense<0.000000e+00> : vector<8x8xf32>
    %105 = tpu.matmul %104, %91, %cst_36 {dimension_numbers = #tpu.dot_dimension_numbers<[1], [0], [0], [1], [0, 0, 1, 1], [], []>} : vector<8x8xf32>, vector<8x8xf32>, vector<8x8xf32> -> vector<8x8xf32>
    %c8_37 = arith.constant 8 : index
    %c0_38 = arith.constant 0 : index
    %106 = vector.load %arg24[%c8_37, %c0_38] : memref<16x32xf32, #tpu.memory_space<vmem>>, vector<8x8xf32>
    tpu.vector_store %arg24[%c8_37, %c0_38], %105 {strides = array<i32>} : memref<16x32xf32, #tpu.memory_space<vmem>>, vector<8x8xf32>,
    %107 = vector.extract_strided_slice %86 {offsets = [0, 8], sizes = [8, 8], strides = [1, 1]} : vector<8x32xf32> to vector<8x8xf32>
    %108 = vector.extract_strided_slice %87 {offsets = [0, 8], sizes = [8, 8], strides = [1, 1]} : vector<8x32xf32> to vector<8x8xf32>
    %109 = vector.extract_strided_slice %88 {offsets = [0, 8], sizes = [8, 8], strides = [1, 1]} : vector<8x32xf32> to vector<8x8xf32>
    %cst_39 = arith.constant dense<0.000000e+00> : vector<8x8xf32>
    %110 = tpu.matmul %107, %108, %cst_39 {dimension_numbers = #tpu.dot_dimension_numbers<[1], [1], [0], [0], [0, 0, 1, 0], [], []>} : vector<8x8xf32>, vector<8x8xf32>, vector<8x8xf32> -> vector<8x8xf32>
    %cst_40 = arith.constant 0.353553385 : f32
    %111 = vector.broadcast %cst_40 : f32 to vector<8x8xf32>
    %112 = arith.mulf %110, %111 : vector<8x8xf32>
    %cst_41 = arith.constant dense<0xFF800000> : vector<8xf32>
    %113 = vector.multi_reduction <maximumf>, %112, %cst_41 [1] : vector<8x8xf32> to vector<8xf32>
    %114 = vector.shape_cast %113 : vector<8xf32> to vector<8x1xf32>
    %115 = vector.broadcast %114 : vector<8x1xf32> to vector<8x8xf32>
    %116 = arith.subf %112, %115 : vector<8x8xf32>
    %117 = math.exp %116 : vector<8x8xf32>
    %cst_42 = arith.constant dense<0.000000e+00> : vector<8xf32>
    %118 = vector.multi_reduction <add>, %117, %cst_42 [1] : vector<8x8xf32> to vector<8xf32>
    %119 = vector.shape_cast %118 : vector<8xf32> to vector<8x1xf32>
    %120 = tpu.reciprocal %119 {approx = true} : vector<8x1xf32> -> vector<8x1xf32>
    %121 = vector.broadcast %120 : vector<8x1xf32> to vector<8x8xf32>
    %122 = arith.mulf %117, %121 : vector<8x8xf32>
    %cst_43 = arith.constant dense<0.000000e+00> : vector<8x8xf32>
    %123 = tpu.matmul %122, %109, %cst_43 {dimension_numbers = #tpu.dot_dimension_numbers<[1], [0], [0], [1], [0, 0, 1, 1], [], []>} : vector<8x8xf32>, vector<8x8xf32>, vector<8x8xf32> -> vector<8x8xf32>
    %c8_44 = arith.constant 8 : index
    %c8_45 = arith.constant 8 : index
    %124 = vector.load %arg24[%c8_44, %c8_45] : memref<16x32xf32, #tpu.memory_space<vmem>>, vector<8x8xf32>
    tpu.vector_store %arg24[%c8_44, %c8_45], %123 {strides = array<i32>} : memref<16x32xf32, #tpu.memory_space<vmem>>, vector<8x8xf32>,
    %125 = vector.extract_strided_slice %86 {offsets = [0, 16], sizes = [8, 8], strides = [1, 1]} : vector<8x32xf32> to vector<8x8xf32>
    %126 = vector.extract_strided_slice %87 {offsets = [0, 16], sizes = [8, 8], strides = [1, 1]} : vector<8x32xf32> to vector<8x8xf32>
    %127 = vector.extract_strided_slice %88 {offsets = [0, 16], sizes = [8, 8], strides = [1, 1]} : vector<8x32xf32> to vector<8x8xf32>
    %cst_46 = arith.constant dense<0.000000e+00> : vector<8x8xf32>
    %128 = tpu.matmul %125, %126, %cst_46 {dimension_numbers = #tpu.dot_dimension_numbers<[1], [1], [0], [0], [0, 0, 1, 0], [], []>} : vector<8x8xf32>, vector<8x8xf32>, vector<8x8xf32> -> vector<8x8xf32>
    %cst_47 = arith.constant 0.353553385 : f32
    %129 = vector.broadcast %cst_47 : f32 to vector<8x8xf32>
    %130 = arith.mulf %128, %129 : vector<8x8xf32>
    %cst_48 = arith.constant dense<0xFF800000> : vector<8xf32>
    %131 = vector.multi_reduction <maximumf>, %130, %cst_48 [1] : vector<8x8xf32> to vector<8xf32>
    %132 = vector.shape_cast %131 : vector<8xf32> to vector<8x1xf32>
    %133 = vector.broadcast %132 : vector<8x1xf32> to vector<8x8xf32>
    %134 = arith.subf %130, %133 : vector<8x8xf32>
    %135 = math.exp %134 : vector<8x8xf32>
    %cst_49 = arith.constant dense<0.000000e+00> : vector<8xf32>
    %136 = vector.multi_reduction <add>, %135, %cst_49 [1] : vector<8x8xf32> to vector<8xf32>
    %137 = vector.shape_cast %136 : vector<8xf32> to vector<8x1xf32>
    %138 = tpu.reciprocal %137 {approx = true} : vector<8x1xf32> -> vector<8x1xf32>
    %139 = vector.broadcast %138 : vector<8x1xf32> to vector<8x8xf32>
    %140 = arith.mulf %135, %139 : vector<8x8xf32>
    %cst_50 = arith.constant dense<0.000000e+00> : vector<8x8xf32>
    %141 = tpu.matmul %140, %127, %cst_50 {dimension_numbers = #tpu.dot_dimension_numbers<[1], [0], [0], [1], [0, 0, 1, 1], [], []>} : vector<8x8xf32>, vector<8x8xf32>, vector<8x8xf32> -> vector<8x8xf32>
    %c8_51 = arith.constant 8 : index
    %c16_52 = arith.constant 16 : index
    %142 = vector.load %arg24[%c8_51, %c16_52] : memref<16x32xf32, #tpu.memory_space<vmem>>, vector<8x8xf32>
    tpu.vector_store %arg24[%c8_51, %c16_52], %141 {strides = array<i32>} : memref<16x32xf32, #tpu.memory_space<vmem>>, vector<8x8xf32>,
    %143 = vector.extract_strided_slice %86 {offsets = [0, 24], sizes = [8, 8], strides = [1, 1]} : vector<8x32xf32> to vector<8x8xf32>
    %144 = vector.extract_strided_slice %87 {offsets = [0, 24], sizes = [8, 8], strides = [1, 1]} : vector<8x32xf32> to vector<8x8xf32>
    %145 = vector.extract_strided_slice %88 {offsets = [0, 24], sizes = [8, 8], strides = [1, 1]} : vector<8x32xf32> to vector<8x8xf32>
    %cst_53 = arith.constant dense<0.000000e+00> : vector<8x8xf32>
    %146 = tpu.matmul %143, %144, %cst_53 {dimension_numbers = #tpu.dot_dimension_numbers<[1], [1], [0], [0], [0, 0, 1, 0], [], []>} : vector<8x8xf32>, vector<8x8xf32>, vector<8x8xf32> -> vector<8x8xf32>
    %cst_54 = arith.constant 0.353553385 : f32
    %147 = vector.broadcast %cst_54 : f32 to vector<8x8xf32>
    %148 = arith.mulf %146, %147 : vector<8x8xf32>
    %cst_55 = arith.constant dense<0xFF800000> : vector<8xf32>
    %149 = vector.multi_reduction <maximumf>, %148, %cst_55 [1] : vector<8x8xf32> to vector<8xf32>
    %150 = vector.shape_cast %149 : vector<8xf32> to vector<8x1xf32>
    %151 = vector.broadcast %150 : vector<8x1xf32> to vector<8x8xf32>
    %152 = arith.subf %148, %151 : vector<8x8xf32>
    %153 = math.exp %152 : vector<8x8xf32>
    %cst_56 = arith.constant dense<0.000000e+00> : vector<8xf32>
    %154 = vector.multi_reduction <add>, %153, %cst_56 [1] : vector<8x8xf32> to vector<8xf32>
    %155 = vector.shape_cast %154 : vector<8xf32> to vector<8x1xf32>
    %156 = tpu.reciprocal %155 {approx = true} : vector<8x1xf32> -> vector<8x1xf32>
    %157 = vector.broadcast %156 : vector<8x1xf32> to vector<8x8xf32>
    %158 = arith.mulf %153, %157 : vector<8x8xf32>
    %cst_57 = arith.constant dense<0.000000e+00> : vector<8x8xf32>
    %159 = tpu.matmul %158, %145, %cst_57 {dimension_numbers = #tpu.dot_dimension_numbers<[1], [0], [0], [1], [0, 0, 1, 1], [], []>} : vector<8x8xf32>, vector<8x8xf32>, vector<8x8xf32> -> vector<8x8xf32>
    %c8_58 = arith.constant 8 : index
    %c24_59 = arith.constant 24 : index
    %160 = vector.load %arg24[%c8_58, %c24_59] : memref<16x32xf32, #tpu.memory_space<vmem>>, vector<8x8xf32>
    tpu.vector_store %arg24[%c8_58, %c24_59], %159 {strides = array<i32>} : memref<16x32xf32, #tpu.memory_space<vmem>>, vector<8x8xf32>,
    %c0_60 = arith.constant 0 : index
    %c0_61 = arith.constant 0 : index
    %161 = vector.load %arg24[%c0_60, %c0_61] : memref<16x32xf32, #tpu.memory_space<vmem>>, vector<16x32xf32>
    %c0_62 = arith.constant 0 : index
    %c0_63 = arith.constant 0 : index
    %162 = vector.load %arg5[%c0_62, %c0_63] : memref<32x32xbf16, #tpu.memory_space<vmem>>, vector<32x32xbf16>
    %163 = arith.truncf %161 : vector<16x32xf32> to vector<16x32xbf16>
    %cst_64 = arith.constant dense<0.000000e+00> : vector<16x32xf32>
    %164 = tpu.matmul %163, %162, %cst_64 {dimension_numbers = #tpu.dot_dimension_numbers<[1], [0], [0], [1], [0, 0, 1, 1], [], []>} : vector<16x32xbf16>, vector<32x32xbf16>, vector<16x32xf32> -> vector<16x32xf32>
    %c0_65 = arith.constant 0 : index
    %c0_66 = arith.constant 0 : index
    %165 = vector.load %arg6[%c0_65, %c0_66] : memref<1x32xf32, #tpu.memory_space<vmem>>, vector<1x32xf32>
    %166 = vector.broadcast %165 : vector<1x32xf32> to vector<16x32xf32>
    %167 = arith.addf %164, %166 : vector<16x32xf32>
    %c0_67 = arith.constant 0 : index
    %c0_68 = arith.constant 0 : index
    %168 = vector.load %arg7[%c0_67, %c0_68] : memref<1x32xf32, #tpu.memory_space<vmem>>, vector<1x32xf32>
    %c0_69 = arith.constant 0 : index
    %c0_70 = arith.constant 0 : index
    %169 = vector.load %arg8[%c0_69, %c0_70] : memref<1x32xf32, #tpu.memory_space<vmem>>, vector<1x32xf32>
    %170 = arith.addf %167, %0 : vector<16x32xf32>
    %cst_71 = arith.constant dense<0.000000e+00> : vector<16xf32>
    %171 = vector.multi_reduction <add>, %170, %cst_71 [1] : vector<16x32xf32> to vector<16xf32>
    %172 = vector.shape_cast %171 : vector<16xf32> to vector<16x1xf32>
    %cst_72 = arith.constant 3.200000e+01 : f32
    %173 = vector.broadcast %cst_72 : f32 to vector<16x1xf32>
    %174 = arith.divf %172, %173 : vector<16x1xf32>
    %175 = vector.broadcast %174 : vector<16x1xf32> to vector<16x32xf32>
    %176 = arith.subf %170, %175 : vector<16x32xf32>
    %177 = arith.mulf %176, %176 : vector<16x32xf32>
    %cst_73 = arith.constant dense<0.000000e+00> : vector<16xf32>
    %178 = vector.multi_reduction <add>, %177, %cst_73 [1] : vector<16x32xf32> to vector<16xf32>
    %179 = vector.shape_cast %178 : vector<16xf32> to vector<16x1xf32>
    %cst_74 = arith.constant 3.200000e+01 : f32
    %180 = vector.broadcast %cst_74 : f32 to vector<16x1xf32>
    %181 = arith.divf %179, %180 : vector<16x1xf32>
    %cst_75 = arith.constant 9.99999974E-6 : f32
    %182 = vector.broadcast %cst_75 : f32 to vector<16x1xf32>
    %183 = arith.addf %181, %182 : vector<16x1xf32>
    %184 = math.rsqrt %183 : vector<16x1xf32>
    %185 = vector.broadcast %184 : vector<16x1xf32> to vector<16x32xf32>
    %186 = arith.mulf %176, %185 : vector<16x32xf32>
    %187 = vector.broadcast %168 : vector<1x32xf32> to vector<16x32xf32>
    %188 = arith.mulf %186, %187 : vector<16x32xf32>
    %189 = vector.broadcast %169 : vector<1x32xf32> to vector<16x32xf32>
    %190 = arith.addf %188, %189 : vector<16x32xf32>
    %c0_76 = arith.constant 0 : index
    %c0_77 = arith.constant 0 : index
    %191 = vector.load %arg9[%c0_76, %c0_77] : memref<32x32xbf16, #tpu.memory_space<vmem>>, vector<32x32xbf16>
    %192 = arith.truncf %190 : vector<16x32xf32> to vector<16x32xbf16>
    %cst_78 = arith.constant dense<0.000000e+00> : vector<16x32xf32>
    %193 = tpu.matmul %192, %191, %cst_78 {dimension_numbers = #tpu.dot_dimension_numbers<[1], [0], [0], [1], [0, 0, 1, 1], [], []>} : vector<16x32xbf16>, vector<32x32xbf16>, vector<16x32xf32> -> vector<16x32xf32>
    %c0_79 = arith.constant 0 : index
    %c0_80 = arith.constant 0 : index
    %194 = vector.load %arg10[%c0_79, %c0_80] : memref<1x32xf32, #tpu.memory_space<vmem>>, vector<1x32xf32>
    %195 = vector.broadcast %194 : vector<1x32xf32> to vector<16x32xf32>
    %196 = arith.addf %193, %195 : vector<16x32xf32>
    %c0_81 = arith.constant 0 : index
    %c0_82 = arith.constant 0 : index
    %197 = vector.load %arg11[%c0_81, %c0_82] : memref<32x64xbf16, #tpu.memory_space<vmem>>, vector<32x64xbf16>
    %198 = arith.truncf %1 : vector<16x32xf32> to vector<16x32xbf16>
    %cst_83 = arith.constant dense<0.000000e+00> : vector<16x64xf32>
    %199 = tpu.matmul %198, %197, %cst_83 {dimension_numbers = #tpu.dot_dimension_numbers<[1], [0], [0], [1], [0, 0, 1, 1], [], []>} : vector<16x32xbf16>, vector<32x64xbf16>, vector<16x64xf32> -> vector<16x64xf32>
    %c0_84 = arith.constant 0 : index
    %c0_85 = arith.constant 0 : index
    %200 = vector.load %arg12[%c0_84, %c0_85] : memref<1x64xf32, #tpu.memory_space<vmem>>, vector<1x64xf32>
    %201 = vector.broadcast %200 : vector<1x64xf32> to vector<16x64xf32>
    %202 = arith.addf %199, %201 : vector<16x64xf32>
    %203 = vector.extract_strided_slice %202 {offsets = [0, 0], sizes = [16, 32], strides = [1, 1]} : vector<16x64xf32> to vector<16x32xf32>
    %204 = vector.extract_strided_slice %202 {offsets = [0, 32], sizes = [16, 32], strides = [1, 1]} : vector<16x64xf32> to vector<16x32xf32>
    %205 = vector.extract_strided_slice %196 {offsets = [0, 0], sizes = [8, 32], strides = [1, 1]} : vector<16x32xf32> to vector<8x32xf32>
    %206 = vector.extract_strided_slice %203 {offsets = [0, 0], sizes = [8, 32], strides = [1, 1]} : vector<16x32xf32> to vector<8x32xf32>
    %207 = vector.extract_strided_slice %204 {offsets = [0, 0], sizes = [8, 32], strides = [1, 1]} : vector<16x32xf32> to vector<8x32xf32>
    %208 = vector.extract_strided_slice %205 {offsets = [0, 0], sizes = [8, 8], strides = [1, 1]} : vector<8x32xf32> to vector<8x8xf32>
    %209 = vector.extract_strided_slice %206 {offsets = [0, 0], sizes = [8, 8], strides = [1, 1]} : vector<8x32xf32> to vector<8x8xf32>
    %210 = vector.extract_strided_slice %207 {offsets = [0, 0], sizes = [8, 8], strides = [1, 1]} : vector<8x32xf32> to vector<8x8xf32>
    %cst_86 = arith.constant dense<0.000000e+00> : vector<8x8xf32>
    %211 = tpu.matmul %208, %209, %cst_86 {dimension_numbers = #tpu.dot_dimension_numbers<[1], [1], [0], [0], [0, 0, 1, 0], [], []>} : vector<8x8xf32>, vector<8x8xf32>, vector<8x8xf32> -> vector<8x8xf32>
    %cst_87 = arith.constant 0.353553385 : f32
    %212 = vector.broadcast %cst_87 : f32 to vector<8x8xf32>
    %213 = arith.mulf %211, %212 : vector<8x8xf32>
    %cst_88 = arith.constant dense<0xFF800000> : vector<8xf32>
    %214 = vector.multi_reduction <maximumf>, %213, %cst_88 [1] : vector<8x8xf32> to vector<8xf32>
    %215 = vector.shape_cast %214 : vector<8xf32> to vector<8x1xf32>
    %216 = vector.broadcast %215 : vector<8x1xf32> to vector<8x8xf32>
    %217 = arith.subf %213, %216 : vector<8x8xf32>
    %218 = math.exp %217 : vector<8x8xf32>
    %cst_89 = arith.constant dense<0.000000e+00> : vector<8xf32>
    %219 = vector.multi_reduction <add>, %218, %cst_89 [1] : vector<8x8xf32> to vector<8xf32>
    %220 = vector.shape_cast %219 : vector<8xf32> to vector<8x1xf32>
    %221 = tpu.reciprocal %220 {approx = true} : vector<8x1xf32> -> vector<8x1xf32>
    %222 = vector.broadcast %221 : vector<8x1xf32> to vector<8x8xf32>
    %223 = arith.mulf %218, %222 : vector<8x8xf32>
    %cst_90 = arith.constant dense<0.000000e+00> : vector<8x8xf32>
    %224 = tpu.matmul %223, %210, %cst_90 {dimension_numbers = #tpu.dot_dimension_numbers<[1], [0], [0], [1], [0, 0, 1, 1], [], []>} : vector<8x8xf32>, vector<8x8xf32>, vector<8x8xf32> -> vector<8x8xf32>
    %c0_91 = arith.constant 0 : index
    %c0_92 = arith.constant 0 : index
    %225 = vector.load %arg24[%c0_91, %c0_92] : memref<16x32xf32, #tpu.memory_space<vmem>>, vector<8x8xf32>
    tpu.vector_store %arg24[%c0_91, %c0_92], %224 {strides = array<i32>} : memref<16x32xf32, #tpu.memory_space<vmem>>, vector<8x8xf32>,
    %226 = vector.extract_strided_slice %205 {offsets = [0, 8], sizes = [8, 8], strides = [1, 1]} : vector<8x32xf32> to vector<8x8xf32>
    %227 = vector.extract_strided_slice %206 {offsets = [0, 8], sizes = [8, 8], strides = [1, 1]} : vector<8x32xf32> to vector<8x8xf32>
    %228 = vector.extract_strided_slice %207 {offsets = [0, 8], sizes = [8, 8], strides = [1, 1]} : vector<8x32xf32> to vector<8x8xf32>
    %cst_93 = arith.constant dense<0.000000e+00> : vector<8x8xf32>
    %229 = tpu.matmul %226, %227, %cst_93 {dimension_numbers = #tpu.dot_dimension_numbers<[1], [1], [0], [0], [0, 0, 1, 0], [], []>} : vector<8x8xf32>, vector<8x8xf32>, vector<8x8xf32> -> vector<8x8xf32>
    %cst_94 = arith.constant 0.353553385 : f32
    %230 = vector.broadcast %cst_94 : f32 to vector<8x8xf32>
    %231 = arith.mulf %229, %230 : vector<8x8xf32>
    %cst_95 = arith.constant dense<0xFF800000> : vector<8xf32>
    %232 = vector.multi_reduction <maximumf>, %231, %cst_95 [1] : vector<8x8xf32> to vector<8xf32>
    %233 = vector.shape_cast %232 : vector<8xf32> to vector<8x1xf32>
    %234 = vector.broadcast %233 : vector<8x1xf32> to vector<8x8xf32>
    %235 = arith.subf %231, %234 : vector<8x8xf32>
    %236 = math.exp %235 : vector<8x8xf32>
    %cst_96 = arith.constant dense<0.000000e+00> : vector<8xf32>
    %237 = vector.multi_reduction <add>, %236, %cst_96 [1] : vector<8x8xf32> to vector<8xf32>
    %238 = vector.shape_cast %237 : vector<8xf32> to vector<8x1xf32>
    %239 = tpu.reciprocal %238 {approx = true} : vector<8x1xf32> -> vector<8x1xf32>
    %240 = vector.broadcast %239 : vector<8x1xf32> to vector<8x8xf32>
    %241 = arith.mulf %236, %240 : vector<8x8xf32>
    %cst_97 = arith.constant dense<0.000000e+00> : vector<8x8xf32>
    %242 = tpu.matmul %241, %228, %cst_97 {dimension_numbers = #tpu.dot_dimension_numbers<[1], [0], [0], [1], [0, 0, 1, 1], [], []>} : vector<8x8xf32>, vector<8x8xf32>, vector<8x8xf32> -> vector<8x8xf32>
    %c0_98 = arith.constant 0 : index
    %c8_99 = arith.constant 8 : index
    %243 = vector.load %arg24[%c0_98, %c8_99] : memref<16x32xf32, #tpu.memory_space<vmem>>, vector<8x8xf32>
    tpu.vector_store %arg24[%c0_98, %c8_99], %242 {strides = array<i32>} : memref<16x32xf32, #tpu.memory_space<vmem>>, vector<8x8xf32>,
    %244 = vector.extract_strided_slice %205 {offsets = [0, 16], sizes = [8, 8], strides = [1, 1]} : vector<8x32xf32> to vector<8x8xf32>
    %245 = vector.extract_strided_slice %206 {offsets = [0, 16], sizes = [8, 8], strides = [1, 1]} : vector<8x32xf32> to vector<8x8xf32>
    %246 = vector.extract_strided_slice %207 {offsets = [0, 16], sizes = [8, 8], strides = [1, 1]} : vector<8x32xf32> to vector<8x8xf32>
    %cst_100 = arith.constant dense<0.000000e+00> : vector<8x8xf32>
    %247 = tpu.matmul %244, %245, %cst_100 {dimension_numbers = #tpu.dot_dimension_numbers<[1], [1], [0], [0], [0, 0, 1, 0], [], []>} : vector<8x8xf32>, vector<8x8xf32>, vector<8x8xf32> -> vector<8x8xf32>
    %cst_101 = arith.constant 0.353553385 : f32
    %248 = vector.broadcast %cst_101 : f32 to vector<8x8xf32>
    %249 = arith.mulf %247, %248 : vector<8x8xf32>
    %cst_102 = arith.constant dense<0xFF800000> : vector<8xf32>
    %250 = vector.multi_reduction <maximumf>, %249, %cst_102 [1] : vector<8x8xf32> to vector<8xf32>
    %251 = vector.shape_cast %250 : vector<8xf32> to vector<8x1xf32>
    %252 = vector.broadcast %251 : vector<8x1xf32> to vector<8x8xf32>
    %253 = arith.subf %249, %252 : vector<8x8xf32>
    %254 = math.exp %253 : vector<8x8xf32>
    %cst_103 = arith.constant dense<0.000000e+00> : vector<8xf32>
    %255 = vector.multi_reduction <add>, %254, %cst_103 [1] : vector<8x8xf32> to vector<8xf32>
    %256 = vector.shape_cast %255 : vector<8xf32> to vector<8x1xf32>
    %257 = tpu.reciprocal %256 {approx = true} : vector<8x1xf32> -> vector<8x1xf32>
    %258 = vector.broadcast %257 : vector<8x1xf32> to vector<8x8xf32>
    %259 = arith.mulf %254, %258 : vector<8x8xf32>
    %cst_104 = arith.constant dense<0.000000e+00> : vector<8x8xf32>
    %260 = tpu.matmul %259, %246, %cst_104 {dimension_numbers = #tpu.dot_dimension_numbers<[1], [0], [0], [1], [0, 0, 1, 1], [], []>} : vector<8x8xf32>, vector<8x8xf32>, vector<8x8xf32> -> vector<8x8xf32>
    %c0_105 = arith.constant 0 : index
    %c16_106 = arith.constant 16 : index
    %261 = vector.load %arg24[%c0_105, %c16_106] : memref<16x32xf32, #tpu.memory_space<vmem>>, vector<8x8xf32>
    tpu.vector_store %arg24[%c0_105, %c16_106], %260 {strides = array<i32>} : memref<16x32xf32, #tpu.memory_space<vmem>>, vector<8x8xf32>,
    %262 = vector.extract_strided_slice %205 {offsets = [0, 24], sizes = [8, 8], strides = [1, 1]} : vector<8x32xf32> to vector<8x8xf32>
    %263 = vector.extract_strided_slice %206 {offsets = [0, 24], sizes = [8, 8], strides = [1, 1]} : vector<8x32xf32> to vector<8x8xf32>
    %264 = vector.extract_strided_slice %207 {offsets = [0, 24], sizes = [8, 8], strides = [1, 1]} : vector<8x32xf32> to vector<8x8xf32>
    %cst_107 = arith.constant dense<0.000000e+00> : vector<8x8xf32>
    %265 = tpu.matmul %262, %263, %cst_107 {dimension_numbers = #tpu.dot_dimension_numbers<[1], [1], [0], [0], [0, 0, 1, 0], [], []>} : vector<8x8xf32>, vector<8x8xf32>, vector<8x8xf32> -> vector<8x8xf32>
    %cst_108 = arith.constant 0.353553385 : f32
    %266 = vector.broadcast %cst_108 : f32 to vector<8x8xf32>
    %267 = arith.mulf %265, %266 : vector<8x8xf32>
    %cst_109 = arith.constant dense<0xFF800000> : vector<8xf32>
    %268 = vector.multi_reduction <maximumf>, %267, %cst_109 [1] : vector<8x8xf32> to vector<8xf32>
    %269 = vector.shape_cast %268 : vector<8xf32> to vector<8x1xf32>
    %270 = vector.broadcast %269 : vector<8x1xf32> to vector<8x8xf32>
    %271 = arith.subf %267, %270 : vector<8x8xf32>
    %272 = math.exp %271 : vector<8x8xf32>
    %cst_110 = arith.constant dense<0.000000e+00> : vector<8xf32>
    %273 = vector.multi_reduction <add>, %272, %cst_110 [1] : vector<8x8xf32> to vector<8xf32>
    %274 = vector.shape_cast %273 : vector<8xf32> to vector<8x1xf32>
    %275 = tpu.reciprocal %274 {approx = true} : vector<8x1xf32> -> vector<8x1xf32>
    %276 = vector.broadcast %275 : vector<8x1xf32> to vector<8x8xf32>
    %277 = arith.mulf %272, %276 : vector<8x8xf32>
    %cst_111 = arith.constant dense<0.000000e+00> : vector<8x8xf32>
    %278 = tpu.matmul %277, %264, %cst_111 {dimension_numbers = #tpu.dot_dimension_numbers<[1], [0], [0], [1], [0, 0, 1, 1], [], []>} : vector<8x8xf32>, vector<8x8xf32>, vector<8x8xf32> -> vector<8x8xf32>
    %c0_112 = arith.constant 0 : index
    %c24_113 = arith.constant 24 : index
    %279 = vector.load %arg24[%c0_112, %c24_113] : memref<16x32xf32, #tpu.memory_space<vmem>>, vector<8x8xf32>
    tpu.vector_store %arg24[%c0_112, %c24_113], %278 {strides = array<i32>} : memref<16x32xf32, #tpu.memory_space<vmem>>, vector<8x8xf32>,
    %280 = vector.extract_strided_slice %196 {offsets = [8, 0], sizes = [8, 32], strides = [1, 1]} : vector<16x32xf32> to vector<8x32xf32>
    %281 = vector.extract_strided_slice %203 {offsets = [8, 0], sizes = [8, 32], strides = [1, 1]} : vector<16x32xf32> to vector<8x32xf32>
    %282 = vector.extract_strided_slice %204 {offsets = [8, 0], sizes = [8, 32], strides = [1, 1]} : vector<16x32xf32> to vector<8x32xf32>
    %283 = vector.extract_strided_slice %280 {offsets = [0, 0], sizes = [8, 8], strides = [1, 1]} : vector<8x32xf32> to vector<8x8xf32>
    %284 = vector.extract_strided_slice %281 {offsets = [0, 0], sizes = [8, 8], strides = [1, 1]} : vector<8x32xf32> to vector<8x8xf32>
    %285 = vector.extract_strided_slice %282 {offsets = [0, 0], sizes = [8, 8], strides = [1, 1]} : vector<8x32xf32> to vector<8x8xf32>
    %cst_114 = arith.constant dense<0.000000e+00> : vector<8x8xf32>
    %286 = tpu.matmul %283, %284, %cst_114 {dimension_numbers = #tpu.dot_dimension_numbers<[1], [1], [0], [0], [0, 0, 1, 0], [], []>} : vector<8x8xf32>, vector<8x8xf32>, vector<8x8xf32> -> vector<8x8xf32>
    %cst_115 = arith.constant 0.353553385 : f32
    %287 = vector.broadcast %cst_115 : f32 to vector<8x8xf32>
    %288 = arith.mulf %286, %287 : vector<8x8xf32>
    %cst_116 = arith.constant dense<0xFF800000> : vector<8xf32>
    %289 = vector.multi_reduction <maximumf>, %288, %cst_116 [1] : vector<8x8xf32> to vector<8xf32>
    %290 = vector.shape_cast %289 : vector<8xf32> to vector<8x1xf32>
    %291 = vector.broadcast %290 : vector<8x1xf32> to vector<8x8xf32>
    %292 = arith.subf %288, %291 : vector<8x8xf32>
    %293 = math.exp %292 : vector<8x8xf32>
    %cst_117 = arith.constant dense<0.000000e+00> : vector<8xf32>
    %294 = vector.multi_reduction <add>, %293, %cst_117 [1] : vector<8x8xf32> to vector<8xf32>
    %295 = vector.shape_cast %294 : vector<8xf32> to vector<8x1xf32>
    %296 = tpu.reciprocal %295 {approx = true} : vector<8x1xf32> -> vector<8x1xf32>
    %297 = vector.broadcast %296 : vector<8x1xf32> to vector<8x8xf32>
    %298 = arith.mulf %293, %297 : vector<8x8xf32>
    %cst_118 = arith.constant dense<0.000000e+00> : vector<8x8xf32>
    %299 = tpu.matmul %298, %285, %cst_118 {dimension_numbers = #tpu.dot_dimension_numbers<[1], [0], [0], [1], [0, 0, 1, 1], [], []>} : vector<8x8xf32>, vector<8x8xf32>, vector<8x8xf32> -> vector<8x8xf32>
    %c8_119 = arith.constant 8 : index
    %c0_120 = arith.constant 0 : index
    %300 = vector.load %arg24[%c8_119, %c0_120] : memref<16x32xf32, #tpu.memory_space<vmem>>, vector<8x8xf32>
    tpu.vector_store %arg24[%c8_119, %c0_120], %299 {strides = array<i32>} : memref<16x32xf32, #tpu.memory_space<vmem>>, vector<8x8xf32>,
    %301 = vector.extract_strided_slice %280 {offsets = [0, 8], sizes = [8, 8], strides = [1, 1]} : vector<8x32xf32> to vector<8x8xf32>
    %302 = vector.extract_strided_slice %281 {offsets = [0, 8], sizes = [8, 8], strides = [1, 1]} : vector<8x32xf32> to vector<8x8xf32>
    %303 = vector.extract_strided_slice %282 {offsets = [0, 8], sizes = [8, 8], strides = [1, 1]} : vector<8x32xf32> to vector<8x8xf32>
    %cst_121 = arith.constant dense<0.000000e+00> : vector<8x8xf32>
    %304 = tpu.matmul %301, %302, %cst_121 {dimension_numbers = #tpu.dot_dimension_numbers<[1], [1], [0], [0], [0, 0, 1, 0], [], []>} : vector<8x8xf32>, vector<8x8xf32>, vector<8x8xf32> -> vector<8x8xf32>
    %cst_122 = arith.constant 0.353553385 : f32
    %305 = vector.broadcast %cst_122 : f32 to vector<8x8xf32>
    %306 = arith.mulf %304, %305 : vector<8x8xf32>
    %cst_123 = arith.constant dense<0xFF800000> : vector<8xf32>
    %307 = vector.multi_reduction <maximumf>, %306, %cst_123 [1] : vector<8x8xf32> to vector<8xf32>
    %308 = vector.shape_cast %307 : vector<8xf32> to vector<8x1xf32>
    %309 = vector.broadcast %308 : vector<8x1xf32> to vector<8x8xf32>
    %310 = arith.subf %306, %309 : vector<8x8xf32>
    %311 = math.exp %310 : vector<8x8xf32>
    %cst_124 = arith.constant dense<0.000000e+00> : vector<8xf32>
    %312 = vector.multi_reduction <add>, %311, %cst_124 [1] : vector<8x8xf32> to vector<8xf32>
    %313 = vector.shape_cast %312 : vector<8xf32> to vector<8x1xf32>
    %314 = tpu.reciprocal %313 {approx = true} : vector<8x1xf32> -> vector<8x1xf32>
    %315 = vector.broadcast %314 : vector<8x1xf32> to vector<8x8xf32>
    %316 = arith.mulf %311, %315 : vector<8x8xf32>
    %cst_125 = arith.constant dense<0.000000e+00> : vector<8x8xf32>
    %317 = tpu.matmul %316, %303, %cst_125 {dimension_numbers = #tpu.dot_dimension_numbers<[1], [0], [0], [1], [0, 0, 1, 1], [], []>} : vector<8x8xf32>, vector<8x8xf32>, vector<8x8xf32> -> vector<8x8xf32>
    %c8_126 = arith.constant 8 : index
    %c8_127 = arith.constant 8 : index
    %318 = vector.load %arg24[%c8_126, %c8_127] : memref<16x32xf32, #tpu.memory_space<vmem>>, vector<8x8xf32>
    tpu.vector_store %arg24[%c8_126, %c8_127], %317 {strides = array<i32>} : memref<16x32xf32, #tpu.memory_space<vmem>>, vector<8x8xf32>,
    %319 = vector.extract_strided_slice %280 {offsets = [0, 16], sizes = [8, 8], strides = [1, 1]} : vector<8x32xf32> to vector<8x8xf32>
    %320 = vector.extract_strided_slice %281 {offsets = [0, 16], sizes = [8, 8], strides = [1, 1]} : vector<8x32xf32> to vector<8x8xf32>
    %321 = vector.extract_strided_slice %282 {offsets = [0, 16], sizes = [8, 8], strides = [1, 1]} : vector<8x32xf32> to vector<8x8xf32>
    %cst_128 = arith.constant dense<0.000000e+00> : vector<8x8xf32>
    %322 = tpu.matmul %319, %320, %cst_128 {dimension_numbers = #tpu.dot_dimension_numbers<[1], [1], [0], [0], [0, 0, 1, 0], [], []>} : vector<8x8xf32>, vector<8x8xf32>, vector<8x8xf32> -> vector<8x8xf32>
    %cst_129 = arith.constant 0.353553385 : f32
    %323 = vector.broadcast %cst_129 : f32 to vector<8x8xf32>
    %324 = arith.mulf %322, %323 : vector<8x8xf32>
    %cst_130 = arith.constant dense<0xFF800000> : vector<8xf32>
    %325 = vector.multi_reduction <maximumf>, %324, %cst_130 [1] : vector<8x8xf32> to vector<8xf32>
    %326 = vector.shape_cast %325 : vector<8xf32> to vector<8x1xf32>
    %327 = vector.broadcast %326 : vector<8x1xf32> to vector<8x8xf32>
    %328 = arith.subf %324, %327 : vector<8x8xf32>
    %329 = math.exp %328 : vector<8x8xf32>
    %cst_131 = arith.constant dense<0.000000e+00> : vector<8xf32>
    %330 = vector.multi_reduction <add>, %329, %cst_131 [1] : vector<8x8xf32> to vector<8xf32>
    %331 = vector.shape_cast %330 : vector<8xf32> to vector<8x1xf32>
    %332 = tpu.reciprocal %331 {approx = true} : vector<8x1xf32> -> vector<8x1xf32>
    %333 = vector.broadcast %332 : vector<8x1xf32> to vector<8x8xf32>
    %334 = arith.mulf %329, %333 : vector<8x8xf32>
    %cst_132 = arith.constant dense<0.000000e+00> : vector<8x8xf32>
    %335 = tpu.matmul %334, %321, %cst_132 {dimension_numbers = #tpu.dot_dimension_numbers<[1], [0], [0], [1], [0, 0, 1, 1], [], []>} : vector<8x8xf32>, vector<8x8xf32>, vector<8x8xf32> -> vector<8x8xf32>
    %c8_133 = arith.constant 8 : index
    %c16_134 = arith.constant 16 : index
    %336 = vector.load %arg24[%c8_133, %c16_134] : memref<16x32xf32, #tpu.memory_space<vmem>>, vector<8x8xf32>
    tpu.vector_store %arg24[%c8_133, %c16_134], %335 {strides = array<i32>} : memref<16x32xf32, #tpu.memory_space<vmem>>, vector<8x8xf32>,
    %337 = vector.extract_strided_slice %280 {offsets = [0, 24], sizes = [8, 8], strides = [1, 1]} : vector<8x32xf32> to vector<8x8xf32>
    %338 = vector.extract_strided_slice %281 {offsets = [0, 24], sizes = [8, 8], strides = [1, 1]} : vector<8x32xf32> to vector<8x8xf32>
    %339 = vector.extract_strided_slice %282 {offsets = [0, 24], sizes = [8, 8], strides = [1, 1]} : vector<8x32xf32> to vector<8x8xf32>
    %cst_135 = arith.constant dense<0.000000e+00> : vector<8x8xf32>
    %340 = tpu.matmul %337, %338, %cst_135 {dimension_numbers = #tpu.dot_dimension_numbers<[1], [1], [0], [0], [0, 0, 1, 0], [], []>} : vector<8x8xf32>, vector<8x8xf32>, vector<8x8xf32> -> vector<8x8xf32>
    %cst_136 = arith.constant 0.353553385 : f32
    %341 = vector.broadcast %cst_136 : f32 to vector<8x8xf32>
    %342 = arith.mulf %340, %341 : vector<8x8xf32>
    %cst_137 = arith.constant dense<0xFF800000> : vector<8xf32>
    %343 = vector.multi_reduction <maximumf>, %342, %cst_137 [1] : vector<8x8xf32> to vector<8xf32>
    %344 = vector.shape_cast %343 : vector<8xf32> to vector<8x1xf32>
    %345 = vector.broadcast %344 : vector<8x1xf32> to vector<8x8xf32>
    %346 = arith.subf %342, %345 : vector<8x8xf32>
    %347 = math.exp %346 : vector<8x8xf32>
    %cst_138 = arith.constant dense<0.000000e+00> : vector<8xf32>
    %348 = vector.multi_reduction <add>, %347, %cst_138 [1] : vector<8x8xf32> to vector<8xf32>
    %349 = vector.shape_cast %348 : vector<8xf32> to vector<8x1xf32>
    %350 = tpu.reciprocal %349 {approx = true} : vector<8x1xf32> -> vector<8x1xf32>
    %351 = vector.broadcast %350 : vector<8x1xf32> to vector<8x8xf32>
    %352 = arith.mulf %347, %351 : vector<8x8xf32>
    %cst_139 = arith.constant dense<0.000000e+00> : vector<8x8xf32>
    %353 = tpu.matmul %352, %339, %cst_139 {dimension_numbers = #tpu.dot_dimension_numbers<[1], [0], [0], [1], [0, 0, 1, 1], [], []>} : vector<8x8xf32>, vector<8x8xf32>, vector<8x8xf32> -> vector<8x8xf32>
    %c8_140 = arith.constant 8 : index
    %c24_141 = arith.constant 24 : index
    %354 = vector.load %arg24[%c8_140, %c24_141] : memref<16x32xf32, #tpu.memory_space<vmem>>, vector<8x8xf32>
    tpu.vector_store %arg24[%c8_140, %c24_141], %353 {strides = array<i32>} : memref<16x32xf32, #tpu.memory_space<vmem>>, vector<8x8xf32>,
    %c0_142 = arith.constant 0 : index
    %c0_143 = arith.constant 0 : index
    %355 = vector.load %arg24[%c0_142, %c0_143] : memref<16x32xf32, #tpu.memory_space<vmem>>, vector<16x32xf32>
    %c0_144 = arith.constant 0 : index
    %c0_145 = arith.constant 0 : index
    %356 = vector.load %arg13[%c0_144, %c0_145] : memref<32x32xbf16, #tpu.memory_space<vmem>>, vector<32x32xbf16>
    %357 = arith.truncf %355 : vector<16x32xf32> to vector<16x32xbf16>
    %cst_146 = arith.constant dense<0.000000e+00> : vector<16x32xf32>
    %358 = tpu.matmul %357, %356, %cst_146 {dimension_numbers = #tpu.dot_dimension_numbers<[1], [0], [0], [1], [0, 0, 1, 1], [], []>} : vector<16x32xbf16>, vector<32x32xbf16>, vector<16x32xf32> -> vector<16x32xf32>
    %c0_147 = arith.constant 0 : index
    %c0_148 = arith.constant 0 : index
    %359 = vector.load %arg14[%c0_147, %c0_148] : memref<1x32xf32, #tpu.memory_space<vmem>>, vector<1x32xf32>
    %360 = vector.broadcast %359 : vector<1x32xf32> to vector<16x32xf32>
    %361 = arith.addf %358, %360 : vector<16x32xf32>
    %c0_149 = arith.constant 0 : index
    %c0_150 = arith.constant 0 : index
    %362 = vector.load %arg15[%c0_149, %c0_150] : memref<1x32xf32, #tpu.memory_space<vmem>>, vector<1x32xf32>
    %c0_151 = arith.constant 0 : index
    %c0_152 = arith.constant 0 : index
    %363 = vector.load %arg16[%c0_151, %c0_152] : memref<1x32xf32, #tpu.memory_space<vmem>>, vector<1x32xf32>
    %364 = arith.addf %361, %190 : vector<16x32xf32>
    %cst_153 = arith.constant dense<0.000000e+00> : vector<16xf32>
    %365 = vector.multi_reduction <add>, %364, %cst_153 [1] : vector<16x32xf32> to vector<16xf32>
    %366 = vector.shape_cast %365 : vector<16xf32> to vector<16x1xf32>
    %cst_154 = arith.constant 3.200000e+01 : f32
    %367 = vector.broadcast %cst_154 : f32 to vector<16x1xf32>
    %368 = arith.divf %366, %367 : vector<16x1xf32>
    %369 = vector.broadcast %368 : vector<16x1xf32> to vector<16x32xf32>
    %370 = arith.subf %364, %369 : vector<16x32xf32>
    %371 = arith.mulf %370, %370 : vector<16x32xf32>
    %cst_155 = arith.constant dense<0.000000e+00> : vector<16xf32>
    %372 = vector.multi_reduction <add>, %371, %cst_155 [1] : vector<16x32xf32> to vector<16xf32>
    %373 = vector.shape_cast %372 : vector<16xf32> to vector<16x1xf32>
    %cst_156 = arith.constant 3.200000e+01 : f32
    %374 = vector.broadcast %cst_156 : f32 to vector<16x1xf32>
    %375 = arith.divf %373, %374 : vector<16x1xf32>
    %cst_157 = arith.constant 9.99999974E-6 : f32
    %376 = vector.broadcast %cst_157 : f32 to vector<16x1xf32>
    %377 = arith.addf %375, %376 : vector<16x1xf32>
    %378 = math.rsqrt %377 : vector<16x1xf32>
    %379 = vector.broadcast %378 : vector<16x1xf32> to vector<16x32xf32>
    %380 = arith.mulf %370, %379 : vector<16x32xf32>
    %381 = vector.broadcast %362 : vector<1x32xf32> to vector<16x32xf32>
    %382 = arith.mulf %380, %381 : vector<16x32xf32>
    %383 = vector.broadcast %363 : vector<1x32xf32> to vector<16x32xf32>
    %384 = arith.addf %382, %383 : vector<16x32xf32>
    %c0_158 = arith.constant 0 : index
    %c0_159 = arith.constant 0 : index
    %385 = vector.load %arg17[%c0_158, %c0_159] : memref<32x2048xbf16, #tpu.memory_space<vmem>>, vector<32x2048xbf16>
    %386 = arith.truncf %384 : vector<16x32xf32> to vector<16x32xbf16>
    %cst_160 = arith.constant dense<0.000000e+00> : vector<16x2048xf32>
    %387 = tpu.matmul %386, %385, %cst_160 {dimension_numbers = #tpu.dot_dimension_numbers<[1], [0], [0], [1], [0, 0, 1, 1], [], []>} : vector<16x32xbf16>, vector<32x2048xbf16>, vector<16x2048xf32> -> vector<16x2048xf32>
    %c0_161 = arith.constant 0 : index
    %c0_162 = arith.constant 0 : index
    %388 = vector.load %arg18[%c0_161, %c0_162] : memref<1x2048xf32, #tpu.memory_space<vmem>>, vector<1x2048xf32>
    %389 = vector.broadcast %388 : vector<1x2048xf32> to vector<16x2048xf32>
    %390 = arith.addf %387, %389 : vector<16x2048xf32>
    %cst_163 = arith.constant 0.000000e+00 : f32
    %391 = vector.broadcast %cst_163 : f32 to vector<16x2048xf32>
    %392 = arith.maximumf %390, %391 : vector<16x2048xf32>
    %c0_164 = arith.constant 0 : index
    %c0_165 = arith.constant 0 : index
    %393 = vector.load %arg19[%c0_164, %c0_165] : memref<2048x32xbf16, #tpu.memory_space<vmem>>, vector<2048x32xbf16>
    %394 = arith.truncf %392 : vector<16x2048xf32> to vector<16x2048xbf16>
    %cst_166 = arith.constant dense<0.000000e+00> : vector<16x32xf32>
    %395 = tpu.matmul %394, %393, %cst_166 {dimension_numbers = #tpu.dot_dimension_numbers<[1], [0], [0], [1], [0, 0, 1, 1], [], []>} : vector<16x2048xbf16>, vector<2048x32xbf16>, vector<16x32xf32> -> vector<16x32xf32>
    %c0_167 = arith.constant 0 : index
    %c0_168 = arith.constant 0 : index
    %396 = vector.load %arg20[%c0_167, %c0_168] : memref<1x32xf32, #tpu.memory_space<vmem>>, vector<1x32xf32>
    %397 = vector.broadcast %396 : vector<1x32xf32> to vector<16x32xf32>
    %398 = arith.addf %395, %397 : vector<16x32xf32>
    %c0_169 = arith.constant 0 : index
    %c0_170 = arith.constant 0 : index
    %399 = vector.load %arg21[%c0_169, %c0_170] : memref<1x32xf32, #tpu.memory_space<vmem>>, vector<1x32xf32>
    %c0_171 = arith.constant 0 : index
    %c0_172 = arith.constant 0 : index
    %400 = vector.load %arg22[%c0_171, %c0_172] : memref<1x32xf32, #tpu.memory_space<vmem>>, vector<1x32xf32>
    %401 = arith.addf %398, %384 : vector<16x32xf32>
    %cst_173 = arith.constant dense<0.000000e+00> : vector<16xf32>
    %402 = vector.multi_reduction <add>, %401, %cst_173 [1] : vector<16x32xf32> to vector<16xf32>
    %403 = vector.shape_cast %402 : vector<16xf32> to vector<16x1xf32>
    %cst_174 = arith.constant 3.200000e+01 : f32
    %404 = vector.broadcast %cst_174 : f32 to vector<16x1xf32>
    %405 = arith.divf %403, %404 : vector<16x1xf32>
    %406 = vector.broadcast %405 : vector<16x1xf32> to vector<16x32xf32>
    %407 = arith.subf %401, %406 : vector<16x32xf32>
    %408 = arith.mulf %407, %407 : vector<16x32xf32>
    %cst_175 = arith.constant dense<0.000000e+00> : vector<16xf32>
    %409 = vector.multi_reduction <add>, %408, %cst_175 [1] : vector<16x32xf32> to vector<16xf32>
    %410 = vector.shape_cast %409 : vector<16xf32> to vector<16x1xf32>
    %cst_176 = arith.constant 3.200000e+01 : f32
    %411 = vector.broadcast %cst_176 : f32 to vector<16x1xf32>
    %412 = arith.divf %410, %411 : vector<16x1xf32>
    %cst_177 = arith.constant 9.99999974E-6 : f32
    %413 = vector.broadcast %cst_177 : f32 to vector<16x1xf32>
    %414 = arith.addf %412, %413 : vector<16x1xf32>
    %415 = math.rsqrt %414 : vector<16x1xf32>
    %416 = vector.broadcast %415 : vector<16x1xf32> to vector<16x32xf32>
    %417 = arith.mulf %407, %416 : vector<16x32xf32>
    %418 = vector.broadcast %399 : vector<1x32xf32> to vector<16x32xf32>
    %419 = arith.mulf %417, %418 : vector<16x32xf32>
    %420 = vector.broadcast %400 : vector<1x32xf32> to vector<16x32xf32>
    %421 = arith.addf %419, %420 : vector<16x32xf32>
    %c0_178 = arith.constant 0 : index
    %c0_179 = arith.constant 0 : index
    %422 = vector.load %arg23[%c0_178, %c0_179] : memref<16x32xf32, #tpu.memory_space<vmem>>, vector<16x32xf32>
    tpu.vector_store %arg23[%c0_178, %c0_179], %421 {strides = array<i32>} : memref<16x32xf32, #tpu.memory_space<vmem>>, vector<16x32xf32>,
    return
  }
  func.func @transform_0(%arg0: i32) -> (i32, i32) {
    %c0_i32 = arith.constant 0 : i32
    %c0_i32_0 = arith.constant 0 : i32
    %c0_i32_1 = arith.constant 0 : i32
    return %c0_i32, %c0_i32_0 : i32, i32
  }
  func.func @transform_1(%arg0: i32) -> (i32, i32) {
    %c0_i32 = arith.constant 0 : i32
    %c0_i32_0 = arith.constant 0 : i32
    %c0_i32_1 = arith.constant 0 : i32
    return %c0_i32, %c0_i32_0 : i32, i32
  }
  func.func @transform_2(%arg0: i32) -> (i32, i32) {
    %c0_i32 = arith.constant 0 : i32
    %c0_i32_0 = arith.constant 0 : i32
    %c0_i32_1 = arith.constant 0 : i32
    return %c0_i32, %c0_i32_0 : i32, i32
  }
  func.func @transform_3(%arg0: i32) -> (i32, i32) {
    %c0_i32 = arith.constant 0 : i32
    %c0_i32_0 = arith.constant 0 : i32
    %c0_i32_1 = arith.constant 0 : i32
    return %c0_i32, %c0_i32_0 : i32, i32
  }
  func.func @transform_4(%arg0: i32) -> (i32, i32) {
    %c0_i32 = arith.constant 0 : i32
    %c0_i32_0 = arith.constant 0 : i32
    %c0_i32_1 = arith.constant 0 : i32
    return %c0_i32, %c0_i32_0 : i32, i32
  }
  func.func @transform_5(%arg0: i32) -> (i32, i32) {
    %c0_i32 = arith.constant 0 : i32
    %c0_i32_0 = arith.constant 0 : i32
    %c0_i32_1 = arith.constant 0 : i32
    return %c0_i32, %c0_i32_0 : i32, i32
  }
  func.func @transform_6(%arg0: i32) -> (i32, i32) {
    %c0_i32 = arith.constant 0 : i32
    %c0_i32_0 = arith.constant 0 : i32
    %c0_i32_1 = arith.constant 0 : i32
    return %c0_i32, %c0_i32_0 : i32, i32
  }
  func.func @transform_7(%arg0: i32) -> (i32, i32) {
    %c0_i32 = arith.constant 0 : i32
    %c0_i32_0 = arith.constant 0 : i32
    %c0_i32_1 = arith.constant 0 : i32
    return %c0_i32, %c0_i32_0 : i32, i32
  }
  func.func @transform_8(%arg0: i32) -> (i32, i32) {
    %c0_i32 = arith.constant 0 : i32
    %c0_i32_0 = arith.constant 0 : i32
    %c0_i32_1 = arith.constant 0 : i32
    return %c0_i32, %c0_i32_0 : i32, i32
  }
  func.func @transform_9(%arg0: i32) -> (i32, i32) {
    %c0_i32 = arith.constant 0 : i32
    %c0_i32_0 = arith.constant 0 : i32
    %c0_i32_1 = arith.constant 0 : i32
    return %c0_i32, %c0_i32_0 : i32, i32
  }
  func.func @transform_10(%arg0: i32) -> (i32, i32) {
    %c0_i32 = arith.constant 0 : i32
    %c0_i32_0 = arith.constant 0 : i32
    %c0_i32_1 = arith.constant 0 : i32
    return %c0_i32, %c0_i32_0 : i32, i32
  }
  func.func @transform_11(%arg0: i32) -> (i32, i32) {
    %c0_i32 = arith.constant 0 : i32
    %c0_i32_0 = arith.constant 0 : i32
    %c0_i32_1 = arith.constant 0 : i32
    return %c0_i32, %c0_i32_0 : i32, i32
  }
  func.func @transform_12(%arg0: i32) -> (i32, i32) {
    %c0_i32 = arith.constant 0 : i32
    %c0_i32_0 = arith.constant 0 : i32
    %c0_i32_1 = arith.constant 0 : i32
    return %c0_i32, %c0_i32_0 : i32, i32
  }
  func.func @transform_13(%arg0: i32) -> (i32, i32) {
    %c0_i32 = arith.constant 0 : i32
    %c0_i32_0 = arith.constant 0 : i32
    %c0_i32_1 = arith.constant 0 : i32
    return %c0_i32, %c0_i32_0 : i32, i32
  }
  func.func @transform_14(%arg0: i32) -> (i32, i32) {
    %c0_i32 = arith.constant 0 : i32
    %c0_i32_0 = arith.constant 0 : i32
    %c0_i32_1 = arith.constant 0 : i32
    return %c0_i32, %c0_i32_0 : i32, i32
  }
  func.func @transform_15(%arg0: i32) -> (i32, i32) {
    %c0_i32 = arith.constant 0 : i32
    %c0_i32_0 = arith.constant 0 : i32
    %c0_i32_1 = arith.constant 0 : i32
    return %c0_i32, %c0_i32_0 : i32, i32
  }
  func.func @transform_16(%arg0: i32) -> (i32, i32) {
    %c0_i32 = arith.constant 0 : i32
    %c0_i32_0 = arith.constant 0 : i32
    %c0_i32_1 = arith.constant 0 : i32
    return %c0_i32, %c0_i32_0 : i32, i32
  }
  func.func @transform_17(%arg0: i32) -> (i32, i32) {
    %c0_i32 = arith.constant 0 : i32
    %c0_i32_0 = arith.constant 0 : i32
    %c0_i32_1 = arith.constant 0 : i32
    return %c0_i32, %c0_i32_0 : i32, i32
  }
  func.func @transform_18(%arg0: i32) -> (i32, i32) {
    %c0_i32 = arith.constant 0 : i32
    %c0_i32_0 = arith.constant 0 : i32
    %c0_i32_1 = arith.constant 0 : i32
    return %c0_i32, %c0_i32_0 : i32, i32
  }
  func.func @transform_19(%arg0: i32) -> (i32, i32) {
    %c0_i32 = arith.constant 0 : i32
    %c0_i32_0 = arith.constant 0 : i32
    %c0_i32_1 = arith.constant 0 : i32
    return %c0_i32, %c0_i32_0 : i32, i32
  }
  func.func @transform_20(%arg0: i32) -> (i32, i32) {
    %c0_i32 = arith.constant 0 : i32
    %c0_i32_0 = arith.constant 0 : i32
    %c0_i32_1 = arith.constant 0 : i32
    return %c0_i32, %c0_i32_0 : i32, i32
  }
  func.func @transform_21(%arg0: i32) -> (i32, i32) {
    %c0_i32 = arith.constant 0 : i32
    %c0_i32_0 = arith.constant 0 : i32
    %c0_i32_1 = arith.constant 0 : i32
    return %c0_i32, %c0_i32_0 : i32, i32
  }
  func.func @transform_22(%arg0: i32) -> (i32, i32) {
    %c0_i32 = arith.constant 0 : i32
    %c0_i32_0 = arith.constant 0 : i32
    %c0_i32_1 = arith.constant 0 : i32
    return %c0_i32, %c0_i32_0 : i32, i32
  }
}

module attributes {stable_mosaic.version = 11 : i64} {
  func.func @_linear_kernel(%arg0: i32, %arg1: i32, %arg2: memref<16x32xf32, #tpu.memory_space<vmem>>, %arg3: memref<32x64xbf16, #tpu.memory_space<vmem>>, %arg4: memref<1x64xf32, #tpu.memory_space<vmem>>, %arg5: memref<16x64xf32, #tpu.memory_space<vmem>>) attributes {dimension_semantics = [#tpu.dimension_semantics<parallel>, #tpu.dimension_semantics<parallel>], iteration_bounds = array<i64: 1, 1>, scalar_prefetch = 0 : i64, scratch_operands = 0 : i64, tpu.core_type = #tpu.core_type<tc>, window_params = [{transform_indices = @transform_0, window_bounds = array<i64: 16, 32>}, {transform_indices = @transform_1, window_bounds = array<i64: 32, 64>}, {transform_indices = @transform_2, window_bounds = array<i64: 1, 64>}, {transform_indices = @transform_3, window_bounds = array<i64: 16, 64>}]} {
    %c0 = arith.constant 0 : index
    %c0_0 = arith.constant 0 : index
    %0 = vector.load %arg2[%c0, %c0_0] : memref<16x32xf32, #tpu.memory_space<vmem>>, vector<16x32xf32>
    %1 = arith.truncf %0 : vector<16x32xf32> to vector<16x32xbf16>
    %c0_1 = arith.constant 0 : index
    %c0_2 = arith.constant 0 : index
    %2 = vector.load %arg3[%c0_1, %c0_2] : memref<32x64xbf16, #tpu.memory_space<vmem>>, vector<32x64xbf16>
    %cst = arith.constant dense<0.000000e+00> : vector<16x64xf32>
    %3 = tpu.matmul %1, %2, %cst {dimension_numbers = #tpu.dot_dimension_numbers<[1], [0], [0], [1], [0, 0, 1, 1], [], []>} : vector<16x32xbf16>, vector<32x64xbf16>, vector<16x64xf32> -> vector<16x64xf32>
    %c0_3 = arith.constant 0 : index
    %c0_4 = arith.constant 0 : index
    %4 = vector.load %arg4[%c0_3, %c0_4] : memref<1x64xf32, #tpu.memory_space<vmem>>, vector<1x64xf32>
    %5 = vector.broadcast %4 : vector<1x64xf32> to vector<16x64xf32>
    %6 = arith.addf %3, %5 : vector<16x64xf32>
    %c0_5 = arith.constant 0 : index
    %c0_6 = arith.constant 0 : index
    %7 = vector.load %arg5[%c0_5, %c0_6] : memref<16x64xf32, #tpu.memory_space<vmem>>, vector<16x64xf32>
    tpu.vector_store %arg5[%c0_5, %c0_6], %6 {strides = array<i32>} : memref<16x64xf32, #tpu.memory_space<vmem>>, vector<16x64xf32>,
    return
  }
  func.func @transform_0(%arg0: i32, %arg1: i32) -> (i32, i32) {
    %c0_i32 = arith.constant 0 : i32
    %c0_i32_0 = arith.constant 0 : i32
    return %arg0, %c0_i32 : i32, i32
  }
  func.func @transform_1(%arg0: i32, %arg1: i32) -> (i32, i32) {
    %c0_i32 = arith.constant 0 : i32
    %c0_i32_0 = arith.constant 0 : i32
    return %c0_i32, %arg1 : i32, i32
  }
  func.func @transform_2(%arg0: i32, %arg1: i32) -> (i32, i32) {
    %c0_i32 = arith.constant 0 : i32
    %c0_i32_0 = arith.constant 0 : i32
    return %c0_i32, %arg1 : i32, i32
  }
  func.func @transform_3(%arg0: i32, %arg1: i32) -> (i32, i32) {
    %c0_i32 = arith.constant 0 : i32
    return %arg0, %arg1 : i32, i32
  }
}

</mosaic_0001>

<llo_original>
// kernel: transformer_forward.17
$region0: #{transformer_forward.17}
  #allocation0 [shape = 'u32[]', space=smem, size = 0x4, offset = 0x4, fixed_abs, tag = 'smem constant byte address 0x4 - core index']
  #allocation1 [shape = 'u32[144,128]{1,0:T(1,128)}', space=vmem, size = 0x12000, scoped, tag = 'internal scratch']
  %s0 = inlined_call_operand.vmem [shape: f32[16,32], index: 0, kind: input, shape index: {}]
  %s1 = inlined_call_operand.vmem [shape: bf16[32,64], index: 1, kind: input, shape index: {}]
  %s2 = inlined_call_operand.vmem [shape: f32[1,64], index: 2, kind: input, shape index: {}]
  %s3 = inlined_call_operand.vmem [shape: f32[16,64], index: 3, kind: output, shape index: {}]
  %s4 = sld [smem:[#allocation0]]
  $region22: #{transformer_forward.17} parent=0
    _
  %s6 = ssub.s32 1, %s4
  %s7 = scalar_select 0, %s6, %s4
  // Predicated region
  $region2: #{transformer_forward.17} parent=0 // pred_check
    _
  $region3: #{transformer_forward.17} parent=0 // pred_check_branch
    %9 = sbr.rel (0) target = $region5
  $region4: #{transformer_forward.17} parent=0 // pred_region
    _
  $region5: #{transformer_forward.17} parent=0 // pred_fallthru
    _
  // Predicated region
  $region6: #{transformer_forward.17} parent=0 // pred_check
    _
  $region7: #{transformer_forward.17} parent=0 // pred_check_branch
    %11 = sbr.rel (0) target = $region9
  $region8: #{transformer_forward.17} parent=0 // pred_region
    _
  $region9: #{transformer_forward.17} parent=0 // pred_fallthru
    _
  // Predicated region
  $region10: #{transformer_forward.17} parent=0 // pred_check
    _
  $region11: #{transformer_forward.17} parent=0 // pred_check_branch
    %13 = sbr.rel (0) target = $region13
  $region12: #{transformer_forward.17} parent=0 // pred_region
    _
  $region13: #{transformer_forward.17} parent=0 // pred_fallthru
    _
  %v15 = vld [vmem:[%s0] sm:$0xff]
  %v16 = vld [vmem:[%s0 + $0x8] sm:$0xff]
  %v17 = vpack.c.bf16 %v16, %v15
  %v18 = vld [vmem:[%s1] sm:$0xf]
  %v19 = vld [vmem:[%s1 + $0x4] sm:$0xf]
  %v20 = vld [vmem:[%s1 + $0x8] sm:$0xf]
  %v21 = vld [vmem:[%s1 + $0xc] sm:$0xf]
  %v22 = vld [vmem:[%s2] sm:$0x1]
  %v24 = vlaneseq
  %v25 = vshrl.u32 %v24, 7
  %v26 = vsub.s32 0, %v25
  %v27 = vrot.slane %v22, %v26
  %v33 = vunpack.c.l.b16 %v18
  %v34 = vunpack.c.l.b16 %v19
  %v35 = vunpack.c.l.b16 %v20
  %v36 = vunpack.c.l.b16 %v21
  %v37 = vpack.c.b16 %v34, %v33
  %v38 = vpack.c.b16 %v36, %v35
  %vm41 = vcmask 261120
  %v43 = vsel %vm41, %v17, 0
  %45 = vmatprep.subr.bf16.mxu0 0
  %46 = vmatpush1.bf16.msra.mxu0 0
  %47 = vmatprep.subr.bf16.mxu0 0
  %48 = vmatpush1.bf16.msra.mxu0 0
  %49 = vmatprep.subr.bf16.mxu0 0
  %50 = vmatpush1.bf16.msra.mxu0 0
  %51 = vmatprep.subr.bf16.mxu0 0
  %52 = vmatpush1.bf16.msra.mxu0 0
  %53 = vmatprep.subr.bf16.mxu0 0
  %54 = vmatpush1.bf16.msra.mxu0 0
  %55 = vmatprep.subr.bf16.mxu0 0
  %56 = vmatpush1.bf16.msra.mxu0 0
  %57 = vmatprep.subr.bf16.mxu0 0
  %58 = vmatpush1.bf16.msra.mxu0 %v38
  %59 = vmatprep.subr.bf16.mxu0 0
  %60 = vmatpush1.bf16.msra.mxu0 %v37
  %61 = vmatprep.subr.bf16.mxu0 0
  %62 = vmatpush2.bf16.msra.mxu0 0
  %63 = vmatprep.subr.bf16.mxu0 0
  %64 = vmatpush2.bf16.msra.mxu0 0
  %65 = vmatprep.subr.bf16.mxu0 0
  %66 = vmatpush2.bf16.msra.mxu0 0
  %67 = vmatprep.subr.bf16.mxu0 0
  %68 = vmatpush2.bf16.msra.mxu0 0
  %69 = vmatprep.subr.bf16.mxu0 0
  %70 = vmatpush2.bf16.msra.mxu0 0
  %71 = vmatprep.subr.bf16.mxu0 0
  %72 = vmatpush2.bf16.msra.mxu0 0
  %73 = vmatprep.subr.bf16.mxu0 0
  %74 = vmatpush2.bf16.msra.mxu0 0
  %75 = vmatprep.subr.bf16.mxu0 0
  %76 = vmatpush2.bf16.msra.mxu0 0
  %77 = vmatprep.mubr.bf16.mxu0 0
  %78 = vmatmul.mubr.bf16.gmra.mxu0 %v43
  %v79 = vpop.f32.mrf.mxu0
  %v80 = vadd.f32 %v27, %v79
  %v81 = vpop.f32.mrf.mxu0
  %v82 = vpop.f32.mrf.mxu0
  %v83 = vadd.f32 %v27, %v82
  %v84 = vpop.f32.mrf.mxu0
  %85 = vdwg.mxu0
  %vm86 = vcmask 523264
  %87 = vst.msk [vmem:[%s3] sm:$0xff] %vm86, %v80
  %88 = vst.msk [vmem:[%s3 + $0x8] sm:$0xff] %vm86, %v83
  // Predicated region
  $region14: #{transformer_forward.17} parent=0 // pred_check
    _
  $region15: #{transformer_forward.17} parent=0 // pred_check_branch
    %90 = sbr.rel (0) target = $region17
  $region16: #{transformer_forward.17} parent=0 // pred_region
    _
  $region17: #{transformer_forward.17} parent=0 // pred_fallthru
    _
  // Predicated region
  $region18: #{transformer_forward.17} parent=0 // pred_check
    _
  $region19: #{transformer_forward.17} parent=0 // pred_check_branch
    %92 = sbr.rel (0) target = $region21
  $region20: #{transformer_forward.17} parent=0 // pred_region
    _
  $region21: #{transformer_forward.17} parent=0 // pred_fallthru
    _

// kernel: transformer_forward.9
$region0: #{transformer_forward.9}
  #allocation0 [shape = 'u32[]', space=smem, size = 0x4, offset = 0x4, fixed_abs, tag = 'smem constant byte address 0x4 - core index']
  #allocation1 [shape = 'u32[144,128]{1,0:T(1,128)}', space=vmem, size = 0x12000, scoped, tag = 'internal scratch']
  #allocation2 [shape = 'f32[16,32]{1,0:T(8,128)}', space=vmem, size = 0x2000, scoped, tag = 'scratch operand']
  %s0 = inlined_call_operand.vmem [shape: f32[16,32], index: 0, kind: input, shape index: {}]
  %s1 = inlined_call_operand.vmem [shape: bf16[32,96], index: 1, kind: input, shape index: {}]
  %s2 = inlined_call_operand.vmem [shape: f32[1,96], index: 2, kind: input, shape index: {}]
  %s3 = inlined_call_operand.vmem [shape: bf16[32,32], index: 3, kind: input, shape index: {}]
  %s4 = inlined_call_operand.vmem [shape: f32[1,32], index: 4, kind: input, shape index: {}]
  %s5 = inlined_call_operand.vmem [shape: f32[1,32], index: 5, kind: input, shape index: {}]
  %s6 = inlined_call_operand.vmem [shape: f32[1,32], index: 6, kind: input, shape index: {}]
  %s7 = inlined_call_operand.vmem [shape: bf16[32,2048], index: 7, kind: input, shape index: {}]
  %s8 = inlined_call_operand.vmem [shape: f32[1,2048], index: 8, kind: input, shape index: {}]
  %s9 = inlined_call_operand.vmem [shape: bf16[2048,32], index: 9, kind: input, shape index: {}]
  %s10 = inlined_call_operand.vmem [shape: f32[1,32], index: 10, kind: input, shape index: {}]
  %s11 = inlined_call_operand.vmem [shape: f32[1,32], index: 11, kind: input, shape index: {}]
  %s12 = inlined_call_operand.vmem [shape: f32[1,32], index: 12, kind: input, shape index: {}]
  %s13 = inlined_call_operand.vmem [shape: f32[16,32], index: 13, kind: output, shape index: {}]
  %s14 = sld [smem:[#allocation0]]
  $region62: #{transformer_forward.9} parent=0
    _
  %s16 = ssub.s32 1, %s14
  %s17 = scalar_select 0, %s16, %s14
  // Predicated region
  $region2: #{transformer_forward.9} parent=0 // pred_check
    _
  $region3: #{transformer_forward.9} parent=0 // pred_check_branch
    %19 = sbr.rel (0) target = $region5
  $region4: #{transformer_forward.9} parent=0 // pred_region
    _
  $region5: #{transformer_forward.9} parent=0 // pred_fallthru
    _
  // Predicated region
  $region6: #{transformer_forward.9} parent=0 // pred_check
    _
  $region7: #{transformer_forward.9} parent=0 // pred_check_branch
    %21 = sbr.rel (0) target = $region9
  $region8: #{transformer_forward.9} parent=0 // pred_region
    _
  $region9: #{transformer_forward.9} parent=0 // pred_fallthru
    _
  // Predicated region
  $region10: #{transformer_forward.9} parent=0 // pred_check
    _
  $region11: #{transformer_forward.9} parent=0 // pred_check_branch
    %23 = sbr.rel (0) target = $region13
  $region12: #{transformer_forward.9} parent=0 // pred_region
    _
  $region13: #{transformer_forward.9} parent=0 // pred_fallthru
    _
  // Predicated region
  $region14: #{transformer_forward.9} parent=0 // pred_check
    _
  $region15: #{transformer_forward.9} parent=0 // pred_check_branch
    %25 = sbr.rel (0) target = $region17
  $region16: #{transformer_forward.9} parent=0 // pred_region
    _
  $region17: #{transformer_forward.9} parent=0 // pred_fallthru
    _
  // Predicated region
  $region18: #{transformer_forward.9} parent=0 // pred_check
    _
  $region19: #{transformer_forward.9} parent=0 // pred_check_branch
    %27 = sbr.rel (0) target = $region21
  $region20: #{transformer_forward.9} parent=0 // pred_region
    _
  $region21: #{transformer_forward.9} parent=0 // pred_fallthru
    _
  // Predicated region
  $region22: #{transformer_forward.9} parent=0 // pred_check
    _
  $region23: #{transformer_forward.9} parent=0 // pred_check_branch
    %29 = sbr.rel (0) target = $region25
  $region24: #{transformer_forward.9} parent=0 // pred_region
    _
  $region25: #{transformer_forward.9} parent=0 // pred_fallthru
    _
  // Predicated region
  $region26: #{transformer_forward.9} parent=0 // pred_check
    _
  $region27: #{transformer_forward.9} parent=0 // pred_check_branch
    %31 = sbr.rel (0) target = $region29
  $region28: #{transformer_forward.9} parent=0 // pred_region
    _
  $region29: #{transformer_forward.9} parent=0 // pred_fallthru
    _
  // Predicated region
  $region30: #{transformer_forward.9} parent=0 // pred_check
    _
  $region31: #{transformer_forward.9} parent=0 // pred_check_branch
    %33 = sbr.rel (0) target = $region33
  $region32: #{transformer_forward.9} parent=0 // pred_region
    _
  $region33: #{transformer_forward.9} parent=0 // pred_fallthru
    _
  // Predicated region
  $region34: #{transformer_forward.9} parent=0 // pred_check
    _
  $region35: #{transformer_forward.9} parent=0 // pred_check_branch
    %35 = sbr.rel (0) target = $region37
  $region36: #{transformer_forward.9} parent=0 // pred_region
    _
  $region37: #{transformer_forward.9} parent=0 // pred_fallthru
    _
  // Predicated region
  $region38: #{transformer_forward.9} parent=0 // pred_check
    _
  $region39: #{transformer_forward.9} parent=0 // pred_check_branch
    %37 = sbr.rel (0) target = $region41
  $region40: #{transformer_forward.9} parent=0 // pred_region
    _
  $region41: #{transformer_forward.9} parent=0 // pred_fallthru
    _
  // Predicated region
  $region42: #{transformer_forward.9} parent=0 // pred_check
    _
  $region43: #{transformer_forward.9} parent=0 // pred_check_branch
    %39 = sbr.rel (0) target = $region45
  $region44: #{transformer_forward.9} parent=0 // pred_region
    _
  $region45: #{transformer_forward.9} parent=0 // pred_fallthru
    _
  // Predicated region
  $region46: #{transformer_forward.9} parent=0 // pred_check
    _
  $region47: #{transformer_forward.9} parent=0 // pred_check_branch
    %41 = sbr.rel (0) target = $region49
  $region48: #{transformer_forward.9} parent=0 // pred_region
    _
  $region49: #{transformer_forward.9} parent=0 // pred_fallthru
    _
  // Predicated region
  $region50: #{transformer_forward.9} parent=0 // pred_check
    _
  $region51: #{transformer_forward.9} parent=0 // pred_check_branch
    %43 = sbr.rel (0) target = $region53
  $region52: #{transformer_forward.9} parent=0 // pred_region
    _
  $region53: #{transformer_forward.9} parent=0 // pred_fallthru
    _
  %v45 = vld [vmem:[%s0] sm:$0xff]
  %v46 = vld [vmem:[%s0 + $0x8] sm:$0xff]
  %v47 = vld [vmem:[%s1] sm:$0xf]
  %v48 = vld [vmem:[%s1 + $0x4] sm:$0xf]
  %v49 = vld [vmem:[%s1 + $0x8] sm:$0xf]
  %v50 = vld [vmem:[%s1 + $0xc] sm:$0xf]
  %v51 = vpack.c.bf16 %v46, %v45
  %v52 = vld [vmem:[%s2] sm:$0x1]
  %v54 = vlaneseq
  %v55 = vshrl.u32 %v54, 7
  %v56 = vsub.s32 0, %v55
  %v57 = vrot.slane %v52, %v56
  %v63 = vunpack.c.l.b16 %v47
  %v64 = vunpack.c.l.b16 %v48
  %v65 = vunpack.c.l.b16 %v49
  %v66 = vunpack.c.l.b16 %v50
  %v67 = vpack.c.b16 %v64, %v63
  %v68 = vpack.c.b16 %v66, %v65
  %vm71 = vcmask 261120
  %v73 = vsel %vm71, %v51, 0
  %75 = vmatprep.subr.bf16.mxu0 0
  %76 = vmatpush1.bf16.msra.mxu0 0
  %77 = vmatprep.subr.bf16.mxu0 0
  %78 = vmatpush1.bf16.msra.mxu0 0
  %79 = vmatprep.subr.bf16.mxu0 0
  %80 = vmatpush1.bf16.msra.mxu0 0
  %81 = vmatprep.subr.bf16.mxu0 0
  %82 = vmatpush1.bf16.msra.mxu0 0
  %83 = vmatprep.subr.bf16.mxu0 0
  %84 = vmatpush1.bf16.msra.mxu0 0
  %85 = vmatprep.subr.bf16.mxu0 0
  %86 = vmatpush1.bf16.msra.mxu0 0
  %87 = vmatprep.subr.bf16.mxu0 0
  %88 = vmatpush1.bf16.msra.mxu0 %v68
  %89 = vmatprep.subr.bf16.mxu0 0
  %90 = vmatpush1.bf16.msra.mxu0 %v67
  %91 = vmatprep.subr.bf16.mxu0 0
  %92 = vmatpush2.bf16.msra.mxu0 0
  %93 = vmatprep.subr.bf16.mxu0 0
  %94 = vmatpush2.bf16.msra.mxu0 0
  %95 = vmatprep.subr.bf16.mxu0 0
  %96 = vmatpush2.bf16.msra.mxu0 0
  %97 = vmatprep.subr.bf16.mxu0 0
  %98 = vmatpush2.bf16.msra.mxu0 0
  %99 = vmatprep.subr.bf16.mxu0 0
  %100 = vmatpush2.bf16.msra.mxu0 0
  %101 = vmatprep.subr.bf16.mxu0 0
  %102 = vmatpush2.bf16.msra.mxu0 0
  %103 = vmatprep.subr.bf16.mxu0 0
  %104 = vmatpush2.bf16.msra.mxu0 0
  %105 = vmatprep.subr.bf16.mxu0 0
  %106 = vmatpush2.bf16.msra.mxu0 0
  %107 = vmatprep.mubr.bf16.mxu0 0
  %108 = vmatmul.mubr.bf16.gmra.mxu0 %v73
  %v109 = vpop.f32.mrf.mxu0
  %v110 = vadd.f32 %v57, %v109
  %v111 = vpop.f32.mrf.mxu0
  %v112 = vpop.f32.mrf.mxu0
  %v113 = vadd.f32 %v57, %v112
  %v114 = vpop.f32.mrf.mxu0
  %115 = vdwg.mxu0
  %117 = vrot.lane.b32.xlu0 %v110, 96
  %v118 = vpop.permute.xlu0 %117
  %vm119 = vcmask 64512
  %v120 = vsel %vm119, %v110, 0
  %v122 = vsel %vm119, %v118, 0
  %124 = vmatprep.subr.mxu0 0.0
  %125 = vmatpush1.xpose.msra.mxu0 0.0
  %126 = vmatprep.subr.mxu0 0.0
  %127 = vmatpush1.xpose.msra.mxu0 0.0
  %128 = vmatprep.subr.mxu0 0.0
  %129 = vmatpush1.xpose.msra.mxu0 0.0
  %130 = vmatprep.subr.mxu0 0.0
  %131 = vmatpush1.xpose.msra.mxu0 0.0
  %132 = vmatprep.subr.mxu0 0.0
  %133 = vmatpush1.xpose.msra.mxu0 0.0
  %134 = vmatprep.subr.mxu0 0.0
  %135 = vmatpush1.xpose.msra.mxu0 0.0
  %136 = vmatprep.subr.mxu0 0.0
  %137 = vmatpush1.xpose.msra.mxu0 0.0
  %138 = vmatprep.subr.mxu0 0.0
  %139 = vmatpush1.xpose.msra.mxu0 0.0
  %140 = vmatprep.subr.mxu0 0.0
  %141 = vmatpush1.xpose.msra.mxu0 0.0
  %142 = vmatprep.subr.mxu0 0.0
  %143 = vmatpush1.xpose.msra.mxu0 0.0
  %144 = vmatprep.subr.mxu0 0.0
  %145 = vmatpush1.xpose.msra.mxu0 0.0
  %146 = vmatprep.subr.mxu0 0.0
  %147 = vmatpush1.xpose.msra.mxu0 0.0
  %148 = vmatprep.subr.mxu0 0.0
  %149 = vmatpush1.xpose.msra.mxu0 0.0
  %150 = vmatprep.subr.mxu0 0.0
  %151 = vmatpush1.xpose.msra.mxu0 0.0
  %152 = vmatprep.subr.mxu0 0.0
  %153 = vmatpush1.xpose.msra.mxu0 0.0
  %154 = vmatprep.subr.mxu0 0.0
  %155 = vmatpush1.xpose.msra.mxu0 %v122
  %156 = vmatprep.subr.mxu0 0.0
  %157 = vmatpush2.xpose.msra.mxu0 0.0
  %158 = vmatprep.subr.mxu0 0.0
  %159 = vmatpush2.xpose.msra.mxu0 0.0
  %160 = vmatprep.subr.mxu0 0.0
  %161 = vmatpush2.xpose.msra.mxu0 0.0
  %162 = vmatprep.subr.mxu0 0.0
  %163 = vmatpush2.xpose.msra.mxu0 0.0
  %164 = vmatprep.subr.mxu0 0.0
  %165 = vmatpush2.xpose.msra.mxu0 0.0
  %166 = vmatprep.subr.mxu0 0.0
  %167 = vmatpush2.xpose.msra.mxu0 0.0
  %168 = vmatprep.subr.mxu0 0.0
  %169 = vmatpush2.xpose.msra.mxu0 0.0
  %170 = vmatprep.subr.mxu0 0.0
  %171 = vmatpush2.xpose.msra.mxu0 0.0
  %172 = vmatprep.subr.mxu0 0.0
  %173 = vmatpush2.xpose.msra.mxu0 0.0
  %174 = vmatprep.subr.mxu0 0.0
  %175 = vmatpush2.xpose.msra.mxu0 0.0
  %176 = vmatprep.subr.mxu0 0.0
  %177 = vmatpush2.xpose.msra.mxu0 0.0
  %178 = vmatprep.subr.mxu0 0.0
  %179 = vmatpush2.xpose.msra.mxu0 0.0
  %180 = vmatprep.subr.mxu0 0.0
  %181 = vmatpush2.xpose.msra.mxu0 0.0
  %182 = vmatprep.subr.mxu0 0.0
  %183 = vmatpush2.xpose.msra.mxu0 0.0
  %184 = vmatprep.subr.mxu0 0.0
  %185 = vmatpush2.xpose.msra.mxu0 0.0
  %186 = vmatprep.subr.mxu0 0.0
  %187 = vmatpush2.xpose.msra.mxu0 0.0
  %188 = vmatprep.mubr.f32.mxu0 0.0
  %189 = vmatmul.mubr.f32.gmra.mxu0 %v120
  %v190 = vpop.f32.mrf.mxu0
  %v191 = vadd.f32 0.0, %v190
  %v192 = vpop.f32.mrf.mxu0
  %193 = vdwg.mxu0
  %v194 = vmul.f32 %v191, 0.35355338
  %v195 = vsel %vm119, %v194, -inf
  %196 = vmax.xlane.f32.xlu0 %v195
  %v197 = vpop.xlane.xlu0 %196
  %v198 = vsub.f32 %v194, %v197
  %v199 = vmul.f32 %v198, 1.442695
  %v200 = vpow.pop %v199
  %v201 = vsel %vm119, %v200, 0.0
  %202 = vadd.xlane.f32.xlu0 %v201
  %v203 = vpop.xlane.xlu0 %202
  %v204 = vrcp.pop %v203
  %v205 = vmul.f32 %v200, %v204
  %206 = vrot.lane.b32.xlu0 %v110, 64
  %v207 = vpop.permute.xlu0 %206
  %v210 = vsel %vm119, %v205, 0
  %212 = vmatprep.subr.mxu0 0.0
  %213 = vmatpush1.msra.mxu0 0.0
  %214 = vmatprep.subr.mxu0 0.0
  %215 = vmatpush1.msra.mxu0 0.0
  %216 = vmatprep.subr.mxu0 0.0
  %217 = vmatpush1.msra.mxu0 0.0
  %218 = vmatprep.subr.mxu0 0.0
  %219 = vmatpush1.msra.mxu0 0.0
  %220 = vmatprep.subr.mxu0 0.0
  %221 = vmatpush1.msra.mxu0 0.0
  %222 = vmatprep.subr.mxu0 0.0
  %223 = vmatpush1.msra.mxu0 0.0
  %224 = vmatprep.subr.mxu0 0.0
  %225 = vmatpush1.msra.mxu0 0.0
  %226 = vmatprep.subr.mxu0 0.0
  %227 = vmatpush1.msra.mxu0 0.0
  %228 = vmatprep.subr.mxu0 0.0
  %229 = vmatpush1.msra.mxu0 0.0
  %230 = vmatprep.subr.mxu0 0.0
  %231 = vmatpush1.msra.mxu0 0.0
  %232 = vmatprep.subr.mxu0 0.0
  %233 = vmatpush1.msra.mxu0 0.0
  %234 = vmatprep.subr.mxu0 0.0
  %235 = vmatpush1.msra.mxu0 0.0
  %236 = vmatprep.subr.mxu0 0.0
  %237 = vmatpush1.msra.mxu0 0.0
  %238 = vmatprep.subr.mxu0 0.0
  %239 = vmatpush1.msra.mxu0 0.0
  %240 = vmatprep.subr.mxu0 0.0
  %241 = vmatpush1.msra.mxu0 0.0
  %242 = vmatprep.subr.mxu0 0.0
  %243 = vmatpush1.msra.mxu0 %v207
  %244 = vmatprep.subr.mxu0 0.0
  %245 = vmatpush2.msra.mxu0 0.0
  %246 = vmatprep.subr.mxu0 0.0
  %247 = vmatpush2.msra.mxu0 0.0
  %248 = vmatprep.subr.mxu0 0.0
  %249 = vmatpush2.msra.mxu0 0.0
  %250 = vmatprep.subr.mxu0 0.0
  %251 = vmatpush2.msra.mxu0 0.0
  %252 = vmatprep.subr.mxu0 0.0
  %253 = vmatpush2.msra.mxu0 0.0
  %254 = vmatprep.subr.mxu0 0.0
  %255 = vmatpush2.msra.mxu0 0.0
  %256 = vmatprep.subr.mxu0 0.0
  %257 = vmatpush2.msra.mxu0 0.0
  %258 = vmatprep.subr.mxu0 0.0
  %259 = vmatpush2.msra.mxu0 0.0
  %260 = vmatprep.subr.mxu0 0.0
  %261 = vmatpush2.msra.mxu0 0.0
  %262 = vmatprep.subr.mxu0 0.0
  %263 = vmatpush2.msra.mxu0 0.0
  %264 = vmatprep.subr.mxu0 0.0
  %265 = vmatpush2.msra.mxu0 0.0
  %266 = vmatprep.subr.mxu0 0.0
  %267 = vmatpush2.msra.mxu0 0.0
  %268 = vmatprep.subr.mxu0 0.0
  %269 = vmatpush2.msra.mxu0 0.0
  %270 = vmatprep.subr.mxu0 0.0
  %271 = vmatpush2.msra.mxu0 0.0
  %272 = vmatprep.subr.mxu0 0.0
  %273 = vmatpush2.msra.mxu0 0.0
  %274 = vmatprep.subr.mxu0 0.0
  %275 = vmatpush2.msra.mxu0 0.0
  %276 = vmatprep.mubr.f32.mxu0 0.0
  %277 = vmatmul.mubr.f32.gmra.mxu0 %v210
  %v278 = vpop.f32.mrf.mxu0
  %v279 = vadd.f32 0.0, %v278
  %v280 = vpop.f32.mrf.mxu0
  %281 = vdwg.mxu0
  %282 = vst.msk [vmem:[#allocation2] sm:$0xff] %vm119, %v279
  %283 = vrot.lane.b32.xlu0 %v110, 120
  %v284 = vpop.permute.xlu0 %283
  %285 = vrot.lane.b32.xlu0 %v110, 88
  %v286 = vpop.permute.xlu0 %285
  %v287 = vsel %vm119, %v284, 0
  %v289 = vsel %vm119, %v286, 0
  %291 = vmatprep.subr.mxu0 0.0
  %292 = vmatpush1.xpose.msra.mxu0 0.0
  %293 = vmatprep.subr.mxu0 0.0
  %294 = vmatpush1.xpose.msra.mxu0 0.0
  %295 = vmatprep.subr.mxu0 0.0
  %296 = vmatpush1.xpose.msra.mxu0 0.0
  %297 = vmatprep.subr.mxu0 0.0
  %298 = vmatpush1.xpose.msra.mxu0 0.0
  %299 = vmatprep.subr.mxu0 0.0
  %300 = vmatpush1.xpose.msra.mxu0 0.0
  %301 = vmatprep.subr.mxu0 0.0
  %302 = vmatpush1.xpose.msra.mxu0 0.0
  %303 = vmatprep.subr.mxu0 0.0
  %304 = vmatpush1.xpose.msra.mxu0 0.0
  %305 = vmatprep.subr.mxu0 0.0
  %306 = vmatpush1.xpose.msra.mxu0 0.0
  %307 = vmatprep.subr.mxu0 0.0
  %308 = vmatpush1.xpose.msra.mxu0 0.0
  %309 = vmatprep.subr.mxu0 0.0
  %310 = vmatpush1.xpose.msra.mxu0 0.0
  %311 = vmatprep.subr.mxu0 0.0
  %312 = vmatpush1.xpose.msra.mxu0 0.0
  %313 = vmatprep.subr.mxu0 0.0
  %314 = vmatpush1.xpose.msra.mxu0 0.0
  %315 = vmatprep.subr.mxu0 0.0
  %316 = vmatpush1.xpose.msra.mxu0 0.0
  %317 = vmatprep.subr.mxu0 0.0
  %318 = vmatpush1.xpose.msra.mxu0 0.0
  %319 = vmatprep.subr.mxu0 0.0
  %320 = vmatpush1.xpose.msra.mxu0 0.0
  %321 = vmatprep.subr.mxu0 0.0
  %322 = vmatpush1.xpose.msra.mxu0 %v289
  %323 = vmatprep.subr.mxu0 0.0
  %324 = vmatpush2.xpose.msra.mxu0 0.0
  %325 = vmatprep.subr.mxu0 0.0
  %326 = vmatpush2.xpose.msra.mxu0 0.0
  %327 = vmatprep.subr.mxu0 0.0
  %328 = vmatpush2.xpose.msra.mxu0 0.0
  %329 = vmatprep.subr.mxu0 0.0
  %330 = vmatpush2.xpose.msra.mxu0 0.0
  %331 = vmatprep.subr.mxu0 0.0
  %332 = vmatpush2.xpose.msra.mxu0 0.0
  %333 = vmatprep.subr.mxu0 0.0
  %334 = vmatpush2.xpose.msra.mxu0 0.0
  %335 = vmatprep.subr.mxu0 0.0
  %336 = vmatpush2.xpose.msra.mxu0 0.0
  %337 = vmatprep.subr.mxu0 0.0
  %338 = vmatpush2.xpose.msra.mxu0 0.0
  %339 = vmatprep.subr.mxu0 0.0
  %340 = vmatpush2.xpose.msra.mxu0 0.0
  %341 = vmatprep.subr.mxu0 0.0
  %342 = vmatpush2.xpose.msra.mxu0 0.0
  %343 = vmatprep.subr.mxu0 0.0
  %344 = vmatpush2.xpose.msra.mxu0 0.0
  %345 = vmatprep.subr.mxu0 0.0
  %346 = vmatpush2.xpose.msra.mxu0 0.0
  %347 = vmatprep.subr.mxu0 0.0
  %348 = vmatpush2.xpose.msra.mxu0 0.0
  %349 = vmatprep.subr.mxu0 0.0
  %350 = vmatpush2.xpose.msra.mxu0 0.0
  %351 = vmatprep.subr.mxu0 0.0
  %352 = vmatpush2.xpose.msra.mxu0 0.0
  %353 = vmatprep.subr.mxu0 0.0
  %354 = vmatpush2.xpose.msra.mxu0 0.0
  %355 = vmatprep.mubr.f32.mxu0 0.0
  %356 = vmatmul.mubr.f32.gmra.mxu0 %v287
  %v357 = vpop.f32.mrf.mxu0
  %v358 = vadd.f32 0.0, %v357
  %v359 = vpop.f32.mrf.mxu0
  %360 = vdwg.mxu0
  %v361 = vmul.f32 %v358, 0.35355338
  %v362 = vsel %vm119, %v361, -inf
  %363 = vmax.xlane.f32.xlu0 %v362
  %v364 = vpop.xlane.xlu0 %363
  %v365 = vsub.f32 %v361, %v364
  %v366 = vmul.f32 %v365, 1.442695
  %v367 = vpow.pop %v366
  %v368 = vsel %vm119, %v367, 0.0
  %369 = vadd.xlane.f32.xlu0 %v368
  %v370 = vpop.xlane.xlu0 %369
  %v371 = vrcp.pop %v370
  %v372 = vmul.f32 %v367, %v371
  %373 = vrot.lane.b32.xlu0 %v110, 56
  %v374 = vpop.permute.xlu0 %373
  %v377 = vsel %vm119, %v372, 0
  %379 = vmatprep.subr.mxu0 0.0
  %380 = vmatpush1.msra.mxu0 0.0
  %381 = vmatprep.subr.mxu0 0.0
  %382 = vmatpush1.msra.mxu0 0.0
  %383 = vmatprep.subr.mxu0 0.0
  %384 = vmatpush1.msra.mxu0 0.0
  %385 = vmatprep.subr.mxu0 0.0
  %386 = vmatpush1.msra.mxu0 0.0
  %387 = vmatprep.subr.mxu0 0.0
  %388 = vmatpush1.msra.mxu0 0.0
  %389 = vmatprep.subr.mxu0 0.0
  %390 = vmatpush1.msra.mxu0 0.0
  %391 = vmatprep.subr.mxu0 0.0
  %392 = vmatpush1.msra.mxu0 0.0
  %393 = vmatprep.subr.mxu0 0.0
  %394 = vmatpush1.msra.mxu0 0.0
  %395 = vmatprep.subr.mxu0 0.0
  %396 = vmatpush1.msra.mxu0 0.0
  %397 = vmatprep.subr.mxu0 0.0
  %398 = vmatpush1.msra.mxu0 0.0
  %399 = vmatprep.subr.mxu0 0.0
  %400 = vmatpush1.msra.mxu0 0.0
  %401 = vmatprep.subr.mxu0 0.0
  %402 = vmatpush1.msra.mxu0 0.0
  %403 = vmatprep.subr.mxu0 0.0
  %404 = vmatpush1.msra.mxu0 0.0
  %405 = vmatprep.subr.mxu0 0.0
  %406 = vmatpush1.msra.mxu0 0.0
  %407 = vmatprep.subr.mxu0 0.0
  %408 = vmatpush1.msra.mxu0 0.0
  %409 = vmatprep.subr.mxu0 0.0
  %410 = vmatpush1.msra.mxu0 %v374
  %411 = vmatprep.subr.mxu0 0.0
  %412 = vmatpush2.msra.mxu0 0.0
  %413 = vmatprep.subr.mxu0 0.0
  %414 = vmatpush2.msra.mxu0 0.0
  %415 = vmatprep.subr.mxu0 0.0
  %416 = vmatpush2.msra.mxu0 0.0
  %417 = vmatprep.subr.mxu0 0.0
  %418 = vmatpush2.msra.mxu0 0.0
  %419 = vmatprep.subr.mxu0 0.0
  %420 = vmatpush2.msra.mxu0 0.0
  %421 = vmatprep.subr.mxu0 0.0
  %422 = vmatpush2.msra.mxu0 0.0
  %423 = vmatprep.subr.mxu0 0.0
  %424 = vmatpush2.msra.mxu0 0.0
  %425 = vmatprep.subr.mxu0 0.0
  %426 = vmatpush2.msra.mxu0 0.0
  %427 = vmatprep.subr.mxu0 0.0
  %428 = vmatpush2.msra.mxu0 0.0
  %429 = vmatprep.subr.mxu0 0.0
  %430 = vmatpush2.msra.mxu0 0.0
  %431 = vmatprep.subr.mxu0 0.0
  %432 = vmatpush2.msra.mxu0 0.0
  %433 = vmatprep.subr.mxu0 0.0
  %434 = vmatpush2.msra.mxu0 0.0
  %435 = vmatprep.subr.mxu0 0.0
  %436 = vmatpush2.msra.mxu0 0.0
  %437 = vmatprep.subr.mxu0 0.0
  %438 = vmatpush2.msra.mxu0 0.0
  %439 = vmatprep.subr.mxu0 0.0
  %440 = vmatpush2.msra.mxu0 0.0
  %441 = vmatprep.subr.mxu0 0.0
  %442 = vmatpush2.msra.mxu0 0.0
  %443 = vmatprep.mubr.f32.mxu0 0.0
  %444 = vmatmul.mubr.f32.gmra.mxu0 %v377
  %v445 = vpop.f32.mrf.mxu0
  %v446 = vadd.f32 0.0, %v445
  %v447 = vpop.f32.mrf.mxu0
  %448 = vdwg.mxu0
  %450 = vrot.lane.b32.xlu0 %v446, 8
  %v451 = vpop.permute.xlu0 %450
  %vm453 = vcmask 130112
  %454 = vst.msk [vmem:[#allocation2] sm:$0xff] %vm453, %v451
  %455 = vrot.lane.b32.xlu0 %v110, 112
  %v456 = vpop.permute.xlu0 %455
  %457 = vrot.lane.b32.xlu0 %v110, 80
  %v458 = vpop.permute.xlu0 %457
  %v459 = vsel %vm119, %v456, 0
  %v461 = vsel %vm119, %v458, 0
  %463 = vmatprep.subr.mxu0 0.0
  %464 = vmatpush1.xpose.msra.mxu0 0.0
  %465 = vmatprep.subr.mxu0 0.0
  %466 = vmatpush1.xpose.msra.mxu0 0.0
  %467 = vmatprep.subr.mxu0 0.0
  %468 = vmatpush1.xpose.msra.mxu0 0.0
  %469 = vmatprep.subr.mxu0 0.0
  %470 = vmatpush1.xpose.msra.mxu0 0.0
  %471 = vmatprep.subr.mxu0 0.0
  %472 = vmatpush1.xpose.msra.mxu0 0.0
  %473 = vmatprep.subr.mxu0 0.0
  %474 = vmatpush1.xpose.msra.mxu0 0.0
  %475 = vmatprep.subr.mxu0 0.0
  %476 = vmatpush1.xpose.msra.mxu0 0.0
  %477 = vmatprep.subr.mxu0 0.0
  %478 = vmatpush1.xpose.msra.mxu0 0.0
  %479 = vmatprep.subr.mxu0 0.0
  %480 = vmatpush1.xpose.msra.mxu0 0.0
  %481 = vmatprep.subr.mxu0 0.0
  %482 = vmatpush1.xpose.msra.mxu0 0.0
  %483 = vmatprep.subr.mxu0 0.0
  %484 = vmatpush1.xpose.msra.mxu0 0.0
  %485 = vmatprep.subr.mxu0 0.0
  %486 = vmatpush1.xpose.msra.mxu0 0.0
  %487 = vmatprep.subr.mxu0 0.0
  %488 = vmatpush1.xpose.msra.mxu0 0.0
  %489 = vmatprep.subr.mxu0 0.0
  %490 = vmatpush1.xpose.msra.mxu0 0.0
  %491 = vmatprep.subr.mxu0 0.0
  %492 = vmatpush1.xpose.msra.mxu0 0.0
  %493 = vmatprep.subr.mxu0 0.0
  %494 = vmatpush1.xpose.msra.mxu0 %v461
  %495 = vmatprep.subr.mxu0 0.0
  %496 = vmatpush2.xpose.msra.mxu0 0.0
  %497 = vmatprep.subr.mxu0 0.0
  %498 = vmatpush2.xpose.msra.mxu0 0.0
  %499 = vmatprep.subr.mxu0 0.0
  %500 = vmatpush2.xpose.msra.mxu0 0.0
  %501 = vmatprep.subr.mxu0 0.0
  %502 = vmatpush2.xpose.msra.mxu0 0.0
  %503 = vmatprep.subr.mxu0 0.0
  %504 = vmatpush2.xpose.msra.mxu0 0.0
  %505 = vmatprep.subr.mxu0 0.0
  %506 = vmatpush2.xpose.msra.mxu0 0.0
  %507 = vmatprep.subr.mxu0 0.0
  %508 = vmatpush2.xpose.msra.mxu0 0.0
  %509 = vmatprep.subr.mxu0 0.0
  %510 = vmatpush2.xpose.msra.mxu0 0.0
  %511 = vmatprep.subr.mxu0 0.0
  %512 = vmatpush2.xpose.msra.mxu0 0.0
  %513 = vmatprep.subr.mxu0 0.0
  %514 = vmatpush2.xpose.msra.mxu0 0.0
  %515 = vmatprep.subr.mxu0 0.0
  %516 = vmatpush2.xpose.msra.mxu0 0.0
  %517 = vmatprep.subr.mxu0 0.0
  %518 = vmatpush2.xpose.msra.mxu0 0.0
  %519 = vmatprep.subr.mxu0 0.0
  %520 = vmatpush2.xpose.msra.mxu0 0.0
  %521 = vmatprep.subr.mxu0 0.0
  %522 = vmatpush2.xpose.msra.mxu0 0.0
  %523 = vmatprep.subr.mxu0 0.0
  %524 = vmatpush2.xpose.msra.mxu0 0.0
  %525 = vmatprep.subr.mxu0 0.0
  %526 = vmatpush2.xpose.msra.mxu0 0.0
  %527 = vmatprep.mubr.f32.mxu0 0.0
  %528 = vmatmul.mubr.f32.gmra.mxu0 %v459
  %v529 = vpop.f32.mrf.mxu0
  %v530 = vadd.f32 0.0, %v529
  %v531 = vpop.f32.mrf.mxu0
  %532 = vdwg.mxu0
  %v533 = vmul.f32 %v530, 0.35355338
  %v534 = vsel %vm119, %v533, -inf
  %535 = vmax.xlane.f32.xlu0 %v534
  %v536 = vpop.xlane.xlu0 %535
  %v537 = vsub.f32 %v533, %v536
  %v538 = vmul.f32 %v537, 1.442695
  %v539 = vpow.pop %v538
  %v540 = vsel %vm119, %v539, 0.0
  %541 = vadd.xlane.f32.xlu0 %v540
  %v542 = vpop.xlane.xlu0 %541
  %v543 = vrcp.pop %v542
  %v544 = vmul.f32 %v539, %v543
  %545 = vrot.lane.b32.xlu0 %v110, 48
  %v546 = vpop.permute.xlu0 %545
  %v549 = vsel %vm119, %v544, 0
  %551 = vmatprep.subr.mxu0 0.0
  %552 = vmatpush1.msra.mxu0 0.0
  %553 = vmatprep.subr.mxu0 0.0
  %554 = vmatpush1.msra.mxu0 0.0
  %555 = vmatprep.subr.mxu0 0.0
  %556 = vmatpush1.msra.mxu0 0.0
  %557 = vmatprep.subr.mxu0 0.0
  %558 = vmatpush1.msra.mxu0 0.0
  %559 = vmatprep.subr.mxu0 0.0
  %560 = vmatpush1.msra.mxu0 0.0
  %561 = vmatprep.subr.mxu0 0.0
  %562 = vmatpush1.msra.mxu0 0.0
  %563 = vmatprep.subr.mxu0 0.0
  %564 = vmatpush1.msra.mxu0 0.0
  %565 = vmatprep.subr.mxu0 0.0
  %566 = vmatpush1.msra.mxu0 0.0
  %567 = vmatprep.subr.mxu0 0.0
  %568 = vmatpush1.msra.mxu0 0.0
  %569 = vmatprep.subr.mxu0 0.0
  %570 = vmatpush1.msra.mxu0 0.0
  %571 = vmatprep.subr.mxu0 0.0
  %572 = vmatpush1.msra.mxu0 0.0
  %573 = vmatprep.subr.mxu0 0.0
  %574 = vmatpush1.msra.mxu0 0.0
  %575 = vmatprep.subr.mxu0 0.0
  %576 = vmatpush1.msra.mxu0 0.0
  %577 = vmatprep.subr.mxu0 0.0
  %578 = vmatpush1.msra.mxu0 0.0
  %579 = vmatprep.subr.mxu0 0.0
  %580 = vmatpush1.msra.mxu0 0.0
  %581 = vmatprep.subr.mxu0 0.0
  %582 = vmatpush1.msra.mxu0 %v546
  %583 = vmatprep.subr.mxu0 0.0
  %584 = vmatpush2.msra.mxu0 0.0
  %585 = vmatprep.subr.mxu0 0.0
  %586 = vmatpush2.msra.mxu0 0.0
  %587 = vmatprep.subr.mxu0 0.0
  %588 = vmatpush2.msra.mxu0 0.0
  %589 = vmatprep.subr.mxu0 0.0
  %590 = vmatpush2.msra.mxu0 0.0
  %591 = vmatprep.subr.mxu0 0.0
  %592 = vmatpush2.msra.mxu0 0.0
  %593 = vmatprep.subr.mxu0 0.0
  %594 = vmatpush2.msra.mxu0 0.0
  %595 = vmatprep.subr.mxu0 0.0
  %596 = vmatpush2.msra.mxu0 0.0
  %597 = vmatprep.subr.mxu0 0.0
  %598 = vmatpush2.msra.mxu0 0.0
  %599 = vmatprep.subr.mxu0 0.0
  %600 = vmatpush2.msra.mxu0 0.0
  %601 = vmatprep.subr.mxu0 0.0
  %602 = vmatpush2.msra.mxu0 0.0
  %603 = vmatprep.subr.mxu0 0.0
  %604 = vmatpush2.msra.mxu0 0.0
  %605 = vmatprep.subr.mxu0 0.0
  %606 = vmatpush2.msra.mxu0 0.0
  %607 = vmatprep.subr.mxu0 0.0
  %608 = vmatpush2.msra.mxu0 0.0
  %609 = vmatprep.subr.mxu0 0.0
  %610 = vmatpush2.msra.mxu0 0.0
  %611 = vmatprep.subr.mxu0 0.0
  %612 = vmatpush2.msra.mxu0 0.0
  %613 = vmatprep.subr.mxu0 0.0
  %614 = vmatpush2.msra.mxu0 0.0
  %615 = vmatprep.mubr.f32.mxu0 0.0
  %616 = vmatmul.mubr.f32.gmra.mxu0 %v549
  %v617 = vpop.f32.mrf.mxu0
  %v618 = vadd.f32 0.0, %v617
  %v619 = vpop.f32.mrf.mxu0
  %620 = vdwg.mxu0
  %622 = vrot.lane.b32.xlu0 %v618, 16
  %v623 = vpop.permute.xlu0 %622
  %vm625 = vcmask 195712
  %626 = vst.msk [vmem:[#allocation2] sm:$0xff] %vm625, %v623
  %627 = vrot.lane.b32.xlu0 %v110, 104
  %v628 = vpop.permute.xlu0 %627
  %629 = vrot.lane.b32.xlu0 %v110, 72
  %v630 = vpop.permute.xlu0 %629
  %v631 = vsel %vm119, %v628, 0
  %v633 = vsel %vm119, %v630, 0
  %635 = vmatprep.subr.mxu0 0.0
  %636 = vmatpush1.xpose.msra.mxu0 0.0
  %637 = vmatprep.subr.mxu0 0.0
  %638 = vmatpush1.xpose.msra.mxu0 0.0
  %639 = vmatprep.subr.mxu0 0.0
  %640 = vmatpush1.xpose.msra.mxu0 0.0
  %641 = vmatprep.subr.mxu0 0.0
  %642 = vmatpush1.xpose.msra.mxu0 0.0
  %643 = vmatprep.subr.mxu0 0.0
  %644 = vmatpush1.xpose.msra.mxu0 0.0
  %645 = vmatprep.subr.mxu0 0.0
  %646 = vmatpush1.xpose.msra.mxu0 0.0
  %647 = vmatprep.subr.mxu0 0.0
  %648 = vmatpush1.xpose.msra.mxu0 0.0
  %649 = vmatprep.subr.mxu0 0.0
  %650 = vmatpush1.xpose.msra.mxu0 0.0
  %651 = vmatprep.subr.mxu0 0.0
  %652 = vmatpush1.xpose.msra.mxu0 0.0
  %653 = vmatprep.subr.mxu0 0.0
  %654 = vmatpush1.xpose.msra.mxu0 0.0
  %655 = vmatprep.subr.mxu0 0.0
  %656 = vmatpush1.xpose.msra.mxu0 0.0
  %657 = vmatprep.subr.mxu0 0.0
  %658 = vmatpush1.xpose.msra.mxu0 0.0
  %659 = vmatprep.subr.mxu0 0.0
  %660 = vmatpush1.xpose.msra.mxu0 0.0
  %661 = vmatprep.subr.mxu0 0.0
  %662 = vmatpush1.xpose.msra.mxu0 0.0
  %663 = vmatprep.subr.mxu0 0.0
  %664 = vmatpush1.xpose.msra.mxu0 0.0
  %665 = vmatprep.subr.mxu0 0.0
  %666 = vmatpush1.xpose.msra.mxu0 %v633
  %667 = vmatprep.subr.mxu0 0.0
  %668 = vmatpush2.xpose.msra.mxu0 0.0
  %669 = vmatprep.subr.mxu0 0.0
  %670 = vmatpush2.xpose.msra.mxu0 0.0
  %671 = vmatprep.subr.mxu0 0.0
  %672 = vmatpush2.xpose.msra.mxu0 0.0
  %673 = vmatprep.subr.mxu0 0.0
  %674 = vmatpush2.xpose.msra.mxu0 0.0
  %675 = vmatprep.subr.mxu0 0.0
  %676 = vmatpush2.xpose.msra.mxu0 0.0
  %677 = vmatprep.subr.mxu0 0.0
  %678 = vmatpush2.xpose.msra.mxu0 0.0
  %679 = vmatprep.subr.mxu0 0.0
  %680 = vmatpush2.xpose.msra.mxu0 0.0
  %681 = vmatprep.subr.mxu0 0.0
  %682 = vmatpush2.xpose.msra.mxu0 0.0
  %683 = vmatprep.subr.mxu0 0.0
  %684 = vmatpush2.xpose.msra.mxu0 0.0
  %685 = vmatprep.subr.mxu0 0.0
  %686 = vmatpush2.xpose.msra.mxu0 0.0
  %687 = vmatprep.subr.mxu0 0.0
  %688 = vmatpush2.xpose.msra.mxu0 0.0
  %689 = vmatprep.subr.mxu0 0.0
  %690 = vmatpush2.xpose.msra.mxu0 0.0
  %691 = vmatprep.subr.mxu0 0.0
  %692 = vmatpush2.xpose.msra.mxu0 0.0
  %693 = vmatprep.subr.mxu0 0.0
  %694 = vmatpush2.xpose.msra.mxu0 0.0
  %695 = vmatprep.subr.mxu0 0.0
  %696 = vmatpush2.xpose.msra.mxu0 0.0
  %697 = vmatprep.subr.mxu0 0.0
  %698 = vmatpush2.xpose.msra.mxu0 0.0
  %699 = vmatprep.mubr.f32.mxu0 0.0
  %700 = vmatmul.mubr.f32.gmra.mxu0 %v631
  %v701 = vpop.f32.mrf.mxu0
  %v702 = vadd.f32 0.0, %v701
  %v703 = vpop.f32.mrf.mxu0
  %704 = vdwg.mxu0
  %v705 = vmul.f32 %v702, 0.35355338
  %v706 = vsel %vm119, %v705, -inf
  %707 = vmax.xlane.f32.xlu0 %v706
  %v708 = vpop.xlane.xlu0 %707
  %v709 = vsub.f32 %v705, %v708
  %v710 = vmul.f32 %v709, 1.442695
  %v711 = vpow.pop %v710
  %v712 = vsel %vm119, %v711, 0.0
  %713 = vadd.xlane.f32.xlu0 %v712
  %v714 = vpop.xlane.xlu0 %713
  %v715 = vrcp.pop %v714
  %v716 = vmul.f32 %v711, %v715
  %717 = vrot.lane.b32.xlu0 %v110, 40
  %v718 = vpop.permute.xlu0 %717
  %v721 = vsel %vm119, %v716, 0
  %723 = vmatprep.subr.mxu0 0.0
  %724 = vmatpush1.msra.mxu0 0.0
  %725 = vmatprep.subr.mxu0 0.0
  %726 = vmatpush1.msra.mxu0 0.0
  %727 = vmatprep.subr.mxu0 0.0
  %728 = vmatpush1.msra.mxu0 0.0
  %729 = vmatprep.subr.mxu0 0.0
  %730 = vmatpush1.msra.mxu0 0.0
  %731 = vmatprep.subr.mxu0 0.0
  %732 = vmatpush1.msra.mxu0 0.0
  %733 = vmatprep.subr.mxu0 0.0
  %734 = vmatpush1.msra.mxu0 0.0
  %735 = vmatprep.subr.mxu0 0.0
  %736 = vmatpush1.msra.mxu0 0.0
  %737 = vmatprep.subr.mxu0 0.0
  %738 = vmatpush1.msra.mxu0 0.0
  %739 = vmatprep.subr.mxu0 0.0
  %740 = vmatpush1.msra.mxu0 0.0
  %741 = vmatprep.subr.mxu0 0.0
  %742 = vmatpush1.msra.mxu0 0.0
  %743 = vmatprep.subr.mxu0 0.0
  %744 = vmatpush1.msra.mxu0 0.0
  %745 = vmatprep.subr.mxu0 0.0
  %746 = vmatpush1.msra.mxu0 0.0
  %747 = vmatprep.subr.mxu0 0.0
  %748 = vmatpush1.msra.mxu0 0.0
  %749 = vmatprep.subr.mxu0 0.0
  %750 = vmatpush1.msra.mxu0 0.0
  %751 = vmatprep.subr.mxu0 0.0
  %752 = vmatpush1.msra.mxu0 0.0
  %753 = vmatprep.subr.mxu0 0.0
  %754 = vmatpush1.msra.mxu0 %v718
  %755 = vmatprep.subr.mxu0 0.0
  %756 = vmatpush2.msra.mxu0 0.0
  %757 = vmatprep.subr.mxu0 0.0
  %758 = vmatpush2.msra.mxu0 0.0
  %759 = vmatprep.subr.mxu0 0.0
  %760 = vmatpush2.msra.mxu0 0.0
  %761 = vmatprep.subr.mxu0 0.0
  %762 = vmatpush2.msra.mxu0 0.0
  %763 = vmatprep.subr.mxu0 0.0
  %764 = vmatpush2.msra.mxu0 0.0
  %765 = vmatprep.subr.mxu0 0.0
  %766 = vmatpush2.msra.mxu0 0.0
  %767 = vmatprep.subr.mxu0 0.0
  %768 = vmatpush2.msra.mxu0 0.0
  %769 = vmatprep.subr.mxu0 0.0
  %770 = vmatpush2.msra.mxu0 0.0
  %771 = vmatprep.subr.mxu0 0.0
  %772 = vmatpush2.msra.mxu0 0.0
  %773 = vmatprep.subr.mxu0 0.0
  %774 = vmatpush2.msra.mxu0 0.0
  %775 = vmatprep.subr.mxu0 0.0
  %776 = vmatpush2.msra.mxu0 0.0
  %777 = vmatprep.subr.mxu0 0.0
  %778 = vmatpush2.msra.mxu0 0.0
  %779 = vmatprep.subr.mxu0 0.0
  %780 = vmatpush2.msra.mxu0 0.0
  %781 = vmatprep.subr.mxu0 0.0
  %782 = vmatpush2.msra.mxu0 0.0
  %783 = vmatprep.subr.mxu0 0.0
  %784 = vmatpush2.msra.mxu0 0.0
  %785 = vmatprep.subr.mxu0 0.0
  %786 = vmatpush2.msra.mxu0 0.0
  %787 = vmatprep.mubr.f32.mxu0 0.0
  %788 = vmatmul.mubr.f32.gmra.mxu0 %v721
  %v789 = vpop.f32.mrf.mxu0
  %v790 = vadd.f32 0.0, %v789
  %v791 = vpop.f32.mrf.mxu0
  %792 = vdwg.mxu0
  %794 = vrot.lane.b32.xlu0 %v790, 24
  %v795 = vpop.permute.xlu0 %794
  %vm797 = vcmask 261312
  %798 = vst.msk [vmem:[#allocation2] sm:$0xff] %vm797, %v795
  %800 = vrot.lane.b32.xlu0 %v113, 96
  %v801 = vpop.permute.xlu0 %800
  %v802 = vsel %vm119, %v113, 0
  %v804 = vsel %vm119, %v801, 0
  %806 = vmatprep.subr.mxu0 0.0
  %807 = vmatpush1.xpose.msra.mxu0 0.0
  %808 = vmatprep.subr.mxu0 0.0
  %809 = vmatpush1.xpose.msra.mxu0 0.0
  %810 = vmatprep.subr.mxu0 0.0
  %811 = vmatpush1.xpose.msra.mxu0 0.0
  %812 = vmatprep.subr.mxu0 0.0
  %813 = vmatpush1.xpose.msra.mxu0 0.0
  %814 = vmatprep.subr.mxu0 0.0
  %815 = vmatpush1.xpose.msra.mxu0 0.0
  %816 = vmatprep.subr.mxu0 0.0
  %817 = vmatpush1.xpose.msra.mxu0 0.0
  %818 = vmatprep.subr.mxu0 0.0
  %819 = vmatpush1.xpose.msra.mxu0 0.0
  %820 = vmatprep.subr.mxu0 0.0
  %821 = vmatpush1.xpose.msra.mxu0 0.0
  %822 = vmatprep.subr.mxu0 0.0
  %823 = vmatpush1.xpose.msra.mxu0 0.0
  %824 = vmatprep.subr.mxu0 0.0
  %825 = vmatpush1.xpose.msra.mxu0 0.0
  %826 = vmatprep.subr.mxu0 0.0
  %827 = vmatpush1.xpose.msra.mxu0 0.0
  %828 = vmatprep.subr.mxu0 0.0
  %829 = vmatpush1.xpose.msra.mxu0 0.0
  %830 = vmatprep.subr.mxu0 0.0
  %831 = vmatpush1.xpose.msra.mxu0 0.0
  %832 = vmatprep.subr.mxu0 0.0
  %833 = vmatpush1.xpose.msra.mxu0 0.0
  %834 = vmatprep.subr.mxu0 0.0
  %835 = vmatpush1.xpose.msra.mxu0 0.0
  %836 = vmatprep.subr.mxu0 0.0
  %837 = vmatpush1.xpose.msra.mxu0 %v804
  %838 = vmatprep.subr.mxu0 0.0
  %839 = vmatpush2.xpose.msra.mxu0 0.0
  %840 = vmatprep.subr.mxu0 0.0
  %841 = vmatpush2.xpose.msra.mxu0 0.0
  %842 = vmatprep.subr.mxu0 0.0
  %843 = vmatpush2.xpose.msra.mxu0 0.0
  %844 = vmatprep.subr.mxu0 0.0
  %845 = vmatpush2.xpose.msra.mxu0 0.0
  %846 = vmatprep.subr.mxu0 0.0
  %847 = vmatpush2.xpose.msra.mxu0 0.0
  %848 = vmatprep.subr.mxu0 0.0
  %849 = vmatpush2.xpose.msra.mxu0 0.0
  %850 = vmatprep.subr.mxu0 0.0
  %851 = vmatpush2.xpose.msra.mxu0 0.0
  %852 = vmatprep.subr.mxu0 0.0
  %853 = vmatpush2.xpose.msra.mxu0 0.0
  %854 = vmatprep.subr.mxu0 0.0
  %855 = vmatpush2.xpose.msra.mxu0 0.0
  %856 = vmatprep.subr.mxu0 0.0
  %857 = vmatpush2.xpose.msra.mxu0 0.0
  %858 = vmatprep.subr.mxu0 0.0
  %859 = vmatpush2.xpose.msra.mxu0 0.0
  %860 = vmatprep.subr.mxu0 0.0
  %861 = vmatpush2.xpose.msra.mxu0 0.0
  %862 = vmatprep.subr.mxu0 0.0
  %863 = vmatpush2.xpose.msra.mxu0 0.0
  %864 = vmatprep.subr.mxu0 0.0
  %865 = vmatpush2.xpose.msra.mxu0 0.0
  %866 = vmatprep.subr.mxu0 0.0
  %867 = vmatpush2.xpose.msra.mxu0 0.0
  %868 = vmatprep.subr.mxu0 0.0
  %869 = vmatpush2.xpose.msra.mxu0 0.0
  %870 = vmatprep.mubr.f32.mxu0 0.0
  %871 = vmatmul.mubr.f32.gmra.mxu0 %v802
  %v872 = vpop.f32.mrf.mxu0
  %v873 = vadd.f32 0.0, %v872
  %v874 = vpop.f32.mrf.mxu0
  %875 = vdwg.mxu0
  %v876 = vmul.f32 %v873, 0.35355338
  %v877 = vsel %vm119, %v876, -inf
  %878 = vmax.xlane.f32.xlu0 %v877
  %v879 = vpop.xlane.xlu0 %878
  %v880 = vsub.f32 %v876, %v879
  %v881 = vmul.f32 %v880, 1.442695
  %v882 = vpow.pop %v881
  %v883 = vsel %vm119, %v882, 0.0
  %884 = vadd.xlane.f32.xlu0 %v883
  %v885 = vpop.xlane.xlu0 %884
  %v886 = vrcp.pop %v885
  %v887 = vmul.f32 %v882, %v886
  %888 = vrot.lane.b32.xlu0 %v113, 64
  %v889 = vpop.permute.xlu0 %888
  %v892 = vsel %vm119, %v887, 0
  %894 = vmatprep.subr.mxu0 0.0
  %895 = vmatpush1.msra.mxu0 0.0
  %896 = vmatprep.subr.mxu0 0.0
  %897 = vmatpush1.msra.mxu0 0.0
  %898 = vmatprep.subr.mxu0 0.0
  %899 = vmatpush1.msra.mxu0 0.0
  %900 = vmatprep.subr.mxu0 0.0
  %901 = vmatpush1.msra.mxu0 0.0
  %902 = vmatprep.subr.mxu0 0.0
  %903 = vmatpush1.msra.mxu0 0.0
  %904 = vmatprep.subr.mxu0 0.0
  %905 = vmatpush1.msra.mxu0 0.0
  %906 = vmatprep.subr.mxu0 0.0
  %907 = vmatpush1.msra.mxu0 0.0
  %908 = vmatprep.subr.mxu0 0.0
  %909 = vmatpush1.msra.mxu0 0.0
  %910 = vmatprep.subr.mxu0 0.0
  %911 = vmatpush1.msra.mxu0 0.0
  %912 = vmatprep.subr.mxu0 0.0
  %913 = vmatpush1.msra.mxu0 0.0
  %914 = vmatprep.subr.mxu0 0.0
  %915 = vmatpush1.msra.mxu0 0.0
  %916 = vmatprep.subr.mxu0 0.0
  %917 = vmatpush1.msra.mxu0 0.0
  %918 = vmatprep.subr.mxu0 0.0
  %919 = vmatpush1.msra.mxu0 0.0
  %920 = vmatprep.subr.mxu0 0.0
  %921 = vmatpush1.msra.mxu0 0.0
  %922 = vmatprep.subr.mxu0 0.0
  %923 = vmatpush1.msra.mxu0 0.0
  %924 = vmatprep.subr.mxu0 0.0
  %925 = vmatpush1.msra.mxu0 %v889
  %926 = vmatprep.subr.mxu0 0.0
  %927 = vmatpush2.msra.mxu0 0.0
  %928 = vmatprep.subr.mxu0 0.0
  %929 = vmatpush2.msra.mxu0 0.0
  %930 = vmatprep.subr.mxu0 0.0
  %931 = vmatpush2.msra.mxu0 0.0
  %932 = vmatprep.subr.mxu0 0.0
  %933 = vmatpush2.msra.mxu0 0.0
  %934 = vmatprep.subr.mxu0 0.0
  %935 = vmatpush2.msra.mxu0 0.0
  %936 = vmatprep.subr.mxu0 0.0
  %937 = vmatpush2.msra.mxu0 0.0
  %938 = vmatprep.subr.mxu0 0.0
  %939 = vmatpush2.msra.mxu0 0.0
  %940 = vmatprep.subr.mxu0 0.0
  %941 = vmatpush2.msra.mxu0 0.0
  %942 = vmatprep.subr.mxu0 0.0
  %943 = vmatpush2.msra.mxu0 0.0
  %944 = vmatprep.subr.mxu0 0.0
  %945 = vmatpush2.msra.mxu0 0.0
  %946 = vmatprep.subr.mxu0 0.0
  %947 = vmatpush2.msra.mxu0 0.0
  %948 = vmatprep.subr.mxu0 0.0
  %949 = vmatpush2.msra.mxu0 0.0
  %950 = vmatprep.subr.mxu0 0.0
  %951 = vmatpush2.msra.mxu0 0.0
  %952 = vmatprep.subr.mxu0 0.0
  %953 = vmatpush2.msra.mxu0 0.0
  %954 = vmatprep.subr.mxu0 0.0
  %955 = vmatpush2.msra.mxu0 0.0
  %956 = vmatprep.subr.mxu0 0.0
  %957 = vmatpush2.msra.mxu0 0.0
  %958 = vmatprep.mubr.f32.mxu0 0.0
  %959 = vmatmul.mubr.f32.gmra.mxu0 %v892
  %v960 = vpop.f32.mrf.mxu0
  %v961 = vadd.f32 0.0, %v960
  %v962 = vpop.f32.mrf.mxu0
  %963 = vdwg.mxu0
  %964 = vst.msk [vmem:[#allocation2 + $0x8] sm:$0xff] %vm119, %v961
  %965 = vrot.lane.b32.xlu0 %v113, 120
  %v966 = vpop.permute.xlu0 %965
  %967 = vrot.lane.b32.xlu0 %v113, 88
  %v968 = vpop.permute.xlu0 %967
  %v969 = vsel %vm119, %v966, 0
  %v971 = vsel %vm119, %v968, 0
  %973 = vmatprep.subr.mxu0 0.0
  %974 = vmatpush1.xpose.msra.mxu0 0.0
  %975 = vmatprep.subr.mxu0 0.0
  %976 = vmatpush1.xpose.msra.mxu0 0.0
  %977 = vmatprep.subr.mxu0 0.0
  %978 = vmatpush1.xpose.msra.mxu0 0.0
  %979 = vmatprep.subr.mxu0 0.0
  %980 = vmatpush1.xpose.msra.mxu0 0.0
  %981 = vmatprep.subr.mxu0 0.0
  %982 = vmatpush1.xpose.msra.mxu0 0.0
  %983 = vmatprep.subr.mxu0 0.0
  %984 = vmatpush1.xpose.msra.mxu0 0.0
  %985 = vmatprep.subr.mxu0 0.0
  %986 = vmatpush1.xpose.msra.mxu0 0.0
  %987 = vmatprep.subr.mxu0 0.0
  %988 = vmatpush1.xpose.msra.mxu0 0.0
  %989 = vmatprep.subr.mxu0 0.0
  %990 = vmatpush1.xpose.msra.mxu0 0.0
  %991 = vmatprep.subr.mxu0 0.0
  %992 = vmatpush1.xpose.msra.mxu0 0.0
  %993 = vmatprep.subr.mxu0 0.0
  %994 = vmatpush1.xpose.msra.mxu0 0.0
  %995 = vmatprep.subr.mxu0 0.0
  %996 = vmatpush1.xpose.msra.mxu0 0.0
  %997 = vmatprep.subr.mxu0 0.0
  %998 = vmatpush1.xpose.msra.mxu0 0.0
  %999 = vmatprep.subr.mxu0 0.0
  %1000 = vmatpush1.xpose.msra.mxu0 0.0
  %1001 = vmatprep.subr.mxu0 0.0
  %1002 = vmatpush1.xpose.msra.mxu0 0.0
  %1003 = vmatprep.subr.mxu0 0.0
  %1004 = vmatpush1.xpose.msra.mxu0 %v971
  %1005 = vmatprep.subr.mxu0 0.0
  %1006 = vmatpush2.xpose.msra.mxu0 0.0
  %1007 = vmatprep.subr.mxu0 0.0
  %1008 = vmatpush2.xpose.msra.mxu0 0.0
  %1009 = vmatprep.subr.mxu0 0.0
  %1010 = vmatpush2.xpose.msra.mxu0 0.0
  %1011 = vmatprep.subr.mxu0 0.0
  %1012 = vmatpush2.xpose.msra.mxu0 0.0
  %1013 = vmatprep.subr.mxu0 0.0
  %1014 = vmatpush2.xpose.msra.mxu0 0.0
  %1015 = vmatprep.subr.mxu0 0.0
  %1016 = vmatpush2.xpose.msra.mxu0 0.0
  %1017 = vmatprep.subr.mxu0 0.0
  %1018 = vmatpush2.xpose.msra.mxu0 0.0
  %1019 = vmatprep.subr.mxu0 0.0
  %1020 = vmatpush2.xpose.msra.mxu0 0.0
  %1021 = vmatprep.subr.mxu0 0.0
  %1022 = vmatpush2.xpose.msra.mxu0 0.0
  %1023 = vmatprep.subr.mxu0 0.0
  %1024 = vmatpush2.xpose.msra.mxu0 0.0
  %1025 = vmatprep.subr.mxu0 0.0
  %1026 = vmatpush2.xpose.msra.mxu0 0.0
  %1027 = vmatprep.subr.mxu0 0.0
  %1028 = vmatpush2.xpose.msra.mxu0 0.0
  %1029 = vmatprep.subr.mxu0 0.0
  %1030 = vmatpush2.xpose.msra.mxu0 0.0
  %1031 = vmatprep.subr.mxu0 0.0
  %1032 = vmatpush2.xpose.msra.mxu0 0.0
  %1033 = vmatprep.subr.mxu0 0.0
  %1034 = vmatpush2.xpose.msra.mxu0 0.0
  %1035 = vmatprep.subr.mxu0 0.0
  %1036 = vmatpush2.xpose.msra.mxu0 0.0
  %1037 = vmatprep.mubr.f32.mxu0 0.0
  %1038 = vmatmul.mubr.f32.gmra.mxu0 %v969
  %v1039 = vpop.f32.mrf.mxu0
  %v1040 = vadd.f32 0.0, %v1039
  %v1041 = vpop.f32.mrf.mxu0
  %1042 = vdwg.mxu0
  %v1043 = vmul.f32 %v1040, 0.35355338
  %v1044 = vsel %vm119, %v1043, -inf
  %1045 = vmax.xlane.f32.xlu0 %v1044
  %v1046 = vpop.xlane.xlu0 %1045
  %v1047 = vsub.f32 %v1043, %v1046
  %v1048 = vmul.f32 %v1047, 1.442695
  %v1049 = vpow.pop %v1048
  %v1050 = vsel %vm119, %v1049, 0.0
  %1051 = vadd.xlane.f32.xlu0 %v1050
  %v1052 = vpop.xlane.xlu0 %1051
  %v1053 = vrcp.pop %v1052
  %v1054 = vmul.f32 %v1049, %v1053
  %1055 = vrot.lane.b32.xlu0 %v113, 56
  %v1056 = vpop.permute.xlu0 %1055
  %v1059 = vsel %vm119, %v1054, 0
  %1061 = vmatprep.subr.mxu0 0.0
  %1062 = vmatpush1.msra.mxu0 0.0
  %1063 = vmatprep.subr.mxu0 0.0
  %1064 = vmatpush1.msra.mxu0 0.0
  %1065 = vmatprep.subr.mxu0 0.0
  %1066 = vmatpush1.msra.mxu0 0.0
  %1067 = vmatprep.subr.mxu0 0.0
  %1068 = vmatpush1.msra.mxu0 0.0
  %1069 = vmatprep.subr.mxu0 0.0
  %1070 = vmatpush1.msra.mxu0 0.0
  %1071 = vmatprep.subr.mxu0 0.0
  %1072 = vmatpush1.msra.mxu0 0.0
  %1073 = vmatprep.subr.mxu0 0.0
  %1074 = vmatpush1.msra.mxu0 0.0
  %1075 = vmatprep.subr.mxu0 0.0
  %1076 = vmatpush1.msra.mxu0 0.0
  %1077 = vmatprep.subr.mxu0 0.0
  %1078 = vmatpush1.msra.mxu0 0.0
  %1079 = vmatprep.subr.mxu0 0.0
  %1080 = vmatpush1.msra.mxu0 0.0
  %1081 = vmatprep.subr.mxu0 0.0
  %1082 = vmatpush1.msra.mxu0 0.0
  %1083 = vmatprep.subr.mxu0 0.0
  %1084 = vmatpush1.msra.mxu0 0.0
  %1085 = vmatprep.subr.mxu0 0.0
  %1086 = vmatpush1.msra.mxu0 0.0
  %1087 = vmatprep.subr.mxu0 0.0
  %1088 = vmatpush1.msra.mxu0 0.0
  %1089 = vmatprep.subr.mxu0 0.0
  %1090 = vmatpush1.msra.mxu0 0.0
  %1091 = vmatprep.subr.mxu0 0.0
  %1092 = vmatpush1.msra.mxu0 %v1056
  %1093 = vmatprep.subr.mxu0 0.0
  %1094 = vmatpush2.msra.mxu0 0.0
  %1095 = vmatprep.subr.mxu0 0.0
  %1096 = vmatpush2.msra.mxu0 0.0
  %1097 = vmatprep.subr.mxu0 0.0
  %1098 = vmatpush2.msra.mxu0 0.0
  %1099 = vmatprep.subr.mxu0 0.0
  %1100 = vmatpush2.msra.mxu0 0.0
  %1101 = vmatprep.subr.mxu0 0.0
  %1102 = vmatpush2.msra.mxu0 0.0
  %1103 = vmatprep.subr.mxu0 0.0
  %1104 = vmatpush2.msra.mxu0 0.0
  %1105 = vmatprep.subr.mxu0 0.0
  %1106 = vmatpush2.msra.mxu0 0.0
  %1107 = vmatprep.subr.mxu0 0.0
  %1108 = vmatpush2.msra.mxu0 0.0
  %1109 = vmatprep.subr.mxu0 0.0
  %1110 = vmatpush2.msra.mxu0 0.0
  %1111 = vmatprep.subr.mxu0 0.0
  %1112 = vmatpush2.msra.mxu0 0.0
  %1113 = vmatprep.subr.mxu0 0.0
  %1114 = vmatpush2.msra.mxu0 0.0
  %1115 = vmatprep.subr.mxu0 0.0
  %1116 = vmatpush2.msra.mxu0 0.0
  %1117 = vmatprep.subr.mxu0 0.0
  %1118 = vmatpush2.msra.mxu0 0.0
  %1119 = vmatprep.subr.mxu0 0.0
  %1120 = vmatpush2.msra.mxu0 0.0
  %1121 = vmatprep.subr.mxu0 0.0
  %1122 = vmatpush2.msra.mxu0 0.0
  %1123 = vmatprep.subr.mxu0 0.0
  %1124 = vmatpush2.msra.mxu0 0.0
  %1125 = vmatprep.mubr.f32.mxu0 0.0
  %1126 = vmatmul.mubr.f32.gmra.mxu0 %v1059
  %v1127 = vpop.f32.mrf.mxu0
  %v1128 = vadd.f32 0.0, %v1127
  %v1129 = vpop.f32.mrf.mxu0
  %1130 = vdwg.mxu0
  %1132 = vrot.lane.b32.xlu0 %v1128, 8
  %v1133 = vpop.permute.xlu0 %1132
  %1135 = vst.msk [vmem:[#allocation2 + $0x8] sm:$0xff] %vm453, %v1133
  %1136 = vrot.lane.b32.xlu0 %v113, 112
  %v1137 = vpop.permute.xlu0 %1136
  %1138 = vrot.lane.b32.xlu0 %v113, 80
  %v1139 = vpop.permute.xlu0 %1138
  %v1140 = vsel %vm119, %v1137, 0
  %v1142 = vsel %vm119, %v1139, 0
  %1144 = vmatprep.subr.mxu0 0.0
  %1145 = vmatpush1.xpose.msra.mxu0 0.0
  %1146 = vmatprep.subr.mxu0 0.0
  %1147 = vmatpush1.xpose.msra.mxu0 0.0
  %1148 = vmatprep.subr.mxu0 0.0
  %1149 = vmatpush1.xpose.msra.mxu0 0.0
  %1150 = vmatprep.subr.mxu0 0.0
  %1151 = vmatpush1.xpose.msra.mxu0 0.0
  %1152 = vmatprep.subr.mxu0 0.0
  %1153 = vmatpush1.xpose.msra.mxu0 0.0
  %1154 = vmatprep.subr.mxu0 0.0
  %1155 = vmatpush1.xpose.msra.mxu0 0.0
  %1156 = vmatprep.subr.mxu0 0.0
  %1157 = vmatpush1.xpose.msra.mxu0 0.0
  %1158 = vmatprep.subr.mxu0 0.0
  %1159 = vmatpush1.xpose.msra.mxu0 0.0
  %1160 = vmatprep.subr.mxu0 0.0
  %1161 = vmatpush1.xpose.msra.mxu0 0.0
  %1162 = vmatprep.subr.mxu0 0.0
  %1163 = vmatpush1.xpose.msra.mxu0 0.0
  %1164 = vmatprep.subr.mxu0 0.0
  %1165 = vmatpush1.xpose.msra.mxu0 0.0
  %1166 = vmatprep.subr.mxu0 0.0
  %1167 = vmatpush1.xpose.msra.mxu0 0.0
  %1168 = vmatprep.subr.mxu0 0.0
  %1169 = vmatpush1.xpose.msra.mxu0 0.0
  %1170 = vmatprep.subr.mxu0 0.0
  %1171 = vmatpush1.xpose.msra.mxu0 0.0
  %1172 = vmatprep.subr.mxu0 0.0
  %1173 = vmatpush1.xpose.msra.mxu0 0.0
  %1174 = vmatprep.subr.mxu0 0.0
  %1175 = vmatpush1.xpose.msra.mxu0 %v1142
  %1176 = vmatprep.subr.mxu0 0.0
  %1177 = vmatpush2.xpose.msra.mxu0 0.0
  %1178 = vmatprep.subr.mxu0 0.0
  %1179 = vmatpush2.xpose.msra.mxu0 0.0
  %1180 = vmatprep.subr.mxu0 0.0
  %1181 = vmatpush2.xpose.msra.mxu0 0.0
  %1182 = vmatprep.subr.mxu0 0.0
  %1183 = vmatpush2.xpose.msra.mxu0 0.0
  %1184 = vmatprep.subr.mxu0 0.0
  %1185 = vmatpush2.xpose.msra.mxu0 0.0
  %1186 = vmatprep.subr.mxu0 0.0
  %1187 = vmatpush2.xpose.msra.mxu0 0.0
  %1188 = vmatprep.subr.mxu0 0.0
  %1189 = vmatpush2.xpose.msra.mxu0 0.0
  %1190 = vmatprep.subr.mxu0 0.0
  %1191 = vmatpush2.xpose.msra.mxu0 0.0
  %1192 = vmatprep.subr.mxu0 0.0
  %1193 = vmatpush2.xpose.msra.mxu0 0.0
  %1194 = vmatprep.subr.mxu0 0.0
  %1195 = vmatpush2.xpose.msra.mxu0 0.0
  %1196 = vmatprep.subr.mxu0 0.0
  %1197 = vmatpush2.xpose.msra.mxu0 0.0
  %1198 = vmatprep.subr.mxu0 0.0
  %1199 = vmatpush2.xpose.msra.mxu0 0.0
  %1200 = vmatprep.subr.mxu0 0.0
  %1201 = vmatpush2.xpose.msra.mxu0 0.0
  %1202 = vmatprep.subr.mxu0 0.0
  %1203 = vmatpush2.xpose.msra.mxu0 0.0
  %1204 = vmatprep.subr.mxu0 0.0
  %1205 = vmatpush2.xpose.msra.mxu0 0.0
  %1206 = vmatprep.subr.mxu0 0.0
  %1207 = vmatpush2.xpose.msra.mxu0 0.0
  %1208 = vmatprep.mubr.f32.mxu0 0.0
  %1209 = vmatmul.mubr.f32.gmra.mxu0 %v1140
  %v1210 = vpop.f32.mrf.mxu0
  %v1211 = vadd.f32 0.0, %v1210
  %v1212 = vpop.f32.mrf.mxu0
  %1213 = vdwg.mxu0
  %v1214 = vmul.f32 %v1211, 0.35355338
  %v1215 = vsel %vm119, %v1214, -inf
  %1216 = vmax.xlane.f32.xlu0 %v1215
  %v1217 = vpop.xlane.xlu0 %1216
  %v1218 = vsub.f32 %v1214, %v1217
  %v1219 = vmul.f32 %v1218, 1.442695
  %v1220 = vpow.pop %v1219
  %v1221 = vsel %vm119, %v1220, 0.0
  %1222 = vadd.xlane.f32.xlu0 %v1221
  %v1223 = vpop.xlane.xlu0 %1222
  %v1224 = vrcp.pop %v1223
  %v1225 = vmul.f32 %v1220, %v1224
  %1226 = vrot.lane.b32.xlu0 %v113, 48
  %v1227 = vpop.permute.xlu0 %1226
  %v1230 = vsel %vm119, %v1225, 0
  %1232 = vmatprep.subr.mxu0 0.0
  %1233 = vmatpush1.msra.mxu0 0.0
  %1234 = vmatprep.subr.mxu0 0.0
  %1235 = vmatpush1.msra.mxu0 0.0
  %1236 = vmatprep.subr.mxu0 0.0
  %1237 = vmatpush1.msra.mxu0 0.0
  %1238 = vmatprep.subr.mxu0 0.0
  %1239 = vmatpush1.msra.mxu0 0.0
  %1240 = vmatprep.subr.mxu0 0.0
  %1241 = vmatpush1.msra.mxu0 0.0
  %1242 = vmatprep.subr.mxu0 0.0
  %1243 = vmatpush1.msra.mxu0 0.0
  %1244 = vmatprep.subr.mxu0 0.0
  %1245 = vmatpush1.msra.mxu0 0.0
  %1246 = vmatprep.subr.mxu0 0.0
  %1247 = vmatpush1.msra.mxu0 0.0
  %1248 = vmatprep.subr.mxu0 0.0
  %1249 = vmatpush1.msra.mxu0 0.0
  %1250 = vmatprep.subr.mxu0 0.0
  %1251 = vmatpush1.msra.mxu0 0.0
  %1252 = vmatprep.subr.mxu0 0.0
  %1253 = vmatpush1.msra.mxu0 0.0
  %1254 = vmatprep.subr.mxu0 0.0
  %1255 = vmatpush1.msra.mxu0 0.0
  %1256 = vmatprep.subr.mxu0 0.0
  %1257 = vmatpush1.msra.mxu0 0.0
  %1258 = vmatprep.subr.mxu0 0.0
  %1259 = vmatpush1.msra.mxu0 0.0
  %1260 = vmatprep.subr.mxu0 0.0
  %1261 = vmatpush1.msra.mxu0 0.0
  %1262 = vmatprep.subr.mxu0 0.0
  %1263 = vmatpush1.msra.mxu0 %v1227
  %1264 = vmatprep.subr.mxu0 0.0
  %1265 = vmatpush2.msra.mxu0 0.0
  %1266 = vmatprep.subr.mxu0 0.0
  %1267 = vmatpush2.msra.mxu0 0.0
  %1268 = vmatprep.subr.mxu0 0.0
  %1269 = vmatpush2.msra.mxu0 0.0
  %1270 = vmatprep.subr.mxu0 0.0
  %1271 = vmatpush2.msra.mxu0 0.0
  %1272 = vmatprep.subr.mxu0 0.0
  %1273 = vmatpush2.msra.mxu0 0.0
  %1274 = vmatprep.subr.mxu0 0.0
  %1275 = vmatpush2.msra.mxu0 0.0
  %1276 = vmatprep.subr.mxu0 0.0
  %1277 = vmatpush2.msra.mxu0 0.0
  %1278 = vmatprep.subr.mxu0 0.0
  %1279 = vmatpush2.msra.mxu0 0.0
  %1280 = vmatprep.subr.mxu0 0.0
  %1281 = vmatpush2.msra.mxu0 0.0
  %1282 = vmatprep.subr.mxu0 0.0
  %1283 = vmatpush2.msra.mxu0 0.0
  %1284 = vmatprep.subr.mxu0 0.0
  %1285 = vmatpush2.msra.mxu0 0.0
  %1286 = vmatprep.subr.mxu0 0.0
  %1287 = vmatpush2.msra.mxu0 0.0
  %1288 = vmatprep.subr.mxu0 0.0
  %1289 = vmatpush2.msra.mxu0 0.0
  %1290 = vmatprep.subr.mxu0 0.0
  %1291 = vmatpush2.msra.mxu0 0.0
  %1292 = vmatprep.subr.mxu0 0.0
  %1293 = vmatpush2.msra.mxu0 0.0
  %1294 = vmatprep.subr.mxu0 0.0
  %1295 = vmatpush2.msra.mxu0 0.0
  %1296 = vmatprep.mubr.f32.mxu0 0.0
  %1297 = vmatmul.mubr.f32.gmra.mxu0 %v1230
  %v1298 = vpop.f32.mrf.mxu0
  %v1299 = vadd.f32 0.0, %v1298
  %v1300 = vpop.f32.mrf.mxu0
  %1301 = vdwg.mxu0
  %1303 = vrot.lane.b32.xlu0 %v1299, 16
  %v1304 = vpop.permute.xlu0 %1303
  %1306 = vst.msk [vmem:[#allocation2 + $0x8] sm:$0xff] %vm625, %v1304
  %1307 = vrot.lane.b32.xlu0 %v113, 104
  %v1308 = vpop.permute.xlu0 %1307
  %1309 = vrot.lane.b32.xlu0 %v113, 72
  %v1310 = vpop.permute.xlu0 %1309
  %v1311 = vsel %vm119, %v1308, 0
  %v1313 = vsel %vm119, %v1310, 0
  %1315 = vmatprep.subr.mxu0 0.0
  %1316 = vmatpush1.xpose.msra.mxu0 0.0
  %1317 = vmatprep.subr.mxu0 0.0
  %1318 = vmatpush1.xpose.msra.mxu0 0.0
  %1319 = vmatprep.subr.mxu0 0.0
  %1320 = vmatpush1.xpose.msra.mxu0 0.0
  %1321 = vmatprep.subr.mxu0 0.0
  %1322 = vmatpush1.xpose.msra.mxu0 0.0
  %1323 = vmatprep.subr.mxu0 0.0
  %1324 = vmatpush1.xpose.msra.mxu0 0.0
  %1325 = vmatprep.subr.mxu0 0.0
  %1326 = vmatpush1.xpose.msra.mxu0 0.0
  %1327 = vmatprep.subr.mxu0 0.0
  %1328 = vmatpush1.xpose.msra.mxu0 0.0
  %1329 = vmatprep.subr.mxu0 0.0
  %1330 = vmatpush1.xpose.msra.mxu0 0.0
  %1331 = vmatprep.subr.mxu0 0.0
  %1332 = vmatpush1.xpose.msra.mxu0 0.0
  %1333 = vmatprep.subr.mxu0 0.0
  %1334 = vmatpush1.xpose.msra.mxu0 0.0
  %1335 = vmatprep.subr.mxu0 0.0
  %1336 = vmatpush1.xpose.msra.mxu0 0.0
  %1337 = vmatprep.subr.mxu0 0.0
  %1338 = vmatpush1.xpose.msra.mxu0 0.0
  %1339 = vmatprep.subr.mxu0 0.0
  %1340 = vmatpush1.xpose.msra.mxu0 0.0
  %1341 = vmatprep.subr.mxu0 0.0
  %1342 = vmatpush1.xpose.msra.mxu0 0.0
  %1343 = vmatprep.subr.mxu0 0.0
  %1344 = vmatpush1.xpose.msra.mxu0 0.0
  %1345 = vmatprep.subr.mxu0 0.0
  %1346 = vmatpush1.xpose.msra.mxu0 %v1313
  %1347 = vmatprep.subr.mxu0 0.0
  %1348 = vmatpush2.xpose.msra.mxu0 0.0
  %1349 = vmatprep.subr.mxu0 0.0
  %1350 = vmatpush2.xpose.msra.mxu0 0.0
  %1351 = vmatprep.subr.mxu0 0.0
  %1352 = vmatpush2.xpose.msra.mxu0 0.0
  %1353 = vmatprep.subr.mxu0 0.0
  %1354 = vmatpush2.xpose.msra.mxu0 0.0
  %1355 = vmatprep.subr.mxu0 0.0
  %1356 = vmatpush2.xpose.msra.mxu0 0.0
  %1357 = vmatprep.subr.mxu0 0.0
  %1358 = vmatpush2.xpose.msra.mxu0 0.0
  %1359 = vmatprep.subr.mxu0 0.0
  %1360 = vmatpush2.xpose.msra.mxu0 0.0
  %1361 = vmatprep.subr.mxu0 0.0
  %1362 = vmatpush2.xpose.msra.mxu0 0.0
  %1363 = vmatprep.subr.mxu0 0.0
  %1364 = vmatpush2.xpose.msra.mxu0 0.0
  %1365 = vmatprep.subr.mxu0 0.0
  %1366 = vmatpush2.xpose.msra.mxu0 0.0
  %1367 = vmatprep.subr.mxu0 0.0
  %1368 = vmatpush2.xpose.msra.mxu0 0.0
  %1369 = vmatprep.subr.mxu0 0.0
  %1370 = vmatpush2.xpose.msra.mxu0 0.0
  %1371 = vmatprep.subr.mxu0 0.0
  %1372 = vmatpush2.xpose.msra.mxu0 0.0
  %1373 = vmatprep.subr.mxu0 0.0
  %1374 = vmatpush2.xpose.msra.mxu0 0.0
  %1375 = vmatprep.subr.mxu0 0.0
  %1376 = vmatpush2.xpose.msra.mxu0 0.0
  %1377 = vmatprep.subr.mxu0 0.0
  %1378 = vmatpush2.xpose.msra.mxu0 0.0
  %1379 = vmatprep.mubr.f32.mxu0 0.0
  %1380 = vmatmul.mubr.f32.gmra.mxu0 %v1311
  %v1381 = vpop.f32.mrf.mxu0
  %v1382 = vadd.f32 0.0, %v1381
  %v1383 = vpop.f32.mrf.mxu0
  %1384 = vdwg.mxu0
  %v1385 = vmul.f32 %v1382, 0.35355338
  %v1386 = vsel %vm119, %v1385, -inf
  %1387 = vmax.xlane.f32.xlu0 %v1386
  %v1388 = vpop.xlane.xlu0 %1387
  %v1389 = vsub.f32 %v1385, %v1388
  %v1390 = vmul.f32 %v1389, 1.442695
  %v1391 = vpow.pop %v1390
  %v1392 = vsel %vm119, %v1391, 0.0
  %1393 = vadd.xlane.f32.xlu0 %v1392
  %v1394 = vpop.xlane.xlu0 %1393
  %v1395 = vrcp.pop %v1394
  %v1396 = vmul.f32 %v1391, %v1395
  %1397 = vrot.lane.b32.xlu0 %v113, 40
  %v1398 = vpop.permute.xlu0 %1397
  %v1401 = vsel %vm119, %v1396, 0
  %1403 = vmatprep.subr.mxu0 0.0
  %1404 = vmatpush1.msra.mxu0 0.0
  %1405 = vmatprep.subr.mxu0 0.0
  %1406 = vmatpush1.msra.mxu0 0.0
  %1407 = vmatprep.subr.mxu0 0.0
  %1408 = vmatpush1.msra.mxu0 0.0
  %1409 = vmatprep.subr.mxu0 0.0
  %1410 = vmatpush1.msra.mxu0 0.0
  %1411 = vmatprep.subr.mxu0 0.0
  %1412 = vmatpush1.msra.mxu0 0.0
  %1413 = vmatprep.subr.mxu0 0.0
  %1414 = vmatpush1.msra.mxu0 0.0
  %1415 = vmatprep.subr.mxu0 0.0
  %1416 = vmatpush1.msra.mxu0 0.0
  %1417 = vmatprep.subr.mxu0 0.0
  %1418 = vmatpush1.msra.mxu0 0.0
  %1419 = vmatprep.subr.mxu0 0.0
  %1420 = vmatpush1.msra.mxu0 0.0
  %1421 = vmatprep.subr.mxu0 0.0
  %1422 = vmatpush1.msra.mxu0 0.0
  %1423 = vmatprep.subr.mxu0 0.0
  %1424 = vmatpush1.msra.mxu0 0.0
  %1425 = vmatprep.subr.mxu0 0.0
  %1426 = vmatpush1.msra.mxu0 0.0
  %1427 = vmatprep.subr.mxu0 0.0
  %1428 = vmatpush1.msra.mxu0 0.0
  %1429 = vmatprep.subr.mxu0 0.0
  %1430 = vmatpush1.msra.mxu0 0.0
  %1431 = vmatprep.subr.mxu0 0.0
  %1432 = vmatpush1.msra.mxu0 0.0
  %1433 = vmatprep.subr.mxu0 0.0
  %1434 = vmatpush1.msra.mxu0 %v1398
  %1435 = vmatprep.subr.mxu0 0.0
  %1436 = vmatpush2.msra.mxu0 0.0
  %1437 = vmatprep.subr.mxu0 0.0
  %1438 = vmatpush2.msra.mxu0 0.0
  %1439 = vmatprep.subr.mxu0 0.0
  %1440 = vmatpush2.msra.mxu0 0.0
  %1441 = vmatprep.subr.mxu0 0.0
  %1442 = vmatpush2.msra.mxu0 0.0
  %1443 = vmatprep.subr.mxu0 0.0
  %1444 = vmatpush2.msra.mxu0 0.0
  %1445 = vmatprep.subr.mxu0 0.0
  %1446 = vmatpush2.msra.mxu0 0.0
  %1447 = vmatprep.subr.mxu0 0.0
  %1448 = vmatpush2.msra.mxu0 0.0
  %1449 = vmatprep.subr.mxu0 0.0
  %1450 = vmatpush2.msra.mxu0 0.0
  %1451 = vmatprep.subr.mxu0 0.0
  %1452 = vmatpush2.msra.mxu0 0.0
  %1453 = vmatprep.subr.mxu0 0.0
  %1454 = vmatpush2.msra.mxu0 0.0
  %1455 = vmatprep.subr.mxu0 0.0
  %1456 = vmatpush2.msra.mxu0 0.0
  %1457 = vmatprep.subr.mxu0 0.0
  %1458 = vmatpush2.msra.mxu0 0.0
  %1459 = vmatprep.subr.mxu0 0.0
  %1460 = vmatpush2.msra.mxu0 0.0
  %1461 = vmatprep.subr.mxu0 0.0
  %1462 = vmatpush2.msra.mxu0 0.0
  %1463 = vmatprep.subr.mxu0 0.0
  %1464 = vmatpush2.msra.mxu0 0.0
  %1465 = vmatprep.subr.mxu0 0.0
  %1466 = vmatpush2.msra.mxu0 0.0
  %1467 = vmatprep.mubr.f32.mxu0 0.0
  %1468 = vmatmul.mubr.f32.gmra.mxu0 %v1401
  %v1469 = vpop.f32.mrf.mxu0
  %v1470 = vadd.f32 0.0, %v1469
  %v1471 = vpop.f32.mrf.mxu0
  %1472 = vdwg.mxu0
  %1474 = vrot.lane.b32.xlu0 %v1470, 24
  %v1475 = vpop.permute.xlu0 %1474
  %1477 = vst.msk [vmem:[#allocation2 + $0x8] sm:$0xff] %vm797, %v1475
  %v1478 = vld [vmem:[#allocation2] sm:$0xff]
  %v1479 = vld [vmem:[#allocation2 + $0x8] sm:$0xff]
  %v1480 = vld [vmem:[%s3] sm:$0xf]
  %v1481 = vld [vmem:[%s3 + $0x4] sm:$0xf]
  %v1482 = vld [vmem:[%s3 + $0x8] sm:$0xf]
  %v1483 = vld [vmem:[%s3 + $0xc] sm:$0xf]
  %v1484 = vpack.c.bf16 %v1479, %v1478
  %v1485 = vld [vmem:[%s4] sm:$0x1]
  %v1487 = vlaneseq
  %v1488 = vshrl.u32 %v1487, 7
  %v1489 = vsub.s32 0, %v1488
  %v1490 = vrot.slane %v1485, %v1489
  %v1496 = vunpack.c.l.b16 %v1480
  %v1497 = vunpack.c.l.b16 %v1481
  %v1498 = vunpack.c.l.b16 %v1482
  %v1499 = vunpack.c.l.b16 %v1483
  %v1500 = vpack.c.b16 %v1497, %v1496
  %v1501 = vpack.c.b16 %v1499, %v1498
  %v1505 = vsel %vm71, %v1484, 0
  %1507 = vmatprep.subr.bf16.mxu0 0
  %1508 = vmatpush1.bf16.msra.mxu0 0
  %1509 = vmatprep.subr.bf16.mxu0 0
  %1510 = vmatpush1.bf16.msra.mxu0 0
  %1511 = vmatprep.subr.bf16.mxu0 0
  %1512 = vmatpush1.bf16.msra.mxu0 0
  %1513 = vmatprep.subr.bf16.mxu0 0
  %1514 = vmatpush1.bf16.msra.mxu0 0
  %1515 = vmatprep.subr.bf16.mxu0 0
  %1516 = vmatpush1.bf16.msra.mxu0 0
  %1517 = vmatprep.subr.bf16.mxu0 0
  %1518 = vmatpush1.bf16.msra.mxu0 0
  %1519 = vmatprep.subr.bf16.mxu0 0
  %1520 = vmatpush1.bf16.msra.mxu0 %v1501
  %1521 = vmatprep.subr.bf16.mxu0 0
  %1522 = vmatpush1.bf16.msra.mxu0 %v1500
  %1523 = vmatprep.subr.bf16.mxu0 0
  %1524 = vmatpush2.bf16.msra.mxu0 0
  %1525 = vmatprep.subr.bf16.mxu0 0
  %1526 = vmatpush2.bf16.msra.mxu0 0
  %1527 = vmatprep.subr.bf16.mxu0 0
  %1528 = vmatpush2.bf16.msra.mxu0 0
  %1529 = vmatprep.subr.bf16.mxu0 0
  %1530 = vmatpush2.bf16.msra.mxu0 0
  %1531 = vmatprep.subr.bf16.mxu0 0
  %1532 = vmatpush2.bf16.msra.mxu0 0
  %1533 = vmatprep.subr.bf16.mxu0 0
  %1534 = vmatpush2.bf16.msra.mxu0 0
  %1535 = vmatprep.subr.bf16.mxu0 0
  %1536 = vmatpush2.bf16.msra.mxu0 0
  %1537 = vmatprep.subr.bf16.mxu0 0
  %1538 = vmatpush2.bf16.msra.mxu0 0
  %1539 = vmatprep.mubr.bf16.mxu0 0
  %1540 = vmatmul.mubr.bf16.gmra.mxu0 %v1505
  %v1541 = vpop.f32.mrf.mxu0
  %v1542 = vadd.f32 %v1490, %v1541
  %v1543 = vpop.f32.mrf.mxu0
  %v1544 = vpop.f32.mrf.mxu0
  %v1545 = vadd.f32 %v1490, %v1544
  %v1546 = vpop.f32.mrf.mxu0
  %1547 = vdwg.mxu0
  %v1548 = vld [vmem:[%s5] sm:$0x1]
  %v1549 = vld [vmem:[%s6] sm:$0x1]
  %v1550 = vadd.f32 %v1542, %v45
  %v1551 = vadd.f32 %v1545, %v46
  %v1552 = vsel %vm71, %v1550, 0.0
  %1553 = vadd.xlane.f32.xlu0 %v1552
  %v1554 = vpop.xlane.xlu0 %1553
  %v1555 = vsel %vm71, %v1551, 0.0
  %1556 = vadd.xlane.f32.xlu0 %v1555
  %v1557 = vpop.xlane.xlu0 %1556
  %v1558 = vrcp.pop 32.0
  %v1559 = vmul.f32 %v1554, %v1558
  %v1560 = vmul.f32 %v1557, %v1558
  %v1561 = vsub.f32 %v1550, %v1559
  %v1562 = vsub.f32 %v1551, %v1560
  %v1563 = vmul.f32 %v1561, %v1561
  %v1564 = vmul.f32 %v1562, %v1562
  %v1565 = vsel %vm71, %v1563, 0.0
  %1566 = vadd.xlane.f32.xlu0 %v1565
  %v1567 = vpop.xlane.xlu0 %1566
  %v1568 = vsel %vm71, %v1564, 0.0
  %1569 = vadd.xlane.f32.xlu0 %v1568
  %v1570 = vpop.xlane.xlu0 %1569
  %v1571 = vmul.f32 %v1567, %v1558
  %v1572 = vmul.f32 %v1570, %v1558
  %v1573 = vadd.f32 %v1571, 1e-05
  %v1574 = vadd.f32 %v1572, 1e-05
  %v1575 = vrsqrt.pop %v1573
  %v1576 = vrsqrt.pop %v1574
  %v1577 = vmul.f32 %v1561, %v1575
  %v1578 = vmul.f32 %v1562, %v1576
  %v1580 = vlaneseq
  %v1581 = vshrl.u32 %v1580, 7
  %v1582 = vsub.s32 0, %v1581
  %v1583 = vrot.slane %v1548, %v1582
  %v1585 = vmul.f32 %v1577, %v1583
  %v1586 = vmul.f32 %v1578, %v1583
  %v1588 = vlaneseq
  %v1589 = vshrl.u32 %v1588, 7
  %v1590 = vsub.s32 0, %v1589
  %v1591 = vrot.slane %v1549, %v1590
  %v1593 = vadd.f32 %v1585, %v1591
  %v1594 = vadd.f32 %v1586, %v1591
  %v1595 = vld [vmem:[%s7] sm:$0xff]
  %v1596 = vld [vmem:[%s7 + $0x8] sm:$0xff]
  %v1597 = vld [vmem:[%s7 + $0x10] sm:$0xff]
  %v1598 = vld [vmem:[%s7 + $0x18] sm:$0xff]
  %v1599 = vld [vmem:[%s7 + $0x20] sm:$0xff]
  %v1600 = vld [vmem:[%s7 + $0x28] sm:$0xff]
  %v1601 = vld [vmem:[%s7 + $0x30] sm:$0xff]
  %v1602 = vld [vmem:[%s7 + $0x38] sm:$0xff]
  %v1603 = vld [vmem:[%s7 + $0x40] sm:$0xff]
  %v1604 = vld [vmem:[%s7 + $0x48] sm:$0xff]
  %v1605 = vld [vmem:[%s7 + $0x50] sm:$0xff]
  %v1606 = vld [vmem:[%s7 + $0x58] sm:$0xff]
  %v1607 = vld [vmem:[%s7 + $0x60] sm:$0xff]
  %v1608 = vld [vmem:[%s7 + $0x68] sm:$0xff]
  %v1609 = vld [vmem:[%s7 + $0x70] sm:$0xff]
  %v1610 = vld [vmem:[%s7 + $0x78] sm:$0xff]
  %v1611 = vld [vmem:[%s7 + $0x80] sm:$0xff]
  %v1612 = vld [vmem:[%s7 + $0x88] sm:$0xff]
  %v1613 = vld [vmem:[%s7 + $0x90] sm:$0xff]
  %v1614 = vld [vmem:[%s7 + $0x98] sm:$0xff]
  %v1615 = vld [vmem:[%s7 + $0xa0] sm:$0xff]
  %v1616 = vld [vmem:[%s7 + $0xa8] sm:$0xff]
  %v1617 = vld [vmem:[%s7 + $0xb0] sm:$0xff]
  %v1618 = vld [vmem:[%s7 + $0xb8] sm:$0xff]
  %v1619 = vld [vmem:[%s7 + $0xc0] sm:$0xff]
  %v1620 = vld [vmem:[%s7 + $0xc8] sm:$0xff]
  %v1621 = vld [vmem:[%s7 + $0xd0] sm:$0xff]
  %v1622 = vld [vmem:[%s7 + $0xd8] sm:$0xff]
  %v1623 = vld [vmem:[%s7 + $0xe0] sm:$0xff]
  %v1624 = vld [vmem:[%s7 + $0xe8] sm:$0xff]
  %v1625 = vld [vmem:[%s7 + $0xf0] sm:$0xff]
  %v1626 = vld [vmem:[%s7 + $0xf8] sm:$0xff]
  %v1627 = vpack.c.bf16 %v1594, %v1593
  %v1628 = vld [vmem:[%s8] sm:$0xff]
  %v1629 = vld [vmem:[%s8 + $0x8] sm:$0xff]
  %v1632 = vlaneseq
  %v1633 = vshrl.u32 %v1632, 7
  %v1634 = vsub.s32 0, %v1633
  %v1635 = vrot.slane %v1628, %v1634
  %v1636 = vlaneseq
  %v1637 = vshrl.u32 %v1636, 7
  %v1638 = vsub.s32 1, %v1637
  %v1639 = vrot.slane %v1628, %v1638
  %v1640 = vlaneseq
  %v1641 = vshrl.u32 %v1640, 7
  %v1642 = vsub.s32 2, %v1641
  %v1643 = vrot.slane %v1628, %v1642
  %v1644 = vlaneseq
  %v1645 = vshrl.u32 %v1644, 7
  %v1646 = vsub.s32 3, %v1645
  %v1647 = vrot.slane %v1628, %v1646
  %v1648 = vlaneseq
  %v1649 = vshrl.u32 %v1648, 7
  %v1650 = vsub.s32 4, %v1649
  %v1651 = vrot.slane %v1628, %v1650
  %v1652 = vlaneseq
  %v1653 = vshrl.u32 %v1652, 7
  %v1654 = vsub.s32 5, %v1653
  %v1655 = vrot.slane %v1628, %v1654
  %v1656 = vlaneseq
  %v1657 = vshrl.u32 %v1656, 7
  %v1658 = vsub.s32 6, %v1657
  %v1659 = vrot.slane %v1628, %v1658
  %v1660 = vlaneseq
  %v1661 = vshrl.u32 %v1660, 7
  %v1662 = vsub.s32 7, %v1661
  %v1663 = vrot.slane %v1628, %v1662
  %v1664 = vlaneseq
  %v1665 = vshrl.u32 %v1664, 7
  %v1666 = vsub.s32 0, %v1665
  %v1667 = vrot.slane %v1629, %v1666
  %v1668 = vlaneseq
  %v1669 = vshrl.u32 %v1668, 7
  %v1670 = vsub.s32 1, %v1669
  %v1671 = vrot.slane %v1629, %v1670
  %v1672 = vlaneseq
  %v1673 = vshrl.u32 %v1672, 7
  %v1674 = vsub.s32 2, %v1673
  %v1675 = vrot.slane %v1629, %v1674
  %v1676 = vlaneseq
  %v1677 = vshrl.u32 %v1676, 7
  %v1678 = vsub.s32 3, %v1677
  %v1679 = vrot.slane %v1629, %v1678
  %v1680 = vlaneseq
  %v1681 = vshrl.u32 %v1680, 7
  %v1682 = vsub.s32 4, %v1681
  %v1683 = vrot.slane %v1629, %v1682
  %v1684 = vlaneseq
  %v1685 = vshrl.u32 %v1684, 7
  %v1686 = vsub.s32 5, %v1685
  %v1687 = vrot.slane %v1629, %v1686
  %v1688 = vlaneseq
  %v1689 = vshrl.u32 %v1688, 7
  %v1690 = vsub.s32 6, %v1689
  %v1691 = vrot.slane %v1629, %v1690
  %v1692 = vlaneseq
  %v1693 = vshrl.u32 %v1692, 7
  %v1694 = vsub.s32 7, %v1693
  %v1695 = vrot.slane %v1629, %v1694
  %v1744 = vunpack.c.l.b16 %v1595
  %v1745 = vunpack.c.h.b16 %v1595
  %v1746 = vunpack.c.l.b16 %v1596
  %v1747 = vunpack.c.h.b16 %v1596
  %v1748 = vunpack.c.l.b16 %v1597
  %v1749 = vunpack.c.h.b16 %v1597
  %v1750 = vunpack.c.l.b16 %v1598
  %v1751 = vunpack.c.h.b16 %v1598
  %v1752 = vunpack.c.l.b16 %v1599
  %v1753 = vunpack.c.h.b16 %v1599
  %v1754 = vunpack.c.l.b16 %v1600
  %v1755 = vunpack.c.h.b16 %v1600
  %v1756 = vunpack.c.l.b16 %v1601
  %v1757 = vunpack.c.h.b16 %v1601
  %v1758 = vunpack.c.l.b16 %v1602
  %v1759 = vunpack.c.h.b16 %v1602
  %v1760 = vunpack.c.l.b16 %v1603
  %v1761 = vunpack.c.h.b16 %v1603
  %v1762 = vunpack.c.l.b16 %v1604
  %v1763 = vunpack.c.h.b16 %v1604
  %v1764 = vunpack.c.l.b16 %v1605
  %v1765 = vunpack.c.h.b16 %v1605
  %v1766 = vunpack.c.l.b16 %v1606
  %v1767 = vunpack.c.h.b16 %v1606
  %v1768 = vunpack.c.l.b16 %v1607
  %v1769 = vunpack.c.h.b16 %v1607
  %v1770 = vunpack.c.l.b16 %v1608
  %v1771 = vunpack.c.h.b16 %v1608
  %v1772 = vunpack.c.l.b16 %v1609
  %v1773 = vunpack.c.h.b16 %v1609
  %v1774 = vunpack.c.l.b16 %v1610
  %v1775 = vunpack.c.h.b16 %v1610
  %v1776 = vunpack.c.l.b16 %v1611
  %v1777 = vunpack.c.h.b16 %v1611
  %v1778 = vunpack.c.l.b16 %v1612
  %v1779 = vunpack.c.h.b16 %v1612
  %v1780 = vunpack.c.l.b16 %v1613
  %v1781 = vunpack.c.h.b16 %v1613
  %v1782 = vunpack.c.l.b16 %v1614
  %v1783 = vunpack.c.h.b16 %v1614
  %v1784 = vunpack.c.l.b16 %v1615
  %v1785 = vunpack.c.h.b16 %v1615
  %v1786 = vunpack.c.l.b16 %v1616
  %v1787 = vunpack.c.h.b16 %v1616
  %v1788 = vunpack.c.l.b16 %v1617
  %v1789 = vunpack.c.h.b16 %v1617
  %v1790 = vunpack.c.l.b16 %v1618
  %v1791 = vunpack.c.h.b16 %v1618
  %v1792 = vunpack.c.l.b16 %v1619
  %v1793 = vunpack.c.h.b16 %v1619
  %v1794 = vunpack.c.l.b16 %v1620
  %v1795 = vunpack.c.h.b16 %v1620
  %v1796 = vunpack.c.l.b16 %v1621
  %v1797 = vunpack.c.h.b16 %v1621
  %v1798 = vunpack.c.l.b16 %v1622
  %v1799 = vunpack.c.h.b16 %v1622
  %v1800 = vunpack.c.l.b16 %v1623
  %v1801 = vunpack.c.h.b16 %v1623
  %v1802 = vunpack.c.l.b16 %v1624
  %v1803 = vunpack.c.h.b16 %v1624
  %v1804 = vunpack.c.l.b16 %v1625
  %v1805 = vunpack.c.h.b16 %v1625
  %v1806 = vunpack.c.l.b16 %v1626
  %v1807 = vunpack.c.h.b16 %v1626
  %v1808 = vpack.c.b16 %v1760, %v1744
  %v1809 = vpack.c.b16 %v1761, %v1745
  %v1810 = vpack.c.b16 %v1762, %v1746
  %v1811 = vpack.c.b16 %v1763, %v1747
  %v1812 = vpack.c.b16 %v1764, %v1748
  %v1813 = vpack.c.b16 %v1765, %v1749
  %v1814 = vpack.c.b16 %v1766, %v1750
  %v1815 = vpack.c.b16 %v1767, %v1751
  %v1816 = vpack.c.b16 %v1768, %v1752
  %v1817 = vpack.c.b16 %v1769, %v1753
  %v1818 = vpack.c.b16 %v1770, %v1754
  %v1819 = vpack.c.b16 %v1771, %v1755
  %v1820 = vpack.c.b16 %v1772, %v1756
  %v1821 = vpack.c.b16 %v1773, %v1757
  %v1822 = vpack.c.b16 %v1774, %v1758
  %v1823 = vpack.c.b16 %v1775, %v1759
  %v1824 = vpack.c.b16 %v1792, %v1776
  %v1825 = vpack.c.b16 %v1793, %v1777
  %v1826 = vpack.c.b16 %v1794, %v1778
  %v1827 = vpack.c.b16 %v1795, %v1779
  %v1828 = vpack.c.b16 %v1796, %v1780
  %v1829 = vpack.c.b16 %v1797, %v1781
  %v1830 = vpack.c.b16 %v1798, %v1782
  %v1831 = vpack.c.b16 %v1799, %v1783
  %v1832 = vpack.c.b16 %v1800, %v1784
  %v1833 = vpack.c.b16 %v1801, %v1785
  %v1834 = vpack.c.b16 %v1802, %v1786
  %v1835 = vpack.c.b16 %v1803, %v1787
  %v1836 = vpack.c.b16 %v1804, %v1788
  %v1837 = vpack.c.b16 %v1805, %v1789
  %v1838 = vpack.c.b16 %v1806, %v1790
  %v1839 = vpack.c.b16 %v1807, %v1791
  %v1873 = vsel %vm71, %v1627, 0
  %1875 = vmatprep.subr.bf16.mxu0 0
  %1876 = vmatpush1.bf16.msra.mxu0 0
  %1877 = vmatprep.subr.bf16.mxu0 0
  %1878 = vmatpush1.bf16.msra.mxu0 0
  %1879 = vmatprep.subr.bf16.mxu0 0
  %1880 = vmatpush1.bf16.msra.mxu0 0
  %1881 = vmatprep.subr.bf16.mxu0 0
  %1882 = vmatpush1.bf16.msra.mxu0 0
  %1883 = vmatprep.subr.bf16.mxu0 0
  %1884 = vmatpush1.bf16.msra.mxu0 0
  %1885 = vmatprep.subr.bf16.mxu0 0
  %1886 = vmatpush1.bf16.msra.mxu0 0
  %1887 = vmatprep.subr.bf16.mxu0 %v1825
  %1888 = vmatpush1.bf16.msra.mxu0 %v1824
  %1889 = vmatprep.subr.bf16.mxu0 %v1809
  %1890 = vmatpush1.bf16.msra.mxu0 %v1808
  %1891 = vmatprep.subr.bf16.mxu0 0
  %1892 = vmatpush2.bf16.msra.mxu0 0
  %1893 = vmatprep.subr.bf16.mxu0 0
  %1894 = vmatpush2.bf16.msra.mxu0 0
  %1895 = vmatprep.subr.bf16.mxu0 0
  %1896 = vmatpush2.bf16.msra.mxu0 0
  %1897 = vmatprep.subr.bf16.mxu0 0
  %1898 = vmatpush2.bf16.msra.mxu0 0
  %1899 = vmatprep.subr.bf16.mxu0 0
  %1900 = vmatpush2.bf16.msra.mxu0 0
  %1901 = vmatprep.subr.bf16.mxu0 0
  %1902 = vmatpush2.bf16.msra.mxu0 0
  %1903 = vmatprep.subr.bf16.mxu0 0
  %1904 = vmatpush2.bf16.msra.mxu0 0
  %1905 = vmatprep.subr.bf16.mxu0 0
  %1906 = vmatpush2.bf16.msra.mxu0 0
  %1907 = vmatprep.mubr.bf16.mxu0 0
  %1908 = vmatmul.mubr.bf16.gmra.mxu0 %v1873
  %v1909 = vpop.f32.mrf.mxu0
  %v1910 = vadd.f32 %v1635, %v1909
  %v1911 = vpop.f32.mrf.mxu0
  %v1912 = vadd.f32 %v1639, %v1911
  %v1913 = vpop.f32.mrf.mxu0
  %v1914 = vadd.f32 %v1635, %v1913
  %v1915 = vpop.f32.mrf.mxu0
  %v1916 = vadd.f32 %v1639, %v1915
  %1917 = vdwg.mxu0
  %1918 = vmatprep.subr.bf16.mxu0 0
  %1919 = vmatpush1.bf16.msra.mxu0 0
  %1920 = vmatprep.subr.bf16.mxu0 0
  %1921 = vmatpush1.bf16.msra.mxu0 0
  %1922 = vmatprep.subr.bf16.mxu0 0
  %1923 = vmatpush1.bf16.msra.mxu0 0
  %1924 = vmatprep.subr.bf16.mxu0 0
  %1925 = vmatpush1.bf16.msra.mxu0 0
  %1926 = vmatprep.subr.bf16.mxu0 0
  %1927 = vmatpush1.bf16.msra.mxu0 0
  %1928 = vmatprep.subr.bf16.mxu0 0
  %1929 = vmatpush1.bf16.msra.mxu0 0
  %1930 = vmatprep.subr.bf16.mxu0 %v1827
  %1931 = vmatpush1.bf16.msra.mxu0 %v1826
  %1932 = vmatprep.subr.bf16.mxu0 %v1811
  %1933 = vmatpush1.bf16.msra.mxu0 %v1810
  %1934 = vmatprep.subr.bf16.mxu0 0
  %1935 = vmatpush2.bf16.msra.mxu0 0
  %1936 = vmatprep.subr.bf16.mxu0 0
  %1937 = vmatpush2.bf16.msra.mxu0 0
  %1938 = vmatprep.subr.bf16.mxu0 0
  %1939 = vmatpush2.bf16.msra.mxu0 0
  %1940 = vmatprep.subr.bf16.mxu0 0
  %1941 = vmatpush2.bf16.msra.mxu0 0
  %1942 = vmatprep.subr.bf16.mxu0 0
  %1943 = vmatpush2.bf16.msra.mxu0 0
  %1944 = vmatprep.subr.bf16.mxu0 0
  %1945 = vmatpush2.bf16.msra.mxu0 0
  %1946 = vmatprep.subr.bf16.mxu0 0
  %1947 = vmatpush2.bf16.msra.mxu0 0
  %1948 = vmatprep.subr.bf16.mxu0 0
  %1949 = vmatpush2.bf16.msra.mxu0 0
  %1950 = vmatprep.mubr.bf16.mxu0 0
  %1951 = vmatmul.mubr.bf16.gmra.mxu0 %v1873
  %v1952 = vpop.f32.mrf.mxu0
  %v1953 = vadd.f32 %v1643, %v1952
  %v1954 = vpop.f32.mrf.mxu0
  %v1955 = vadd.f32 %v1647, %v1954
  %v1956 = vpop.f32.mrf.mxu0
  %v1957 = vadd.f32 %v1643, %v1956
  %v1958 = vpop.f32.mrf.mxu0
  %v1959 = vadd.f32 %v1647, %v1958
  %1960 = vdwg.mxu0
  %1961 = vmatprep.subr.bf16.mxu0 0
  %1962 = vmatpush1.bf16.msra.mxu0 0
  %1963 = vmatprep.subr.bf16.mxu0 0
  %1964 = vmatpush1.bf16.msra.mxu0 0
  %1965 = vmatprep.subr.bf16.mxu0 0
  %1966 = vmatpush1.bf16.msra.mxu0 0
  %1967 = vmatprep.subr.bf16.mxu0 0
  %1968 = vmatpush1.bf16.msra.mxu0 0
  %1969 = vmatprep.subr.bf16.mxu0 0
  %1970 = vmatpush1.bf16.msra.mxu0 0
  %1971 = vmatprep.subr.bf16.mxu0 0
  %1972 = vmatpush1.bf16.msra.mxu0 0
  %1973 = vmatprep.subr.bf16.mxu0 %v1829
  %1974 = vmatpush1.bf16.msra.mxu0 %v1828
  %1975 = vmatprep.subr.bf16.mxu0 %v1813
  %1976 = vmatpush1.bf16.msra.mxu0 %v1812
  %1977 = vmatprep.subr.bf16.mxu0 0
  %1978 = vmatpush2.bf16.msra.mxu0 0
  %1979 = vmatprep.subr.bf16.mxu0 0
  %1980 = vmatpush2.bf16.msra.mxu0 0
  %1981 = vmatprep.subr.bf16.mxu0 0
  %1982 = vmatpush2.bf16.msra.mxu0 0
  %1983 = vmatprep.subr.bf16.mxu0 0
  %1984 = vmatpush2.bf16.msra.mxu0 0
  %1985 = vmatprep.subr.bf16.mxu0 0
  %1986 = vmatpush2.bf16.msra.mxu0 0
  %1987 = vmatprep.subr.bf16.mxu0 0
  %1988 = vmatpush2.bf16.msra.mxu0 0
  %1989 = vmatprep.subr.bf16.mxu0 0
  %1990 = vmatpush2.bf16.msra.mxu0 0
  %1991 = vmatprep.subr.bf16.mxu0 0
  %1992 = vmatpush2.bf16.msra.mxu0 0
  %1993 = vmatprep.mubr.bf16.mxu0 0
  %1994 = vmatmul.mubr.bf16.gmra.mxu0 %v1873
  %v1995 = vpop.f32.mrf.mxu0
  %v1996 = vadd.f32 %v1651, %v1995
  %v1997 = vpop.f32.mrf.mxu0
  %v1998 = vadd.f32 %v1655, %v1997
  %v1999 = vpop.f32.mrf.mxu0
  %v2000 = vadd.f32 %v1651, %v1999
  %v2001 = vpop.f32.mrf.mxu0
  %v2002 = vadd.f32 %v1655, %v2001
  %2003 = vdwg.mxu0
  %2004 = vmatprep.subr.bf16.mxu0 0
  %2005 = vmatpush1.bf16.msra.mxu0 0
  %2006 = vmatprep.subr.bf16.mxu0 0
  %2007 = vmatpush1.bf16.msra.mxu0 0
  %2008 = vmatprep.subr.bf16.mxu0 0
  %2009 = vmatpush1.bf16.msra.mxu0 0
  %2010 = vmatprep.subr.bf16.mxu0 0
  %2011 = vmatpush1.bf16.msra.mxu0 0
  %2012 = vmatprep.subr.bf16.mxu0 0
  %2013 = vmatpush1.bf16.msra.mxu0 0
  %2014 = vmatprep.subr.bf16.mxu0 0
  %2015 = vmatpush1.bf16.msra.mxu0 0
  %2016 = vmatprep.subr.bf16.mxu0 %v1831
  %2017 = vmatpush1.bf16.msra.mxu0 %v1830
  %2018 = vmatprep.subr.bf16.mxu0 %v1815
  %2019 = vmatpush1.bf16.msra.mxu0 %v1814
  %2020 = vmatprep.subr.bf16.mxu0 0
  %2021 = vmatpush2.bf16.msra.mxu0 0
  %2022 = vmatprep.subr.bf16.mxu0 0
  %2023 = vmatpush2.bf16.msra.mxu0 0
  %2024 = vmatprep.subr.bf16.mxu0 0
  %2025 = vmatpush2.bf16.msra.mxu0 0
  %2026 = vmatprep.subr.bf16.mxu0 0
  %2027 = vmatpush2.bf16.msra.mxu0 0
  %2028 = vmatprep.subr.bf16.mxu0 0
  %2029 = vmatpush2.bf16.msra.mxu0 0
  %2030 = vmatprep.subr.bf16.mxu0 0
  %2031 = vmatpush2.bf16.msra.mxu0 0
  %2032 = vmatprep.subr.bf16.mxu0 0
  %2033 = vmatpush2.bf16.msra.mxu0 0
  %2034 = vmatprep.subr.bf16.mxu0 0
  %2035 = vmatpush2.bf16.msra.mxu0 0
  %2036 = vmatprep.mubr.bf16.mxu0 0
  %2037 = vmatmul.mubr.bf16.gmra.mxu0 %v1873
  %v2038 = vpop.f32.mrf.mxu0
  %v2039 = vadd.f32 %v1659, %v2038
  %v2040 = vpop.f32.mrf.mxu0
  %v2041 = vadd.f32 %v1663, %v2040
  %v2042 = vpop.f32.mrf.mxu0
  %v2043 = vadd.f32 %v1659, %v2042
  %v2044 = vpop.f32.mrf.mxu0
  %v2045 = vadd.f32 %v1663, %v2044
  %2046 = vdwg.mxu0
  %2047 = vmatprep.subr.bf16.mxu0 0
  %2048 = vmatpush1.bf16.msra.mxu0 0
  %2049 = vmatprep.subr.bf16.mxu0 0
  %2050 = vmatpush1.bf16.msra.mxu0 0
  %2051 = vmatprep.subr.bf16.mxu0 0
  %2052 = vmatpush1.bf16.msra.mxu0 0
  %2053 = vmatprep.subr.bf16.mxu0 0
  %2054 = vmatpush1.bf16.msra.mxu0 0
  %2055 = vmatprep.subr.bf16.mxu0 0
  %2056 = vmatpush1.bf16.msra.mxu0 0
  %2057 = vmatprep.subr.bf16.mxu0 0
  %2058 = vmatpush1.bf16.msra.mxu0 0
  %2059 = vmatprep.subr.bf16.mxu0 %v1833
  %2060 = vmatpush1.bf16.msra.mxu0 %v1832
  %2061 = vmatprep.subr.bf16.mxu0 %v1817
  %2062 = vmatpush1.bf16.msra.mxu0 %v1816
  %2063 = vmatprep.subr.bf16.mxu0 0
  %2064 = vmatpush2.bf16.msra.mxu0 0
  %2065 = vmatprep.subr.bf16.mxu0 0
  %2066 = vmatpush2.bf16.msra.mxu0 0
  %2067 = vmatprep.subr.bf16.mxu0 0
  %2068 = vmatpush2.bf16.msra.mxu0 0
  %2069 = vmatprep.subr.bf16.mxu0 0
  %2070 = vmatpush2.bf16.msra.mxu0 0
  %2071 = vmatprep.subr.bf16.mxu0 0
  %2072 = vmatpush2.bf16.msra.mxu0 0
  %2073 = vmatprep.subr.bf16.mxu0 0
  %2074 = vmatpush2.bf16.msra.mxu0 0
  %2075 = vmatprep.subr.bf16.mxu0 0
  %2076 = vmatpush2.bf16.msra.mxu0 0
  %2077 = vmatprep.subr.bf16.mxu0 0
  %2078 = vmatpush2.bf16.msra.mxu0 0
  %2079 = vmatprep.mubr.bf16.mxu0 0
  %2080 = vmatmul.mubr.bf16.gmra.mxu0 %v1873
  %v2081 = vpop.f32.mrf.mxu0
  %v2082 = vadd.f32 %v1667, %v2081
  %v2083 = vpop.f32.mrf.mxu0
  %v2084 = vadd.f32 %v1671, %v2083
  %v2085 = vpop.f32.mrf.mxu0
  %v2086 = vadd.f32 %v1667, %v2085
  %v2087 = vpop.f32.mrf.mxu0
  %v2088 = vadd.f32 %v1671, %v2087
  %2089 = vdwg.mxu0
  %2090 = vmatprep.subr.bf16.mxu0 0
  %2091 = vmatpush1.bf16.msra.mxu0 0
  %2092 = vmatprep.subr.bf16.mxu0 0
  %2093 = vmatpush1.bf16.msra.mxu0 0
  %2094 = vmatprep.subr.bf16.mxu0 0
  %2095 = vmatpush1.bf16.msra.mxu0 0
  %2096 = vmatprep.subr.bf16.mxu0 0
  %2097 = vmatpush1.bf16.msra.mxu0 0
  %2098 = vmatprep.subr.bf16.mxu0 0
  %2099 = vmatpush1.bf16.msra.mxu0 0
  %2100 = vmatprep.subr.bf16.mxu0 0
  %2101 = vmatpush1.bf16.msra.mxu0 0
  %2102 = vmatprep.subr.bf16.mxu0 %v1835
  %2103 = vmatpush1.bf16.msra.mxu0 %v1834
  %2104 = vmatprep.subr.bf16.mxu0 %v1819
  %2105 = vmatpush1.bf16.msra.mxu0 %v1818
  %2106 = vmatprep.subr.bf16.mxu0 0
  %2107 = vmatpush2.bf16.msra.mxu0 0
  %2108 = vmatprep.subr.bf16.mxu0 0
  %2109 = vmatpush2.bf16.msra.mxu0 0
  %2110 = vmatprep.subr.bf16.mxu0 0
  %2111 = vmatpush2.bf16.msra.mxu0 0
  %2112 = vmatprep.subr.bf16.mxu0 0
  %2113 = vmatpush2.bf16.msra.mxu0 0
  %2114 = vmatprep.subr.bf16.mxu0 0
  %2115 = vmatpush2.bf16.msra.mxu0 0
  %2116 = vmatprep.subr.bf16.mxu0 0
  %2117 = vmatpush2.bf16.msra.mxu0 0
  %2118 = vmatprep.subr.bf16.mxu0 0
  %2119 = vmatpush2.bf16.msra.mxu0 0
  %2120 = vmatprep.subr.bf16.mxu0 0
  %2121 = vmatpush2.bf16.msra.mxu0 0
  %2122 = vmatprep.mubr.bf16.mxu0 0
  %2123 = vmatmul.mubr.bf16.gmra.mxu0 %v1873
  %v2124 = vpop.f32.mrf.mxu0
  %v2125 = vadd.f32 %v1675, %v2124
  %v2126 = vpop.f32.mrf.mxu0
  %v2127 = vadd.f32 %v1679, %v2126
  %v2128 = vpop.f32.mrf.mxu0
  %v2129 = vadd.f32 %v1675, %v2128
  %v2130 = vpop.f32.mrf.mxu0
  %v2131 = vadd.f32 %v1679, %v2130
  %2132 = vdwg.mxu0
  %2133 = vmatprep.subr.bf16.mxu0 0
  %2134 = vmatpush1.bf16.msra.mxu0 0
  %2135 = vmatprep.subr.bf16.mxu0 0
  %2136 = vmatpush1.bf16.msra.mxu0 0
  %2137 = vmatprep.subr.bf16.mxu0 0
  %2138 = vmatpush1.bf16.msra.mxu0 0
  %2139 = vmatprep.subr.bf16.mxu0 0
  %2140 = vmatpush1.bf16.msra.mxu0 0
  %2141 = vmatprep.subr.bf16.mxu0 0
  %2142 = vmatpush1.bf16.msra.mxu0 0
  %2143 = vmatprep.subr.bf16.mxu0 0
  %2144 = vmatpush1.bf16.msra.mxu0 0
  %2145 = vmatprep.subr.bf16.mxu0 %v1837
  %2146 = vmatpush1.bf16.msra.mxu0 %v1836
  %2147 = vmatprep.subr.bf16.mxu0 %v1821
  %2148 = vmatpush1.bf16.msra.mxu0 %v1820
  %2149 = vmatprep.subr.bf16.mxu0 0
  %2150 = vmatpush2.bf16.msra.mxu0 0
  %2151 = vmatprep.subr.bf16.mxu0 0
  %2152 = vmatpush2.bf16.msra.mxu0 0
  %2153 = vmatprep.subr.bf16.mxu0 0
  %2154 = vmatpush2.bf16.msra.mxu0 0
  %2155 = vmatprep.subr.bf16.mxu0 0
  %2156 = vmatpush2.bf16.msra.mxu0 0
  %2157 = vmatprep.subr.bf16.mxu0 0
  %2158 = vmatpush2.bf16.msra.mxu0 0
  %2159 = vmatprep.subr.bf16.mxu0 0
  %2160 = vmatpush2.bf16.msra.mxu0 0
  %2161 = vmatprep.subr.bf16.mxu0 0
  %2162 = vmatpush2.bf16.msra.mxu0 0
  %2163 = vmatprep.subr.bf16.mxu0 0
  %2164 = vmatpush2.bf16.msra.mxu0 0
  %2165 = vmatprep.mubr.bf16.mxu0 0
  %2166 = vmatmul.mubr.bf16.gmra.mxu0 %v1873
  %v2167 = vpop.f32.mrf.mxu0
  %v2168 = vadd.f32 %v1683, %v2167
  %v2169 = vpop.f32.mrf.mxu0
  %v2170 = vadd.f32 %v1687, %v2169
  %v2171 = vpop.f32.mrf.mxu0
  %v2172 = vadd.f32 %v1683, %v2171
  %v2173 = vpop.f32.mrf.mxu0
  %v2174 = vadd.f32 %v1687, %v2173
  %2175 = vdwg.mxu0
  %2176 = vmatprep.subr.bf16.mxu0 0
  %2177 = vmatpush1.bf16.msra.mxu0 0
  %2178 = vmatprep.subr.bf16.mxu0 0
  %2179 = vmatpush1.bf16.msra.mxu0 0
  %2180 = vmatprep.subr.bf16.mxu0 0
  %2181 = vmatpush1.bf16.msra.mxu0 0
  %2182 = vmatprep.subr.bf16.mxu0 0
  %2183 = vmatpush1.bf16.msra.mxu0 0
  %2184 = vmatprep.subr.bf16.mxu0 0
  %2185 = vmatpush1.bf16.msra.mxu0 0
  %2186 = vmatprep.subr.bf16.mxu0 0
  %2187 = vmatpush1.bf16.msra.mxu0 0
  %2188 = vmatprep.subr.bf16.mxu0 %v1839
  %2189 = vmatpush1.bf16.msra.mxu0 %v1838
  %2190 = vmatprep.subr.bf16.mxu0 %v1823
  %2191 = vmatpush1.bf16.msra.mxu0 %v1822
  %2192 = vmatprep.subr.bf16.mxu0 0
  %2193 = vmatpush2.bf16.msra.mxu0 0
  %2194 = vmatprep.subr.bf16.mxu0 0
  %2195 = vmatpush2.bf16.msra.mxu0 0
  %2196 = vmatprep.subr.bf16.mxu0 0
  %2197 = vmatpush2.bf16.msra.mxu0 0
  %2198 = vmatprep.subr.bf16.mxu0 0
  %2199 = vmatpush2.bf16.msra.mxu0 0
  %2200 = vmatprep.subr.bf16.mxu0 0
  %2201 = vmatpush2.bf16.msra.mxu0 0
  %2202 = vmatprep.subr.bf16.mxu0 0
  %2203 = vmatpush2.bf16.msra.mxu0 0
  %2204 = vmatprep.subr.bf16.mxu0 0
  %2205 = vmatpush2.bf16.msra.mxu0 0
  %2206 = vmatprep.subr.bf16.mxu0 0
  %2207 = vmatpush2.bf16.msra.mxu0 0
  %2208 = vmatprep.mubr.bf16.mxu0 0
  %2209 = vmatmul.mubr.bf16.gmra.mxu0 %v1873
  %v2210 = vpop.f32.mrf.mxu0
  %v2211 = vadd.f32 %v1691, %v2210
  %v2212 = vpop.f32.mrf.mxu0
  %v2213 = vadd.f32 %v1695, %v2212
  %v2214 = vpop.f32.mrf.mxu0
  %v2215 = vadd.f32 %v1691, %v2214
  %v2216 = vpop.f32.mrf.mxu0
  %v2217 = vadd.f32 %v1695, %v2216
  %2218 = vdwg.mxu0
  %v2219 = vmax.f32 %v1910, 0.0
  %v2220 = vmax.f32 %v1912, 0.0
  %v2221 = vmax.f32 %v1953, 0.0
  %v2222 = vmax.f32 %v1955, 0.0
  %v2223 = vmax.f32 %v1996, 0.0
  %v2224 = vmax.f32 %v1998, 0.0
  %v2225 = vmax.f32 %v2039, 0.0
  %v2226 = vmax.f32 %v2041, 0.0
  %v2227 = vmax.f32 %v2082, 0.0
  %v2228 = vmax.f32 %v2084, 0.0
  %v2229 = vmax.f32 %v2125, 0.0
  %v2230 = vmax.f32 %v2127, 0.0
  %v2231 = vmax.f32 %v2168, 0.0
  %v2232 = vmax.f32 %v2170, 0.0
  %v2233 = vmax.f32 %v2211, 0.0
  %v2234 = vmax.f32 %v2213, 0.0
  %v2235 = vmax.f32 %v1914, 0.0
  %v2236 = vmax.f32 %v1916, 0.0
  %v2237 = vmax.f32 %v1957, 0.0
  %v2238 = vmax.f32 %v1959, 0.0
  %v2239 = vmax.f32 %v2000, 0.0
  %v2240 = vmax.f32 %v2002, 0.0
  %v2241 = vmax.f32 %v2043, 0.0
  %v2242 = vmax.f32 %v2045, 0.0
  %v2243 = vmax.f32 %v2086, 0.0
  %v2244 = vmax.f32 %v2088, 0.0
  %v2245 = vmax.f32 %v2129, 0.0
  %v2246 = vmax.f32 %v2131, 0.0
  %v2247 = vmax.f32 %v2172, 0.0
  %v2248 = vmax.f32 %v2174, 0.0
  %v2249 = vmax.f32 %v2215, 0.0
  %v2250 = vmax.f32 %v2217, 0.0
  %v2251 = vld [vmem:[%s9] sm:$0xf]
  %v2252 = vld [vmem:[%s9 + $0x4] sm:$0xf]
  %v2253 = vld [vmem:[%s9 + $0x8] sm:$0xf]
  %v2254 = vld [vmem:[%s9 + $0xc] sm:$0xf]
  %v2255 = vld [vmem:[%s9 + $0x10] sm:$0xf]
  %v2256 = vld [vmem:[%s9 + $0x14] sm:$0xf]
  %v2257 = vld [vmem:[%s9 + $0x18] sm:$0xf]
  %v2258 = vld [vmem:[%s9 + $0x1c] sm:$0xf]
  %v2259 = vld [vmem:[%s9 + $0x20] sm:$0xf]
  %v2260 = vld [vmem:[%s9 + $0x24] sm:$0xf]
  %v2261 = vld [vmem:[%s9 + $0x28] sm:$0xf]
  %v2262 = vld [vmem:[%s9 + $0x2c] sm:$0xf]
  %v2263 = vld [vmem:[%s9 + $0x30] sm:$0xf]
  %v2264 = vld [vmem:[%s9 + $0x34] sm:$0xf]
  %v2265 = vld [vmem:[%s9 + $0x38] sm:$0xf]
  %v2266 = vld [vmem:[%s9 + $0x3c] sm:$0xf]
  %v2267 = vld [vmem:[%s9 + $0x40] sm:$0xf]
  %v2268 = vld [vmem:[%s9 + $0x44] sm:$0xf]
  %v2269 = vld [vmem:[%s9 + $0x48] sm:$0xf]
  %v2270 = vld [vmem:[%s9 + $0x4c] sm:$0xf]
  %v2271 = vld [vmem:[%s9 + $0x50] sm:$0xf]
  %v2272 = vld [vmem:[%s9 + $0x54] sm:$0xf]
  %v2273 = vld [vmem:[%s9 + $0x58] sm:$0xf]
  %v2274 = vld [vmem:[%s9 + $0x5c] sm:$0xf]
  %v2275 = vld [vmem:[%s9 + $0x60] sm:$0xf]
  %v2276 = vld [vmem:[%s9 + $0x64] sm:$0xf]
  %v2277 = vld [vmem:[%s9 + $0x68] sm:$0xf]
  %v2278 = vld [vmem:[%s9 + $0x6c] sm:$0xf]
  %v2279 = vld [vmem:[%s9 + $0x70] sm:$0xf]
  %v2280 = vld [vmem:[%s9 + $0x74] sm:$0xf]
  %v2281 = vld [vmem:[%s9 + $0x78] sm:$0xf]
  %v2282 = vld [vmem:[%s9 + $0x7c] sm:$0xf]
  %v2283 = vld [vmem:[%s9 + $0x80] sm:$0xf]
  %v2284 = vld [vmem:[%s9 + $0x84] sm:$0xf]
  %v2285 = vld [vmem:[%s9 + $0x88] sm:$0xf]
  %v2286 = vld [vmem:[%s9 + $0x8c] sm:$0xf]
  %v2287 = vld [vmem:[%s9 + $0x90] sm:$0xf]
  %v2288 = vld [vmem:[%s9 + $0x94] sm:$0xf]
  %v2289 = vld [vmem:[%s9 + $0x98] sm:$0xf]
  %v2290 = vld [vmem:[%s9 + $0x9c] sm:$0xf]
  %v2291 = vld [vmem:[%s9 + $0xa0] sm:$0xf]
  %v2292 = vld [vmem:[%s9 + $0xa4] sm:$0xf]
  %v2293 = vld [vmem:[%s9 + $0xa8] sm:$0xf]
  %v2294 = vld [vmem:[%s9 + $0xac] sm:$0xf]
  %v2295 = vld [vmem:[%s9 + $0xb0] sm:$0xf]
  %v2296 = vld [vmem:[%s9 + $0xb4] sm:$0xf]
  %v2297 = vld [vmem:[%s9 + $0xb8] sm:$0xf]
  %v2298 = vld [vmem:[%s9 + $0xbc] sm:$0xf]
  %v2299 = vld [vmem:[%s9 + $0xc0] sm:$0xf]
  %v2300 = vld [vmem:[%s9 + $0xc4] sm:$0xf]
  %v2301 = vld [vmem:[%s9 + $0xc8] sm:$0xf]
  %v2302 = vld [vmem:[%s9 + $0xcc] sm:$0xf]
  %v2303 = vld [vmem:[%s9 + $0xd0] sm:$0xf]
  %v2304 = vld [vmem:[%s9 + $0xd4] sm:$0xf]
  %v2305 = vld [vmem:[%s9 + $0xd8] sm:$0xf]
  %v2306 = vld [vmem:[%s9 + $0xdc] sm:$0xf]
  %v2307 = vld [vmem:[%s9 + $0xe0] sm:$0xf]
  %v2308 = vld [vmem:[%s9 + $0xe4] sm:$0xf]
  %v2309 = vld [vmem:[%s9 + $0xe8] sm:$0xf]
  %v2310 = vld [vmem:[%s9 + $0xec] sm:$0xf]
  %v2311 = vld [vmem:[%s9 + $0xf0] sm:$0xf]
  %v2312 = vld [vmem:[%s9 + $0xf4] sm:$0xf]
  %v2313 = vld [vmem:[%s9 + $0xf8] sm:$0xf]
  %v2314 = vld [vmem:[%s9 + $0xfc] sm:$0xf]
  %v2315 = vld [vmem:[%s9 + $0x100] sm:$0xf]
  %v2316 = vld [vmem:[%s9 + $0x104] sm:$0xf]
  %v2317 = vld [vmem:[%s9 + $0x108] sm:$0xf]
  %v2318 = vld [vmem:[%s9 + $0x10c] sm:$0xf]
  %v2319 = vld [vmem:[%s9 + $0x110] sm:$0xf]
  %v2320 = vld [vmem:[%s9 + $0x114] sm:$0xf]
  %v2321 = vld [vmem:[%s9 + $0x118] sm:$0xf]
  %v2322 = vld [vmem:[%s9 + $0x11c] sm:$0xf]
  %v2323 = vld [vmem:[%s9 + $0x120] sm:$0xf]
  %v2324 = vld [vmem:[%s9 + $0x124] sm:$0xf]
  %v2325 = vld [vmem:[%s9 + $0x128] sm:$0xf]
  %v2326 = vld [vmem:[%s9 + $0x12c] sm:$0xf]
  %v2327 = vld [vmem:[%s9 + $0x130] sm:$0xf]
  %v2328 = vld [vmem:[%s9 + $0x134] sm:$0xf]
  %v2329 = vld [vmem:[%s9 + $0x138] sm:$0xf]
  %v2330 = vld [vmem:[%s9 + $0x13c] sm:$0xf]
  %v2331 = vld [vmem:[%s9 + $0x140] sm:$0xf]
  %v2332 = vld [vmem:[%s9 + $0x144] sm:$0xf]
  %v2333 = vld [vmem:[%s9 + $0x148] sm:$0xf]
  %v2334 = vld [vmem:[%s9 + $0x14c] sm:$0xf]
  %v2335 = vld [vmem:[%s9 + $0x150] sm:$0xf]
  %v2336 = vld [vmem:[%s9 + $0x154] sm:$0xf]
  %v2337 = vld [vmem:[%s9 + $0x158] sm:$0xf]
  %v2338 = vld [vmem:[%s9 + $0x15c] sm:$0xf]
  %v2339 = vld [vmem:[%s9 + $0x160] sm:$0xf]
  %v2340 = vld [vmem:[%s9 + $0x164] sm:$0xf]
  %v2341 = vld [vmem:[%s9 + $0x168] sm:$0xf]
  %v2342 = vld [vmem:[%s9 + $0x16c] sm:$0xf]
  %v2343 = vld [vmem:[%s9 + $0x170] sm:$0xf]
  %v2344 = vld [vmem:[%s9 + $0x174] sm:$0xf]
  %v2345 = vld [vmem:[%s9 + $0x178] sm:$0xf]
  %v2346 = vld [vmem:[%s9 + $0x17c] sm:$0xf]
  %v2347 = vld [vmem:[%s9 + $0x180] sm:$0xf]
  %v2348 = vld [vmem:[%s9 + $0x184] sm:$0xf]
  %v2349 = vld [vmem:[%s9 + $0x188] sm:$0xf]
  %v2350 = vld [vmem:[%s9 + $0x18c] sm:$0xf]
  %v2351 = vld [vmem:[%s9 + $0x190] sm:$0xf]
  %v2352 = vld [vmem:[%s9 + $0x194] sm:$0xf]
  %v2353 = vld [vmem:[%s9 + $0x198] sm:$0xf]
  %v2354 = vld [vmem:[%s9 + $0x19c] sm:$0xf]
  %v2355 = vld [vmem:[%s9 + $0x1a0] sm:$0xf]
  %v2356 = vld [vmem:[%s9 + $0x1a4] sm:$0xf]
  %v2357 = vld [vmem:[%s9 + $0x1a8] sm:$0xf]
  %v2358 = vld [vmem:[%s9 + $0x1ac] sm:$0xf]
  %v2359 = vld [vmem:[%s9 + $0x1b0] sm:$0xf]
  %v2360 = vld [vmem:[%s9 + $0x1b4] sm:$0xf]
  %v2361 = vld [vmem:[%s9 + $0x1b8] sm:$0xf]
  %v2362 = vld [vmem:[%s9 + $0x1bc] sm:$0xf]
  %v2363 = vld [vmem:[%s9 + $0x1c0] sm:$0xf]
  %v2364 = vld [vmem:[%s9 + $0x1c4] sm:$0xf]
  %v2365 = vld [vmem:[%s9 + $0x1c8] sm:$0xf]
  %v2366 = vld [vmem:[%s9 + $0x1cc] sm:$0xf]
  %v2367 = vld [vmem:[%s9 + $0x1d0] sm:$0xf]
  %v2368 = vld [vmem:[%s9 + $0x1d4] sm:$0xf]
  %v2369 = vld [vmem:[%s9 + $0x1d8] sm:$0xf]
  %v2370 = vld [vmem:[%s9 + $0x1dc] sm:$0xf]
  %v2371 = vld [vmem:[%s9 + $0x1e0] sm:$0xf]
  %v2372 = vld [vmem:[%s9 + $0x1e4] sm:$0xf]
  %v2373 = vld [vmem:[%s9 + $0x1e8] sm:$0xf]
  %v2374 = vld [vmem:[%s9 + $0x1ec] sm:$0xf]
  %v2375 = vld [vmem:[%s9 + $0x1f0] sm:$0xf]
  %v2376 = vld [vmem:[%s9 + $0x1f4] sm:$0xf]
  %v2377 = vld [vmem:[%s9 + $0x1f8] sm:$0xf]
  %v2378 = vld [vmem:[%s9 + $0x1fc] sm:$0xf]
  %v2379 = vld [vmem:[%s9 + $0x200] sm:$0xf]
  %v2380 = vld [vmem:[%s9 + $0x204] sm:$0xf]
  %v2381 = vld [vmem:[%s9 + $0x208] sm:$0xf]
  %v2382 = vld [vmem:[%s9 + $0x20c] sm:$0xf]
  %v2383 = vld [vmem:[%s9 + $0x210] sm:$0xf]
  %v2384 = vld [vmem:[%s9 + $0x214] sm:$0xf]
  %v2385 = vld [vmem:[%s9 + $0x218] sm:$0xf]
  %v2386 = vld [vmem:[%s9 + $0x21c] sm:$0xf]
  %v2387 = vld [vmem:[%s9 + $0x220] sm:$0xf]
  %v2388 = vld [vmem:[%s9 + $0x224] sm:$0xf]
  %v2389 = vld [vmem:[%s9 + $0x228] sm:$0xf]
  %v2390 = vld [vmem:[%s9 + $0x22c] sm:$0xf]
  %v2391 = vld [vmem:[%s9 + $0x230] sm:$0xf]
  %v2392 = vld [vmem:[%s9 + $0x234] sm:$0xf]
  %v2393 = vld [vmem:[%s9 + $0x238] sm:$0xf]
  %v2394 = vld [vmem:[%s9 + $0x23c] sm:$0xf]
  %v2395 = vld [vmem:[%s9 + $0x240] sm:$0xf]
  %v2396 = vld [vmem:[%s9 + $0x244] sm:$0xf]
  %v2397 = vld [vmem:[%s9 + $0x248] sm:$0xf]
  %v2398 = vld [vmem:[%s9 + $0x24c] sm:$0xf]
  %v2399 = vld [vmem:[%s9 + $0x250] sm:$0xf]
  %v2400 = vld [vmem:[%s9 + $0x254] sm:$0xf]
  %v2401 = vld [vmem:[%s9 + $0x258] sm:$0xf]
  %v2402 = vld [vmem:[%s9 + $0x25c] sm:$0xf]
  %v2403 = vld [vmem:[%s9 + $0x260] sm:$0xf]
  %v2404 = vld [vmem:[%s9 + $0x264] sm:$0xf]
  %v2405 = vld [vmem:[%s9 + $0x268] sm:$0xf]
  %v2406 = vld [vmem:[%s9 + $0x26c] sm:$0xf]
  %v2407 = vld [vmem:[%s9 + $0x270] sm:$0xf]
  %v2408 = vld [vmem:[%s9 + $0x274] sm:$0xf]
  %v2409 = vld [vmem:[%s9 + $0x278] sm:$0xf]
  %v2410 = vld [vmem:[%s9 + $0x27c] sm:$0xf]
  %v2411 = vld [vmem:[%s9 + $0x280] sm:$0xf]
  %v2412 = vld [vmem:[%s9 + $0x284] sm:$0xf]
  %v2413 = vld [vmem:[%s9 + $0x288] sm:$0xf]
  %v2414 = vld [vmem:[%s9 + $0x28c] sm:$0xf]
  %v2415 = vld [vmem:[%s9 + $0x290] sm:$0xf]
  %v2416 = vld [vmem:[%s9 + $0x294] sm:$0xf]
  %v2417 = vld [vmem:[%s9 + $0x298] sm:$0xf]
  %v2418 = vld [vmem:[%s9 + $0x29c] sm:$0xf]
  %v2419 = vld [vmem:[%s9 + $0x2a0] sm:$0xf]
  %v2420 = vld [vmem:[%s9 + $0x2a4] sm:$0xf]
  %v2421 = vld [vmem:[%s9 + $0x2a8] sm:$0xf]
  %v2422 = vld [vmem:[%s9 + $0x2ac] sm:$0xf]
  %v2423 = vld [vmem:[%s9 + $0x2b0] sm:$0xf]
  %v2424 = vld [vmem:[%s9 + $0x2b4] sm:$0xf]
  %v2425 = vld [vmem:[%s9 + $0x2b8] sm:$0xf]
  %v2426 = vld [vmem:[%s9 + $0x2bc] sm:$0xf]
  %v2427 = vld [vmem:[%s9 + $0x2c0] sm:$0xf]
  %v2428 = vld [vmem:[%s9 + $0x2c4] sm:$0xf]
  %v2429 = vld [vmem:[%s9 + $0x2c8] sm:$0xf]
  %v2430 = vld [vmem:[%s9 + $0x2cc] sm:$0xf]
  %v2431 = vld [vmem:[%s9 + $0x2d0] sm:$0xf]
  %v2432 = vld [vmem:[%s9 + $0x2d4] sm:$0xf]
  %v2433 = vld [vmem:[%s9 + $0x2d8] sm:$0xf]
  %v2434 = vld [vmem:[%s9 + $0x2dc] sm:$0xf]
  %v2435 = vld [vmem:[%s9 + $0x2e0] sm:$0xf]
  %v2436 = vld [vmem:[%s9 + $0x2e4] sm:$0xf]
  %v2437 = vld [vmem:[%s9 + $0x2e8] sm:$0xf]
  %v2438 = vld [vmem:[%s9 + $0x2ec] sm:$0xf]
  %v2439 = vld [vmem:[%s9 + $0x2f0] sm:$0xf]
  %v2440 = vld [vmem:[%s9 + $0x2f4] sm:$0xf]
  %v2441 = vld [vmem:[%s9 + $0x2f8] sm:$0xf]
  %v2442 = vld [vmem:[%s9 + $0x2fc] sm:$0xf]
  %v2443 = vld [vmem:[%s9 + $0x300] sm:$0xf]
  %v2444 = vld [vmem:[%s9 + $0x304] sm:$0xf]
  %v2445 = vld [vmem:[%s9 + $0x308] sm:$0xf]
  %v2446 = vld [vmem:[%s9 + $0x30c] sm:$0xf]
  %v2447 = vld [vmem:[%s9 + $0x310] sm:$0xf]
  %v2448 = vld [vmem:[%s9 + $0x314] sm:$0xf]
  %v2449 = vld [vmem:[%s9 + $0x318] sm:$0xf]
  %v2450 = vld [vmem:[%s9 + $0x31c] sm:$0xf]
  %v2451 = vld [vmem:[%s9 + $0x320] sm:$0xf]
  %v2452 = vld [vmem:[%s9 + $0x324] sm:$0xf]
  %v2453 = vld [vmem:[%s9 + $0x328] sm:$0xf]
  %v2454 = vld [vmem:[%s9 + $0x32c] sm:$0xf]
  %v2455 = vld [vmem:[%s9 + $0x330] sm:$0xf]
  %v2456 = vld [vmem:[%s9 + $0x334] sm:$0xf]
  %v2457 = vld [vmem:[%s9 + $0x338] sm:$0xf]
  %v2458 = vld [vmem:[%s9 + $0x33c] sm:$0xf]
  %v2459 = vld [vmem:[%s9 + $0x340] sm:$0xf]
  %v2460 = vld [vmem:[%s9 + $0x344] sm:$0xf]
  %v2461 = vld [vmem:[%s9 + $0x348] sm:$0xf]
  %v2462 = vld [vmem:[%s9 + $0x34c] sm:$0xf]
  %v2463 = vld [vmem:[%s9 + $0x350] sm:$0xf]
  %v2464 = vld [vmem:[%s9 + $0x354] sm:$0xf]
  %v2465 = vld [vmem:[%s9 + $0x358] sm:$0xf]
  %v2466 = vld [vmem:[%s9 + $0x35c] sm:$0xf]
  %v2467 = vld [vmem:[%s9 + $0x360] sm:$0xf]
  %v2468 = vld [vmem:[%s9 + $0x364] sm:$0xf]
  %v2469 = vld [vmem:[%s9 + $0x368] sm:$0xf]
  %v2470 = vld [vmem:[%s9 + $0x36c] sm:$0xf]
  %v2471 = vld [vmem:[%s9 + $0x370] sm:$0xf]
  %v2472 = vld [vmem:[%s9 + $0x374] sm:$0xf]
  %v2473 = vld [vmem:[%s9 + $0x378] sm:$0xf]
  %v2474 = vld [vmem:[%s9 + $0x37c] sm:$0xf]
  %v2475 = vld [vmem:[%s9 + $0x380] sm:$0xf]
  %v2476 = vld [vmem:[%s9 + $0x384] sm:$0xf]
  %v2477 = vld [vmem:[%s9 + $0x388] sm:$0xf]
  %v2478 = vld [vmem:[%s9 + $0x38c] sm:$0xf]
  %v2479 = vld [vmem:[%s9 + $0x390] sm:$0xf]
  %v2480 = vld [vmem:[%s9 + $0x394] sm:$0xf]
  %v2481 = vld [vmem:[%s9 + $0x398] sm:$0xf]
  %v2482 = vld [vmem:[%s9 + $0x39c] sm:$0xf]
  %v2483 = vld [vmem:[%s9 + $0x3a0] sm:$0xf]
  %v2484 = vld [vmem:[%s9 + $0x3a4] sm:$0xf]
  %v2485 = vld [vmem:[%s9 + $0x3a8] sm:$0xf]
  %v2486 = vld [vmem:[%s9 + $0x3ac] sm:$0xf]
  %v2487 = vld [vmem:[%s9 + $0x3b0] sm:$0xf]
  %v2488 = vld [vmem:[%s9 + $0x3b4] sm:$0xf]
  %v2489 = vld [vmem:[%s9 + $0x3b8] sm:$0xf]
  %v2490 = vld [vmem:[%s9 + $0x3bc] sm:$0xf]
  %v2491 = vld [vmem:[%s9 + $0x3c0] sm:$0xf]
  %v2492 = vld [vmem:[%s9 + $0x3c4] sm:$0xf]
  %v2493 = vld [vmem:[%s9 + $0x3c8] sm:$0xf]
  %v2494 = vld [vmem:[%s9 + $0x3cc] sm:$0xf]
  %v2495 = vld [vmem:[%s9 + $0x3d0] sm:$0xf]
  %v2496 = vld [vmem:[%s9 + $0x3d4] sm:$0xf]
  %v2497 = vld [vmem:[%s9 + $0x3d8] sm:$0xf]
  %v2498 = vld [vmem:[%s9 + $0x3dc] sm:$0xf]
  %v2499 = vld [vmem:[%s9 + $0x3e0] sm:$0xf]
  %v2500 = vld [vmem:[%s9 + $0x3e4] sm:$0xf]
  %v2501 = vld [vmem:[%s9 + $0x3e8] sm:$0xf]
  %v2502 = vld [vmem:[%s9 + $0x3ec] sm:$0xf]
  %v2503 = vld [vmem:[%s9 + $0x3f0] sm:$0xf]
  %v2504 = vld [vmem:[%s9 + $0x3f4] sm:$0xf]
  %v2505 = vld [vmem:[%s9 + $0x3f8] sm:$0xf]
  %v2506 = vld [vmem:[%s9 + $0x3fc] sm:$0xf]
  %v2507 = vpack.c.bf16 %v2235, %v2219
  %v2508 = vpack.c.bf16 %v2236, %v2220
  %v2509 = vpack.c.bf16 %v2237, %v2221
  %v2510 = vpack.c.bf16 %v2238, %v2222
  %v2511 = vpack.c.bf16 %v2239, %v2223
  %v2512 = vpack.c.bf16 %v2240, %v2224
  %v2513 = vpack.c.bf16 %v2241, %v2225
  %v2514 = vpack.c.bf16 %v2242, %v2226
  %v2515 = vpack.c.bf16 %v2243, %v2227
  %v2516 = vpack.c.bf16 %v2244, %v2228
  %v2517 = vpack.c.bf16 %v2245, %v2229
  %v2518 = vpack.c.bf16 %v2246, %v2230
  %v2519 = vpack.c.bf16 %v2247, %v2231
  %v2520 = vpack.c.bf16 %v2248, %v2232
  %v2521 = vpack.c.bf16 %v2249, %v2233
  %v2522 = vpack.c.bf16 %v2250, %v2234
  %v2523 = vld [vmem:[%s10] sm:$0x1]
  %v2525 = vlaneseq
  %v2526 = vshrl.u32 %v2525, 7
  %v2527 = vsub.s32 0, %v2526
  %v2528 = vrot.slane %v2523, %v2527
  %v2786 = vunpack.c.l.b16 %v2251
  %v2787 = vunpack.c.l.b16 %v2252
  %v2788 = vunpack.c.l.b16 %v2253
  %v2789 = vunpack.c.l.b16 %v2254
  %v2790 = vunpack.c.l.b16 %v2255
  %v2791 = vunpack.c.l.b16 %v2256
  %v2792 = vunpack.c.l.b16 %v2257
  %v2793 = vunpack.c.l.b16 %v2258
  %v2794 = vunpack.c.l.b16 %v2259
  %v2795 = vunpack.c.l.b16 %v2260
  %v2796 = vunpack.c.l.b16 %v2261
  %v2797 = vunpack.c.l.b16 %v2262
  %v2798 = vunpack.c.l.b16 %v2263
  %v2799 = vunpack.c.l.b16 %v2264
  %v2800 = vunpack.c.l.b16 %v2265
  %v2801 = vunpack.c.l.b16 %v2266
  %v2802 = vunpack.c.l.b16 %v2267
  %v2803 = vunpack.c.l.b16 %v2268
  %v2804 = vunpack.c.l.b16 %v2269
  %v2805 = vunpack.c.l.b16 %v2270
  %v2806 = vunpack.c.l.b16 %v2271
  %v2807 = vunpack.c.l.b16 %v2272
  %v2808 = vunpack.c.l.b16 %v2273
  %v2809 = vunpack.c.l.b16 %v2274
  %v2810 = vunpack.c.l.b16 %v2275
  %v2811 = vunpack.c.l.b16 %v2276
  %v2812 = vunpack.c.l.b16 %v2277
  %v2813 = vunpack.c.l.b16 %v2278
  %v2814 = vunpack.c.l.b16 %v2279
  %v2815 = vunpack.c.l.b16 %v2280
  %v2816 = vunpack.c.l.b16 %v2281
  %v2817 = vunpack.c.l.b16 %v2282
  %v2818 = vunpack.c.l.b16 %v2283
  %v2819 = vunpack.c.l.b16 %v2284
  %v2820 = vunpack.c.l.b16 %v2285
  %v2821 = vunpack.c.l.b16 %v2286
  %v2822 = vunpack.c.l.b16 %v2287
  %v2823 = vunpack.c.l.b16 %v2288
  %v2824 = vunpack.c.l.b16 %v2289
  %v2825 = vunpack.c.l.b16 %v2290
  %v2826 = vunpack.c.l.b16 %v2291
  %v2827 = vunpack.c.l.b16 %v2292
  %v2828 = vunpack.c.l.b16 %v2293
  %v2829 = vunpack.c.l.b16 %v2294
  %v2830 = vunpack.c.l.b16 %v2295
  %v2831 = vunpack.c.l.b16 %v2296
  %v2832 = vunpack.c.l.b16 %v2297
  %v2833 = vunpack.c.l.b16 %v2298
  %v2834 = vunpack.c.l.b16 %v2299
  %v2835 = vunpack.c.l.b16 %v2300
  %v2836 = vunpack.c.l.b16 %v2301
  %v2837 = vunpack.c.l.b16 %v2302
  %v2838 = vunpack.c.l.b16 %v2303
  %v2839 = vunpack.c.l.b16 %v2304
  %v2840 = vunpack.c.l.b16 %v2305
  %v2841 = vunpack.c.l.b16 %v2306
  %v2842 = vunpack.c.l.b16 %v2307
  %v2843 = vunpack.c.l.b16 %v2308
  %v2844 = vunpack.c.l.b16 %v2309
  %v2845 = vunpack.c.l.b16 %v2310
  %v2846 = vunpack.c.l.b16 %v2311
  %v2847 = vunpack.c.l.b16 %v2312
  %v2848 = vunpack.c.l.b16 %v2313
  %v2849 = vunpack.c.l.b16 %v2314
  %v2850 = vunpack.c.l.b16 %v2315
  %v2851 = vunpack.c.l.b16 %v2316
  %v2852 = vunpack.c.l.b16 %v2317
  %v2853 = vunpack.c.l.b16 %v2318
  %v2854 = vunpack.c.l.b16 %v2319
  %v2855 = vunpack.c.l.b16 %v2320
  %v2856 = vunpack.c.l.b16 %v2321
  %v2857 = vunpack.c.l.b16 %v2322
  %v2858 = vunpack.c.l.b16 %v2323
  %v2859 = vunpack.c.l.b16 %v2324
  %v2860 = vunpack.c.l.b16 %v2325
  %v2861 = vunpack.c.l.b16 %v2326
  %v2862 = vunpack.c.l.b16 %v2327
  %v2863 = vunpack.c.l.b16 %v2328
  %v2864 = vunpack.c.l.b16 %v2329
  %v2865 = vunpack.c.l.b16 %v2330
  %v2866 = vunpack.c.l.b16 %v2331
  %v2867 = vunpack.c.l.b16 %v2332
  %v2868 = vunpack.c.l.b16 %v2333
  %v2869 = vunpack.c.l.b16 %v2334
  %v2870 = vunpack.c.l.b16 %v2335
  %v2871 = vunpack.c.l.b16 %v2336
  %v2872 = vunpack.c.l.b16 %v2337
  %v2873 = vunpack.c.l.b16 %v2338
  %v2874 = vunpack.c.l.b16 %v2339
  %v2875 = vunpack.c.l.b16 %v2340
  %v2876 = vunpack.c.l.b16 %v2341
  %v2877 = vunpack.c.l.b16 %v2342
  %v2878 = vunpack.c.l.b16 %v2343
  %v2879 = vunpack.c.l.b16 %v2344
  %v2880 = vunpack.c.l.b16 %v2345
  %v2881 = vunpack.c.l.b16 %v2346
  %v2882 = vunpack.c.l.b16 %v2347
  %v2883 = vunpack.c.l.b16 %v2348
  %v2884 = vunpack.c.l.b16 %v2349
  %v2885 = vunpack.c.l.b16 %v2350
  %v2886 = vunpack.c.l.b16 %v2351
  %v2887 = vunpack.c.l.b16 %v2352
  %v2888 = vunpack.c.l.b16 %v2353
  %v2889 = vunpack.c.l.b16 %v2354
  %v2890 = vunpack.c.l.b16 %v2355
  %v2891 = vunpack.c.l.b16 %v2356
  %v2892 = vunpack.c.l.b16 %v2357
  %v2893 = vunpack.c.l.b16 %v2358
  %v2894 = vunpack.c.l.b16 %v2359
  %v2895 = vunpack.c.l.b16 %v2360
  %v2896 = vunpack.c.l.b16 %v2361
  %v2897 = vunpack.c.l.b16 %v2362
  %v2898 = vunpack.c.l.b16 %v2363
  %v2899 = vunpack.c.l.b16 %v2364
  %v2900 = vunpack.c.l.b16 %v2365
  %v2901 = vunpack.c.l.b16 %v2366
  %v2902 = vunpack.c.l.b16 %v2367
  %v2903 = vunpack.c.l.b16 %v2368
  %v2904 = vunpack.c.l.b16 %v2369
  %v2905 = vunpack.c.l.b16 %v2370
  %v2906 = vunpack.c.l.b16 %v2371
  %v2907 = vunpack.c.l.b16 %v2372
  %v2908 = vunpack.c.l.b16 %v2373
  %v2909 = vunpack.c.l.b16 %v2374
  %v2910 = vunpack.c.l.b16 %v2375
  %v2911 = vunpack.c.l.b16 %v2376
  %v2912 = vunpack.c.l.b16 %v2377
  %v2913 = vunpack.c.l.b16 %v2378
  %v2914 = vunpack.c.l.b16 %v2379
  %v2915 = vunpack.c.l.b16 %v2380
  %v2916 = vunpack.c.l.b16 %v2381
  %v2917 = vunpack.c.l.b16 %v2382
  %v2918 = vunpack.c.l.b16 %v2383
  %v2919 = vunpack.c.l.b16 %v2384
  %v2920 = vunpack.c.l.b16 %v2385
  %v2921 = vunpack.c.l.b16 %v2386
  %v2922 = vunpack.c.l.b16 %v2387
  %v2923 = vunpack.c.l.b16 %v2388
  %v2924 = vunpack.c.l.b16 %v2389
  %v2925 = vunpack.c.l.b16 %v2390
  %v2926 = vunpack.c.l.b16 %v2391
  %v2927 = vunpack.c.l.b16 %v2392
  %v2928 = vunpack.c.l.b16 %v2393
  %v2929 = vunpack.c.l.b16 %v2394
  %v2930 = vunpack.c.l.b16 %v2395
  %v2931 = vunpack.c.l.b16 %v2396
  %v2932 = vunpack.c.l.b16 %v2397
  %v2933 = vunpack.c.l.b16 %v2398
  %v2934 = vunpack.c.l.b16 %v2399
  %v2935 = vunpack.c.l.b16 %v2400
  %v2936 = vunpack.c.l.b16 %v2401
  %v2937 = vunpack.c.l.b16 %v2402
  %v2938 = vunpack.c.l.b16 %v2403
  %v2939 = vunpack.c.l.b16 %v2404
  %v2940 = vunpack.c.l.b16 %v2405
  %v2941 = vunpack.c.l.b16 %v2406
  %v2942 = vunpack.c.l.b16 %v2407
  %v2943 = vunpack.c.l.b16 %v2408
  %v2944 = vunpack.c.l.b16 %v2409
  %v2945 = vunpack.c.l.b16 %v2410
  %v2946 = vunpack.c.l.b16 %v2411
  %v2947 = vunpack.c.l.b16 %v2412
  %v2948 = vunpack.c.l.b16 %v2413
  %v2949 = vunpack.c.l.b16 %v2414
  %v2950 = vunpack.c.l.b16 %v2415
  %v2951 = vunpack.c.l.b16 %v2416
  %v2952 = vunpack.c.l.b16 %v2417
  %v2953 = vunpack.c.l.b16 %v2418
  %v2954 = vunpack.c.l.b16 %v2419
  %v2955 = vunpack.c.l.b16 %v2420
  %v2956 = vunpack.c.l.b16 %v2421
  %v2957 = vunpack.c.l.b16 %v2422
  %v2958 = vunpack.c.l.b16 %v2423
  %v2959 = vunpack.c.l.b16 %v2424
  %v2960 = vunpack.c.l.b16 %v2425
  %v2961 = vunpack.c.l.b16 %v2426
  %v2962 = vunpack.c.l.b16 %v2427
  %v2963 = vunpack.c.l.b16 %v2428
  %v2964 = vunpack.c.l.b16 %v2429
  %v2965 = vunpack.c.l.b16 %v2430
  %v2966 = vunpack.c.l.b16 %v2431
  %v2967 = vunpack.c.l.b16 %v2432
  %v2968 = vunpack.c.l.b16 %v2433
  %v2969 = vunpack.c.l.b16 %v2434
  %v2970 = vunpack.c.l.b16 %v2435
  %v2971 = vunpack.c.l.b16 %v2436
  %v2972 = vunpack.c.l.b16 %v2437
  %v2973 = vunpack.c.l.b16 %v2438
  %v2974 = vunpack.c.l.b16 %v2439
  %v2975 = vunpack.c.l.b16 %v2440
  %v2976 = vunpack.c.l.b16 %v2441
  %v2977 = vunpack.c.l.b16 %v2442
  %v2978 = vunpack.c.l.b16 %v2443
  %v2979 = vunpack.c.l.b16 %v2444
  %v2980 = vunpack.c.l.b16 %v2445
  %v2981 = vunpack.c.l.b16 %v2446
  %v2982 = vunpack.c.l.b16 %v2447
  %v2983 = vunpack.c.l.b16 %v2448
  %v2984 = vunpack.c.l.b16 %v2449
  %v2985 = vunpack.c.l.b16 %v2450
  %v2986 = vunpack.c.l.b16 %v2451
  %v2987 = vunpack.c.l.b16 %v2452
  %v2988 = vunpack.c.l.b16 %v2453
  %v2989 = vunpack.c.l.b16 %v2454
  %v2990 = vunpack.c.l.b16 %v2455
  %v2991 = vunpack.c.l.b16 %v2456
  %v2992 = vunpack.c.l.b16 %v2457
  %v2993 = vunpack.c.l.b16 %v2458
  %v2994 = vunpack.c.l.b16 %v2459
  %v2995 = vunpack.c.l.b16 %v2460
  %v2996 = vunpack.c.l.b16 %v2461
  %v2997 = vunpack.c.l.b16 %v2462
  %v2998 = vunpack.c.l.b16 %v2463
  %v2999 = vunpack.c.l.b16 %v2464
  %v3000 = vunpack.c.l.b16 %v2465
  %v3001 = vunpack.c.l.b16 %v2466
  %v3002 = vunpack.c.l.b16 %v2467
  %v3003 = vunpack.c.l.b16 %v2468
  %v3004 = vunpack.c.l.b16 %v2469
  %v3005 = vunpack.c.l.b16 %v2470
  %v3006 = vunpack.c.l.b16 %v2471
  %v3007 = vunpack.c.l.b16 %v2472
  %v3008 = vunpack.c.l.b16 %v2473
  %v3009 = vunpack.c.l.b16 %v2474
  %v3010 = vunpack.c.l.b16 %v2475
  %v3011 = vunpack.c.l.b16 %v2476
  %v3012 = vunpack.c.l.b16 %v2477
  %v3013 = vunpack.c.l.b16 %v2478
  %v3014 = vunpack.c.l.b16 %v2479
  %v3015 = vunpack.c.l.b16 %v2480
  %v3016 = vunpack.c.l.b16 %v2481
  %v3017 = vunpack.c.l.b16 %v2482
  %v3018 = vunpack.c.l.b16 %v2483
  %v3019 = vunpack.c.l.b16 %v2484
  %v3020 = vunpack.c.l.b16 %v2485
  %v3021 = vunpack.c.l.b16 %v2486
  %v3022 = vunpack.c.l.b16 %v2487
  %v3023 = vunpack.c.l.b16 %v2488
  %v3024 = vunpack.c.l.b16 %v2489
  %v3025 = vunpack.c.l.b16 %v2490
  %v3026 = vunpack.c.l.b16 %v2491
  %v3027 = vunpack.c.l.b16 %v2492
  %v3028 = vunpack.c.l.b16 %v2493
  %v3029 = vunpack.c.l.b16 %v2494
  %v3030 = vunpack.c.l.b16 %v2495
  %v3031 = vunpack.c.l.b16 %v2496
  %v3032 = vunpack.c.l.b16 %v2497
  %v3033 = vunpack.c.l.b16 %v2498
  %v3034 = vunpack.c.l.b16 %v2499
  %v3035 = vunpack.c.l.b16 %v2500
  %v3036 = vunpack.c.l.b16 %v2501
  %v3037 = vunpack.c.l.b16 %v2502
  %v3038 = vunpack.c.l.b16 %v2503
  %v3039 = vunpack.c.l.b16 %v2504
  %v3040 = vunpack.c.l.b16 %v2505
  %v3041 = vunpack.c.l.b16 %v2506
  %v3042 = vpack.c.b16 %v2787, %v2786
  %v3043 = vpack.c.b16 %v2789, %v2788
  %v3044 = vpack.c.b16 %v2791, %v2790
  %v3045 = vpack.c.b16 %v2793, %v2792
  %v3046 = vpack.c.b16 %v2795, %v2794
  %v3047 = vpack.c.b16 %v2797, %v2796
  %v3048 = vpack.c.b16 %v2799, %v2798
  %v3049 = vpack.c.b16 %v2801, %v2800
  %v3050 = vpack.c.b16 %v2803, %v2802
  %v3051 = vpack.c.b16 %v2805, %v2804
  %v3052 = vpack.c.b16 %v2807, %v2806
  %v3053 = vpack.c.b16 %v2809, %v2808
  %v3054 = vpack.c.b16 %v2811, %v2810
  %v3055 = vpack.c.b16 %v2813, %v2812
  %v3056 = vpack.c.b16 %v2815, %v2814
  %v3057 = vpack.c.b16 %v2817, %v2816
  %v3058 = vpack.c.b16 %v2819, %v2818
  %v3059 = vpack.c.b16 %v2821, %v2820
  %v3060 = vpack.c.b16 %v2823, %v2822
  %v3061 = vpack.c.b16 %v2825, %v2824
  %v3062 = vpack.c.b16 %v2827, %v2826
  %v3063 = vpack.c.b16 %v2829, %v2828
  %v3064 = vpack.c.b16 %v2831, %v2830
  %v3065 = vpack.c.b16 %v2833, %v2832
  %v3066 = vpack.c.b16 %v2835, %v2834
  %v3067 = vpack.c.b16 %v2837, %v2836
  %v3068 = vpack.c.b16 %v2839, %v2838
  %v3069 = vpack.c.b16 %v2841, %v2840
  %v3070 = vpack.c.b16 %v2843, %v2842
  %v3071 = vpack.c.b16 %v2845, %v2844
  %v3072 = vpack.c.b16 %v2847, %v2846
  %v3073 = vpack.c.b16 %v2849, %v2848
  %v3074 = vpack.c.b16 %v2851, %v2850
  %v3075 = vpack.c.b16 %v2853, %v2852
  %v3076 = vpack.c.b16 %v2855, %v2854
  %v3077 = vpack.c.b16 %v2857, %v2856
  %v3078 = vpack.c.b16 %v2859, %v2858
  %v3079 = vpack.c.b16 %v2861, %v2860
  %v3080 = vpack.c.b16 %v2863, %v2862
  %v3081 = vpack.c.b16 %v2865, %v2864
  %v3082 = vpack.c.b16 %v2867, %v2866
  %v3083 = vpack.c.b16 %v2869, %v2868
  %v3084 = vpack.c.b16 %v2871, %v2870
  %v3085 = vpack.c.b16 %v2873, %v2872
  %v3086 = vpack.c.b16 %v2875, %v2874
  %v3087 = vpack.c.b16 %v2877, %v2876
  %v3088 = vpack.c.b16 %v2879, %v2878
  %v3089 = vpack.c.b16 %v2881, %v2880
  %v3090 = vpack.c.b16 %v2883, %v2882
  %v3091 = vpack.c.b16 %v2885, %v2884
  %v3092 = vpack.c.b16 %v2887, %v2886
  %v3093 = vpack.c.b16 %v2889, %v2888
  %v3094 = vpack.c.b16 %v2891, %v2890
  %v3095 = vpack.c.b16 %v2893, %v2892
  %v3096 = vpack.c.b16 %v2895, %v2894
  %v3097 = vpack.c.b16 %v2897, %v2896
  %v3098 = vpack.c.b16 %v2899, %v2898
  %v3099 = vpack.c.b16 %v2901, %v2900
  %v3100 = vpack.c.b16 %v2903, %v2902
  %v3101 = vpack.c.b16 %v2905, %v2904
  %v3102 = vpack.c.b16 %v2907, %v2906
  %v3103 = vpack.c.b16 %v2909, %v2908
  %v3104 = vpack.c.b16 %v2911, %v2910
  %v3105 = vpack.c.b16 %v2913, %v2912
  %v3106 = vpack.c.b16 %v2915, %v2914
  %v3107 = vpack.c.b16 %v2917, %v2916
  %v3108 = vpack.c.b16 %v2919, %v2918
  %v3109 = vpack.c.b16 %v2921, %v2920
  %v3110 = vpack.c.b16 %v2923, %v2922
  %v3111 = vpack.c.b16 %v2925, %v2924
  %v3112 = vpack.c.b16 %v2927, %v2926
  %v3113 = vpack.c.b16 %v2929, %v2928
  %v3114 = vpack.c.b16 %v2931, %v2930
  %v3115 = vpack.c.b16 %v2933, %v2932
  %v3116 = vpack.c.b16 %v2935, %v2934
  %v3117 = vpack.c.b16 %v2937, %v2936
  %v3118 = vpack.c.b16 %v2939, %v2938
  %v3119 = vpack.c.b16 %v2941, %v2940
  %v3120 = vpack.c.b16 %v2943, %v2942
  %v3121 = vpack.c.b16 %v2945, %v2944
  %v3122 = vpack.c.b16 %v2947, %v2946
  %v3123 = vpack.c.b16 %v2949, %v2948
  %v3124 = vpack.c.b16 %v2951, %v2950
  %v3125 = vpack.c.b16 %v2953, %v2952
  %v3126 = vpack.c.b16 %v2955, %v2954
  %v3127 = vpack.c.b16 %v2957, %v2956
  %v3128 = vpack.c.b16 %v2959, %v2958
  %v3129 = vpack.c.b16 %v2961, %v2960
  %v3130 = vpack.c.b16 %v2963, %v2962
  %v3131 = vpack.c.b16 %v2965, %v2964
  %v3132 = vpack.c.b16 %v2967, %v2966
  %v3133 = vpack.c.b16 %v2969, %v2968
  %v3134 = vpack.c.b16 %v2971, %v2970
  %v3135 = vpack.c.b16 %v2973, %v2972
  %v3136 = vpack.c.b16 %v2975, %v2974
  %v3137 = vpack.c.b16 %v2977, %v2976
  %v3138 = vpack.c.b16 %v2979, %v2978
  %v3139 = vpack.c.b16 %v2981, %v2980
  %v3140 = vpack.c.b16 %v2983, %v2982
  %v3141 = vpack.c.b16 %v2985, %v2984
  %v3142 = vpack.c.b16 %v2987, %v2986
  %v3143 = vpack.c.b16 %v2989, %v2988
  %v3144 = vpack.c.b16 %v2991, %v2990
  %v3145 = vpack.c.b16 %v2993, %v2992
  %v3146 = vpack.c.b16 %v2995, %v2994
  %v3147 = vpack.c.b16 %v2997, %v2996
  %v3148 = vpack.c.b16 %v2999, %v2998
  %v3149 = vpack.c.b16 %v3001, %v3000
  %v3150 = vpack.c.b16 %v3003, %v3002
  %v3151 = vpack.c.b16 %v3005, %v3004
  %v3152 = vpack.c.b16 %v3007, %v3006
  %v3153 = vpack.c.b16 %v3009, %v3008
  %v3154 = vpack.c.b16 %v3011, %v3010
  %v3155 = vpack.c.b16 %v3013, %v3012
  %v3156 = vpack.c.b16 %v3015, %v3014
  %v3157 = vpack.c.b16 %v3017, %v3016
  %v3158 = vpack.c.b16 %v3019, %v3018
  %v3159 = vpack.c.b16 %v3021, %v3020
  %v3160 = vpack.c.b16 %v3023, %v3022
  %v3161 = vpack.c.b16 %v3025, %v3024
  %v3162 = vpack.c.b16 %v3027, %v3026
  %v3163 = vpack.c.b16 %v3029, %v3028
  %v3164 = vpack.c.b16 %v3031, %v3030
  %v3165 = vpack.c.b16 %v3033, %v3032
  %v3166 = vpack.c.b16 %v3035, %v3034
  %v3167 = vpack.c.b16 %v3037, %v3036
  %v3168 = vpack.c.b16 %v3039, %v3038
  %v3169 = vpack.c.b16 %v3041, %v3040
  %3298 = vmatprep.subr.bf16.mxu0 0
  %3299 = vmatpush1.bf16.msra.mxu0 %v3049
  %3300 = vmatprep.subr.bf16.mxu0 0
  %3301 = vmatpush1.bf16.msra.mxu0 %v3048
  %3302 = vmatprep.subr.bf16.mxu0 0
  %3303 = vmatpush1.bf16.msra.mxu0 %v3047
  %3304 = vmatprep.subr.bf16.mxu0 0
  %3305 = vmatpush1.bf16.msra.mxu0 %v3046
  %3306 = vmatprep.subr.bf16.mxu0 0
  %3307 = vmatpush1.bf16.msra.mxu0 %v3045
  %3308 = vmatprep.subr.bf16.mxu0 0
  %3309 = vmatpush1.bf16.msra.mxu0 %v3044
  %3310 = vmatprep.subr.bf16.mxu0 0
  %3311 = vmatpush1.bf16.msra.mxu0 %v3043
  %3312 = vmatprep.subr.bf16.mxu0 0
  %3313 = vmatpush1.bf16.msra.mxu0 %v3042
  %3314 = vmatprep.subr.bf16.mxu0 0
  %3315 = vmatpush2.bf16.msra.mxu0 %v3057
  %3316 = vmatprep.subr.bf16.mxu0 0
  %3317 = vmatpush2.bf16.msra.mxu0 %v3056
  %3318 = vmatprep.subr.bf16.mxu0 0
  %3319 = vmatpush2.bf16.msra.mxu0 %v3055
  %3320 = vmatprep.subr.bf16.mxu0 0
  %3321 = vmatpush2.bf16.msra.mxu0 %v3054
  %3322 = vmatprep.subr.bf16.mxu0 0
  %3323 = vmatpush2.bf16.msra.mxu0 %v3053
  %3324 = vmatprep.subr.bf16.mxu0 0
  %3325 = vmatpush2.bf16.msra.mxu0 %v3052
  %3326 = vmatprep.subr.bf16.mxu0 0
  %3327 = vmatpush2.bf16.msra.mxu0 %v3051
  %3328 = vmatprep.subr.bf16.mxu0 0
  %3329 = vmatpush2.bf16.msra.mxu0 %v3050
  %3330 = vmatprep.mubr.bf16.mxu0 %v2508
  %3331 = vmatmul.mubr.bf16.gmra.mxu0 %v2507
  %v3332 = vpop.f32.mrf.mxu0
  %v3333 = vadd.f32 %v2528, %v3332
  %v3334 = vpop.f32.mrf.mxu0
  %v3335 = vpop.f32.mrf.mxu0
  %v3336 = vadd.f32 %v2528, %v3335
  %v3337 = vpop.f32.mrf.mxu0
  %3338 = vdwg.mxu0
  %3339 = vmatprep.subr.bf16.mxu0 0
  %3340 = vmatpush1.bf16.msra.mxu0 %v3065
  %3341 = vmatprep.subr.bf16.mxu0 0
  %3342 = vmatpush1.bf16.msra.mxu0 %v3064
  %3343 = vmatprep.subr.bf16.mxu0 0
  %3344 = vmatpush1.bf16.msra.mxu0 %v3063
  %3345 = vmatprep.subr.bf16.mxu0 0
  %3346 = vmatpush1.bf16.msra.mxu0 %v3062
  %3347 = vmatprep.subr.bf16.mxu0 0
  %3348 = vmatpush1.bf16.msra.mxu0 %v3061
  %3349 = vmatprep.subr.bf16.mxu0 0
  %3350 = vmatpush1.bf16.msra.mxu0 %v3060
  %3351 = vmatprep.subr.bf16.mxu0 0
  %3352 = vmatpush1.bf16.msra.mxu0 %v3059
  %3353 = vmatprep.subr.bf16.mxu0 0
  %3354 = vmatpush1.bf16.msra.mxu0 %v3058
  %3355 = vmatprep.subr.bf16.mxu0 0
  %3356 = vmatpush2.bf16.msra.mxu0 %v3073
  %3357 = vmatprep.subr.bf16.mxu0 0
  %3358 = vmatpush2.bf16.msra.mxu0 %v3072
  %3359 = vmatprep.subr.bf16.mxu0 0
  %3360 = vmatpush2.bf16.msra.mxu0 %v3071
  %3361 = vmatprep.subr.bf16.mxu0 0
  %3362 = vmatpush2.bf16.msra.mxu0 %v3070
  %3363 = vmatprep.subr.bf16.mxu0 0
  %3364 = vmatpush2.bf16.msra.mxu0 %v3069
  %3365 = vmatprep.subr.bf16.mxu0 0
  %3366 = vmatpush2.bf16.msra.mxu0 %v3068
  %3367 = vmatprep.subr.bf16.mxu0 0
  %3368 = vmatpush2.bf16.msra.mxu0 %v3067
  %3369 = vmatprep.subr.bf16.mxu0 0
  %3370 = vmatpush2.bf16.msra.mxu0 %v3066
  %3371 = vmatprep.mubr.bf16.mxu0 %v2510
  %3372 = vmatmul.mubr.bf16.gmra.mxu0 %v2509
  %v3373 = vpop.f32.mrf.mxu0
  %v3374 = vadd.f32 %v3333, %v3373
  %v3375 = vpop.f32.mrf.mxu0
  %v3376 = vpop.f32.mrf.mxu0
  %v3377 = vadd.f32 %v3336, %v3376
  %v3378 = vpop.f32.mrf.mxu0
  %3379 = vdwg.mxu0
  %3380 = vmatprep.subr.bf16.mxu0 0
  %3381 = vmatpush1.bf16.msra.mxu0 %v3081
  %3382 = vmatprep.subr.bf16.mxu0 0
  %3383 = vmatpush1.bf16.msra.mxu0 %v3080
  %3384 = vmatprep.subr.bf16.mxu0 0
  %3385 = vmatpush1.bf16.msra.mxu0 %v3079
  %3386 = vmatprep.subr.bf16.mxu0 0
  %3387 = vmatpush1.bf16.msra.mxu0 %v3078
  %3388 = vmatprep.subr.bf16.mxu0 0
  %3389 = vmatpush1.bf16.msra.mxu0 %v3077
  %3390 = vmatprep.subr.bf16.mxu0 0
  %3391 = vmatpush1.bf16.msra.mxu0 %v3076
  %3392 = vmatprep.subr.bf16.mxu0 0
  %3393 = vmatpush1.bf16.msra.mxu0 %v3075
  %3394 = vmatprep.subr.bf16.mxu0 0
  %3395 = vmatpush1.bf16.msra.mxu0 %v3074
  %3396 = vmatprep.subr.bf16.mxu0 0
  %3397 = vmatpush2.bf16.msra.mxu0 %v3089
  %3398 = vmatprep.subr.bf16.mxu0 0
  %3399 = vmatpush2.bf16.msra.mxu0 %v3088
  %3400 = vmatprep.subr.bf16.mxu0 0
  %3401 = vmatpush2.bf16.msra.mxu0 %v3087
  %3402 = vmatprep.subr.bf16.mxu0 0
  %3403 = vmatpush2.bf16.msra.mxu0 %v3086
  %3404 = vmatprep.subr.bf16.mxu0 0
  %3405 = vmatpush2.bf16.msra.mxu0 %v3085
  %3406 = vmatprep.subr.bf16.mxu0 0
  %3407 = vmatpush2.bf16.msra.mxu0 %v3084
  %3408 = vmatprep.subr.bf16.mxu0 0
  %3409 = vmatpush2.bf16.msra.mxu0 %v3083
  %3410 = vmatprep.subr.bf16.mxu0 0
  %3411 = vmatpush2.bf16.msra.mxu0 %v3082
  %3412 = vmatprep.mubr.bf16.mxu0 %v2512
  %3413 = vmatmul.mubr.bf16.gmra.mxu0 %v2511
  %v3414 = vpop.f32.mrf.mxu0
  %v3415 = vadd.f32 %v3374, %v3414
  %v3416 = vpop.f32.mrf.mxu0
  %v3417 = vpop.f32.mrf.mxu0
  %v3418 = vadd.f32 %v3377, %v3417
  %v3419 = vpop.f32.mrf.mxu0
  %3420 = vdwg.mxu0
  %3421 = vmatprep.subr.bf16.mxu0 0
  %3422 = vmatpush1.bf16.msra.mxu0 %v3097
  %3423 = vmatprep.subr.bf16.mxu0 0
  %3424 = vmatpush1.bf16.msra.mxu0 %v3096
  %3425 = vmatprep.subr.bf16.mxu0 0
  %3426 = vmatpush1.bf16.msra.mxu0 %v3095
  %3427 = vmatprep.subr.bf16.mxu0 0
  %3428 = vmatpush1.bf16.msra.mxu0 %v3094
  %3429 = vmatprep.subr.bf16.mxu0 0
  %3430 = vmatpush1.bf16.msra.mxu0 %v3093
  %3431 = vmatprep.subr.bf16.mxu0 0
  %3432 = vmatpush1.bf16.msra.mxu0 %v3092
  %3433 = vmatprep.subr.bf16.mxu0 0
  %3434 = vmatpush1.bf16.msra.mxu0 %v3091
  %3435 = vmatprep.subr.bf16.mxu0 0
  %3436 = vmatpush1.bf16.msra.mxu0 %v3090
  %3437 = vmatprep.subr.bf16.mxu0 0
  %3438 = vmatpush2.bf16.msra.mxu0 %v3105
  %3439 = vmatprep.subr.bf16.mxu0 0
  %3440 = vmatpush2.bf16.msra.mxu0 %v3104
  %3441 = vmatprep.subr.bf16.mxu0 0
  %3442 = vmatpush2.bf16.msra.mxu0 %v3103
  %3443 = vmatprep.subr.bf16.mxu0 0
  %3444 = vmatpush2.bf16.msra.mxu0 %v3102
  %3445 = vmatprep.subr.bf16.mxu0 0
  %3446 = vmatpush2.bf16.msra.mxu0 %v3101
  %3447 = vmatprep.subr.bf16.mxu0 0
  %3448 = vmatpush2.bf16.msra.mxu0 %v3100
  %3449 = vmatprep.subr.bf16.mxu0 0
  %3450 = vmatpush2.bf16.msra.mxu0 %v3099
  %3451 = vmatprep.subr.bf16.mxu0 0
  %3452 = vmatpush2.bf16.msra.mxu0 %v3098
  %3453 = vmatprep.mubr.bf16.mxu0 %v2514
  %3454 = vmatmul.mubr.bf16.gmra.mxu0 %v2513
  %v3455 = vpop.f32.mrf.mxu0
  %v3456 = vadd.f32 %v3415, %v3455
  %v3457 = vpop.f32.mrf.mxu0
  %v3458 = vpop.f32.mrf.mxu0
  %v3459 = vadd.f32 %v3418, %v3458
  %v3460 = vpop.f32.mrf.mxu0
  %3461 = vdwg.mxu0
  %3462 = vmatprep.subr.bf16.mxu0 0
  %3463 = vmatpush1.bf16.msra.mxu0 %v3113
  %3464 = vmatprep.subr.bf16.mxu0 0
  %3465 = vmatpush1.bf16.msra.mxu0 %v3112
  %3466 = vmatprep.subr.bf16.mxu0 0
  %3467 = vmatpush1.bf16.msra.mxu0 %v3111
  %3468 = vmatprep.subr.bf16.mxu0 0
  %3469 = vmatpush1.bf16.msra.mxu0 %v3110
  %3470 = vmatprep.subr.bf16.mxu0 0
  %3471 = vmatpush1.bf16.msra.mxu0 %v3109
  %3472 = vmatprep.subr.bf16.mxu0 0
  %3473 = vmatpush1.bf16.msra.mxu0 %v3108
  %3474 = vmatprep.subr.bf16.mxu0 0
  %3475 = vmatpush1.bf16.msra.mxu0 %v3107
  %3476 = vmatprep.subr.bf16.mxu0 0
  %3477 = vmatpush1.bf16.msra.mxu0 %v3106
  %3478 = vmatprep.subr.bf16.mxu0 0
  %3479 = vmatpush2.bf16.msra.mxu0 %v3121
  %3480 = vmatprep.subr.bf16.mxu0 0
  %3481 = vmatpush2.bf16.msra.mxu0 %v3120
  %3482 = vmatprep.subr.bf16.mxu0 0
  %3483 = vmatpush2.bf16.msra.mxu0 %v3119
  %3484 = vmatprep.subr.bf16.mxu0 0
  %3485 = vmatpush2.bf16.msra.mxu0 %v3118
  %3486 = vmatprep.subr.bf16.mxu0 0
  %3487 = vmatpush2.bf16.msra.mxu0 %v3117
  %3488 = vmatprep.subr.bf16.mxu0 0
  %3489 = vmatpush2.bf16.msra.mxu0 %v3116
  %3490 = vmatprep.subr.bf16.mxu0 0
  %3491 = vmatpush2.bf16.msra.mxu0 %v3115
  %3492 = vmatprep.subr.bf16.mxu0 0
  %3493 = vmatpush2.bf16.msra.mxu0 %v3114
  %3494 = vmatprep.mubr.bf16.mxu0 %v2516
  %3495 = vmatmul.mubr.bf16.gmra.mxu0 %v2515
  %v3496 = vpop.f32.mrf.mxu0
  %v3497 = vadd.f32 %v3456, %v3496
  %v3498 = vpop.f32.mrf.mxu0
  %v3499 = vpop.f32.mrf.mxu0
  %v3500 = vadd.f32 %v3459, %v3499
  %v3501 = vpop.f32.mrf.mxu0
  %3502 = vdwg.mxu0
  %3503 = vmatprep.subr.bf16.mxu0 0
  %3504 = vmatpush1.bf16.msra.mxu0 %v3129
  %3505 = vmatprep.subr.bf16.mxu0 0
  %3506 = vmatpush1.bf16.msra.mxu0 %v3128
  %3507 = vmatprep.subr.bf16.mxu0 0
  %3508 = vmatpush1.bf16.msra.mxu0 %v3127
  %3509 = vmatprep.subr.bf16.mxu0 0
  %3510 = vmatpush1.bf16.msra.mxu0 %v3126
  %3511 = vmatprep.subr.bf16.mxu0 0
  %3512 = vmatpush1.bf16.msra.mxu0 %v3125
  %3513 = vmatprep.subr.bf16.mxu0 0
  %3514 = vmatpush1.bf16.msra.mxu0 %v3124
  %3515 = vmatprep.subr.bf16.mxu0 0
  %3516 = vmatpush1.bf16.msra.mxu0 %v3123
  %3517 = vmatprep.subr.bf16.mxu0 0
  %3518 = vmatpush1.bf16.msra.mxu0 %v3122
  %3519 = vmatprep.subr.bf16.mxu0 0
  %3520 = vmatpush2.bf16.msra.mxu0 %v3137
  %3521 = vmatprep.subr.bf16.mxu0 0
  %3522 = vmatpush2.bf16.msra.mxu0 %v3136
  %3523 = vmatprep.subr.bf16.mxu0 0
  %3524 = vmatpush2.bf16.msra.mxu0 %v3135
  %3525 = vmatprep.subr.bf16.mxu0 0
  %3526 = vmatpush2.bf16.msra.mxu0 %v3134
  %3527 = vmatprep.subr.bf16.mxu0 0
  %3528 = vmatpush2.bf16.msra.mxu0 %v3133
  %3529 = vmatprep.subr.bf16.mxu0 0
  %3530 = vmatpush2.bf16.msra.mxu0 %v3132
  %3531 = vmatprep.subr.bf16.mxu0 0
  %3532 = vmatpush2.bf16.msra.mxu0 %v3131
  %3533 = vmatprep.subr.bf16.mxu0 0
  %3534 = vmatpush2.bf16.msra.mxu0 %v3130
  %3535 = vmatprep.mubr.bf16.mxu0 %v2518
  %3536 = vmatmul.mubr.bf16.gmra.mxu0 %v2517
  %v3537 = vpop.f32.mrf.mxu0
  %v3538 = vadd.f32 %v3497, %v3537
  %v3539 = vpop.f32.mrf.mxu0
  %v3540 = vpop.f32.mrf.mxu0
  %v3541 = vadd.f32 %v3500, %v3540
  %v3542 = vpop.f32.mrf.mxu0
  %3543 = vdwg.mxu0
  %3544 = vmatprep.subr.bf16.mxu0 0
  %3545 = vmatpush1.bf16.msra.mxu0 %v3145
  %3546 = vmatprep.subr.bf16.mxu0 0
  %3547 = vmatpush1.bf16.msra.mxu0 %v3144
  %3548 = vmatprep.subr.bf16.mxu0 0
  %3549 = vmatpush1.bf16.msra.mxu0 %v3143
  %3550 = vmatprep.subr.bf16.mxu0 0
  %3551 = vmatpush1.bf16.msra.mxu0 %v3142
  %3552 = vmatprep.subr.bf16.mxu0 0
  %3553 = vmatpush1.bf16.msra.mxu0 %v3141
  %3554 = vmatprep.subr.bf16.mxu0 0
  %3555 = vmatpush1.bf16.msra.mxu0 %v3140
  %3556 = vmatprep.subr.bf16.mxu0 0
  %3557 = vmatpush1.bf16.msra.mxu0 %v3139
  %3558 = vmatprep.subr.bf16.mxu0 0
  %3559 = vmatpush1.bf16.msra.mxu0 %v3138
  %3560 = vmatprep.subr.bf16.mxu0 0
  %3561 = vmatpush2.bf16.msra.mxu0 %v3153
  %3562 = vmatprep.subr.bf16.mxu0 0
  %3563 = vmatpush2.bf16.msra.mxu0 %v3152
  %3564 = vmatprep.subr.bf16.mxu0 0
  %3565 = vmatpush2.bf16.msra.mxu0 %v3151
  %3566 = vmatprep.subr.bf16.mxu0 0
  %3567 = vmatpush2.bf16.msra.mxu0 %v3150
  %3568 = vmatprep.subr.bf16.mxu0 0
  %3569 = vmatpush2.bf16.msra.mxu0 %v3149
  %3570 = vmatprep.subr.bf16.mxu0 0
  %3571 = vmatpush2.bf16.msra.mxu0 %v3148
  %3572 = vmatprep.subr.bf16.mxu0 0
  %3573 = vmatpush2.bf16.msra.mxu0 %v3147
  %3574 = vmatprep.subr.bf16.mxu0 0
  %3575 = vmatpush2.bf16.msra.mxu0 %v3146
  %3576 = vmatprep.mubr.bf16.mxu0 %v2520
  %3577 = vmatmul.mubr.bf16.gmra.mxu0 %v2519
  %v3578 = vpop.f32.mrf.mxu0
  %v3579 = vadd.f32 %v3538, %v3578
  %v3580 = vpop.f32.mrf.mxu0
  %v3581 = vpop.f32.mrf.mxu0
  %v3582 = vadd.f32 %v3541, %v3581
  %v3583 = vpop.f32.mrf.mxu0
  %3584 = vdwg.mxu0
  %3585 = vmatprep.subr.bf16.mxu0 0
  %3586 = vmatpush1.bf16.msra.mxu0 %v3161
  %3587 = vmatprep.subr.bf16.mxu0 0
  %3588 = vmatpush1.bf16.msra.mxu0 %v3160
  %3589 = vmatprep.subr.bf16.mxu0 0
  %3590 = vmatpush1.bf16.msra.mxu0 %v3159
  %3591 = vmatprep.subr.bf16.mxu0 0
  %3592 = vmatpush1.bf16.msra.mxu0 %v3158
  %3593 = vmatprep.subr.bf16.mxu0 0
  %3594 = vmatpush1.bf16.msra.mxu0 %v3157
  %3595 = vmatprep.subr.bf16.mxu0 0
  %3596 = vmatpush1.bf16.msra.mxu0 %v3156
  %3597 = vmatprep.subr.bf16.mxu0 0
  %3598 = vmatpush1.bf16.msra.mxu0 %v3155
  %3599 = vmatprep.subr.bf16.mxu0 0
  %3600 = vmatpush1.bf16.msra.mxu0 %v3154
  %3601 = vmatprep.subr.bf16.mxu0 0
  %3602 = vmatpush2.bf16.msra.mxu0 %v3169
  %3603 = vmatprep.subr.bf16.mxu0 0
  %3604 = vmatpush2.bf16.msra.mxu0 %v3168
  %3605 = vmatprep.subr.bf16.mxu0 0
  %3606 = vmatpush2.bf16.msra.mxu0 %v3167
  %3607 = vmatprep.subr.bf16.mxu0 0
  %3608 = vmatpush2.bf16.msra.mxu0 %v3166
  %3609 = vmatprep.subr.bf16.mxu0 0
  %3610 = vmatpush2.bf16.msra.mxu0 %v3165
  %3611 = vmatprep.subr.bf16.mxu0 0
  %3612 = vmatpush2.bf16.msra.mxu0 %v3164
  %3613 = vmatprep.subr.bf16.mxu0 0
  %3614 = vmatpush2.bf16.msra.mxu0 %v3163
  %3615 = vmatprep.subr.bf16.mxu0 0
  %3616 = vmatpush2.bf16.msra.mxu0 %v3162
  %3617 = vmatprep.mubr.bf16.mxu0 %v2522
  %3618 = vmatmul.mubr.bf16.gmra.mxu0 %v2521
  %v3619 = vpop.f32.mrf.mxu0
  %v3620 = vadd.f32 %v3579, %v3619
  %v3621 = vpop.f32.mrf.mxu0
  %v3622 = vpop.f32.mrf.mxu0
  %v3623 = vadd.f32 %v3582, %v3622
  %v3624 = vpop.f32.mrf.mxu0
  %3625 = vdwg.mxu0
  %v3626 = vld [vmem:[%s11] sm:$0x1]
  %v3627 = vld [vmem:[%s12] sm:$0x1]
  %v3628 = vadd.f32 %v3620, %v1593
  %v3629 = vadd.f32 %v3623, %v1594
  %v3630 = vsel %vm71, %v3628, 0.0
  %3631 = vadd.xlane.f32.xlu0 %v3630
  %v3632 = vpop.xlane.xlu0 %3631
  %v3633 = vsel %vm71, %v3629, 0.0
  %3634 = vadd.xlane.f32.xlu0 %v3633
  %v3635 = vpop.xlane.xlu0 %3634
  %v3636 = vmul.f32 %v3632, %v1558
  %v3637 = vmul.f32 %v3635, %v1558
  %v3638 = vsub.f32 %v3628, %v3636
  %v3639 = vsub.f32 %v3629, %v3637
  %v3640 = vmul.f32 %v3638, %v3638
  %v3641 = vmul.f32 %v3639, %v3639
  %v3642 = vsel %vm71, %v3640, 0.0
  %3643 = vadd.xlane.f32.xlu0 %v3642
  %v3644 = vpop.xlane.xlu0 %3643
  %v3645 = vsel %vm71, %v3641, 0.0
  %3646 = vadd.xlane.f32.xlu0 %v3645
  %v3647 = vpop.xlane.xlu0 %3646
  %v3648 = vmul.f32 %v3644, %v1558
  %v3649 = vmul.f32 %v3647, %v1558
  %v3650 = vadd.f32 %v3648, 1e-05
  %v3651 = vadd.f32 %v3649, 1e-05
  %v3652 = vrsqrt.pop %v3650
  %v3653 = vrsqrt.pop %v3651
  %v3654 = vmul.f32 %v3638, %v3652
  %v3655 = vmul.f32 %v3639, %v3653
  %v3657 = vlaneseq
  %v3658 = vshrl.u32 %v3657, 7
  %v3659 = vsub.s32 0, %v3658
  %v3660 = vrot.slane %v3626, %v3659
  %v3662 = vmul.f32 %v3654, %v3660
  %v3663 = vmul.f32 %v3655, %v3660
  %v3665 = vlaneseq
  %v3666 = vshrl.u32 %v3665, 7
  %v3667 = vsub.s32 0, %v3666
  %v3668 = vrot.slane %v3627, %v3667
  %v3670 = vadd.f32 %v3662, %v3668
  %v3671 = vadd.f32 %v3663, %v3668
  %3672 = vst.msk [vmem:[%s13] sm:$0xff] %vm71, %v3670
  %3673 = vst.msk [vmem:[%s13 + $0x8] sm:$0xff] %vm71, %v3671
  // Predicated region
  $region54: #{transformer_forward.9} parent=0 // pred_check
    _
  $region55: #{transformer_forward.9} parent=0 // pred_check_branch
    %3675 = sbr.rel (0) target = $region57
  $region56: #{transformer_forward.9} parent=0 // pred_region
    _
  $region57: #{transformer_forward.9} parent=0 // pred_fallthru
    _
  // Predicated region
  $region58: #{transformer_forward.9} parent=0 // pred_check
    _
  $region59: #{transformer_forward.9} parent=0 // pred_check_branch
    %3677 = sbr.rel (0) target = $region61
  $region60: #{transformer_forward.9} parent=0 // pred_region
    _
  $region61: #{transformer_forward.9} parent=0 // pred_fallthru
    _

// kernel: transformer_forward.13
$region0: #{transformer_forward.13}
  #allocation0 [shape = 'u32[]', space=smem, size = 0x4, offset = 0x4, fixed_abs, tag = 'smem constant byte address 0x4 - core index']
  #allocation1 [shape = 'u32[144,128]{1,0:T(1,128)}', space=vmem, size = 0x12000, scoped, tag = 'internal scratch']
  #allocation2 [shape = 'f32[16,32]{1,0:T(8,128)}', space=vmem, size = 0x2000, scoped, tag = 'scratch operand']
  %s0 = inlined_call_operand.vmem [shape: f32[16,32], index: 0, kind: input, shape index: {}, may-alias: {0,1}]
  %s1 = inlined_call_operand.vmem [shape: f32[16,32], index: 1, kind: input, shape index: {}, may-alias: {0,1}]
  %s2 = inlined_call_operand.vmem [shape: bf16[32,96], index: 2, kind: input, shape index: {}]
  %s3 = inlined_call_operand.vmem [shape: f32[1,96], index: 3, kind: input, shape index: {}]
  %s4 = inlined_call_operand.vmem [shape: bf16[32,32], index: 4, kind: input, shape index: {}]
  %s5 = inlined_call_operand.vmem [shape: f32[1,32], index: 5, kind: input, shape index: {}]
  %s6 = inlined_call_operand.vmem [shape: f32[1,32], index: 6, kind: input, shape index: {}]
  %s7 = inlined_call_operand.vmem [shape: f32[1,32], index: 7, kind: input, shape index: {}]
  %s8 = inlined_call_operand.vmem [shape: bf16[32,32], index: 8, kind: input, shape index: {}]
  %s9 = inlined_call_operand.vmem [shape: f32[1,32], index: 9, kind: input, shape index: {}]
  %s10 = inlined_call_operand.vmem [shape: bf16[32,64], index: 10, kind: input, shape index: {}]
  %s11 = inlined_call_operand.vmem [shape: f32[1,64], index: 11, kind: input, shape index: {}]
  %s12 = inlined_call_operand.vmem [shape: bf16[32,32], index: 12, kind: input, shape index: {}]
  %s13 = inlined_call_operand.vmem [shape: f32[1,32], index: 13, kind: input, shape index: {}]
  %s14 = inlined_call_operand.vmem [shape: f32[1,32], index: 14, kind: input, shape index: {}]
  %s15 = inlined_call_operand.vmem [shape: f32[1,32], index: 15, kind: input, shape index: {}]
  %s16 = inlined_call_operand.vmem [shape: bf16[32,2048], index: 16, kind: input, shape index: {}]
  %s17 = inlined_call_operand.vmem [shape: f32[1,2048], index: 17, kind: input, shape index: {}]
  %s18 = inlined_call_operand.vmem [shape: bf16[2048,32], index: 18, kind: input, shape index: {}]
  %s19 = inlined_call_operand.vmem [shape: f32[1,32], index: 19, kind: input, shape index: {}]
  %s20 = inlined_call_operand.vmem [shape: f32[1,32], index: 20, kind: input, shape index: {}]
  %s21 = inlined_call_operand.vmem [shape: f32[1,32], index: 21, kind: input, shape index: {}]
  %s22 = inlined_call_operand.vmem [shape: f32[16,32], index: 22, kind: output, shape index: {}]
  %s23 = sld [smem:[#allocation0]]
  $region98: #{transformer_forward.13} parent=0
    _
  %s25 = ssub.s32 1, %s23
  %s26 = scalar_select 0, %s25, %s23
  // Predicated region
  $region2: #{transformer_forward.13} parent=0 // pred_check
    _
  $region3: #{transformer_forward.13} parent=0 // pred_check_branch
    %28 = sbr.rel (0) target = $region5
  $region4: #{transformer_forward.13} parent=0 // pred_region
    _
  $region5: #{transformer_forward.13} parent=0 // pred_fallthru
    _
  // Predicated region
  $region6: #{transformer_forward.13} parent=0 // pred_check
    _
  $region7: #{transformer_forward.13} parent=0 // pred_check_branch
    %30 = sbr.rel (0) target = $region9
  $region8: #{transformer_forward.13} parent=0 // pred_region
    _
  $region9: #{transformer_forward.13} parent=0 // pred_fallthru
    _
  // Predicated region
  $region10: #{transformer_forward.13} parent=0 // pred_check
    _
  $region11: #{transformer_forward.13} parent=0 // pred_check_branch
    %32 = sbr.rel (0) target = $region13
  $region12: #{transformer_forward.13} parent=0 // pred_region
    _
  $region13: #{transformer_forward.13} parent=0 // pred_fallthru
    _
  // Predicated region
  $region14: #{transformer_forward.13} parent=0 // pred_check
    _
  $region15: #{transformer_forward.13} parent=0 // pred_check_branch
    %34 = sbr.rel (0) target = $region17
  $region16: #{transformer_forward.13} parent=0 // pred_region
    _
  $region17: #{transformer_forward.13} parent=0 // pred_fallthru
    _
  // Predicated region
  $region18: #{transformer_forward.13} parent=0 // pred_check
    _
  $region19: #{transformer_forward.13} parent=0 // pred_check_branch
    %36 = sbr.rel (0) target = $region21
  $region20: #{transformer_forward.13} parent=0 // pred_region
    _
  $region21: #{transformer_forward.13} parent=0 // pred_fallthru
    _
  // Predicated region
  $region22: #{transformer_forward.13} parent=0 // pred_check
    _
  $region23: #{transformer_forward.13} parent=0 // pred_check_branch
    %38 = sbr.rel (0) target = $region25
  $region24: #{transformer_forward.13} parent=0 // pred_region
    _
  $region25: #{transformer_forward.13} parent=0 // pred_fallthru
    _
  // Predicated region
  $region26: #{transformer_forward.13} parent=0 // pred_check
    _
  $region27: #{transformer_forward.13} parent=0 // pred_check_branch
    %40 = sbr.rel (0) target = $region29
  $region28: #{transformer_forward.13} parent=0 // pred_region
    _
  $region29: #{transformer_forward.13} parent=0 // pred_fallthru
    _
  // Predicated region
  $region30: #{transformer_forward.13} parent=0 // pred_check
    _
  $region31: #{transformer_forward.13} parent=0 // pred_check_branch
    %42 = sbr.rel (0) target = $region33
  $region32: #{transformer_forward.13} parent=0 // pred_region
    _
  $region33: #{transformer_forward.13} parent=0 // pred_fallthru
    _
  // Predicated region
  $region34: #{transformer_forward.13} parent=0 // pred_check
    _
  $region35: #{transformer_forward.13} parent=0 // pred_check_branch
    %44 = sbr.rel (0) target = $region37
  $region36: #{transformer_forward.13} parent=0 // pred_region
    _
  $region37: #{transformer_forward.13} parent=0 // pred_fallthru
    _
  // Predicated region
  $region38: #{transformer_forward.13} parent=0 // pred_check
    _
  $region39: #{transformer_forward.13} parent=0 // pred_check_branch
    %46 = sbr.rel (0) target = $region41
  $region40: #{transformer_forward.13} parent=0 // pred_region
    _
  $region41: #{transformer_forward.13} parent=0 // pred_fallthru
    _
  // Predicated region
  $region42: #{transformer_forward.13} parent=0 // pred_check
    _
  $region43: #{transformer_forward.13} parent=0 // pred_check_branch
    %48 = sbr.rel (0) target = $region45
  $region44: #{transformer_forward.13} parent=0 // pred_region
    _
  $region45: #{transformer_forward.13} parent=0 // pred_fallthru
    _
  // Predicated region
  $region46: #{transformer_forward.13} parent=0 // pred_check
    _
  $region47: #{transformer_forward.13} parent=0 // pred_check_branch
    %50 = sbr.rel (0) target = $region49
  $region48: #{transformer_forward.13} parent=0 // pred_region
    _
  $region49: #{transformer_forward.13} parent=0 // pred_fallthru
    _
  // Predicated region
  $region50: #{transformer_forward.13} parent=0 // pred_check
    _
  $region51: #{transformer_forward.13} parent=0 // pred_check_branch
    %52 = sbr.rel (0) target = $region53
  $region52: #{transformer_forward.13} parent=0 // pred_region
    _
  $region53: #{transformer_forward.13} parent=0 // pred_fallthru
    _
  // Predicated region
  $region54: #{transformer_forward.13} parent=0 // pred_check
    _
  $region55: #{transformer_forward.13} parent=0 // pred_check_branch
    %54 = sbr.rel (0) target = $region57
  $region56: #{transformer_forward.13} parent=0 // pred_region
    _
  $region57: #{transformer_forward.13} parent=0 // pred_fallthru
    _
  // Predicated region
  $region58: #{transformer_forward.13} parent=0 // pred_check
    _
  $region59: #{transformer_forward.13} parent=0 // pred_check_branch
    %56 = sbr.rel (0) target = $region61
  $region60: #{transformer_forward.13} parent=0 // pred_region
    _
  $region61: #{transformer_forward.13} parent=0 // pred_fallthru
    _
  // Predicated region
  $region62: #{transformer_forward.13} parent=0 // pred_check
    _
  $region63: #{transformer_forward.13} parent=0 // pred_check_branch
    %58 = sbr.rel (0) target = $region65
  $region64: #{transformer_forward.13} parent=0 // pred_region
    _
  $region65: #{transformer_forward.13} parent=0 // pred_fallthru
    _
  // Predicated region
  $region66: #{transformer_forward.13} parent=0 // pred_check
    _
  $region67: #{transformer_forward.13} parent=0 // pred_check_branch
    %60 = sbr.rel (0) target = $region69
  $region68: #{transformer_forward.13} parent=0 // pred_region
    _
  $region69: #{transformer_forward.13} parent=0 // pred_fallthru
    _
  // Predicated region
  $region70: #{transformer_forward.13} parent=0 // pred_check
    _
  $region71: #{transformer_forward.13} parent=0 // pred_check_branch
    %62 = sbr.rel (0) target = $region73
  $region72: #{transformer_forward.13} parent=0 // pred_region
    _
  $region73: #{transformer_forward.13} parent=0 // pred_fallthru
    _
  // Predicated region
  $region74: #{transformer_forward.13} parent=0 // pred_check
    _
  $region75: #{transformer_forward.13} parent=0 // pred_check_branch
    %64 = sbr.rel (0) target = $region77
  $region76: #{transformer_forward.13} parent=0 // pred_region
    _
  $region77: #{transformer_forward.13} parent=0 // pred_fallthru
    _
  // Predicated region
  $region78: #{transformer_forward.13} parent=0 // pred_check
    _
  $region79: #{transformer_forward.13} parent=0 // pred_check_branch
    %66 = sbr.rel (0) target = $region81
  $region80: #{transformer_forward.13} parent=0 // pred_region
    _
  $region81: #{transformer_forward.13} parent=0 // pred_fallthru
    _
  // Predicated region
  $region82: #{transformer_forward.13} parent=0 // pred_check
    _
  $region83: #{transformer_forward.13} parent=0 // pred_check_branch
    %68 = sbr.rel (0) target = $region85
  $region84: #{transformer_forward.13} parent=0 // pred_region
    _
  $region85: #{transformer_forward.13} parent=0 // pred_fallthru
    _
  // Predicated region
  $region86: #{transformer_forward.13} parent=0 // pred_check
    _
  $region87: #{transformer_forward.13} parent=0 // pred_check_branch
    %70 = sbr.rel (0) target = $region89
  $region88: #{transformer_forward.13} parent=0 // pred_region
    _
  $region89: #{transformer_forward.13} parent=0 // pred_fallthru
    _
  %v72 = vld [vmem:[%s0] sm:$0xff]
  %v73 = vld [vmem:[%s0 + $0x8] sm:$0xff]
  %v74 = vld [vmem:[%s1] sm:$0xff]
  %v75 = vld [vmem:[%s1 + $0x8] sm:$0xff]
  %v76 = vld [vmem:[%s2] sm:$0xf]
  %v77 = vld [vmem:[%s2 + $0x4] sm:$0xf]
  %v78 = vld [vmem:[%s2 + $0x8] sm:$0xf]
  %v79 = vld [vmem:[%s2 + $0xc] sm:$0xf]
  %v80 = vpack.c.bf16 %v73, %v72
  %v81 = vld [vmem:[%s3] sm:$0x1]
  %v83 = vlaneseq
  %v84 = vshrl.u32 %v83, 7
  %v85 = vsub.s32 0, %v84
  %v86 = vrot.slane %v81, %v85
  %v92 = vunpack.c.l.b16 %v76
  %v93 = vunpack.c.l.b16 %v77
  %v94 = vunpack.c.l.b16 %v78
  %v95 = vunpack.c.l.b16 %v79
  %v96 = vpack.c.b16 %v93, %v92
  %v97 = vpack.c.b16 %v95, %v94
  %vm100 = vcmask 261120
  %v102 = vsel %vm100, %v80, 0
  %104 = vmatprep.subr.bf16.mxu0 0
  %105 = vmatpush1.bf16.msra.mxu0 0
  %106 = vmatprep.subr.bf16.mxu0 0
  %107 = vmatpush1.bf16.msra.mxu0 0
  %108 = vmatprep.subr.bf16.mxu0 0
  %109 = vmatpush1.bf16.msra.mxu0 0
  %110 = vmatprep.subr.bf16.mxu0 0
  %111 = vmatpush1.bf16.msra.mxu0 0
  %112 = vmatprep.subr.bf16.mxu0 0
  %113 = vmatpush1.bf16.msra.mxu0 0
  %114 = vmatprep.subr.bf16.mxu0 0
  %115 = vmatpush1.bf16.msra.mxu0 0
  %116 = vmatprep.subr.bf16.mxu0 0
  %117 = vmatpush1.bf16.msra.mxu0 %v97
  %118 = vmatprep.subr.bf16.mxu0 0
  %119 = vmatpush1.bf16.msra.mxu0 %v96
  %120 = vmatprep.subr.bf16.mxu0 0
  %121 = vmatpush2.bf16.msra.mxu0 0
  %122 = vmatprep.subr.bf16.mxu0 0
  %123 = vmatpush2.bf16.msra.mxu0 0
  %124 = vmatprep.subr.bf16.mxu0 0
  %125 = vmatpush2.bf16.msra.mxu0 0
  %126 = vmatprep.subr.bf16.mxu0 0
  %127 = vmatpush2.bf16.msra.mxu0 0
  %128 = vmatprep.subr.bf16.mxu0 0
  %129 = vmatpush2.bf16.msra.mxu0 0
  %130 = vmatprep.subr.bf16.mxu0 0
  %131 = vmatpush2.bf16.msra.mxu0 0
  %132 = vmatprep.subr.bf16.mxu0 0
  %133 = vmatpush2.bf16.msra.mxu0 0
  %134 = vmatprep.subr.bf16.mxu0 0
  %135 = vmatpush2.bf16.msra.mxu0 0
  %136 = vmatprep.mubr.bf16.mxu0 0
  %137 = vmatmul.mubr.bf16.gmra.mxu0 %v102
  %v138 = vpop.f32.mrf.mxu0
  %v139 = vadd.f32 %v86, %v138
  %v140 = vpop.f32.mrf.mxu0
  %v141 = vpop.f32.mrf.mxu0
  %v142 = vadd.f32 %v86, %v141
  %v143 = vpop.f32.mrf.mxu0
  %144 = vdwg.mxu0
  %146 = vrot.lane.b32.xlu0 %v139, 96
  %v147 = vpop.permute.xlu0 %146
  %vm148 = vcmask 64512
  %v149 = vsel %vm148, %v139, 0
  %v151 = vsel %vm148, %v147, 0
  %153 = vmatprep.subr.mxu0 0.0
  %154 = vmatpush1.xpose.msra.mxu0 0.0
  %155 = vmatprep.subr.mxu0 0.0
  %156 = vmatpush1.xpose.msra.mxu0 0.0
  %157 = vmatprep.subr.mxu0 0.0
  %158 = vmatpush1.xpose.msra.mxu0 0.0
  %159 = vmatprep.subr.mxu0 0.0
  %160 = vmatpush1.xpose.msra.mxu0 0.0
  %161 = vmatprep.subr.mxu0 0.0
  %162 = vmatpush1.xpose.msra.mxu0 0.0
  %163 = vmatprep.subr.mxu0 0.0
  %164 = vmatpush1.xpose.msra.mxu0 0.0
  %165 = vmatprep.subr.mxu0 0.0
  %166 = vmatpush1.xpose.msra.mxu0 0.0
  %167 = vmatprep.subr.mxu0 0.0
  %168 = vmatpush1.xpose.msra.mxu0 0.0
  %169 = vmatprep.subr.mxu0 0.0
  %170 = vmatpush1.xpose.msra.mxu0 0.0
  %171 = vmatprep.subr.mxu0 0.0
  %172 = vmatpush1.xpose.msra.mxu0 0.0
  %173 = vmatprep.subr.mxu0 0.0
  %174 = vmatpush1.xpose.msra.mxu0 0.0
  %175 = vmatprep.subr.mxu0 0.0
  %176 = vmatpush1.xpose.msra.mxu0 0.0
  %177 = vmatprep.subr.mxu0 0.0
  %178 = vmatpush1.xpose.msra.mxu0 0.0
  %179 = vmatprep.subr.mxu0 0.0
  %180 = vmatpush1.xpose.msra.mxu0 0.0
  %181 = vmatprep.subr.mxu0 0.0
  %182 = vmatpush1.xpose.msra.mxu0 0.0
  %183 = vmatprep.subr.mxu0 0.0
  %184 = vmatpush1.xpose.msra.mxu0 %v151
  %185 = vmatprep.subr.mxu0 0.0
  %186 = vmatpush2.xpose.msra.mxu0 0.0
  %187 = vmatprep.subr.mxu0 0.0
  %188 = vmatpush2.xpose.msra.mxu0 0.0
  %189 = vmatprep.subr.mxu0 0.0
  %190 = vmatpush2.xpose.msra.mxu0 0.0
  %191 = vmatprep.subr.mxu0 0.0
  %192 = vmatpush2.xpose.msra.mxu0 0.0
  %193 = vmatprep.subr.mxu0 0.0
  %194 = vmatpush2.xpose.msra.mxu0 0.0
  %195 = vmatprep.subr.mxu0 0.0
  %196 = vmatpush2.xpose.msra.mxu0 0.0
  %197 = vmatprep.subr.mxu0 0.0
  %198 = vmatpush2.xpose.msra.mxu0 0.0
  %199 = vmatprep.subr.mxu0 0.0
  %200 = vmatpush2.xpose.msra.mxu0 0.0
  %201 = vmatprep.subr.mxu0 0.0
  %202 = vmatpush2.xpose.msra.mxu0 0.0
  %203 = vmatprep.subr.mxu0 0.0
  %204 = vmatpush2.xpose.msra.mxu0 0.0
  %205 = vmatprep.subr.mxu0 0.0
  %206 = vmatpush2.xpose.msra.mxu0 0.0
  %207 = vmatprep.subr.mxu0 0.0
  %208 = vmatpush2.xpose.msra.mxu0 0.0
  %209 = vmatprep.subr.mxu0 0.0
  %210 = vmatpush2.xpose.msra.mxu0 0.0
  %211 = vmatprep.subr.mxu0 0.0
  %212 = vmatpush2.xpose.msra.mxu0 0.0
  %213 = vmatprep.subr.mxu0 0.0
  %214 = vmatpush2.xpose.msra.mxu0 0.0
  %215 = vmatprep.subr.mxu0 0.0
  %216 = vmatpush2.xpose.msra.mxu0 0.0
  %217 = vmatprep.mubr.f32.mxu0 0.0
  %218 = vmatmul.mubr.f32.gmra.mxu0 %v149
  %v219 = vpop.f32.mrf.mxu0
  %v220 = vadd.f32 0.0, %v219
  %v221 = vpop.f32.mrf.mxu0
  %222 = vdwg.mxu0
  %v223 = vmul.f32 %v220, 0.35355338
  %v224 = vsel %vm148, %v223, -inf
  %225 = vmax.xlane.f32.xlu0 %v224
  %v226 = vpop.xlane.xlu0 %225
  %v227 = vsub.f32 %v223, %v226
  %v228 = vmul.f32 %v227, 1.442695
  %v229 = vpow.pop %v228
  %v230 = vsel %vm148, %v229, 0.0
  %231 = vadd.xlane.f32.xlu0 %v230
  %v232 = vpop.xlane.xlu0 %231
  %v233 = vrcp.pop %v232
  %v234 = vmul.f32 %v229, %v233
  %235 = vrot.lane.b32.xlu0 %v139, 64
  %v236 = vpop.permute.xlu0 %235
  %v239 = vsel %vm148, %v234, 0
  %241 = vmatprep.subr.mxu0 0.0
  %242 = vmatpush1.msra.mxu0 0.0
  %243 = vmatprep.subr.mxu0 0.0
  %244 = vmatpush1.msra.mxu0 0.0
  %245 = vmatprep.subr.mxu0 0.0
  %246 = vmatpush1.msra.mxu0 0.0
  %247 = vmatprep.subr.mxu0 0.0
  %248 = vmatpush1.msra.mxu0 0.0
  %249 = vmatprep.subr.mxu0 0.0
  %250 = vmatpush1.msra.mxu0 0.0
  %251 = vmatprep.subr.mxu0 0.0
  %252 = vmatpush1.msra.mxu0 0.0
  %253 = vmatprep.subr.mxu0 0.0
  %254 = vmatpush1.msra.mxu0 0.0
  %255 = vmatprep.subr.mxu0 0.0
  %256 = vmatpush1.msra.mxu0 0.0
  %257 = vmatprep.subr.mxu0 0.0
  %258 = vmatpush1.msra.mxu0 0.0
  %259 = vmatprep.subr.mxu0 0.0
  %260 = vmatpush1.msra.mxu0 0.0
  %261 = vmatprep.subr.mxu0 0.0
  %262 = vmatpush1.msra.mxu0 0.0
  %263 = vmatprep.subr.mxu0 0.0
  %264 = vmatpush1.msra.mxu0 0.0
  %265 = vmatprep.subr.mxu0 0.0
  %266 = vmatpush1.msra.mxu0 0.0
  %267 = vmatprep.subr.mxu0 0.0
  %268 = vmatpush1.msra.mxu0 0.0
  %269 = vmatprep.subr.mxu0 0.0
  %270 = vmatpush1.msra.mxu0 0.0
  %271 = vmatprep.subr.mxu0 0.0
  %272 = vmatpush1.msra.mxu0 %v236
  %273 = vmatprep.subr.mxu0 0.0
  %274 = vmatpush2.msra.mxu0 0.0
  %275 = vmatprep.subr.mxu0 0.0
  %276 = vmatpush2.msra.mxu0 0.0
  %277 = vmatprep.subr.mxu0 0.0
  %278 = vmatpush2.msra.mxu0 0.0
  %279 = vmatprep.subr.mxu0 0.0
  %280 = vmatpush2.msra.mxu0 0.0
  %281 = vmatprep.subr.mxu0 0.0
  %282 = vmatpush2.msra.mxu0 0.0
  %283 = vmatprep.subr.mxu0 0.0
  %284 = vmatpush2.msra.mxu0 0.0
  %285 = vmatprep.subr.mxu0 0.0
  %286 = vmatpush2.msra.mxu0 0.0
  %287 = vmatprep.subr.mxu0 0.0
  %288 = vmatpush2.msra.mxu0 0.0
  %289 = vmatprep.subr.mxu0 0.0
  %290 = vmatpush2.msra.mxu0 0.0
  %291 = vmatprep.subr.mxu0 0.0
  %292 = vmatpush2.msra.mxu0 0.0
  %293 = vmatprep.subr.mxu0 0.0
  %294 = vmatpush2.msra.mxu0 0.0
  %295 = vmatprep.subr.mxu0 0.0
  %296 = vmatpush2.msra.mxu0 0.0
  %297 = vmatprep.subr.mxu0 0.0
  %298 = vmatpush2.msra.mxu0 0.0
  %299 = vmatprep.subr.mxu0 0.0
  %300 = vmatpush2.msra.mxu0 0.0
  %301 = vmatprep.subr.mxu0 0.0
  %302 = vmatpush2.msra.mxu0 0.0
  %303 = vmatprep.subr.mxu0 0.0
  %304 = vmatpush2.msra.mxu0 0.0
  %305 = vmatprep.mubr.f32.mxu0 0.0
  %306 = vmatmul.mubr.f32.gmra.mxu0 %v239
  %v307 = vpop.f32.mrf.mxu0
  %v308 = vadd.f32 0.0, %v307
  %v309 = vpop.f32.mrf.mxu0
  %310 = vdwg.mxu0
  %311 = vst.msk [vmem:[#allocation2] sm:$0xff] %vm148, %v308
  %312 = vrot.lane.b32.xlu0 %v139, 120
  %v313 = vpop.permute.xlu0 %312
  %314 = vrot.lane.b32.xlu0 %v139, 88
  %v315 = vpop.permute.xlu0 %314
  %v316 = vsel %vm148, %v313, 0
  %v318 = vsel %vm148, %v315, 0
  %320 = vmatprep.subr.mxu0 0.0
  %321 = vmatpush1.xpose.msra.mxu0 0.0
  %322 = vmatprep.subr.mxu0 0.0
  %323 = vmatpush1.xpose.msra.mxu0 0.0
  %324 = vmatprep.subr.mxu0 0.0
  %325 = vmatpush1.xpose.msra.mxu0 0.0
  %326 = vmatprep.subr.mxu0 0.0
  %327 = vmatpush1.xpose.msra.mxu0 0.0
  %328 = vmatprep.subr.mxu0 0.0
  %329 = vmatpush1.xpose.msra.mxu0 0.0
  %330 = vmatprep.subr.mxu0 0.0
  %331 = vmatpush1.xpose.msra.mxu0 0.0
  %332 = vmatprep.subr.mxu0 0.0
  %333 = vmatpush1.xpose.msra.mxu0 0.0
  %334 = vmatprep.subr.mxu0 0.0
  %335 = vmatpush1.xpose.msra.mxu0 0.0
  %336 = vmatprep.subr.mxu0 0.0
  %337 = vmatpush1.xpose.msra.mxu0 0.0
  %338 = vmatprep.subr.mxu0 0.0
  %339 = vmatpush1.xpose.msra.mxu0 0.0
  %340 = vmatprep.subr.mxu0 0.0
  %341 = vmatpush1.xpose.msra.mxu0 0.0
  %342 = vmatprep.subr.mxu0 0.0
  %343 = vmatpush1.xpose.msra.mxu0 0.0
  %344 = vmatprep.subr.mxu0 0.0
  %345 = vmatpush1.xpose.msra.mxu0 0.0
  %346 = vmatprep.subr.mxu0 0.0
  %347 = vmatpush1.xpose.msra.mxu0 0.0
  %348 = vmatprep.subr.mxu0 0.0
  %349 = vmatpush1.xpose.msra.mxu0 0.0
  %350 = vmatprep.subr.mxu0 0.0
  %351 = vmatpush1.xpose.msra.mxu0 %v318
  %352 = vmatprep.subr.mxu0 0.0
  %353 = vmatpush2.xpose.msra.mxu0 0.0
  %354 = vmatprep.subr.mxu0 0.0
  %355 = vmatpush2.xpose.msra.mxu0 0.0
  %356 = vmatprep.subr.mxu0 0.0
  %357 = vmatpush2.xpose.msra.mxu0 0.0
  %358 = vmatprep.subr.mxu0 0.0
  %359 = vmatpush2.xpose.msra.mxu0 0.0
  %360 = vmatprep.subr.mxu0 0.0
  %361 = vmatpush2.xpose.msra.mxu0 0.0
  %362 = vmatprep.subr.mxu0 0.0
  %363 = vmatpush2.xpose.msra.mxu0 0.0
  %364 = vmatprep.subr.mxu0 0.0
  %365 = vmatpush2.xpose.msra.mxu0 0.0
  %366 = vmatprep.subr.mxu0 0.0
  %367 = vmatpush2.xpose.msra.mxu0 0.0
  %368 = vmatprep.subr.mxu0 0.0
  %369 = vmatpush2.xpose.msra.mxu0 0.0
  %370 = vmatprep.subr.mxu0 0.0
  %371 = vmatpush2.xpose.msra.mxu0 0.0
  %372 = vmatprep.subr.mxu0 0.0
  %373 = vmatpush2.xpose.msra.mxu0 0.0
  %374 = vmatprep.subr.mxu0 0.0
  %375 = vmatpush2.xpose.msra.mxu0 0.0
  %376 = vmatprep.subr.mxu0 0.0
  %377 = vmatpush2.xpose.msra.mxu0 0.0
  %378 = vmatprep.subr.mxu0 0.0
  %379 = vmatpush2.xpose.msra.mxu0 0.0
  %380 = vmatprep.subr.mxu0 0.0
  %381 = vmatpush2.xpose.msra.mxu0 0.0
  %382 = vmatprep.subr.mxu0 0.0
  %383 = vmatpush2.xpose.msra.mxu0 0.0
  %384 = vmatprep.mubr.f32.mxu0 0.0
  %385 = vmatmul.mubr.f32.gmra.mxu0 %v316
  %v386 = vpop.f32.mrf.mxu0
  %v387 = vadd.f32 0.0, %v386
  %v388 = vpop.f32.mrf.mxu0
  %389 = vdwg.mxu0
  %v390 = vmul.f32 %v387, 0.35355338
  %v391 = vsel %vm148, %v390, -inf
  %392 = vmax.xlane.f32.xlu0 %v391
  %v393 = vpop.xlane.xlu0 %392
  %v394 = vsub.f32 %v390, %v393
  %v395 = vmul.f32 %v394, 1.442695
  %v396 = vpow.pop %v395
  %v397 = vsel %vm148, %v396, 0.0
  %398 = vadd.xlane.f32.xlu0 %v397
  %v399 = vpop.xlane.xlu0 %398
  %v400 = vrcp.pop %v399
  %v401 = vmul.f32 %v396, %v400
  %402 = vrot.lane.b32.xlu0 %v139, 56
  %v403 = vpop.permute.xlu0 %402
  %v406 = vsel %vm148, %v401, 0
  %408 = vmatprep.subr.mxu0 0.0
  %409 = vmatpush1.msra.mxu0 0.0
  %410 = vmatprep.subr.mxu0 0.0
  %411 = vmatpush1.msra.mxu0 0.0
  %412 = vmatprep.subr.mxu0 0.0
  %413 = vmatpush1.msra.mxu0 0.0
  %414 = vmatprep.subr.mxu0 0.0
  %415 = vmatpush1.msra.mxu0 0.0
  %416 = vmatprep.subr.mxu0 0.0
  %417 = vmatpush1.msra.mxu0 0.0
  %418 = vmatprep.subr.mxu0 0.0
  %419 = vmatpush1.msra.mxu0 0.0
  %420 = vmatprep.subr.mxu0 0.0
  %421 = vmatpush1.msra.mxu0 0.0
  %422 = vmatprep.subr.mxu0 0.0
  %423 = vmatpush1.msra.mxu0 0.0
  %424 = vmatprep.subr.mxu0 0.0
  %425 = vmatpush1.msra.mxu0 0.0
  %426 = vmatprep.subr.mxu0 0.0
  %427 = vmatpush1.msra.mxu0 0.0
  %428 = vmatprep.subr.mxu0 0.0
  %429 = vmatpush1.msra.mxu0 0.0
  %430 = vmatprep.subr.mxu0 0.0
  %431 = vmatpush1.msra.mxu0 0.0
  %432 = vmatprep.subr.mxu0 0.0
  %433 = vmatpush1.msra.mxu0 0.0
  %434 = vmatprep.subr.mxu0 0.0
  %435 = vmatpush1.msra.mxu0 0.0
  %436 = vmatprep.subr.mxu0 0.0
  %437 = vmatpush1.msra.mxu0 0.0
  %438 = vmatprep.subr.mxu0 0.0
  %439 = vmatpush1.msra.mxu0 %v403
  %440 = vmatprep.subr.mxu0 0.0
  %441 = vmatpush2.msra.mxu0 0.0
  %442 = vmatprep.subr.mxu0 0.0
  %443 = vmatpush2.msra.mxu0 0.0
  %444 = vmatprep.subr.mxu0 0.0
  %445 = vmatpush2.msra.mxu0 0.0
  %446 = vmatprep.subr.mxu0 0.0
  %447 = vmatpush2.msra.mxu0 0.0
  %448 = vmatprep.subr.mxu0 0.0
  %449 = vmatpush2.msra.mxu0 0.0
  %450 = vmatprep.subr.mxu0 0.0
  %451 = vmatpush2.msra.mxu0 0.0
  %452 = vmatprep.subr.mxu0 0.0
  %453 = vmatpush2.msra.mxu0 0.0
  %454 = vmatprep.subr.mxu0 0.0
  %455 = vmatpush2.msra.mxu0 0.0
  %456 = vmatprep.subr.mxu0 0.0
  %457 = vmatpush2.msra.mxu0 0.0
  %458 = vmatprep.subr.mxu0 0.0
  %459 = vmatpush2.msra.mxu0 0.0
  %460 = vmatprep.subr.mxu0 0.0
  %461 = vmatpush2.msra.mxu0 0.0
  %462 = vmatprep.subr.mxu0 0.0
  %463 = vmatpush2.msra.mxu0 0.0
  %464 = vmatprep.subr.mxu0 0.0
  %465 = vmatpush2.msra.mxu0 0.0
  %466 = vmatprep.subr.mxu0 0.0
  %467 = vmatpush2.msra.mxu0 0.0
  %468 = vmatprep.subr.mxu0 0.0
  %469 = vmatpush2.msra.mxu0 0.0
  %470 = vmatprep.subr.mxu0 0.0
  %471 = vmatpush2.msra.mxu0 0.0
  %472 = vmatprep.mubr.f32.mxu0 0.0
  %473 = vmatmul.mubr.f32.gmra.mxu0 %v406
  %v474 = vpop.f32.mrf.mxu0
  %v475 = vadd.f32 0.0, %v474
  %v476 = vpop.f32.mrf.mxu0
  %477 = vdwg.mxu0
  %479 = vrot.lane.b32.xlu0 %v475, 8
  %v480 = vpop.permute.xlu0 %479
  %vm482 = vcmask 130112
  %483 = vst.msk [vmem:[#allocation2] sm:$0xff] %vm482, %v480
  %484 = vrot.lane.b32.xlu0 %v139, 112
  %v485 = vpop.permute.xlu0 %484
  %486 = vrot.lane.b32.xlu0 %v139, 80
  %v487 = vpop.permute.xlu0 %486
  %v488 = vsel %vm148, %v485, 0
  %v490 = vsel %vm148, %v487, 0
  %492 = vmatprep.subr.mxu0 0.0
  %493 = vmatpush1.xpose.msra.mxu0 0.0
  %494 = vmatprep.subr.mxu0 0.0
  %495 = vmatpush1.xpose.msra.mxu0 0.0
  %496 = vmatprep.subr.mxu0 0.0
  %497 = vmatpush1.xpose.msra.mxu0 0.0
  %498 = vmatprep.subr.mxu0 0.0
  %499 = vmatpush1.xpose.msra.mxu0 0.0
  %500 = vmatprep.subr.mxu0 0.0
  %501 = vmatpush1.xpose.msra.mxu0 0.0
  %502 = vmatprep.subr.mxu0 0.0
  %503 = vmatpush1.xpose.msra.mxu0 0.0
  %504 = vmatprep.subr.mxu0 0.0
  %505 = vmatpush1.xpose.msra.mxu0 0.0
  %506 = vmatprep.subr.mxu0 0.0
  %507 = vmatpush1.xpose.msra.mxu0 0.0
  %508 = vmatprep.subr.mxu0 0.0
  %509 = vmatpush1.xpose.msra.mxu0 0.0
  %510 = vmatprep.subr.mxu0 0.0
  %511 = vmatpush1.xpose.msra.mxu0 0.0
  %512 = vmatprep.subr.mxu0 0.0
  %513 = vmatpush1.xpose.msra.mxu0 0.0
  %514 = vmatprep.subr.mxu0 0.0
  %515 = vmatpush1.xpose.msra.mxu0 0.0
  %516 = vmatprep.subr.mxu0 0.0
  %517 = vmatpush1.xpose.msra.mxu0 0.0
  %518 = vmatprep.subr.mxu0 0.0
  %519 = vmatpush1.xpose.msra.mxu0 0.0
  %520 = vmatprep.subr.mxu0 0.0
  %521 = vmatpush1.xpose.msra.mxu0 0.0
  %522 = vmatprep.subr.mxu0 0.0
  %523 = vmatpush1.xpose.msra.mxu0 %v490
  %524 = vmatprep.subr.mxu0 0.0
  %525 = vmatpush2.xpose.msra.mxu0 0.0
  %526 = vmatprep.subr.mxu0 0.0
  %527 = vmatpush2.xpose.msra.mxu0 0.0
  %528 = vmatprep.subr.mxu0 0.0
  %529 = vmatpush2.xpose.msra.mxu0 0.0
  %530 = vmatprep.subr.mxu0 0.0
  %531 = vmatpush2.xpose.msra.mxu0 0.0
  %532 = vmatprep.subr.mxu0 0.0
  %533 = vmatpush2.xpose.msra.mxu0 0.0
  %534 = vmatprep.subr.mxu0 0.0
  %535 = vmatpush2.xpose.msra.mxu0 0.0
  %536 = vmatprep.subr.mxu0 0.0
  %537 = vmatpush2.xpose.msra.mxu0 0.0
  %538 = vmatprep.subr.mxu0 0.0
  %539 = vmatpush2.xpose.msra.mxu0 0.0
  %540 = vmatprep.subr.mxu0 0.0
  %541 = vmatpush2.xpose.msra.mxu0 0.0
  %542 = vmatprep.subr.mxu0 0.0
  %543 = vmatpush2.xpose.msra.mxu0 0.0
  %544 = vmatprep.subr.mxu0 0.0
  %545 = vmatpush2.xpose.msra.mxu0 0.0
  %546 = vmatprep.subr.mxu0 0.0
  %547 = vmatpush2.xpose.msra.mxu0 0.0
  %548 = vmatprep.subr.mxu0 0.0
  %549 = vmatpush2.xpose.msra.mxu0 0.0
  %550 = vmatprep.subr.mxu0 0.0
  %551 = vmatpush2.xpose.msra.mxu0 0.0
  %552 = vmatprep.subr.mxu0 0.0
  %553 = vmatpush2.xpose.msra.mxu0 0.0
  %554 = vmatprep.subr.mxu0 0.0
  %555 = vmatpush2.xpose.msra.mxu0 0.0
  %556 = vmatprep.mubr.f32.mxu0 0.0
  %557 = vmatmul.mubr.f32.gmra.mxu0 %v488
  %v558 = vpop.f32.mrf.mxu0
  %v559 = vadd.f32 0.0, %v558
  %v560 = vpop.f32.mrf.mxu0
  %561 = vdwg.mxu0
  %v562 = vmul.f32 %v559, 0.35355338
  %v563 = vsel %vm148, %v562, -inf
  %564 = vmax.xlane.f32.xlu0 %v563
  %v565 = vpop.xlane.xlu0 %564
  %v566 = vsub.f32 %v562, %v565
  %v567 = vmul.f32 %v566, 1.442695
  %v568 = vpow.pop %v567
  %v569 = vsel %vm148, %v568, 0.0
  %570 = vadd.xlane.f32.xlu0 %v569
  %v571 = vpop.xlane.xlu0 %570
  %v572 = vrcp.pop %v571
  %v573 = vmul.f32 %v568, %v572
  %574 = vrot.lane.b32.xlu0 %v139, 48
  %v575 = vpop.permute.xlu0 %574
  %v578 = vsel %vm148, %v573, 0
  %580 = vmatprep.subr.mxu0 0.0
  %581 = vmatpush1.msra.mxu0 0.0
  %582 = vmatprep.subr.mxu0 0.0
  %583 = vmatpush1.msra.mxu0 0.0
  %584 = vmatprep.subr.mxu0 0.0
  %585 = vmatpush1.msra.mxu0 0.0
  %586 = vmatprep.subr.mxu0 0.0
  %587 = vmatpush1.msra.mxu0 0.0
  %588 = vmatprep.subr.mxu0 0.0
  %589 = vmatpush1.msra.mxu0 0.0
  %590 = vmatprep.subr.mxu0 0.0
  %591 = vmatpush1.msra.mxu0 0.0
  %592 = vmatprep.subr.mxu0 0.0
  %593 = vmatpush1.msra.mxu0 0.0
  %594 = vmatprep.subr.mxu0 0.0
  %595 = vmatpush1.msra.mxu0 0.0
  %596 = vmatprep.subr.mxu0 0.0
  %597 = vmatpush1.msra.mxu0 0.0
  %598 = vmatprep.subr.mxu0 0.0
  %599 = vmatpush1.msra.mxu0 0.0
  %600 = vmatprep.subr.mxu0 0.0
  %601 = vmatpush1.msra.mxu0 0.0
  %602 = vmatprep.subr.mxu0 0.0
  %603 = vmatpush1.msra.mxu0 0.0
  %604 = vmatprep.subr.mxu0 0.0
  %605 = vmatpush1.msra.mxu0 0.0
  %606 = vmatprep.subr.mxu0 0.0
  %607 = vmatpush1.msra.mxu0 0.0
  %608 = vmatprep.subr.mxu0 0.0
  %609 = vmatpush1.msra.mxu0 0.0
  %610 = vmatprep.subr.mxu0 0.0
  %611 = vmatpush1.msra.mxu0 %v575
  %612 = vmatprep.subr.mxu0 0.0
  %613 = vmatpush2.msra.mxu0 0.0
  %614 = vmatprep.subr.mxu0 0.0
  %615 = vmatpush2.msra.mxu0 0.0
  %616 = vmatprep.subr.mxu0 0.0
  %617 = vmatpush2.msra.mxu0 0.0
  %618 = vmatprep.subr.mxu0 0.0
  %619 = vmatpush2.msra.mxu0 0.0
  %620 = vmatprep.subr.mxu0 0.0
  %621 = vmatpush2.msra.mxu0 0.0
  %622 = vmatprep.subr.mxu0 0.0
  %623 = vmatpush2.msra.mxu0 0.0
  %624 = vmatprep.subr.mxu0 0.0
  %625 = vmatpush2.msra.mxu0 0.0
  %626 = vmatprep.subr.mxu0 0.0
  %627 = vmatpush2.msra.mxu0 0.0
  %628 = vmatprep.subr.mxu0 0.0
  %629 = vmatpush2.msra.mxu0 0.0
  %630 = vmatprep.subr.mxu0 0.0
  %631 = vmatpush2.msra.mxu0 0.0
  %632 = vmatprep.subr.mxu0 0.0
  %633 = vmatpush2.msra.mxu0 0.0
  %634 = vmatprep.subr.mxu0 0.0
  %635 = vmatpush2.msra.mxu0 0.0
  %636 = vmatprep.subr.mxu0 0.0
  %637 = vmatpush2.msra.mxu0 0.0
  %638 = vmatprep.subr.mxu0 0.0
  %639 = vmatpush2.msra.mxu0 0.0
  %640 = vmatprep.subr.mxu0 0.0
  %641 = vmatpush2.msra.mxu0 0.0
  %642 = vmatprep.subr.mxu0 0.0
  %643 = vmatpush2.msra.mxu0 0.0
  %644 = vmatprep.mubr.f32.mxu0 0.0
  %645 = vmatmul.mubr.f32.gmra.mxu0 %v578
  %v646 = vpop.f32.mrf.mxu0
  %v647 = vadd.f32 0.0, %v646
  %v648 = vpop.f32.mrf.mxu0
  %649 = vdwg.mxu0
  %651 = vrot.lane.b32.xlu0 %v647, 16
  %v652 = vpop.permute.xlu0 %651
  %vm654 = vcmask 195712
  %655 = vst.msk [vmem:[#allocation2] sm:$0xff] %vm654, %v652
  %656 = vrot.lane.b32.xlu0 %v139, 104
  %v657 = vpop.permute.xlu0 %656
  %658 = vrot.lane.b32.xlu0 %v139, 72
  %v659 = vpop.permute.xlu0 %658
  %v660 = vsel %vm148, %v657, 0
  %v662 = vsel %vm148, %v659, 0
  %664 = vmatprep.subr.mxu0 0.0
  %665 = vmatpush1.xpose.msra.mxu0 0.0
  %666 = vmatprep.subr.mxu0 0.0
  %667 = vmatpush1.xpose.msra.mxu0 0.0
  %668 = vmatprep.subr.mxu0 0.0
  %669 = vmatpush1.xpose.msra.mxu0 0.0
  %670 = vmatprep.subr.mxu0 0.0
  %671 = vmatpush1.xpose.msra.mxu0 0.0
  %672 = vmatprep.subr.mxu0 0.0
  %673 = vmatpush1.xpose.msra.mxu0 0.0
  %674 = vmatprep.subr.mxu0 0.0
  %675 = vmatpush1.xpose.msra.mxu0 0.0
  %676 = vmatprep.subr.mxu0 0.0
  %677 = vmatpush1.xpose.msra.mxu0 0.0
  %678 = vmatprep.subr.mxu0 0.0
  %679 = vmatpush1.xpose.msra.mxu0 0.0
  %680 = vmatprep.subr.mxu0 0.0
  %681 = vmatpush1.xpose.msra.mxu0 0.0
  %682 = vmatprep.subr.mxu0 0.0
  %683 = vmatpush1.xpose.msra.mxu0 0.0
  %684 = vmatprep.subr.mxu0 0.0
  %685 = vmatpush1.xpose.msra.mxu0 0.0
  %686 = vmatprep.subr.mxu0 0.0
  %687 = vmatpush1.xpose.msra.mxu0 0.0
  %688 = vmatprep.subr.mxu0 0.0
  %689 = vmatpush1.xpose.msra.mxu0 0.0
  %690 = vmatprep.subr.mxu0 0.0
  %691 = vmatpush1.xpose.msra.mxu0 0.0
  %692 = vmatprep.subr.mxu0 0.0
  %693 = vmatpush1.xpose.msra.mxu0 0.0
  %694 = vmatprep.subr.mxu0 0.0
  %695 = vmatpush1.xpose.msra.mxu0 %v662
  %696 = vmatprep.subr.mxu0 0.0
  %697 = vmatpush2.xpose.msra.mxu0 0.0
  %698 = vmatprep.subr.mxu0 0.0
  %699 = vmatpush2.xpose.msra.mxu0 0.0
  %700 = vmatprep.subr.mxu0 0.0
  %701 = vmatpush2.xpose.msra.mxu0 0.0
  %702 = vmatprep.subr.mxu0 0.0
  %703 = vmatpush2.xpose.msra.mxu0 0.0
  %704 = vmatprep.subr.mxu0 0.0
  %705 = vmatpush2.xpose.msra.mxu0 0.0
  %706 = vmatprep.subr.mxu0 0.0
  %707 = vmatpush2.xpose.msra.mxu0 0.0
  %708 = vmatprep.subr.mxu0 0.0
  %709 = vmatpush2.xpose.msra.mxu0 0.0
  %710 = vmatprep.subr.mxu0 0.0
  %711 = vmatpush2.xpose.msra.mxu0 0.0
  %712 = vmatprep.subr.mxu0 0.0
  %713 = vmatpush2.xpose.msra.mxu0 0.0
  %714 = vmatprep.subr.mxu0 0.0
  %715 = vmatpush2.xpose.msra.mxu0 0.0
  %716 = vmatprep.subr.mxu0 0.0
  %717 = vmatpush2.xpose.msra.mxu0 0.0
  %718 = vmatprep.subr.mxu0 0.0
  %719 = vmatpush2.xpose.msra.mxu0 0.0
  %720 = vmatprep.subr.mxu0 0.0
  %721 = vmatpush2.xpose.msra.mxu0 0.0
  %722 = vmatprep.subr.mxu0 0.0
  %723 = vmatpush2.xpose.msra.mxu0 0.0
  %724 = vmatprep.subr.mxu0 0.0
  %725 = vmatpush2.xpose.msra.mxu0 0.0
  %726 = vmatprep.subr.mxu0 0.0
  %727 = vmatpush2.xpose.msra.mxu0 0.0
  %728 = vmatprep.mubr.f32.mxu0 0.0
  %729 = vmatmul.mubr.f32.gmra.mxu0 %v660
  %v730 = vpop.f32.mrf.mxu0
  %v731 = vadd.f32 0.0, %v730
  %v732 = vpop.f32.mrf.mxu0
  %733 = vdwg.mxu0
  %v734 = vmul.f32 %v731, 0.35355338
  %v735 = vsel %vm148, %v734, -inf
  %736 = vmax.xlane.f32.xlu0 %v735
  %v737 = vpop.xlane.xlu0 %736
  %v738 = vsub.f32 %v734, %v737
  %v739 = vmul.f32 %v738, 1.442695
  %v740 = vpow.pop %v739
  %v741 = vsel %vm148, %v740, 0.0
  %742 = vadd.xlane.f32.xlu0 %v741
  %v743 = vpop.xlane.xlu0 %742
  %v744 = vrcp.pop %v743
  %v745 = vmul.f32 %v740, %v744
  %746 = vrot.lane.b32.xlu0 %v139, 40
  %v747 = vpop.permute.xlu0 %746
  %v750 = vsel %vm148, %v745, 0
  %752 = vmatprep.subr.mxu0 0.0
  %753 = vmatpush1.msra.mxu0 0.0
  %754 = vmatprep.subr.mxu0 0.0
  %755 = vmatpush1.msra.mxu0 0.0
  %756 = vmatprep.subr.mxu0 0.0
  %757 = vmatpush1.msra.mxu0 0.0
  %758 = vmatprep.subr.mxu0 0.0
  %759 = vmatpush1.msra.mxu0 0.0
  %760 = vmatprep.subr.mxu0 0.0
  %761 = vmatpush1.msra.mxu0 0.0
  %762 = vmatprep.subr.mxu0 0.0
  %763 = vmatpush1.msra.mxu0 0.0
  %764 = vmatprep.subr.mxu0 0.0
  %765 = vmatpush1.msra.mxu0 0.0
  %766 = vmatprep.subr.mxu0 0.0
  %767 = vmatpush1.msra.mxu0 0.0
  %768 = vmatprep.subr.mxu0 0.0
  %769 = vmatpush1.msra.mxu0 0.0
  %770 = vmatprep.subr.mxu0 0.0
  %771 = vmatpush1.msra.mxu0 0.0
  %772 = vmatprep.subr.mxu0 0.0
  %773 = vmatpush1.msra.mxu0 0.0
  %774 = vmatprep.subr.mxu0 0.0
  %775 = vmatpush1.msra.mxu0 0.0
  %776 = vmatprep.subr.mxu0 0.0
  %777 = vmatpush1.msra.mxu0 0.0
  %778 = vmatprep.subr.mxu0 0.0
  %779 = vmatpush1.msra.mxu0 0.0
  %780 = vmatprep.subr.mxu0 0.0
  %781 = vmatpush1.msra.mxu0 0.0
  %782 = vmatprep.subr.mxu0 0.0
  %783 = vmatpush1.msra.mxu0 %v747
  %784 = vmatprep.subr.mxu0 0.0
  %785 = vmatpush2.msra.mxu0 0.0
  %786 = vmatprep.subr.mxu0 0.0
  %787 = vmatpush2.msra.mxu0 0.0
  %788 = vmatprep.subr.mxu0 0.0
  %789 = vmatpush2.msra.mxu0 0.0
  %790 = vmatprep.subr.mxu0 0.0
  %791 = vmatpush2.msra.mxu0 0.0
  %792 = vmatprep.subr.mxu0 0.0
  %793 = vmatpush2.msra.mxu0 0.0
  %794 = vmatprep.subr.mxu0 0.0
  %795 = vmatpush2.msra.mxu0 0.0
  %796 = vmatprep.subr.mxu0 0.0
  %797 = vmatpush2.msra.mxu0 0.0
  %798 = vmatprep.subr.mxu0 0.0
  %799 = vmatpush2.msra.mxu0 0.0
  %800 = vmatprep.subr.mxu0 0.0
  %801 = vmatpush2.msra.mxu0 0.0
  %802 = vmatprep.subr.mxu0 0.0
  %803 = vmatpush2.msra.mxu0 0.0
  %804 = vmatprep.subr.mxu0 0.0
  %805 = vmatpush2.msra.mxu0 0.0
  %806 = vmatprep.subr.mxu0 0.0
  %807 = vmatpush2.msra.mxu0 0.0
  %808 = vmatprep.subr.mxu0 0.0
  %809 = vmatpush2.msra.mxu0 0.0
  %810 = vmatprep.subr.mxu0 0.0
  %811 = vmatpush2.msra.mxu0 0.0
  %812 = vmatprep.subr.mxu0 0.0
  %813 = vmatpush2.msra.mxu0 0.0
  %814 = vmatprep.subr.mxu0 0.0
  %815 = vmatpush2.msra.mxu0 0.0
  %816 = vmatprep.mubr.f32.mxu0 0.0
  %817 = vmatmul.mubr.f32.gmra.mxu0 %v750
  %v818 = vpop.f32.mrf.mxu0
  %v819 = vadd.f32 0.0, %v818
  %v820 = vpop.f32.mrf.mxu0
  %821 = vdwg.mxu0
  %823 = vrot.lane.b32.xlu0 %v819, 24
  %v824 = vpop.permute.xlu0 %823
  %vm826 = vcmask 261312
  %827 = vst.msk [vmem:[#allocation2] sm:$0xff] %vm826, %v824
  %829 = vrot.lane.b32.xlu0 %v142, 96
  %v830 = vpop.permute.xlu0 %829
  %v831 = vsel %vm148, %v142, 0
  %v833 = vsel %vm148, %v830, 0
  %835 = vmatprep.subr.mxu0 0.0
  %836 = vmatpush1.xpose.msra.mxu0 0.0
  %837 = vmatprep.subr.mxu0 0.0
  %838 = vmatpush1.xpose.msra.mxu0 0.0
  %839 = vmatprep.subr.mxu0 0.0
  %840 = vmatpush1.xpose.msra.mxu0 0.0
  %841 = vmatprep.subr.mxu0 0.0
  %842 = vmatpush1.xpose.msra.mxu0 0.0
  %843 = vmatprep.subr.mxu0 0.0
  %844 = vmatpush1.xpose.msra.mxu0 0.0
  %845 = vmatprep.subr.mxu0 0.0
  %846 = vmatpush1.xpose.msra.mxu0 0.0
  %847 = vmatprep.subr.mxu0 0.0
  %848 = vmatpush1.xpose.msra.mxu0 0.0
  %849 = vmatprep.subr.mxu0 0.0
  %850 = vmatpush1.xpose.msra.mxu0 0.0
  %851 = vmatprep.subr.mxu0 0.0
  %852 = vmatpush1.xpose.msra.mxu0 0.0
  %853 = vmatprep.subr.mxu0 0.0
  %854 = vmatpush1.xpose.msra.mxu0 0.0
  %855 = vmatprep.subr.mxu0 0.0
  %856 = vmatpush1.xpose.msra.mxu0 0.0
  %857 = vmatprep.subr.mxu0 0.0
  %858 = vmatpush1.xpose.msra.mxu0 0.0
  %859 = vmatprep.subr.mxu0 0.0
  %860 = vmatpush1.xpose.msra.mxu0 0.0
  %861 = vmatprep.subr.mxu0 0.0
  %862 = vmatpush1.xpose.msra.mxu0 0.0
  %863 = vmatprep.subr.mxu0 0.0
  %864 = vmatpush1.xpose.msra.mxu0 0.0
  %865 = vmatprep.subr.mxu0 0.0
  %866 = vmatpush1.xpose.msra.mxu0 %v833
  %867 = vmatprep.subr.mxu0 0.0
  %868 = vmatpush2.xpose.msra.mxu0 0.0
  %869 = vmatprep.subr.mxu0 0.0
  %870 = vmatpush2.xpose.msra.mxu0 0.0
  %871 = vmatprep.subr.mxu0 0.0
  %872 = vmatpush2.xpose.msra.mxu0 0.0
  %873 = vmatprep.subr.mxu0 0.0
  %874 = vmatpush2.xpose.msra.mxu0 0.0
  %875 = vmatprep.subr.mxu0 0.0
  %876 = vmatpush2.xpose.msra.mxu0 0.0
  %877 = vmatprep.subr.mxu0 0.0
  %878 = vmatpush2.xpose.msra.mxu0 0.0
  %879 = vmatprep.subr.mxu0 0.0
  %880 = vmatpush2.xpose.msra.mxu0 0.0
  %881 = vmatprep.subr.mxu0 0.0
  %882 = vmatpush2.xpose.msra.mxu0 0.0
  %883 = vmatprep.subr.mxu0 0.0
  %884 = vmatpush2.xpose.msra.mxu0 0.0
  %885 = vmatprep.subr.mxu0 0.0
  %886 = vmatpush2.xpose.msra.mxu0 0.0
  %887 = vmatprep.subr.mxu0 0.0
  %888 = vmatpush2.xpose.msra.mxu0 0.0
  %889 = vmatprep.subr.mxu0 0.0
  %890 = vmatpush2.xpose.msra.mxu0 0.0
  %891 = vmatprep.subr.mxu0 0.0
  %892 = vmatpush2.xpose.msra.mxu0 0.0
  %893 = vmatprep.subr.mxu0 0.0
  %894 = vmatpush2.xpose.msra.mxu0 0.0
  %895 = vmatprep.subr.mxu0 0.0
  %896 = vmatpush2.xpose.msra.mxu0 0.0
  %897 = vmatprep.subr.mxu0 0.0
  %898 = vmatpush2.xpose.msra.mxu0 0.0
  %899 = vmatprep.mubr.f32.mxu0 0.0
  %900 = vmatmul.mubr.f32.gmra.mxu0 %v831
  %v901 = vpop.f32.mrf.mxu0
  %v902 = vadd.f32 0.0, %v901
  %v903 = vpop.f32.mrf.mxu0
  %904 = vdwg.mxu0
  %v905 = vmul.f32 %v902, 0.35355338
  %v906 = vsel %vm148, %v905, -inf
  %907 = vmax.xlane.f32.xlu0 %v906
  %v908 = vpop.xlane.xlu0 %907
  %v909 = vsub.f32 %v905, %v908
  %v910 = vmul.f32 %v909, 1.442695
  %v911 = vpow.pop %v910
  %v912 = vsel %vm148, %v911, 0.0
  %913 = vadd.xlane.f32.xlu0 %v912
  %v914 = vpop.xlane.xlu0 %913
  %v915 = vrcp.pop %v914
  %v916 = vmul.f32 %v911, %v915
  %917 = vrot.lane.b32.xlu0 %v142, 64
  %v918 = vpop.permute.xlu0 %917
  %v921 = vsel %vm148, %v916, 0
  %923 = vmatprep.subr.mxu0 0.0
  %924 = vmatpush1.msra.mxu0 0.0
  %925 = vmatprep.subr.mxu0 0.0
  %926 = vmatpush1.msra.mxu0 0.0
  %927 = vmatprep.subr.mxu0 0.0
  %928 = vmatpush1.msra.mxu0 0.0
  %929 = vmatprep.subr.mxu0 0.0
  %930 = vmatpush1.msra.mxu0 0.0
  %931 = vmatprep.subr.mxu0 0.0
  %932 = vmatpush1.msra.mxu0 0.0
  %933 = vmatprep.subr.mxu0 0.0
  %934 = vmatpush1.msra.mxu0 0.0
  %935 = vmatprep.subr.mxu0 0.0
  %936 = vmatpush1.msra.mxu0 0.0
  %937 = vmatprep.subr.mxu0 0.0
  %938 = vmatpush1.msra.mxu0 0.0
  %939 = vmatprep.subr.mxu0 0.0
  %940 = vmatpush1.msra.mxu0 0.0
  %941 = vmatprep.subr.mxu0 0.0
  %942 = vmatpush1.msra.mxu0 0.0
  %943 = vmatprep.subr.mxu0 0.0
  %944 = vmatpush1.msra.mxu0 0.0
  %945 = vmatprep.subr.mxu0 0.0
  %946 = vmatpush1.msra.mxu0 0.0
  %947 = vmatprep.subr.mxu0 0.0
  %948 = vmatpush1.msra.mxu0 0.0
  %949 = vmatprep.subr.mxu0 0.0
  %950 = vmatpush1.msra.mxu0 0.0
  %951 = vmatprep.subr.mxu0 0.0
  %952 = vmatpush1.msra.mxu0 0.0
  %953 = vmatprep.subr.mxu0 0.0
  %954 = vmatpush1.msra.mxu0 %v918
  %955 = vmatprep.subr.mxu0 0.0
  %956 = vmatpush2.msra.mxu0 0.0
  %957 = vmatprep.subr.mxu0 0.0
  %958 = vmatpush2.msra.mxu0 0.0
  %959 = vmatprep.subr.mxu0 0.0
  %960 = vmatpush2.msra.mxu0 0.0
  %961 = vmatprep.subr.mxu0 0.0
  %962 = vmatpush2.msra.mxu0 0.0
  %963 = vmatprep.subr.mxu0 0.0
  %964 = vmatpush2.msra.mxu0 0.0
  %965 = vmatprep.subr.mxu0 0.0
  %966 = vmatpush2.msra.mxu0 0.0
  %967 = vmatprep.subr.mxu0 0.0
  %968 = vmatpush2.msra.mxu0 0.0
  %969 = vmatprep.subr.mxu0 0.0
  %970 = vmatpush2.msra.mxu0 0.0
  %971 = vmatprep.subr.mxu0 0.0
  %972 = vmatpush2.msra.mxu0 0.0
  %973 = vmatprep.subr.mxu0 0.0
  %974 = vmatpush2.msra.mxu0 0.0
  %975 = vmatprep.subr.mxu0 0.0
  %976 = vmatpush2.msra.mxu0 0.0
  %977 = vmatprep.subr.mxu0 0.0
  %978 = vmatpush2.msra.mxu0 0.0
  %979 = vmatprep.subr.mxu0 0.0
  %980 = vmatpush2.msra.mxu0 0.0
  %981 = vmatprep.subr.mxu0 0.0
  %982 = vmatpush2.msra.mxu0 0.0
  %983 = vmatprep.subr.mxu0 0.0
  %984 = vmatpush2.msra.mxu0 0.0
  %985 = vmatprep.subr.mxu0 0.0
  %986 = vmatpush2.msra.mxu0 0.0
  %987 = vmatprep.mubr.f32.mxu0 0.0
  %988 = vmatmul.mubr.f32.gmra.mxu0 %v921
  %v989 = vpop.f32.mrf.mxu0
  %v990 = vadd.f32 0.0, %v989
  %v991 = vpop.f32.mrf.mxu0
  %992 = vdwg.mxu0
  %993 = vst.msk [vmem:[#allocation2 + $0x8] sm:$0xff] %vm148, %v990
  %994 = vrot.lane.b32.xlu0 %v142, 120
  %v995 = vpop.permute.xlu0 %994
  %996 = vrot.lane.b32.xlu0 %v142, 88
  %v997 = vpop.permute.xlu0 %996
  %v998 = vsel %vm148, %v995, 0
  %v1000 = vsel %vm148, %v997, 0
  %1002 = vmatprep.subr.mxu0 0.0
  %1003 = vmatpush1.xpose.msra.mxu0 0.0
  %1004 = vmatprep.subr.mxu0 0.0
  %1005 = vmatpush1.xpose.msra.mxu0 0.0
  %1006 = vmatprep.subr.mxu0 0.0
  %1007 = vmatpush1.xpose.msra.mxu0 0.0
  %1008 = vmatprep.subr.mxu0 0.0
  %1009 = vmatpush1.xpose.msra.mxu0 0.0
  %1010 = vmatprep.subr.mxu0 0.0
  %1011 = vmatpush1.xpose.msra.mxu0 0.0
  %1012 = vmatprep.subr.mxu0 0.0
  %1013 = vmatpush1.xpose.msra.mxu0 0.0
  %1014 = vmatprep.subr.mxu0 0.0
  %1015 = vmatpush1.xpose.msra.mxu0 0.0
  %1016 = vmatprep.subr.mxu0 0.0
  %1017 = vmatpush1.xpose.msra.mxu0 0.0
  %1018 = vmatprep.subr.mxu0 0.0
  %1019 = vmatpush1.xpose.msra.mxu0 0.0
  %1020 = vmatprep.subr.mxu0 0.0
  %1021 = vmatpush1.xpose.msra.mxu0 0.0
  %1022 = vmatprep.subr.mxu0 0.0
  %1023 = vmatpush1.xpose.msra.mxu0 0.0
  %1024 = vmatprep.subr.mxu0 0.0
  %1025 = vmatpush1.xpose.msra.mxu0 0.0
  %1026 = vmatprep.subr.mxu0 0.0
  %1027 = vmatpush1.xpose.msra.mxu0 0.0
  %1028 = vmatprep.subr.mxu0 0.0
  %1029 = vmatpush1.xpose.msra.mxu0 0.0
  %1030 = vmatprep.subr.mxu0 0.0
  %1031 = vmatpush1.xpose.msra.mxu0 0.0
  %1032 = vmatprep.subr.mxu0 0.0
  %1033 = vmatpush1.xpose.msra.mxu0 %v1000
  %1034 = vmatprep.subr.mxu0 0.0
  %1035 = vmatpush2.xpose.msra.mxu0 0.0
  %1036 = vmatprep.subr.mxu0 0.0
  %1037 = vmatpush2.xpose.msra.mxu0 0.0
  %1038 = vmatprep.subr.mxu0 0.0
  %1039 = vmatpush2.xpose.msra.mxu0 0.0
  %1040 = vmatprep.subr.mxu0 0.0
  %1041 = vmatpush2.xpose.msra.mxu0 0.0
  %1042 = vmatprep.subr.mxu0 0.0
  %1043 = vmatpush2.xpose.msra.mxu0 0.0
  %1044 = vmatprep.subr.mxu0 0.0
  %1045 = vmatpush2.xpose.msra.mxu0 0.0
  %1046 = vmatprep.subr.mxu0 0.0
  %1047 = vmatpush2.xpose.msra.mxu0 0.0
  %1048 = vmatprep.subr.mxu0 0.0
  %1049 = vmatpush2.xpose.msra.mxu0 0.0
  %1050 = vmatprep.subr.mxu0 0.0
  %1051 = vmatpush2.xpose.msra.mxu0 0.0
  %1052 = vmatprep.subr.mxu0 0.0
  %1053 = vmatpush2.xpose.msra.mxu0 0.0
  %1054 = vmatprep.subr.mxu0 0.0
  %1055 = vmatpush2.xpose.msra.mxu0 0.0
  %1056 = vmatprep.subr.mxu0 0.0
  %1057 = vmatpush2.xpose.msra.mxu0 0.0
  %1058 = vmatprep.subr.mxu0 0.0
  %1059 = vmatpush2.xpose.msra.mxu0 0.0
  %1060 = vmatprep.subr.mxu0 0.0
  %1061 = vmatpush2.xpose.msra.mxu0 0.0
  %1062 = vmatprep.subr.mxu0 0.0
  %1063 = vmatpush2.xpose.msra.mxu0 0.0
  %1064 = vmatprep.subr.mxu0 0.0
  %1065 = vmatpush2.xpose.msra.mxu0 0.0
  %1066 = vmatprep.mubr.f32.mxu0 0.0
  %1067 = vmatmul.mubr.f32.gmra.mxu0 %v998
  %v1068 = vpop.f32.mrf.mxu0
  %v1069 = vadd.f32 0.0, %v1068
  %v1070 = vpop.f32.mrf.mxu0
  %1071 = vdwg.mxu0
  %v1072 = vmul.f32 %v1069, 0.35355338
  %v1073 = vsel %vm148, %v1072, -inf
  %1074 = vmax.xlane.f32.xlu0 %v1073
  %v1075 = vpop.xlane.xlu0 %1074
  %v1076 = vsub.f32 %v1072, %v1075
  %v1077 = vmul.f32 %v1076, 1.442695
  %v1078 = vpow.pop %v1077
  %v1079 = vsel %vm148, %v1078, 0.0
  %1080 = vadd.xlane.f32.xlu0 %v1079
  %v1081 = vpop.xlane.xlu0 %1080
  %v1082 = vrcp.pop %v1081
  %v1083 = vmul.f32 %v1078, %v1082
  %1084 = vrot.lane.b32.xlu0 %v142, 56
  %v1085 = vpop.permute.xlu0 %1084
  %v1088 = vsel %vm148, %v1083, 0
  %1090 = vmatprep.subr.mxu0 0.0
  %1091 = vmatpush1.msra.mxu0 0.0
  %1092 = vmatprep.subr.mxu0 0.0
  %1093 = vmatpush1.msra.mxu0 0.0
  %1094 = vmatprep.subr.mxu0 0.0
  %1095 = vmatpush1.msra.mxu0 0.0
  %1096 = vmatprep.subr.mxu0 0.0
  %1097 = vmatpush1.msra.mxu0 0.0
  %1098 = vmatprep.subr.mxu0 0.0
  %1099 = vmatpush1.msra.mxu0 0.0
  %1100 = vmatprep.subr.mxu0 0.0
  %1101 = vmatpush1.msra.mxu0 0.0
  %1102 = vmatprep.subr.mxu0 0.0
  %1103 = vmatpush1.msra.mxu0 0.0
  %1104 = vmatprep.subr.mxu0 0.0
  %1105 = vmatpush1.msra.mxu0 0.0
  %1106 = vmatprep.subr.mxu0 0.0
  %1107 = vmatpush1.msra.mxu0 0.0
  %1108 = vmatprep.subr.mxu0 0.0
  %1109 = vmatpush1.msra.mxu0 0.0
  %1110 = vmatprep.subr.mxu0 0.0
  %1111 = vmatpush1.msra.mxu0 0.0
  %1112 = vmatprep.subr.mxu0 0.0
  %1113 = vmatpush1.msra.mxu0 0.0
  %1114 = vmatprep.subr.mxu0 0.0
  %1115 = vmatpush1.msra.mxu0 0.0
  %1116 = vmatprep.subr.mxu0 0.0
  %1117 = vmatpush1.msra.mxu0 0.0
  %1118 = vmatprep.subr.mxu0 0.0
  %1119 = vmatpush1.msra.mxu0 0.0
  %1120 = vmatprep.subr.mxu0 0.0
  %1121 = vmatpush1.msra.mxu0 %v1085
  %1122 = vmatprep.subr.mxu0 0.0
  %1123 = vmatpush2.msra.mxu0 0.0
  %1124 = vmatprep.subr.mxu0 0.0
  %1125 = vmatpush2.msra.mxu0 0.0
  %1126 = vmatprep.subr.mxu0 0.0
  %1127 = vmatpush2.msra.mxu0 0.0
  %1128 = vmatprep.subr.mxu0 0.0
  %1129 = vmatpush2.msra.mxu0 0.0
  %1130 = vmatprep.subr.mxu0 0.0
  %1131 = vmatpush2.msra.mxu0 0.0
  %1132 = vmatprep.subr.mxu0 0.0
  %1133 = vmatpush2.msra.mxu0 0.0
  %1134 = vmatprep.subr.mxu0 0.0
  %1135 = vmatpush2.msra.mxu0 0.0
  %1136 = vmatprep.subr.mxu0 0.0
  %1137 = vmatpush2.msra.mxu0 0.0
  %1138 = vmatprep.subr.mxu0 0.0
  %1139 = vmatpush2.msra.mxu0 0.0
  %1140 = vmatprep.subr.mxu0 0.0
  %1141 = vmatpush2.msra.mxu0 0.0
  %1142 = vmatprep.subr.mxu0 0.0
  %1143 = vmatpush2.msra.mxu0 0.0
  %1144 = vmatprep.subr.mxu0 0.0
  %1145 = vmatpush2.msra.mxu0 0.0
  %1146 = vmatprep.subr.mxu0 0.0
  %1147 = vmatpush2.msra.mxu0 0.0
  %1148 = vmatprep.subr.mxu0 0.0
  %1149 = vmatpush2.msra.mxu0 0.0
  %1150 = vmatprep.subr.mxu0 0.0
  %1151 = vmatpush2.msra.mxu0 0.0
  %1152 = vmatprep.subr.mxu0 0.0
  %1153 = vmatpush2.msra.mxu0 0.0
  %1154 = vmatprep.mubr.f32.mxu0 0.0
  %1155 = vmatmul.mubr.f32.gmra.mxu0 %v1088
  %v1156 = vpop.f32.mrf.mxu0
  %v1157 = vadd.f32 0.0, %v1156
  %v1158 = vpop.f32.mrf.mxu0
  %1159 = vdwg.mxu0
  %1161 = vrot.lane.b32.xlu0 %v1157, 8
  %v1162 = vpop.permute.xlu0 %1161
  %1164 = vst.msk [vmem:[#allocation2 + $0x8] sm:$0xff] %vm482, %v1162
  %1165 = vrot.lane.b32.xlu0 %v142, 112
  %v1166 = vpop.permute.xlu0 %1165
  %1167 = vrot.lane.b32.xlu0 %v142, 80
  %v1168 = vpop.permute.xlu0 %1167
  %v1169 = vsel %vm148, %v1166, 0
  %v1171 = vsel %vm148, %v1168, 0
  %1173 = vmatprep.subr.mxu0 0.0
  %1174 = vmatpush1.xpose.msra.mxu0 0.0
  %1175 = vmatprep.subr.mxu0 0.0
  %1176 = vmatpush1.xpose.msra.mxu0 0.0
  %1177 = vmatprep.subr.mxu0 0.0
  %1178 = vmatpush1.xpose.msra.mxu0 0.0
  %1179 = vmatprep.subr.mxu0 0.0
  %1180 = vmatpush1.xpose.msra.mxu0 0.0
  %1181 = vmatprep.subr.mxu0 0.0
  %1182 = vmatpush1.xpose.msra.mxu0 0.0
  %1183 = vmatprep.subr.mxu0 0.0
  %1184 = vmatpush1.xpose.msra.mxu0 0.0
  %1185 = vmatprep.subr.mxu0 0.0
  %1186 = vmatpush1.xpose.msra.mxu0 0.0
  %1187 = vmatprep.subr.mxu0 0.0
  %1188 = vmatpush1.xpose.msra.mxu0 0.0
  %1189 = vmatprep.subr.mxu0 0.0
  %1190 = vmatpush1.xpose.msra.mxu0 0.0
  %1191 = vmatprep.subr.mxu0 0.0
  %1192 = vmatpush1.xpose.msra.mxu0 0.0
  %1193 = vmatprep.subr.mxu0 0.0
  %1194 = vmatpush1.xpose.msra.mxu0 0.0
  %1195 = vmatprep.subr.mxu0 0.0
  %1196 = vmatpush1.xpose.msra.mxu0 0.0
  %1197 = vmatprep.subr.mxu0 0.0
  %1198 = vmatpush1.xpose.msra.mxu0 0.0
  %1199 = vmatprep.subr.mxu0 0.0
  %1200 = vmatpush1.xpose.msra.mxu0 0.0
  %1201 = vmatprep.subr.mxu0 0.0
  %1202 = vmatpush1.xpose.msra.mxu0 0.0
  %1203 = vmatprep.subr.mxu0 0.0
  %1204 = vmatpush1.xpose.msra.mxu0 %v1171
  %1205 = vmatprep.subr.mxu0 0.0
  %1206 = vmatpush2.xpose.msra.mxu0 0.0
  %1207 = vmatprep.subr.mxu0 0.0
  %1208 = vmatpush2.xpose.msra.mxu0 0.0
  %1209 = vmatprep.subr.mxu0 0.0
  %1210 = vmatpush2.xpose.msra.mxu0 0.0
  %1211 = vmatprep.subr.mxu0 0.0
  %1212 = vmatpush2.xpose.msra.mxu0 0.0
  %1213 = vmatprep.subr.mxu0 0.0
  %1214 = vmatpush2.xpose.msra.mxu0 0.0
  %1215 = vmatprep.subr.mxu0 0.0
  %1216 = vmatpush2.xpose.msra.mxu0 0.0
  %1217 = vmatprep.subr.mxu0 0.0
  %1218 = vmatpush2.xpose.msra.mxu0 0.0
  %1219 = vmatprep.subr.mxu0 0.0
  %1220 = vmatpush2.xpose.msra.mxu0 0.0
  %1221 = vmatprep.subr.mxu0 0.0
  %1222 = vmatpush2.xpose.msra.mxu0 0.0
  %1223 = vmatprep.subr.mxu0 0.0
  %1224 = vmatpush2.xpose.msra.mxu0 0.0
  %1225 = vmatprep.subr.mxu0 0.0
  %1226 = vmatpush2.xpose.msra.mxu0 0.0
  %1227 = vmatprep.subr.mxu0 0.0
  %1228 = vmatpush2.xpose.msra.mxu0 0.0
  %1229 = vmatprep.subr.mxu0 0.0
  %1230 = vmatpush2.xpose.msra.mxu0 0.0
  %1231 = vmatprep.subr.mxu0 0.0
  %1232 = vmatpush2.xpose.msra.mxu0 0.0
  %1233 = vmatprep.subr.mxu0 0.0
  %1234 = vmatpush2.xpose.msra.mxu0 0.0
  %1235 = vmatprep.subr.mxu0 0.0
  %1236 = vmatpush2.xpose.msra.mxu0 0.0
  %1237 = vmatprep.mubr.f32.mxu0 0.0
  %1238 = vmatmul.mubr.f32.gmra.mxu0 %v1169
  %v1239 = vpop.f32.mrf.mxu0
  %v1240 = vadd.f32 0.0, %v1239
  %v1241 = vpop.f32.mrf.mxu0
  %1242 = vdwg.mxu0
  %v1243 = vmul.f32 %v1240, 0.35355338
  %v1244 = vsel %vm148, %v1243, -inf
  %1245 = vmax.xlane.f32.xlu0 %v1244
  %v1246 = vpop.xlane.xlu0 %1245
  %v1247 = vsub.f32 %v1243, %v1246
  %v1248 = vmul.f32 %v1247, 1.442695
  %v1249 = vpow.pop %v1248
  %v1250 = vsel %vm148, %v1249, 0.0
  %1251 = vadd.xlane.f32.xlu0 %v1250
  %v1252 = vpop.xlane.xlu0 %1251
  %v1253 = vrcp.pop %v1252
  %v1254 = vmul.f32 %v1249, %v1253
  %1255 = vrot.lane.b32.xlu0 %v142, 48
  %v1256 = vpop.permute.xlu0 %1255
  %v1259 = vsel %vm148, %v1254, 0
  %1261 = vmatprep.subr.mxu0 0.0
  %1262 = vmatpush1.msra.mxu0 0.0
  %1263 = vmatprep.subr.mxu0 0.0
  %1264 = vmatpush1.msra.mxu0 0.0
  %1265 = vmatprep.subr.mxu0 0.0
  %1266 = vmatpush1.msra.mxu0 0.0
  %1267 = vmatprep.subr.mxu0 0.0
  %1268 = vmatpush1.msra.mxu0 0.0
  %1269 = vmatprep.subr.mxu0 0.0
  %1270 = vmatpush1.msra.mxu0 0.0
  %1271 = vmatprep.subr.mxu0 0.0
  %1272 = vmatpush1.msra.mxu0 0.0
  %1273 = vmatprep.subr.mxu0 0.0
  %1274 = vmatpush1.msra.mxu0 0.0
  %1275 = vmatprep.subr.mxu0 0.0
  %1276 = vmatpush1.msra.mxu0 0.0
  %1277 = vmatprep.subr.mxu0 0.0
  %1278 = vmatpush1.msra.mxu0 0.0
  %1279 = vmatprep.subr.mxu0 0.0
  %1280 = vmatpush1.msra.mxu0 0.0
  %1281 = vmatprep.subr.mxu0 0.0
  %1282 = vmatpush1.msra.mxu0 0.0
  %1283 = vmatprep.subr.mxu0 0.0
  %1284 = vmatpush1.msra.mxu0 0.0
  %1285 = vmatprep.subr.mxu0 0.0
  %1286 = vmatpush1.msra.mxu0 0.0
  %1287 = vmatprep.subr.mxu0 0.0
  %1288 = vmatpush1.msra.mxu0 0.0
  %1289 = vmatprep.subr.mxu0 0.0
  %1290 = vmatpush1.msra.mxu0 0.0
  %1291 = vmatprep.subr.mxu0 0.0
  %1292 = vmatpush1.msra.mxu0 %v1256
  %1293 = vmatprep.subr.mxu0 0.0
  %1294 = vmatpush2.msra.mxu0 0.0
  %1295 = vmatprep.subr.mxu0 0.0
  %1296 = vmatpush2.msra.mxu0 0.0
  %1297 = vmatprep.subr.mxu0 0.0
  %1298 = vmatpush2.msra.mxu0 0.0
  %1299 = vmatprep.subr.mxu0 0.0
  %1300 = vmatpush2.msra.mxu0 0.0
  %1301 = vmatprep.subr.mxu0 0.0
  %1302 = vmatpush2.msra.mxu0 0.0
  %1303 = vmatprep.subr.mxu0 0.0
  %1304 = vmatpush2.msra.mxu0 0.0
  %1305 = vmatprep.subr.mxu0 0.0
  %1306 = vmatpush2.msra.mxu0 0.0
  %1307 = vmatprep.subr.mxu0 0.0
  %1308 = vmatpush2.msra.mxu0 0.0
  %1309 = vmatprep.subr.mxu0 0.0
  %1310 = vmatpush2.msra.mxu0 0.0
  %1311 = vmatprep.subr.mxu0 0.0
  %1312 = vmatpush2.msra.mxu0 0.0
  %1313 = vmatprep.subr.mxu0 0.0
  %1314 = vmatpush2.msra.mxu0 0.0
  %1315 = vmatprep.subr.mxu0 0.0
  %1316 = vmatpush2.msra.mxu0 0.0
  %1317 = vmatprep.subr.mxu0 0.0
  %1318 = vmatpush2.msra.mxu0 0.0
  %1319 = vmatprep.subr.mxu0 0.0
  %1320 = vmatpush2.msra.mxu0 0.0
  %1321 = vmatprep.subr.mxu0 0.0
  %1322 = vmatpush2.msra.mxu0 0.0
  %1323 = vmatprep.subr.mxu0 0.0
  %1324 = vmatpush2.msra.mxu0 0.0
  %1325 = vmatprep.mubr.f32.mxu0 0.0
  %1326 = vmatmul.mubr.f32.gmra.mxu0 %v1259
  %v1327 = vpop.f32.mrf.mxu0
  %v1328 = vadd.f32 0.0, %v1327
  %v1329 = vpop.f32.mrf.mxu0
  %1330 = vdwg.mxu0
  %1332 = vrot.lane.b32.xlu0 %v1328, 16
  %v1333 = vpop.permute.xlu0 %1332
  %1335 = vst.msk [vmem:[#allocation2 + $0x8] sm:$0xff] %vm654, %v1333
  %1336 = vrot.lane.b32.xlu0 %v142, 104
  %v1337 = vpop.permute.xlu0 %1336
  %1338 = vrot.lane.b32.xlu0 %v142, 72
  %v1339 = vpop.permute.xlu0 %1338
  %v1340 = vsel %vm148, %v1337, 0
  %v1342 = vsel %vm148, %v1339, 0
  %1344 = vmatprep.subr.mxu0 0.0
  %1345 = vmatpush1.xpose.msra.mxu0 0.0
  %1346 = vmatprep.subr.mxu0 0.0
  %1347 = vmatpush1.xpose.msra.mxu0 0.0
  %1348 = vmatprep.subr.mxu0 0.0
  %1349 = vmatpush1.xpose.msra.mxu0 0.0
  %1350 = vmatprep.subr.mxu0 0.0
  %1351 = vmatpush1.xpose.msra.mxu0 0.0
  %1352 = vmatprep.subr.mxu0 0.0
  %1353 = vmatpush1.xpose.msra.mxu0 0.0
  %1354 = vmatprep.subr.mxu0 0.0
  %1355 = vmatpush1.xpose.msra.mxu0 0.0
  %1356 = vmatprep.subr.mxu0 0.0
  %1357 = vmatpush1.xpose.msra.mxu0 0.0
  %1358 = vmatprep.subr.mxu0 0.0
  %1359 = vmatpush1.xpose.msra.mxu0 0.0
  %1360 = vmatprep.subr.mxu0 0.0
  %1361 = vmatpush1.xpose.msra.mxu0 0.0
  %1362 = vmatprep.subr.mxu0 0.0
  %1363 = vmatpush1.xpose.msra.mxu0 0.0
  %1364 = vmatprep.subr.mxu0 0.0
  %1365 = vmatpush1.xpose.msra.mxu0 0.0
  %1366 = vmatprep.subr.mxu0 0.0
  %1367 = vmatpush1.xpose.msra.mxu0 0.0
  %1368 = vmatprep.subr.mxu0 0.0
  %1369 = vmatpush1.xpose.msra.mxu0 0.0
  %1370 = vmatprep.subr.mxu0 0.0
  %1371 = vmatpush1.xpose.msra.mxu0 0.0
  %1372 = vmatprep.subr.mxu0 0.0
  %1373 = vmatpush1.xpose.msra.mxu0 0.0
  %1374 = vmatprep.subr.mxu0 0.0
  %1375 = vmatpush1.xpose.msra.mxu0 %v1342
  %1376 = vmatprep.subr.mxu0 0.0
  %1377 = vmatpush2.xpose.msra.mxu0 0.0
  %1378 = vmatprep.subr.mxu0 0.0
  %1379 = vmatpush2.xpose.msra.mxu0 0.0
  %1380 = vmatprep.subr.mxu0 0.0
  %1381 = vmatpush2.xpose.msra.mxu0 0.0
  %1382 = vmatprep.subr.mxu0 0.0
  %1383 = vmatpush2.xpose.msra.mxu0 0.0
  %1384 = vmatprep.subr.mxu0 0.0
  %1385 = vmatpush2.xpose.msra.mxu0 0.0
  %1386 = vmatprep.subr.mxu0 0.0
  %1387 = vmatpush2.xpose.msra.mxu0 0.0
  %1388 = vmatprep.subr.mxu0 0.0
  %1389 = vmatpush2.xpose.msra.mxu0 0.0
  %1390 = vmatprep.subr.mxu0 0.0
  %1391 = vmatpush2.xpose.msra.mxu0 0.0
  %1392 = vmatprep.subr.mxu0 0.0
  %1393 = vmatpush2.xpose.msra.mxu0 0.0
  %1394 = vmatprep.subr.mxu0 0.0
  %1395 = vmatpush2.xpose.msra.mxu0 0.0
  %1396 = vmatprep.subr.mxu0 0.0
  %1397 = vmatpush2.xpose.msra.mxu0 0.0
  %1398 = vmatprep.subr.mxu0 0.0
  %1399 = vmatpush2.xpose.msra.mxu0 0.0
  %1400 = vmatprep.subr.mxu0 0.0
  %1401 = vmatpush2.xpose.msra.mxu0 0.0
  %1402 = vmatprep.subr.mxu0 0.0
  %1403 = vmatpush2.xpose.msra.mxu0 0.0
  %1404 = vmatprep.subr.mxu0 0.0
  %1405 = vmatpush2.xpose.msra.mxu0 0.0
  %1406 = vmatprep.subr.mxu0 0.0
  %1407 = vmatpush2.xpose.msra.mxu0 0.0
  %1408 = vmatprep.mubr.f32.mxu0 0.0
  %1409 = vmatmul.mubr.f32.gmra.mxu0 %v1340
  %v1410 = vpop.f32.mrf.mxu0
  %v1411 = vadd.f32 0.0, %v1410
  %v1412 = vpop.f32.mrf.mxu0
  %1413 = vdwg.mxu0
  %v1414 = vmul.f32 %v1411, 0.35355338
  %v1415 = vsel %vm148, %v1414, -inf
  %1416 = vmax.xlane.f32.xlu0 %v1415
  %v1417 = vpop.xlane.xlu0 %1416
  %v1418 = vsub.f32 %v1414, %v1417
  %v1419 = vmul.f32 %v1418, 1.442695
  %v1420 = vpow.pop %v1419
  %v1421 = vsel %vm148, %v1420, 0.0
  %1422 = vadd.xlane.f32.xlu0 %v1421
  %v1423 = vpop.xlane.xlu0 %1422
  %v1424 = vrcp.pop %v1423
  %v1425 = vmul.f32 %v1420, %v1424
  %1426 = vrot.lane.b32.xlu0 %v142, 40
  %v1427 = vpop.permute.xlu0 %1426
  %v1430 = vsel %vm148, %v1425, 0
  %1432 = vmatprep.subr.mxu0 0.0
  %1433 = vmatpush1.msra.mxu0 0.0
  %1434 = vmatprep.subr.mxu0 0.0
  %1435 = vmatpush1.msra.mxu0 0.0
  %1436 = vmatprep.subr.mxu0 0.0
  %1437 = vmatpush1.msra.mxu0 0.0
  %1438 = vmatprep.subr.mxu0 0.0
  %1439 = vmatpush1.msra.mxu0 0.0
  %1440 = vmatprep.subr.mxu0 0.0
  %1441 = vmatpush1.msra.mxu0 0.0
  %1442 = vmatprep.subr.mxu0 0.0
  %1443 = vmatpush1.msra.mxu0 0.0
  %1444 = vmatprep.subr.mxu0 0.0
  %1445 = vmatpush1.msra.mxu0 0.0
  %1446 = vmatprep.subr.mxu0 0.0
  %1447 = vmatpush1.msra.mxu0 0.0
  %1448 = vmatprep.subr.mxu0 0.0
  %1449 = vmatpush1.msra.mxu0 0.0
  %1450 = vmatprep.subr.mxu0 0.0
  %1451 = vmatpush1.msra.mxu0 0.0
  %1452 = vmatprep.subr.mxu0 0.0
  %1453 = vmatpush1.msra.mxu0 0.0
  %1454 = vmatprep.subr.mxu0 0.0
  %1455 = vmatpush1.msra.mxu0 0.0
  %1456 = vmatprep.subr.mxu0 0.0
  %1457 = vmatpush1.msra.mxu0 0.0
  %1458 = vmatprep.subr.mxu0 0.0
  %1459 = vmatpush1.msra.mxu0 0.0
  %1460 = vmatprep.subr.mxu0 0.0
  %1461 = vmatpush1.msra.mxu0 0.0
  %1462 = vmatprep.subr.mxu0 0.0
  %1463 = vmatpush1.msra.mxu0 %v1427
  %1464 = vmatprep.subr.mxu0 0.0
  %1465 = vmatpush2.msra.mxu0 0.0
  %1466 = vmatprep.subr.mxu0 0.0
  %1467 = vmatpush2.msra.mxu0 0.0
  %1468 = vmatprep.subr.mxu0 0.0
  %1469 = vmatpush2.msra.mxu0 0.0
  %1470 = vmatprep.subr.mxu0 0.0
  %1471 = vmatpush2.msra.mxu0 0.0
  %1472 = vmatprep.subr.mxu0 0.0
  %1473 = vmatpush2.msra.mxu0 0.0
  %1474 = vmatprep.subr.mxu0 0.0
  %1475 = vmatpush2.msra.mxu0 0.0
  %1476 = vmatprep.subr.mxu0 0.0
  %1477 = vmatpush2.msra.mxu0 0.0
  %1478 = vmatprep.subr.mxu0 0.0
  %1479 = vmatpush2.msra.mxu0 0.0
  %1480 = vmatprep.subr.mxu0 0.0
  %1481 = vmatpush2.msra.mxu0 0.0
  %1482 = vmatprep.subr.mxu0 0.0
  %1483 = vmatpush2.msra.mxu0 0.0
  %1484 = vmatprep.subr.mxu0 0.0
  %1485 = vmatpush2.msra.mxu0 0.0
  %1486 = vmatprep.subr.mxu0 0.0
  %1487 = vmatpush2.msra.mxu0 0.0
  %1488 = vmatprep.subr.mxu0 0.0
  %1489 = vmatpush2.msra.mxu0 0.0
  %1490 = vmatprep.subr.mxu0 0.0
  %1491 = vmatpush2.msra.mxu0 0.0
  %1492 = vmatprep.subr.mxu0 0.0
  %1493 = vmatpush2.msra.mxu0 0.0
  %1494 = vmatprep.subr.mxu0 0.0
  %1495 = vmatpush2.msra.mxu0 0.0
  %1496 = vmatprep.mubr.f32.mxu0 0.0
  %1497 = vmatmul.mubr.f32.gmra.mxu0 %v1430
  %v1498 = vpop.f32.mrf.mxu0
  %v1499 = vadd.f32 0.0, %v1498
  %v1500 = vpop.f32.mrf.mxu0
  %1501 = vdwg.mxu0
  %1503 = vrot.lane.b32.xlu0 %v1499, 24
  %v1504 = vpop.permute.xlu0 %1503
  %1506 = vst.msk [vmem:[#allocation2 + $0x8] sm:$0xff] %vm826, %v1504
  %v1507 = vld [vmem:[#allocation2] sm:$0xff]
  %v1508 = vld [vmem:[#allocation2 + $0x8] sm:$0xff]
  %v1509 = vld [vmem:[%s4] sm:$0xf]
  %v1510 = vld [vmem:[%s4 + $0x4] sm:$0xf]
  %v1511 = vld [vmem:[%s4 + $0x8] sm:$0xf]
  %v1512 = vld [vmem:[%s4 + $0xc] sm:$0xf]
  %v1513 = vpack.c.bf16 %v1508, %v1507
  %v1514 = vld [vmem:[%s5] sm:$0x1]
  %v1516 = vlaneseq
  %v1517 = vshrl.u32 %v1516, 7
  %v1518 = vsub.s32 0, %v1517
  %v1519 = vrot.slane %v1514, %v1518
  %v1525 = vunpack.c.l.b16 %v1509
  %v1526 = vunpack.c.l.b16 %v1510
  %v1527 = vunpack.c.l.b16 %v1511
  %v1528 = vunpack.c.l.b16 %v1512
  %v1529 = vpack.c.b16 %v1526, %v1525
  %v1530 = vpack.c.b16 %v1528, %v1527
  %v1534 = vsel %vm100, %v1513, 0
  %1536 = vmatprep.subr.bf16.mxu0 0
  %1537 = vmatpush1.bf16.msra.mxu0 0
  %1538 = vmatprep.subr.bf16.mxu0 0
  %1539 = vmatpush1.bf16.msra.mxu0 0
  %1540 = vmatprep.subr.bf16.mxu0 0
  %1541 = vmatpush1.bf16.msra.mxu0 0
  %1542 = vmatprep.subr.bf16.mxu0 0
  %1543 = vmatpush1.bf16.msra.mxu0 0
  %1544 = vmatprep.subr.bf16.mxu0 0
  %1545 = vmatpush1.bf16.msra.mxu0 0
  %1546 = vmatprep.subr.bf16.mxu0 0
  %1547 = vmatpush1.bf16.msra.mxu0 0
  %1548 = vmatprep.subr.bf16.mxu0 0
  %1549 = vmatpush1.bf16.msra.mxu0 %v1530
  %1550 = vmatprep.subr.bf16.mxu0 0
  %1551 = vmatpush1.bf16.msra.mxu0 %v1529
  %1552 = vmatprep.subr.bf16.mxu0 0
  %1553 = vmatpush2.bf16.msra.mxu0 0
  %1554 = vmatprep.subr.bf16.mxu0 0
  %1555 = vmatpush2.bf16.msra.mxu0 0
  %1556 = vmatprep.subr.bf16.mxu0 0
  %1557 = vmatpush2.bf16.msra.mxu0 0
  %1558 = vmatprep.subr.bf16.mxu0 0
  %1559 = vmatpush2.bf16.msra.mxu0 0
  %1560 = vmatprep.subr.bf16.mxu0 0
  %1561 = vmatpush2.bf16.msra.mxu0 0
  %1562 = vmatprep.subr.bf16.mxu0 0
  %1563 = vmatpush2.bf16.msra.mxu0 0
  %1564 = vmatprep.subr.bf16.mxu0 0
  %1565 = vmatpush2.bf16.msra.mxu0 0
  %1566 = vmatprep.subr.bf16.mxu0 0
  %1567 = vmatpush2.bf16.msra.mxu0 0
  %1568 = vmatprep.mubr.bf16.mxu0 0
  %1569 = vmatmul.mubr.bf16.gmra.mxu0 %v1534
  %v1570 = vpop.f32.mrf.mxu0
  %v1571 = vadd.f32 %v1519, %v1570
  %v1572 = vpop.f32.mrf.mxu0
  %v1573 = vpop.f32.mrf.mxu0
  %v1574 = vadd.f32 %v1519, %v1573
  %v1575 = vpop.f32.mrf.mxu0
  %1576 = vdwg.mxu0
  %v1577 = vld [vmem:[%s6] sm:$0x1]
  %v1578 = vld [vmem:[%s7] sm:$0x1]
  %v1579 = vadd.f32 %v1571, %v72
  %v1580 = vadd.f32 %v1574, %v73
  %v1581 = vsel %vm100, %v1579, 0.0
  %1582 = vadd.xlane.f32.xlu0 %v1581
  %v1583 = vpop.xlane.xlu0 %1582
  %v1584 = vsel %vm100, %v1580, 0.0
  %1585 = vadd.xlane.f32.xlu0 %v1584
  %v1586 = vpop.xlane.xlu0 %1585
  %v1587 = vrcp.pop 32.0
  %v1588 = vmul.f32 %v1583, %v1587
  %v1589 = vmul.f32 %v1586, %v1587
  %v1590 = vsub.f32 %v1579, %v1588
  %v1591 = vsub.f32 %v1580, %v1589
  %v1592 = vmul.f32 %v1590, %v1590
  %v1593 = vmul.f32 %v1591, %v1591
  %v1594 = vsel %vm100, %v1592, 0.0
  %1595 = vadd.xlane.f32.xlu0 %v1594
  %v1596 = vpop.xlane.xlu0 %1595
  %v1597 = vsel %vm100, %v1593, 0.0
  %1598 = vadd.xlane.f32.xlu0 %v1597
  %v1599 = vpop.xlane.xlu0 %1598
  %v1600 = vmul.f32 %v1596, %v1587
  %v1601 = vmul.f32 %v1599, %v1587
  %v1602 = vadd.f32 %v1600, 1e-05
  %v1603 = vadd.f32 %v1601, 1e-05
  %v1604 = vrsqrt.pop %v1602
  %v1605 = vrsqrt.pop %v1603
  %v1606 = vmul.f32 %v1590, %v1604
  %v1607 = vmul.f32 %v1591, %v1605
  %v1609 = vlaneseq
  %v1610 = vshrl.u32 %v1609, 7
  %v1611 = vsub.s32 0, %v1610
  %v1612 = vrot.slane %v1577, %v1611
  %v1614 = vmul.f32 %v1606, %v1612
  %v1615 = vmul.f32 %v1607, %v1612
  %v1617 = vlaneseq
  %v1618 = vshrl.u32 %v1617, 7
  %v1619 = vsub.s32 0, %v1618
  %v1620 = vrot.slane %v1578, %v1619
  %v1622 = vadd.f32 %v1614, %v1620
  %v1623 = vadd.f32 %v1615, %v1620
  %v1624 = vld [vmem:[%s8] sm:$0xf]
  %v1625 = vld [vmem:[%s8 + $0x4] sm:$0xf]
  %v1626 = vld [vmem:[%s8 + $0x8] sm:$0xf]
  %v1627 = vld [vmem:[%s8 + $0xc] sm:$0xf]
  %v1628 = vpack.c.bf16 %v1623, %v1622
  %v1629 = vld [vmem:[%s9] sm:$0x1]
  %v1631 = vlaneseq
  %v1632 = vshrl.u32 %v1631, 7
  %v1633 = vsub.s32 0, %v1632
  %v1634 = vrot.slane %v1629, %v1633
  %v1640 = vunpack.c.l.b16 %v1624
  %v1641 = vunpack.c.l.b16 %v1625
  %v1642 = vunpack.c.l.b16 %v1626
  %v1643 = vunpack.c.l.b16 %v1627
  %v1644 = vpack.c.b16 %v1641, %v1640
  %v1645 = vpack.c.b16 %v1643, %v1642
  %v1649 = vsel %vm100, %v1628, 0
  %1651 = vmatprep.subr.bf16.mxu0 0
  %1652 = vmatpush1.bf16.msra.mxu0 0
  %1653 = vmatprep.subr.bf16.mxu0 0
  %1654 = vmatpush1.bf16.msra.mxu0 0
  %1655 = vmatprep.subr.bf16.mxu0 0
  %1656 = vmatpush1.bf16.msra.mxu0 0
  %1657 = vmatprep.subr.bf16.mxu0 0
  %1658 = vmatpush1.bf16.msra.mxu0 0
  %1659 = vmatprep.subr.bf16.mxu0 0
  %1660 = vmatpush1.bf16.msra.mxu0 0
  %1661 = vmatprep.subr.bf16.mxu0 0
  %1662 = vmatpush1.bf16.msra.mxu0 0
  %1663 = vmatprep.subr.bf16.mxu0 0
  %1664 = vmatpush1.bf16.msra.mxu0 %v1645
  %1665 = vmatprep.subr.bf16.mxu0 0
  %1666 = vmatpush1.bf16.msra.mxu0 %v1644
  %1667 = vmatprep.subr.bf16.mxu0 0
  %1668 = vmatpush2.bf16.msra.mxu0 0
  %1669 = vmatprep.subr.bf16.mxu0 0
  %1670 = vmatpush2.bf16.msra.mxu0 0
  %1671 = vmatprep.subr.bf16.mxu0 0
  %1672 = vmatpush2.bf16.msra.mxu0 0
  %1673 = vmatprep.subr.bf16.mxu0 0
  %1674 = vmatpush2.bf16.msra.mxu0 0
  %1675 = vmatprep.subr.bf16.mxu0 0
  %1676 = vmatpush2.bf16.msra.mxu0 0
  %1677 = vmatprep.subr.bf16.mxu0 0
  %1678 = vmatpush2.bf16.msra.mxu0 0
  %1679 = vmatprep.subr.bf16.mxu0 0
  %1680 = vmatpush2.bf16.msra.mxu0 0
  %1681 = vmatprep.subr.bf16.mxu0 0
  %1682 = vmatpush2.bf16.msra.mxu0 0
  %1683 = vmatprep.mubr.bf16.mxu0 0
  %1684 = vmatmul.mubr.bf16.gmra.mxu0 %v1649
  %v1685 = vpop.f32.mrf.mxu0
  %v1686 = vadd.f32 %v1634, %v1685
  %v1687 = vpop.f32.mrf.mxu0
  %v1688 = vpop.f32.mrf.mxu0
  %v1689 = vadd.f32 %v1634, %v1688
  %v1690 = vpop.f32.mrf.mxu0
  %1691 = vdwg.mxu0
  %v1692 = vld [vmem:[%s10] sm:$0xf]
  %v1693 = vld [vmem:[%s10 + $0x4] sm:$0xf]
  %v1694 = vld [vmem:[%s10 + $0x8] sm:$0xf]
  %v1695 = vld [vmem:[%s10 + $0xc] sm:$0xf]
  %v1696 = vpack.c.bf16 %v75, %v74
  %v1697 = vld [vmem:[%s11] sm:$0x1]
  %v1699 = vlaneseq
  %v1700 = vshrl.u32 %v1699, 7
  %v1701 = vsub.s32 0, %v1700
  %v1702 = vrot.slane %v1697, %v1701
  %v1708 = vunpack.c.l.b16 %v1692
  %v1709 = vunpack.c.l.b16 %v1693
  %v1710 = vunpack.c.l.b16 %v1694
  %v1711 = vunpack.c.l.b16 %v1695
  %v1712 = vpack.c.b16 %v1709, %v1708
  %v1713 = vpack.c.b16 %v1711, %v1710
  %v1717 = vsel %vm100, %v1696, 0
  %1719 = vmatprep.subr.bf16.mxu0 0
  %1720 = vmatpush1.bf16.msra.mxu0 0
  %1721 = vmatprep.subr.bf16.mxu0 0
  %1722 = vmatpush1.bf16.msra.mxu0 0
  %1723 = vmatprep.subr.bf16.mxu0 0
  %1724 = vmatpush1.bf16.msra.mxu0 0
  %1725 = vmatprep.subr.bf16.mxu0 0
  %1726 = vmatpush1.bf16.msra.mxu0 0
  %1727 = vmatprep.subr.bf16.mxu0 0
  %1728 = vmatpush1.bf16.msra.mxu0 0
  %1729 = vmatprep.subr.bf16.mxu0 0
  %1730 = vmatpush1.bf16.msra.mxu0 0
  %1731 = vmatprep.subr.bf16.mxu0 0
  %1732 = vmatpush1.bf16.msra.mxu0 %v1713
  %1733 = vmatprep.subr.bf16.mxu0 0
  %1734 = vmatpush1.bf16.msra.mxu0 %v1712
  %1735 = vmatprep.subr.bf16.mxu0 0
  %1736 = vmatpush2.bf16.msra.mxu0 0
  %1737 = vmatprep.subr.bf16.mxu0 0
  %1738 = vmatpush2.bf16.msra.mxu0 0
  %1739 = vmatprep.subr.bf16.mxu0 0
  %1740 = vmatpush2.bf16.msra.mxu0 0
  %1741 = vmatprep.subr.bf16.mxu0 0
  %1742 = vmatpush2.bf16.msra.mxu0 0
  %1743 = vmatprep.subr.bf16.mxu0 0
  %1744 = vmatpush2.bf16.msra.mxu0 0
  %1745 = vmatprep.subr.bf16.mxu0 0
  %1746 = vmatpush2.bf16.msra.mxu0 0
  %1747 = vmatprep.subr.bf16.mxu0 0
  %1748 = vmatpush2.bf16.msra.mxu0 0
  %1749 = vmatprep.subr.bf16.mxu0 0
  %1750 = vmatpush2.bf16.msra.mxu0 0
  %1751 = vmatprep.mubr.bf16.mxu0 0
  %1752 = vmatmul.mubr.bf16.gmra.mxu0 %v1717
  %v1753 = vpop.f32.mrf.mxu0
  %v1754 = vadd.f32 %v1702, %v1753
  %v1755 = vpop.f32.mrf.mxu0
  %v1756 = vpop.f32.mrf.mxu0
  %v1757 = vadd.f32 %v1702, %v1756
  %v1758 = vpop.f32.mrf.mxu0
  %1759 = vdwg.mxu0
  %v1761 = vsel %vm148, %v1686, 0
  %v1764 = vsel %vm148, %v1754, 0
  %1766 = vmatprep.subr.mxu0 0.0
  %1767 = vmatpush1.xpose.msra.mxu0 0.0
  %1768 = vmatprep.subr.mxu0 0.0
  %1769 = vmatpush1.xpose.msra.mxu0 0.0
  %1770 = vmatprep.subr.mxu0 0.0
  %1771 = vmatpush1.xpose.msra.mxu0 0.0
  %1772 = vmatprep.subr.mxu0 0.0
  %1773 = vmatpush1.xpose.msra.mxu0 0.0
  %1774 = vmatprep.subr.mxu0 0.0
  %1775 = vmatpush1.xpose.msra.mxu0 0.0
  %1776 = vmatprep.subr.mxu0 0.0
  %1777 = vmatpush1.xpose.msra.mxu0 0.0
  %1778 = vmatprep.subr.mxu0 0.0
  %1779 = vmatpush1.xpose.msra.mxu0 0.0
  %1780 = vmatprep.subr.mxu0 0.0
  %1781 = vmatpush1.xpose.msra.mxu0 0.0
  %1782 = vmatprep.subr.mxu0 0.0
  %1783 = vmatpush1.xpose.msra.mxu0 0.0
  %1784 = vmatprep.subr.mxu0 0.0
  %1785 = vmatpush1.xpose.msra.mxu0 0.0
  %1786 = vmatprep.subr.mxu0 0.0
  %1787 = vmatpush1.xpose.msra.mxu0 0.0
  %1788 = vmatprep.subr.mxu0 0.0
  %1789 = vmatpush1.xpose.msra.mxu0 0.0
  %1790 = vmatprep.subr.mxu0 0.0
  %1791 = vmatpush1.xpose.msra.mxu0 0.0
  %1792 = vmatprep.subr.mxu0 0.0
  %1793 = vmatpush1.xpose.msra.mxu0 0.0
  %1794 = vmatprep.subr.mxu0 0.0
  %1795 = vmatpush1.xpose.msra.mxu0 0.0
  %1796 = vmatprep.subr.mxu0 0.0
  %1797 = vmatpush1.xpose.msra.mxu0 %v1764
  %1798 = vmatprep.subr.mxu0 0.0
  %1799 = vmatpush2.xpose.msra.mxu0 0.0
  %1800 = vmatprep.subr.mxu0 0.0
  %1801 = vmatpush2.xpose.msra.mxu0 0.0
  %1802 = vmatprep.subr.mxu0 0.0
  %1803 = vmatpush2.xpose.msra.mxu0 0.0
  %1804 = vmatprep.subr.mxu0 0.0
  %1805 = vmatpush2.xpose.msra.mxu0 0.0
  %1806 = vmatprep.subr.mxu0 0.0
  %1807 = vmatpush2.xpose.msra.mxu0 0.0
  %1808 = vmatprep.subr.mxu0 0.0
  %1809 = vmatpush2.xpose.msra.mxu0 0.0
  %1810 = vmatprep.subr.mxu0 0.0
  %1811 = vmatpush2.xpose.msra.mxu0 0.0
  %1812 = vmatprep.subr.mxu0 0.0
  %1813 = vmatpush2.xpose.msra.mxu0 0.0
  %1814 = vmatprep.subr.mxu0 0.0
  %1815 = vmatpush2.xpose.msra.mxu0 0.0
  %1816 = vmatprep.subr.mxu0 0.0
  %1817 = vmatpush2.xpose.msra.mxu0 0.0
  %1818 = vmatprep.subr.mxu0 0.0
  %1819 = vmatpush2.xpose.msra.mxu0 0.0
  %1820 = vmatprep.subr.mxu0 0.0
  %1821 = vmatpush2.xpose.msra.mxu0 0.0
  %1822 = vmatprep.subr.mxu0 0.0
  %1823 = vmatpush2.xpose.msra.mxu0 0.0
  %1824 = vmatprep.subr.mxu0 0.0
  %1825 = vmatpush2.xpose.msra.mxu0 0.0
  %1826 = vmatprep.subr.mxu0 0.0
  %1827 = vmatpush2.xpose.msra.mxu0 0.0
  %1828 = vmatprep.subr.mxu0 0.0
  %1829 = vmatpush2.xpose.msra.mxu0 0.0
  %1830 = vmatprep.mubr.f32.mxu0 0.0
  %1831 = vmatmul.mubr.f32.gmra.mxu0 %v1761
  %v1832 = vpop.f32.mrf.mxu0
  %v1833 = vadd.f32 0.0, %v1832
  %v1834 = vpop.f32.mrf.mxu0
  %1835 = vdwg.mxu0
  %v1836 = vmul.f32 %v1833, 0.35355338
  %v1837 = vsel %vm148, %v1836, -inf
  %1838 = vmax.xlane.f32.xlu0 %v1837
  %v1839 = vpop.xlane.xlu0 %1838
  %v1840 = vsub.f32 %v1836, %v1839
  %v1841 = vmul.f32 %v1840, 1.442695
  %v1842 = vpow.pop %v1841
  %v1843 = vsel %vm148, %v1842, 0.0
  %1844 = vadd.xlane.f32.xlu0 %v1843
  %v1845 = vpop.xlane.xlu0 %1844
  %v1846 = vrcp.pop %v1845
  %v1847 = vmul.f32 %v1842, %v1846
  %1848 = vrot.lane.b32.xlu0 %v1754, 96
  %v1849 = vpop.permute.xlu0 %1848
  %v1852 = vsel %vm148, %v1847, 0
  %1854 = vmatprep.subr.mxu0 0.0
  %1855 = vmatpush1.msra.mxu0 0.0
  %1856 = vmatprep.subr.mxu0 0.0
  %1857 = vmatpush1.msra.mxu0 0.0
  %1858 = vmatprep.subr.mxu0 0.0
  %1859 = vmatpush1.msra.mxu0 0.0
  %1860 = vmatprep.subr.mxu0 0.0
  %1861 = vmatpush1.msra.mxu0 0.0
  %1862 = vmatprep.subr.mxu0 0.0
  %1863 = vmatpush1.msra.mxu0 0.0
  %1864 = vmatprep.subr.mxu0 0.0
  %1865 = vmatpush1.msra.mxu0 0.0
  %1866 = vmatprep.subr.mxu0 0.0
  %1867 = vmatpush1.msra.mxu0 0.0
  %1868 = vmatprep.subr.mxu0 0.0
  %1869 = vmatpush1.msra.mxu0 0.0
  %1870 = vmatprep.subr.mxu0 0.0
  %1871 = vmatpush1.msra.mxu0 0.0
  %1872 = vmatprep.subr.mxu0 0.0
  %1873 = vmatpush1.msra.mxu0 0.0
  %1874 = vmatprep.subr.mxu0 0.0
  %1875 = vmatpush1.msra.mxu0 0.0
  %1876 = vmatprep.subr.mxu0 0.0
  %1877 = vmatpush1.msra.mxu0 0.0
  %1878 = vmatprep.subr.mxu0 0.0
  %1879 = vmatpush1.msra.mxu0 0.0
  %1880 = vmatprep.subr.mxu0 0.0
  %1881 = vmatpush1.msra.mxu0 0.0
  %1882 = vmatprep.subr.mxu0 0.0
  %1883 = vmatpush1.msra.mxu0 0.0
  %1884 = vmatprep.subr.mxu0 0.0
  %1885 = vmatpush1.msra.mxu0 %v1849
  %1886 = vmatprep.subr.mxu0 0.0
  %1887 = vmatpush2.msra.mxu0 0.0
  %1888 = vmatprep.subr.mxu0 0.0
  %1889 = vmatpush2.msra.mxu0 0.0
  %1890 = vmatprep.subr.mxu0 0.0
  %1891 = vmatpush2.msra.mxu0 0.0
  %1892 = vmatprep.subr.mxu0 0.0
  %1893 = vmatpush2.msra.mxu0 0.0
  %1894 = vmatprep.subr.mxu0 0.0
  %1895 = vmatpush2.msra.mxu0 0.0
  %1896 = vmatprep.subr.mxu0 0.0
  %1897 = vmatpush2.msra.mxu0 0.0
  %1898 = vmatprep.subr.mxu0 0.0
  %1899 = vmatpush2.msra.mxu0 0.0
  %1900 = vmatprep.subr.mxu0 0.0
  %1901 = vmatpush2.msra.mxu0 0.0
  %1902 = vmatprep.subr.mxu0 0.0
  %1903 = vmatpush2.msra.mxu0 0.0
  %1904 = vmatprep.subr.mxu0 0.0
  %1905 = vmatpush2.msra.mxu0 0.0
  %1906 = vmatprep.subr.mxu0 0.0
  %1907 = vmatpush2.msra.mxu0 0.0
  %1908 = vmatprep.subr.mxu0 0.0
  %1909 = vmatpush2.msra.mxu0 0.0
  %1910 = vmatprep.subr.mxu0 0.0
  %1911 = vmatpush2.msra.mxu0 0.0
  %1912 = vmatprep.subr.mxu0 0.0
  %1913 = vmatpush2.msra.mxu0 0.0
  %1914 = vmatprep.subr.mxu0 0.0
  %1915 = vmatpush2.msra.mxu0 0.0
  %1916 = vmatprep.subr.mxu0 0.0
  %1917 = vmatpush2.msra.mxu0 0.0
  %1918 = vmatprep.mubr.f32.mxu0 0.0
  %1919 = vmatmul.mubr.f32.gmra.mxu0 %v1852
  %v1920 = vpop.f32.mrf.mxu0
  %v1921 = vadd.f32 0.0, %v1920
  %v1922 = vpop.f32.mrf.mxu0
  %1923 = vdwg.mxu0
  %1924 = vst.msk [vmem:[#allocation2] sm:$0xff] %vm148, %v1921
  %1925 = vrot.lane.b32.xlu0 %v1686, 120
  %v1926 = vpop.permute.xlu0 %1925
  %1927 = vrot.lane.b32.xlu0 %v1754, 120
  %v1928 = vpop.permute.xlu0 %1927
  %v1929 = vsel %vm148, %v1926, 0
  %v1931 = vsel %vm148, %v1928, 0
  %1933 = vmatprep.subr.mxu0 0.0
  %1934 = vmatpush1.xpose.msra.mxu0 0.0
  %1935 = vmatprep.subr.mxu0 0.0
  %1936 = vmatpush1.xpose.msra.mxu0 0.0
  %1937 = vmatprep.subr.mxu0 0.0
  %1938 = vmatpush1.xpose.msra.mxu0 0.0
  %1939 = vmatprep.subr.mxu0 0.0
  %1940 = vmatpush1.xpose.msra.mxu0 0.0
  %1941 = vmatprep.subr.mxu0 0.0
  %1942 = vmatpush1.xpose.msra.mxu0 0.0
  %1943 = vmatprep.subr.mxu0 0.0
  %1944 = vmatpush1.xpose.msra.mxu0 0.0
  %1945 = vmatprep.subr.mxu0 0.0
  %1946 = vmatpush1.xpose.msra.mxu0 0.0
  %1947 = vmatprep.subr.mxu0 0.0
  %1948 = vmatpush1.xpose.msra.mxu0 0.0
  %1949 = vmatprep.subr.mxu0 0.0
  %1950 = vmatpush1.xpose.msra.mxu0 0.0
  %1951 = vmatprep.subr.mxu0 0.0
  %1952 = vmatpush1.xpose.msra.mxu0 0.0
  %1953 = vmatprep.subr.mxu0 0.0
  %1954 = vmatpush1.xpose.msra.mxu0 0.0
  %1955 = vmatprep.subr.mxu0 0.0
  %1956 = vmatpush1.xpose.msra.mxu0 0.0
  %1957 = vmatprep.subr.mxu0 0.0
  %1958 = vmatpush1.xpose.msra.mxu0 0.0
  %1959 = vmatprep.subr.mxu0 0.0
  %1960 = vmatpush1.xpose.msra.mxu0 0.0
  %1961 = vmatprep.subr.mxu0 0.0
  %1962 = vmatpush1.xpose.msra.mxu0 0.0
  %1963 = vmatprep.subr.mxu0 0.0
  %1964 = vmatpush1.xpose.msra.mxu0 %v1931
  %1965 = vmatprep.subr.mxu0 0.0
  %1966 = vmatpush2.xpose.msra.mxu0 0.0
  %1967 = vmatprep.subr.mxu0 0.0
  %1968 = vmatpush2.xpose.msra.mxu0 0.0
  %1969 = vmatprep.subr.mxu0 0.0
  %1970 = vmatpush2.xpose.msra.mxu0 0.0
  %1971 = vmatprep.subr.mxu0 0.0
  %1972 = vmatpush2.xpose.msra.mxu0 0.0
  %1973 = vmatprep.subr.mxu0 0.0
  %1974 = vmatpush2.xpose.msra.mxu0 0.0
  %1975 = vmatprep.subr.mxu0 0.0
  %1976 = vmatpush2.xpose.msra.mxu0 0.0
  %1977 = vmatprep.subr.mxu0 0.0
  %1978 = vmatpush2.xpose.msra.mxu0 0.0
  %1979 = vmatprep.subr.mxu0 0.0
  %1980 = vmatpush2.xpose.msra.mxu0 0.0
  %1981 = vmatprep.subr.mxu0 0.0
  %1982 = vmatpush2.xpose.msra.mxu0 0.0
  %1983 = vmatprep.subr.mxu0 0.0
  %1984 = vmatpush2.xpose.msra.mxu0 0.0
  %1985 = vmatprep.subr.mxu0 0.0
  %1986 = vmatpush2.xpose.msra.mxu0 0.0
  %1987 = vmatprep.subr.mxu0 0.0
  %1988 = vmatpush2.xpose.msra.mxu0 0.0
  %1989 = vmatprep.subr.mxu0 0.0
  %1990 = vmatpush2.xpose.msra.mxu0 0.0
  %1991 = vmatprep.subr.mxu0 0.0
  %1992 = vmatpush2.xpose.msra.mxu0 0.0
  %1993 = vmatprep.subr.mxu0 0.0
  %1994 = vmatpush2.xpose.msra.mxu0 0.0
  %1995 = vmatprep.subr.mxu0 0.0
  %1996 = vmatpush2.xpose.msra.mxu0 0.0
  %1997 = vmatprep.mubr.f32.mxu0 0.0
  %1998 = vmatmul.mubr.f32.gmra.mxu0 %v1929
  %v1999 = vpop.f32.mrf.mxu0
  %v2000 = vadd.f32 0.0, %v1999
  %v2001 = vpop.f32.mrf.mxu0
  %2002 = vdwg.mxu0
  %v2003 = vmul.f32 %v2000, 0.35355338
  %v2004 = vsel %vm148, %v2003, -inf
  %2005 = vmax.xlane.f32.xlu0 %v2004
  %v2006 = vpop.xlane.xlu0 %2005
  %v2007 = vsub.f32 %v2003, %v2006
  %v2008 = vmul.f32 %v2007, 1.442695
  %v2009 = vpow.pop %v2008
  %v2010 = vsel %vm148, %v2009, 0.0
  %2011 = vadd.xlane.f32.xlu0 %v2010
  %v2012 = vpop.xlane.xlu0 %2011
  %v2013 = vrcp.pop %v2012
  %v2014 = vmul.f32 %v2009, %v2013
  %2015 = vrot.lane.b32.xlu0 %v1754, 88
  %v2016 = vpop.permute.xlu0 %2015
  %v2019 = vsel %vm148, %v2014, 0
  %2021 = vmatprep.subr.mxu0 0.0
  %2022 = vmatpush1.msra.mxu0 0.0
  %2023 = vmatprep.subr.mxu0 0.0
  %2024 = vmatpush1.msra.mxu0 0.0
  %2025 = vmatprep.subr.mxu0 0.0
  %2026 = vmatpush1.msra.mxu0 0.0
  %2027 = vmatprep.subr.mxu0 0.0
  %2028 = vmatpush1.msra.mxu0 0.0
  %2029 = vmatprep.subr.mxu0 0.0
  %2030 = vmatpush1.msra.mxu0 0.0
  %2031 = vmatprep.subr.mxu0 0.0
  %2032 = vmatpush1.msra.mxu0 0.0
  %2033 = vmatprep.subr.mxu0 0.0
  %2034 = vmatpush1.msra.mxu0 0.0
  %2035 = vmatprep.subr.mxu0 0.0
  %2036 = vmatpush1.msra.mxu0 0.0
  %2037 = vmatprep.subr.mxu0 0.0
  %2038 = vmatpush1.msra.mxu0 0.0
  %2039 = vmatprep.subr.mxu0 0.0
  %2040 = vmatpush1.msra.mxu0 0.0
  %2041 = vmatprep.subr.mxu0 0.0
  %2042 = vmatpush1.msra.mxu0 0.0
  %2043 = vmatprep.subr.mxu0 0.0
  %2044 = vmatpush1.msra.mxu0 0.0
  %2045 = vmatprep.subr.mxu0 0.0
  %2046 = vmatpush1.msra.mxu0 0.0
  %2047 = vmatprep.subr.mxu0 0.0
  %2048 = vmatpush1.msra.mxu0 0.0
  %2049 = vmatprep.subr.mxu0 0.0
  %2050 = vmatpush1.msra.mxu0 0.0
  %2051 = vmatprep.subr.mxu0 0.0
  %2052 = vmatpush1.msra.mxu0 %v2016
  %2053 = vmatprep.subr.mxu0 0.0
  %2054 = vmatpush2.msra.mxu0 0.0
  %2055 = vmatprep.subr.mxu0 0.0
  %2056 = vmatpush2.msra.mxu0 0.0
  %2057 = vmatprep.subr.mxu0 0.0
  %2058 = vmatpush2.msra.mxu0 0.0
  %2059 = vmatprep.subr.mxu0 0.0
  %2060 = vmatpush2.msra.mxu0 0.0
  %2061 = vmatprep.subr.mxu0 0.0
  %2062 = vmatpush2.msra.mxu0 0.0
  %2063 = vmatprep.subr.mxu0 0.0
  %2064 = vmatpush2.msra.mxu0 0.0
  %2065 = vmatprep.subr.mxu0 0.0
  %2066 = vmatpush2.msra.mxu0 0.0
  %2067 = vmatprep.subr.mxu0 0.0
  %2068 = vmatpush2.msra.mxu0 0.0
  %2069 = vmatprep.subr.mxu0 0.0
  %2070 = vmatpush2.msra.mxu0 0.0
  %2071 = vmatprep.subr.mxu0 0.0
  %2072 = vmatpush2.msra.mxu0 0.0
  %2073 = vmatprep.subr.mxu0 0.0
  %2074 = vmatpush2.msra.mxu0 0.0
  %2075 = vmatprep.subr.mxu0 0.0
  %2076 = vmatpush2.msra.mxu0 0.0
  %2077 = vmatprep.subr.mxu0 0.0
  %2078 = vmatpush2.msra.mxu0 0.0
  %2079 = vmatprep.subr.mxu0 0.0
  %2080 = vmatpush2.msra.mxu0 0.0
  %2081 = vmatprep.subr.mxu0 0.0
  %2082 = vmatpush2.msra.mxu0 0.0
  %2083 = vmatprep.subr.mxu0 0.0
  %2084 = vmatpush2.msra.mxu0 0.0
  %2085 = vmatprep.mubr.f32.mxu0 0.0
  %2086 = vmatmul.mubr.f32.gmra.mxu0 %v2019
  %v2087 = vpop.f32.mrf.mxu0
  %v2088 = vadd.f32 0.0, %v2087
  %v2089 = vpop.f32.mrf.mxu0
  %2090 = vdwg.mxu0
  %2092 = vrot.lane.b32.xlu0 %v2088, 8
  %v2093 = vpop.permute.xlu0 %2092
  %2095 = vst.msk [vmem:[#allocation2] sm:$0xff] %vm482, %v2093
  %2096 = vrot.lane.b32.xlu0 %v1686, 112
  %v2097 = vpop.permute.xlu0 %2096
  %2098 = vrot.lane.b32.xlu0 %v1754, 112
  %v2099 = vpop.permute.xlu0 %2098
  %v2100 = vsel %vm148, %v2097, 0
  %v2102 = vsel %vm148, %v2099, 0
  %2104 = vmatprep.subr.mxu0 0.0
  %2105 = vmatpush1.xpose.msra.mxu0 0.0
  %2106 = vmatprep.subr.mxu0 0.0
  %2107 = vmatpush1.xpose.msra.mxu0 0.0
  %2108 = vmatprep.subr.mxu0 0.0
  %2109 = vmatpush1.xpose.msra.mxu0 0.0
  %2110 = vmatprep.subr.mxu0 0.0
  %2111 = vmatpush1.xpose.msra.mxu0 0.0
  %2112 = vmatprep.subr.mxu0 0.0
  %2113 = vmatpush1.xpose.msra.mxu0 0.0
  %2114 = vmatprep.subr.mxu0 0.0
  %2115 = vmatpush1.xpose.msra.mxu0 0.0
  %2116 = vmatprep.subr.mxu0 0.0
  %2117 = vmatpush1.xpose.msra.mxu0 0.0
  %2118 = vmatprep.subr.mxu0 0.0
  %2119 = vmatpush1.xpose.msra.mxu0 0.0
  %2120 = vmatprep.subr.mxu0 0.0
  %2121 = vmatpush1.xpose.msra.mxu0 0.0
  %2122 = vmatprep.subr.mxu0 0.0
  %2123 = vmatpush1.xpose.msra.mxu0 0.0
  %2124 = vmatprep.subr.mxu0 0.0
  %2125 = vmatpush1.xpose.msra.mxu0 0.0
  %2126 = vmatprep.subr.mxu0 0.0
  %2127 = vmatpush1.xpose.msra.mxu0 0.0
  %2128 = vmatprep.subr.mxu0 0.0
  %2129 = vmatpush1.xpose.msra.mxu0 0.0
  %2130 = vmatprep.subr.mxu0 0.0
  %2131 = vmatpush1.xpose.msra.mxu0 0.0
  %2132 = vmatprep.subr.mxu0 0.0
  %2133 = vmatpush1.xpose.msra.mxu0 0.0
  %2134 = vmatprep.subr.mxu0 0.0
  %2135 = vmatpush1.xpose.msra.mxu0 %v2102
  %2136 = vmatprep.subr.mxu0 0.0
  %2137 = vmatpush2.xpose.msra.mxu0 0.0
  %2138 = vmatprep.subr.mxu0 0.0
  %2139 = vmatpush2.xpose.msra.mxu0 0.0
  %2140 = vmatprep.subr.mxu0 0.0
  %2141 = vmatpush2.xpose.msra.mxu0 0.0
  %2142 = vmatprep.subr.mxu0 0.0
  %2143 = vmatpush2.xpose.msra.mxu0 0.0
  %2144 = vmatprep.subr.mxu0 0.0
  %2145 = vmatpush2.xpose.msra.mxu0 0.0
  %2146 = vmatprep.subr.mxu0 0.0
  %2147 = vmatpush2.xpose.msra.mxu0 0.0
  %2148 = vmatprep.subr.mxu0 0.0
  %2149 = vmatpush2.xpose.msra.mxu0 0.0
  %2150 = vmatprep.subr.mxu0 0.0
  %2151 = vmatpush2.xpose.msra.mxu0 0.0
  %2152 = vmatprep.subr.mxu0 0.0
  %2153 = vmatpush2.xpose.msra.mxu0 0.0
  %2154 = vmatprep.subr.mxu0 0.0
  %2155 = vmatpush2.xpose.msra.mxu0 0.0
  %2156 = vmatprep.subr.mxu0 0.0
  %2157 = vmatpush2.xpose.msra.mxu0 0.0
  %2158 = vmatprep.subr.mxu0 0.0
  %2159 = vmatpush2.xpose.msra.mxu0 0.0
  %2160 = vmatprep.subr.mxu0 0.0
  %2161 = vmatpush2.xpose.msra.mxu0 0.0
  %2162 = vmatprep.subr.mxu0 0.0
  %2163 = vmatpush2.xpose.msra.mxu0 0.0
  %2164 = vmatprep.subr.mxu0 0.0
  %2165 = vmatpush2.xpose.msra.mxu0 0.0
  %2166 = vmatprep.subr.mxu0 0.0
  %2167 = vmatpush2.xpose.msra.mxu0 0.0
  %2168 = vmatprep.mubr.f32.mxu0 0.0
  %2169 = vmatmul.mubr.f32.gmra.mxu0 %v2100
  %v2170 = vpop.f32.mrf.mxu0
  %v2171 = vadd.f32 0.0, %v2170
  %v2172 = vpop.f32.mrf.mxu0
  %2173 = vdwg.mxu0
  %v2174 = vmul.f32 %v2171, 0.35355338
  %v2175 = vsel %vm148, %v2174, -inf
  %2176 = vmax.xlane.f32.xlu0 %v2175
  %v2177 = vpop.xlane.xlu0 %2176
  %v2178 = vsub.f32 %v2174, %v2177
  %v2179 = vmul.f32 %v2178, 1.442695
  %v2180 = vpow.pop %v2179
  %v2181 = vsel %vm148, %v2180, 0.0
  %2182 = vadd.xlane.f32.xlu0 %v2181
  %v2183 = vpop.xlane.xlu0 %2182
  %v2184 = vrcp.pop %v2183
  %v2185 = vmul.f32 %v2180, %v2184
  %2186 = vrot.lane.b32.xlu0 %v1754, 80
  %v2187 = vpop.permute.xlu0 %2186
  %v2190 = vsel %vm148, %v2185, 0
  %2192 = vmatprep.subr.mxu0 0.0
  %2193 = vmatpush1.msra.mxu0 0.0
  %2194 = vmatprep.subr.mxu0 0.0
  %2195 = vmatpush1.msra.mxu0 0.0
  %2196 = vmatprep.subr.mxu0 0.0
  %2197 = vmatpush1.msra.mxu0 0.0
  %2198 = vmatprep.subr.mxu0 0.0
  %2199 = vmatpush1.msra.mxu0 0.0
  %2200 = vmatprep.subr.mxu0 0.0
  %2201 = vmatpush1.msra.mxu0 0.0
  %2202 = vmatprep.subr.mxu0 0.0
  %2203 = vmatpush1.msra.mxu0 0.0
  %2204 = vmatprep.subr.mxu0 0.0
  %2205 = vmatpush1.msra.mxu0 0.0
  %2206 = vmatprep.subr.mxu0 0.0
  %2207 = vmatpush1.msra.mxu0 0.0
  %2208 = vmatprep.subr.mxu0 0.0
  %2209 = vmatpush1.msra.mxu0 0.0
  %2210 = vmatprep.subr.mxu0 0.0
  %2211 = vmatpush1.msra.mxu0 0.0
  %2212 = vmatprep.subr.mxu0 0.0
  %2213 = vmatpush1.msra.mxu0 0.0
  %2214 = vmatprep.subr.mxu0 0.0
  %2215 = vmatpush1.msra.mxu0 0.0
  %2216 = vmatprep.subr.mxu0 0.0
  %2217 = vmatpush1.msra.mxu0 0.0
  %2218 = vmatprep.subr.mxu0 0.0
  %2219 = vmatpush1.msra.mxu0 0.0
  %2220 = vmatprep.subr.mxu0 0.0
  %2221 = vmatpush1.msra.mxu0 0.0
  %2222 = vmatprep.subr.mxu0 0.0
  %2223 = vmatpush1.msra.mxu0 %v2187
  %2224 = vmatprep.subr.mxu0 0.0
  %2225 = vmatpush2.msra.mxu0 0.0
  %2226 = vmatprep.subr.mxu0 0.0
  %2227 = vmatpush2.msra.mxu0 0.0
  %2228 = vmatprep.subr.mxu0 0.0
  %2229 = vmatpush2.msra.mxu0 0.0
  %2230 = vmatprep.subr.mxu0 0.0
  %2231 = vmatpush2.msra.mxu0 0.0
  %2232 = vmatprep.subr.mxu0 0.0
  %2233 = vmatpush2.msra.mxu0 0.0
  %2234 = vmatprep.subr.mxu0 0.0
  %2235 = vmatpush2.msra.mxu0 0.0
  %2236 = vmatprep.subr.mxu0 0.0
  %2237 = vmatpush2.msra.mxu0 0.0
  %2238 = vmatprep.subr.mxu0 0.0
  %2239 = vmatpush2.msra.mxu0 0.0
  %2240 = vmatprep.subr.mxu0 0.0
  %2241 = vmatpush2.msra.mxu0 0.0
  %2242 = vmatprep.subr.mxu0 0.0
  %2243 = vmatpush2.msra.mxu0 0.0
  %2244 = vmatprep.subr.mxu0 0.0
  %2245 = vmatpush2.msra.mxu0 0.0
  %2246 = vmatprep.subr.mxu0 0.0
  %2247 = vmatpush2.msra.mxu0 0.0
  %2248 = vmatprep.subr.mxu0 0.0
  %2249 = vmatpush2.msra.mxu0 0.0
  %2250 = vmatprep.subr.mxu0 0.0
  %2251 = vmatpush2.msra.mxu0 0.0
  %2252 = vmatprep.subr.mxu0 0.0
  %2253 = vmatpush2.msra.mxu0 0.0
  %2254 = vmatprep.subr.mxu0 0.0
  %2255 = vmatpush2.msra.mxu0 0.0
  %2256 = vmatprep.mubr.f32.mxu0 0.0
  %2257 = vmatmul.mubr.f32.gmra.mxu0 %v2190
  %v2258 = vpop.f32.mrf.mxu0
  %v2259 = vadd.f32 0.0, %v2258
  %v2260 = vpop.f32.mrf.mxu0
  %2261 = vdwg.mxu0
  %2263 = vrot.lane.b32.xlu0 %v2259, 16
  %v2264 = vpop.permute.xlu0 %2263
  %2266 = vst.msk [vmem:[#allocation2] sm:$0xff] %vm654, %v2264
  %2267 = vrot.lane.b32.xlu0 %v1686, 104
  %v2268 = vpop.permute.xlu0 %2267
  %2269 = vrot.lane.b32.xlu0 %v1754, 104
  %v2270 = vpop.permute.xlu0 %2269
  %v2271 = vsel %vm148, %v2268, 0
  %v2273 = vsel %vm148, %v2270, 0
  %2275 = vmatprep.subr.mxu0 0.0
  %2276 = vmatpush1.xpose.msra.mxu0 0.0
  %2277 = vmatprep.subr.mxu0 0.0
  %2278 = vmatpush1.xpose.msra.mxu0 0.0
  %2279 = vmatprep.subr.mxu0 0.0
  %2280 = vmatpush1.xpose.msra.mxu0 0.0
  %2281 = vmatprep.subr.mxu0 0.0
  %2282 = vmatpush1.xpose.msra.mxu0 0.0
  %2283 = vmatprep.subr.mxu0 0.0
  %2284 = vmatpush1.xpose.msra.mxu0 0.0
  %2285 = vmatprep.subr.mxu0 0.0
  %2286 = vmatpush1.xpose.msra.mxu0 0.0
  %2287 = vmatprep.subr.mxu0 0.0
  %2288 = vmatpush1.xpose.msra.mxu0 0.0
  %2289 = vmatprep.subr.mxu0 0.0
  %2290 = vmatpush1.xpose.msra.mxu0 0.0
  %2291 = vmatprep.subr.mxu0 0.0
  %2292 = vmatpush1.xpose.msra.mxu0 0.0
  %2293 = vmatprep.subr.mxu0 0.0
  %2294 = vmatpush1.xpose.msra.mxu0 0.0
  %2295 = vmatprep.subr.mxu0 0.0
  %2296 = vmatpush1.xpose.msra.mxu0 0.0
  %2297 = vmatprep.subr.mxu0 0.0
  %2298 = vmatpush1.xpose.msra.mxu0 0.0
  %2299 = vmatprep.subr.mxu0 0.0
  %2300 = vmatpush1.xpose.msra.mxu0 0.0
  %2301 = vmatprep.subr.mxu0 0.0
  %2302 = vmatpush1.xpose.msra.mxu0 0.0
  %2303 = vmatprep.subr.mxu0 0.0
  %2304 = vmatpush1.xpose.msra.mxu0 0.0
  %2305 = vmatprep.subr.mxu0 0.0
  %2306 = vmatpush1.xpose.msra.mxu0 %v2273
  %2307 = vmatprep.subr.mxu0 0.0
  %2308 = vmatpush2.xpose.msra.mxu0 0.0
  %2309 = vmatprep.subr.mxu0 0.0
  %2310 = vmatpush2.xpose.msra.mxu0 0.0
  %2311 = vmatprep.subr.mxu0 0.0
  %2312 = vmatpush2.xpose.msra.mxu0 0.0
  %2313 = vmatprep.subr.mxu0 0.0
  %2314 = vmatpush2.xpose.msra.mxu0 0.0
  %2315 = vmatprep.subr.mxu0 0.0
  %2316 = vmatpush2.xpose.msra.mxu0 0.0
  %2317 = vmatprep.subr.mxu0 0.0
  %2318 = vmatpush2.xpose.msra.mxu0 0.0
  %2319 = vmatprep.subr.mxu0 0.0
  %2320 = vmatpush2.xpose.msra.mxu0 0.0
  %2321 = vmatprep.subr.mxu0 0.0
  %2322 = vmatpush2.xpose.msra.mxu0 0.0
  %2323 = vmatprep.subr.mxu0 0.0
  %2324 = vmatpush2.xpose.msra.mxu0 0.0
  %2325 = vmatprep.subr.mxu0 0.0
  %2326 = vmatpush2.xpose.msra.mxu0 0.0
  %2327 = vmatprep.subr.mxu0 0.0
  %2328 = vmatpush2.xpose.msra.mxu0 0.0
  %2329 = vmatprep.subr.mxu0 0.0
  %2330 = vmatpush2.xpose.msra.mxu0 0.0
  %2331 = vmatprep.subr.mxu0 0.0
  %2332 = vmatpush2.xpose.msra.mxu0 0.0
  %2333 = vmatprep.subr.mxu0 0.0
  %2334 = vmatpush2.xpose.msra.mxu0 0.0
  %2335 = vmatprep.subr.mxu0 0.0
  %2336 = vmatpush2.xpose.msra.mxu0 0.0
  %2337 = vmatprep.subr.mxu0 0.0
  %2338 = vmatpush2.xpose.msra.mxu0 0.0
  %2339 = vmatprep.mubr.f32.mxu0 0.0
  %2340 = vmatmul.mubr.f32.gmra.mxu0 %v2271
  %v2341 = vpop.f32.mrf.mxu0
  %v2342 = vadd.f32 0.0, %v2341
  %v2343 = vpop.f32.mrf.mxu0
  %2344 = vdwg.mxu0
  %v2345 = vmul.f32 %v2342, 0.35355338
  %v2346 = vsel %vm148, %v2345, -inf
  %2347 = vmax.xlane.f32.xlu0 %v2346
  %v2348 = vpop.xlane.xlu0 %2347
  %v2349 = vsub.f32 %v2345, %v2348
  %v2350 = vmul.f32 %v2349, 1.442695
  %v2351 = vpow.pop %v2350
  %v2352 = vsel %vm148, %v2351, 0.0
  %2353 = vadd.xlane.f32.xlu0 %v2352
  %v2354 = vpop.xlane.xlu0 %2353
  %v2355 = vrcp.pop %v2354
  %v2356 = vmul.f32 %v2351, %v2355
  %2357 = vrot.lane.b32.xlu0 %v1754, 72
  %v2358 = vpop.permute.xlu0 %2357
  %v2361 = vsel %vm148, %v2356, 0
  %2363 = vmatprep.subr.mxu0 0.0
  %2364 = vmatpush1.msra.mxu0 0.0
  %2365 = vmatprep.subr.mxu0 0.0
  %2366 = vmatpush1.msra.mxu0 0.0
  %2367 = vmatprep.subr.mxu0 0.0
  %2368 = vmatpush1.msra.mxu0 0.0
  %2369 = vmatprep.subr.mxu0 0.0
  %2370 = vmatpush1.msra.mxu0 0.0
  %2371 = vmatprep.subr.mxu0 0.0
  %2372 = vmatpush1.msra.mxu0 0.0
  %2373 = vmatprep.subr.mxu0 0.0
  %2374 = vmatpush1.msra.mxu0 0.0
  %2375 = vmatprep.subr.mxu0 0.0
  %2376 = vmatpush1.msra.mxu0 0.0
  %2377 = vmatprep.subr.mxu0 0.0
  %2378 = vmatpush1.msra.mxu0 0.0
  %2379 = vmatprep.subr.mxu0 0.0
  %2380 = vmatpush1.msra.mxu0 0.0
  %2381 = vmatprep.subr.mxu0 0.0
  %2382 = vmatpush1.msra.mxu0 0.0
  %2383 = vmatprep.subr.mxu0 0.0
  %2384 = vmatpush1.msra.mxu0 0.0
  %2385 = vmatprep.subr.mxu0 0.0
  %2386 = vmatpush1.msra.mxu0 0.0
  %2387 = vmatprep.subr.mxu0 0.0
  %2388 = vmatpush1.msra.mxu0 0.0
  %2389 = vmatprep.subr.mxu0 0.0
  %2390 = vmatpush1.msra.mxu0 0.0
  %2391 = vmatprep.subr.mxu0 0.0
  %2392 = vmatpush1.msra.mxu0 0.0
  %2393 = vmatprep.subr.mxu0 0.0
  %2394 = vmatpush1.msra.mxu0 %v2358
  %2395 = vmatprep.subr.mxu0 0.0
  %2396 = vmatpush2.msra.mxu0 0.0
  %2397 = vmatprep.subr.mxu0 0.0
  %2398 = vmatpush2.msra.mxu0 0.0
  %2399 = vmatprep.subr.mxu0 0.0
  %2400 = vmatpush2.msra.mxu0 0.0
  %2401 = vmatprep.subr.mxu0 0.0
  %2402 = vmatpush2.msra.mxu0 0.0
  %2403 = vmatprep.subr.mxu0 0.0
  %2404 = vmatpush2.msra.mxu0 0.0
  %2405 = vmatprep.subr.mxu0 0.0
  %2406 = vmatpush2.msra.mxu0 0.0
  %2407 = vmatprep.subr.mxu0 0.0
  %2408 = vmatpush2.msra.mxu0 0.0
  %2409 = vmatprep.subr.mxu0 0.0
  %2410 = vmatpush2.msra.mxu0 0.0
  %2411 = vmatprep.subr.mxu0 0.0
  %2412 = vmatpush2.msra.mxu0 0.0
  %2413 = vmatprep.subr.mxu0 0.0
  %2414 = vmatpush2.msra.mxu0 0.0
  %2415 = vmatprep.subr.mxu0 0.0
  %2416 = vmatpush2.msra.mxu0 0.0
  %2417 = vmatprep.subr.mxu0 0.0
  %2418 = vmatpush2.msra.mxu0 0.0
  %2419 = vmatprep.subr.mxu0 0.0
  %2420 = vmatpush2.msra.mxu0 0.0
  %2421 = vmatprep.subr.mxu0 0.0
  %2422 = vmatpush2.msra.mxu0 0.0
  %2423 = vmatprep.subr.mxu0 0.0
  %2424 = vmatpush2.msra.mxu0 0.0
  %2425 = vmatprep.subr.mxu0 0.0
  %2426 = vmatpush2.msra.mxu0 0.0
  %2427 = vmatprep.mubr.f32.mxu0 0.0
  %2428 = vmatmul.mubr.f32.gmra.mxu0 %v2361
  %v2429 = vpop.f32.mrf.mxu0
  %v2430 = vadd.f32 0.0, %v2429
  %v2431 = vpop.f32.mrf.mxu0
  %2432 = vdwg.mxu0
  %2434 = vrot.lane.b32.xlu0 %v2430, 24
  %v2435 = vpop.permute.xlu0 %2434
  %2437 = vst.msk [vmem:[#allocation2] sm:$0xff] %vm826, %v2435
  %v2439 = vsel %vm148, %v1689, 0
  %v2442 = vsel %vm148, %v1757, 0
  %2444 = vmatprep.subr.mxu0 0.0
  %2445 = vmatpush1.xpose.msra.mxu0 0.0
  %2446 = vmatprep.subr.mxu0 0.0
  %2447 = vmatpush1.xpose.msra.mxu0 0.0
  %2448 = vmatprep.subr.mxu0 0.0
  %2449 = vmatpush1.xpose.msra.mxu0 0.0
  %2450 = vmatprep.subr.mxu0 0.0
  %2451 = vmatpush1.xpose.msra.mxu0 0.0
  %2452 = vmatprep.subr.mxu0 0.0
  %2453 = vmatpush1.xpose.msra.mxu0 0.0
  %2454 = vmatprep.subr.mxu0 0.0
  %2455 = vmatpush1.xpose.msra.mxu0 0.0
  %2456 = vmatprep.subr.mxu0 0.0
  %2457 = vmatpush1.xpose.msra.mxu0 0.0
  %2458 = vmatprep.subr.mxu0 0.0
  %2459 = vmatpush1.xpose.msra.mxu0 0.0
  %2460 = vmatprep.subr.mxu0 0.0
  %2461 = vmatpush1.xpose.msra.mxu0 0.0
  %2462 = vmatprep.subr.mxu0 0.0
  %2463 = vmatpush1.xpose.msra.mxu0 0.0
  %2464 = vmatprep.subr.mxu0 0.0
  %2465 = vmatpush1.xpose.msra.mxu0 0.0
  %2466 = vmatprep.subr.mxu0 0.0
  %2467 = vmatpush1.xpose.msra.mxu0 0.0
  %2468 = vmatprep.subr.mxu0 0.0
  %2469 = vmatpush1.xpose.msra.mxu0 0.0
  %2470 = vmatprep.subr.mxu0 0.0
  %2471 = vmatpush1.xpose.msra.mxu0 0.0
  %2472 = vmatprep.subr.mxu0 0.0
  %2473 = vmatpush1.xpose.msra.mxu0 0.0
  %2474 = vmatprep.subr.mxu0 0.0
  %2475 = vmatpush1.xpose.msra.mxu0 %v2442
  %2476 = vmatprep.subr.mxu0 0.0
  %2477 = vmatpush2.xpose.msra.mxu0 0.0
  %2478 = vmatprep.subr.mxu0 0.0
  %2479 = vmatpush2.xpose.msra.mxu0 0.0
  %2480 = vmatprep.subr.mxu0 0.0
  %2481 = vmatpush2.xpose.msra.mxu0 0.0
  %2482 = vmatprep.subr.mxu0 0.0
  %2483 = vmatpush2.xpose.msra.mxu0 0.0
  %2484 = vmatprep.subr.mxu0 0.0
  %2485 = vmatpush2.xpose.msra.mxu0 0.0
  %2486 = vmatprep.subr.mxu0 0.0
  %2487 = vmatpush2.xpose.msra.mxu0 0.0
  %2488 = vmatprep.subr.mxu0 0.0
  %2489 = vmatpush2.xpose.msra.mxu0 0.0
  %2490 = vmatprep.subr.mxu0 0.0
  %2491 = vmatpush2.xpose.msra.mxu0 0.0
  %2492 = vmatprep.subr.mxu0 0.0
  %2493 = vmatpush2.xpose.msra.mxu0 0.0
  %2494 = vmatprep.subr.mxu0 0.0
  %2495 = vmatpush2.xpose.msra.mxu0 0.0
  %2496 = vmatprep.subr.mxu0 0.0
  %2497 = vmatpush2.xpose.msra.mxu0 0.0
  %2498 = vmatprep.subr.mxu0 0.0
  %2499 = vmatpush2.xpose.msra.mxu0 0.0
  %2500 = vmatprep.subr.mxu0 0.0
  %2501 = vmatpush2.xpose.msra.mxu0 0.0
  %2502 = vmatprep.subr.mxu0 0.0
  %2503 = vmatpush2.xpose.msra.mxu0 0.0
  %2504 = vmatprep.subr.mxu0 0.0
  %2505 = vmatpush2.xpose.msra.mxu0 0.0
  %2506 = vmatprep.subr.mxu0 0.0
  %2507 = vmatpush2.xpose.msra.mxu0 0.0
  %2508 = vmatprep.mubr.f32.mxu0 0.0
  %2509 = vmatmul.mubr.f32.gmra.mxu0 %v2439
  %v2510 = vpop.f32.mrf.mxu0
  %v2511 = vadd.f32 0.0, %v2510
  %v2512 = vpop.f32.mrf.mxu0
  %2513 = vdwg.mxu0
  %v2514 = vmul.f32 %v2511, 0.35355338
  %v2515 = vsel %vm148, %v2514, -inf
  %2516 = vmax.xlane.f32.xlu0 %v2515
  %v2517 = vpop.xlane.xlu0 %2516
  %v2518 = vsub.f32 %v2514, %v2517
  %v2519 = vmul.f32 %v2518, 1.442695
  %v2520 = vpow.pop %v2519
  %v2521 = vsel %vm148, %v2520, 0.0
  %2522 = vadd.xlane.f32.xlu0 %v2521
  %v2523 = vpop.xlane.xlu0 %2522
  %v2524 = vrcp.pop %v2523
  %v2525 = vmul.f32 %v2520, %v2524
  %2526 = vrot.lane.b32.xlu0 %v1757, 96
  %v2527 = vpop.permute.xlu0 %2526
  %v2530 = vsel %vm148, %v2525, 0
  %2532 = vmatprep.subr.mxu0 0.0
  %2533 = vmatpush1.msra.mxu0 0.0
  %2534 = vmatprep.subr.mxu0 0.0
  %2535 = vmatpush1.msra.mxu0 0.0
  %2536 = vmatprep.subr.mxu0 0.0
  %2537 = vmatpush1.msra.mxu0 0.0
  %2538 = vmatprep.subr.mxu0 0.0
  %2539 = vmatpush1.msra.mxu0 0.0
  %2540 = vmatprep.subr.mxu0 0.0
  %2541 = vmatpush1.msra.mxu0 0.0
  %2542 = vmatprep.subr.mxu0 0.0
  %2543 = vmatpush1.msra.mxu0 0.0
  %2544 = vmatprep.subr.mxu0 0.0
  %2545 = vmatpush1.msra.mxu0 0.0
  %2546 = vmatprep.subr.mxu0 0.0
  %2547 = vmatpush1.msra.mxu0 0.0
  %2548 = vmatprep.subr.mxu0 0.0
  %2549 = vmatpush1.msra.mxu0 0.0
  %2550 = vmatprep.subr.mxu0 0.0
  %2551 = vmatpush1.msra.mxu0 0.0
  %2552 = vmatprep.subr.mxu0 0.0
  %2553 = vmatpush1.msra.mxu0 0.0
  %2554 = vmatprep.subr.mxu0 0.0
  %2555 = vmatpush1.msra.mxu0 0.0
  %2556 = vmatprep.subr.mxu0 0.0
  %2557 = vmatpush1.msra.mxu0 0.0
  %2558 = vmatprep.subr.mxu0 0.0
  %2559 = vmatpush1.msra.mxu0 0.0
  %2560 = vmatprep.subr.mxu0 0.0
  %2561 = vmatpush1.msra.mxu0 0.0
  %2562 = vmatprep.subr.mxu0 0.0
  %2563 = vmatpush1.msra.mxu0 %v2527
  %2564 = vmatprep.subr.mxu0 0.0
  %2565 = vmatpush2.msra.mxu0 0.0
  %2566 = vmatprep.subr.mxu0 0.0
  %2567 = vmatpush2.msra.mxu0 0.0
  %2568 = vmatprep.subr.mxu0 0.0
  %2569 = vmatpush2.msra.mxu0 0.0
  %2570 = vmatprep.subr.mxu0 0.0
  %2571 = vmatpush2.msra.mxu0 0.0
  %2572 = vmatprep.subr.mxu0 0.0
  %2573 = vmatpush2.msra.mxu0 0.0
  %2574 = vmatprep.subr.mxu0 0.0
  %2575 = vmatpush2.msra.mxu0 0.0
  %2576 = vmatprep.subr.mxu0 0.0
  %2577 = vmatpush2.msra.mxu0 0.0
  %2578 = vmatprep.subr.mxu0 0.0
  %2579 = vmatpush2.msra.mxu0 0.0
  %2580 = vmatprep.subr.mxu0 0.0
  %2581 = vmatpush2.msra.mxu0 0.0
  %2582 = vmatprep.subr.mxu0 0.0
  %2583 = vmatpush2.msra.mxu0 0.0
  %2584 = vmatprep.subr.mxu0 0.0
  %2585 = vmatpush2.msra.mxu0 0.0
  %2586 = vmatprep.subr.mxu0 0.0
  %2587 = vmatpush2.msra.mxu0 0.0
  %2588 = vmatprep.subr.mxu0 0.0
  %2589 = vmatpush2.msra.mxu0 0.0
  %2590 = vmatprep.subr.mxu0 0.0
  %2591 = vmatpush2.msra.mxu0 0.0
  %2592 = vmatprep.subr.mxu0 0.0
  %2593 = vmatpush2.msra.mxu0 0.0
  %2594 = vmatprep.subr.mxu0 0.0
  %2595 = vmatpush2.msra.mxu0 0.0
  %2596 = vmatprep.mubr.f32.mxu0 0.0
  %2597 = vmatmul.mubr.f32.gmra.mxu0 %v2530
  %v2598 = vpop.f32.mrf.mxu0
  %v2599 = vadd.f32 0.0, %v2598
  %v2600 = vpop.f32.mrf.mxu0
  %2601 = vdwg.mxu0
  %2602 = vst.msk [vmem:[#allocation2 + $0x8] sm:$0xff] %vm148, %v2599
  %2603 = vrot.lane.b32.xlu0 %v1689, 120
  %v2604 = vpop.permute.xlu0 %2603
  %2605 = vrot.lane.b32.xlu0 %v1757, 120
  %v2606 = vpop.permute.xlu0 %2605
  %v2607 = vsel %vm148, %v2604, 0
  %v2609 = vsel %vm148, %v2606, 0
  %2611 = vmatprep.subr.mxu0 0.0
  %2612 = vmatpush1.xpose.msra.mxu0 0.0
  %2613 = vmatprep.subr.mxu0 0.0
  %2614 = vmatpush1.xpose.msra.mxu0 0.0
  %2615 = vmatprep.subr.mxu0 0.0
  %2616 = vmatpush1.xpose.msra.mxu0 0.0
  %2617 = vmatprep.subr.mxu0 0.0
  %2618 = vmatpush1.xpose.msra.mxu0 0.0
  %2619 = vmatprep.subr.mxu0 0.0
  %2620 = vmatpush1.xpose.msra.mxu0 0.0
  %2621 = vmatprep.subr.mxu0 0.0
  %2622 = vmatpush1.xpose.msra.mxu0 0.0
  %2623 = vmatprep.subr.mxu0 0.0
  %2624 = vmatpush1.xpose.msra.mxu0 0.0
  %2625 = vmatprep.subr.mxu0 0.0
  %2626 = vmatpush1.xpose.msra.mxu0 0.0
  %2627 = vmatprep.subr.mxu0 0.0
  %2628 = vmatpush1.xpose.msra.mxu0 0.0
  %2629 = vmatprep.subr.mxu0 0.0
  %2630 = vmatpush1.xpose.msra.mxu0 0.0
  %2631 = vmatprep.subr.mxu0 0.0
  %2632 = vmatpush1.xpose.msra.mxu0 0.0
  %2633 = vmatprep.subr.mxu0 0.0
  %2634 = vmatpush1.xpose.msra.mxu0 0.0
  %2635 = vmatprep.subr.mxu0 0.0
  %2636 = vmatpush1.xpose.msra.mxu0 0.0
  %2637 = vmatprep.subr.mxu0 0.0
  %2638 = vmatpush1.xpose.msra.mxu0 0.0
  %2639 = vmatprep.subr.mxu0 0.0
  %2640 = vmatpush1.xpose.msra.mxu0 0.0
  %2641 = vmatprep.subr.mxu0 0.0
  %2642 = vmatpush1.xpose.msra.mxu0 %v2609
  %2643 = vmatprep.subr.mxu0 0.0
  %2644 = vmatpush2.xpose.msra.mxu0 0.0
  %2645 = vmatprep.subr.mxu0 0.0
  %2646 = vmatpush2.xpose.msra.mxu0 0.0
  %2647 = vmatprep.subr.mxu0 0.0
  %2648 = vmatpush2.xpose.msra.mxu0 0.0
  %2649 = vmatprep.subr.mxu0 0.0
  %2650 = vmatpush2.xpose.msra.mxu0 0.0
  %2651 = vmatprep.subr.mxu0 0.0
  %2652 = vmatpush2.xpose.msra.mxu0 0.0
  %2653 = vmatprep.subr.mxu0 0.0
  %2654 = vmatpush2.xpose.msra.mxu0 0.0
  %2655 = vmatprep.subr.mxu0 0.0
  %2656 = vmatpush2.xpose.msra.mxu0 0.0
  %2657 = vmatprep.subr.mxu0 0.0
  %2658 = vmatpush2.xpose.msra.mxu0 0.0
  %2659 = vmatprep.subr.mxu0 0.0
  %2660 = vmatpush2.xpose.msra.mxu0 0.0
  %2661 = vmatprep.subr.mxu0 0.0
  %2662 = vmatpush2.xpose.msra.mxu0 0.0
  %2663 = vmatprep.subr.mxu0 0.0
  %2664 = vmatpush2.xpose.msra.mxu0 0.0
  %2665 = vmatprep.subr.mxu0 0.0
  %2666 = vmatpush2.xpose.msra.mxu0 0.0
  %2667 = vmatprep.subr.mxu0 0.0
  %2668 = vmatpush2.xpose.msra.mxu0 0.0
  %2669 = vmatprep.subr.mxu0 0.0
  %2670 = vmatpush2.xpose.msra.mxu0 0.0
  %2671 = vmatprep.subr.mxu0 0.0
  %2672 = vmatpush2.xpose.msra.mxu0 0.0
  %2673 = vmatprep.subr.mxu0 0.0
  %2674 = vmatpush2.xpose.msra.mxu0 0.0
  %2675 = vmatprep.mubr.f32.mxu0 0.0
  %2676 = vmatmul.mubr.f32.gmra.mxu0 %v2607
  %v2677 = vpop.f32.mrf.mxu0
  %v2678 = vadd.f32 0.0, %v2677
  %v2679 = vpop.f32.mrf.mxu0
  %2680 = vdwg.mxu0
  %v2681 = vmul.f32 %v2678, 0.35355338
  %v2682 = vsel %vm148, %v2681, -inf
  %2683 = vmax.xlane.f32.xlu0 %v2682
  %v2684 = vpop.xlane.xlu0 %2683
  %v2685 = vsub.f32 %v2681, %v2684
  %v2686 = vmul.f32 %v2685, 1.442695
  %v2687 = vpow.pop %v2686
  %v2688 = vsel %vm148, %v2687, 0.0
  %2689 = vadd.xlane.f32.xlu0 %v2688
  %v2690 = vpop.xlane.xlu0 %2689
  %v2691 = vrcp.pop %v2690
  %v2692 = vmul.f32 %v2687, %v2691
  %2693 = vrot.lane.b32.xlu0 %v1757, 88
  %v2694 = vpop.permute.xlu0 %2693
  %v2697 = vsel %vm148, %v2692, 0
  %2699 = vmatprep.subr.mxu0 0.0
  %2700 = vmatpush1.msra.mxu0 0.0
  %2701 = vmatprep.subr.mxu0 0.0
  %2702 = vmatpush1.msra.mxu0 0.0
  %2703 = vmatprep.subr.mxu0 0.0
  %2704 = vmatpush1.msra.mxu0 0.0
  %2705 = vmatprep.subr.mxu0 0.0
  %2706 = vmatpush1.msra.mxu0 0.0
  %2707 = vmatprep.subr.mxu0 0.0
  %2708 = vmatpush1.msra.mxu0 0.0
  %2709 = vmatprep.subr.mxu0 0.0
  %2710 = vmatpush1.msra.mxu0 0.0
  %2711 = vmatprep.subr.mxu0 0.0
  %2712 = vmatpush1.msra.mxu0 0.0
  %2713 = vmatprep.subr.mxu0 0.0
  %2714 = vmatpush1.msra.mxu0 0.0
  %2715 = vmatprep.subr.mxu0 0.0
  %2716 = vmatpush1.msra.mxu0 0.0
  %2717 = vmatprep.subr.mxu0 0.0
  %2718 = vmatpush1.msra.mxu0 0.0
  %2719 = vmatprep.subr.mxu0 0.0
  %2720 = vmatpush1.msra.mxu0 0.0
  %2721 = vmatprep.subr.mxu0 0.0
  %2722 = vmatpush1.msra.mxu0 0.0
  %2723 = vmatprep.subr.mxu0 0.0
  %2724 = vmatpush1.msra.mxu0 0.0
  %2725 = vmatprep.subr.mxu0 0.0
  %2726 = vmatpush1.msra.mxu0 0.0
  %2727 = vmatprep.subr.mxu0 0.0
  %2728 = vmatpush1.msra.mxu0 0.0
  %2729 = vmatprep.subr.mxu0 0.0
  %2730 = vmatpush1.msra.mxu0 %v2694
  %2731 = vmatprep.subr.mxu0 0.0
  %2732 = vmatpush2.msra.mxu0 0.0
  %2733 = vmatprep.subr.mxu0 0.0
  %2734 = vmatpush2.msra.mxu0 0.0
  %2735 = vmatprep.subr.mxu0 0.0
  %2736 = vmatpush2.msra.mxu0 0.0
  %2737 = vmatprep.subr.mxu0 0.0
  %2738 = vmatpush2.msra.mxu0 0.0
  %2739 = vmatprep.subr.mxu0 0.0
  %2740 = vmatpush2.msra.mxu0 0.0
  %2741 = vmatprep.subr.mxu0 0.0
  %2742 = vmatpush2.msra.mxu0 0.0
  %2743 = vmatprep.subr.mxu0 0.0
  %2744 = vmatpush2.msra.mxu0 0.0
  %2745 = vmatprep.subr.mxu0 0.0
  %2746 = vmatpush2.msra.mxu0 0.0
  %2747 = vmatprep.subr.mxu0 0.0
  %2748 = vmatpush2.msra.mxu0 0.0
  %2749 = vmatprep.subr.mxu0 0.0
  %2750 = vmatpush2.msra.mxu0 0.0
  %2751 = vmatprep.subr.mxu0 0.0
  %2752 = vmatpush2.msra.mxu0 0.0
  %2753 = vmatprep.subr.mxu0 0.0
  %2754 = vmatpush2.msra.mxu0 0.0
  %2755 = vmatprep.subr.mxu0 0.0
  %2756 = vmatpush2.msra.mxu0 0.0
  %2757 = vmatprep.subr.mxu0 0.0
  %2758 = vmatpush2.msra.mxu0 0.0
  %2759 = vmatprep.subr.mxu0 0.0
  %2760 = vmatpush2.msra.mxu0 0.0
  %2761 = vmatprep.subr.mxu0 0.0
  %2762 = vmatpush2.msra.mxu0 0.0
  %2763 = vmatprep.mubr.f32.mxu0 0.0
  %2764 = vmatmul.mubr.f32.gmra.mxu0 %v2697
  %v2765 = vpop.f32.mrf.mxu0
  %v2766 = vadd.f32 0.0, %v2765
  %v2767 = vpop.f32.mrf.mxu0
  %2768 = vdwg.mxu0
  %2770 = vrot.lane.b32.xlu0 %v2766, 8
  %v2771 = vpop.permute.xlu0 %2770
  %2773 = vst.msk [vmem:[#allocation2 + $0x8] sm:$0xff] %vm482, %v2771
  %2774 = vrot.lane.b32.xlu0 %v1689, 112
  %v2775 = vpop.permute.xlu0 %2774
  %2776 = vrot.lane.b32.xlu0 %v1757, 112
  %v2777 = vpop.permute.xlu0 %2776
  %v2778 = vsel %vm148, %v2775, 0
  %v2780 = vsel %vm148, %v2777, 0
  %2782 = vmatprep.subr.mxu0 0.0
  %2783 = vmatpush1.xpose.msra.mxu0 0.0
  %2784 = vmatprep.subr.mxu0 0.0
  %2785 = vmatpush1.xpose.msra.mxu0 0.0
  %2786 = vmatprep.subr.mxu0 0.0
  %2787 = vmatpush1.xpose.msra.mxu0 0.0
  %2788 = vmatprep.subr.mxu0 0.0
  %2789 = vmatpush1.xpose.msra.mxu0 0.0
  %2790 = vmatprep.subr.mxu0 0.0
  %2791 = vmatpush1.xpose.msra.mxu0 0.0
  %2792 = vmatprep.subr.mxu0 0.0
  %2793 = vmatpush1.xpose.msra.mxu0 0.0
  %2794 = vmatprep.subr.mxu0 0.0
  %2795 = vmatpush1.xpose.msra.mxu0 0.0
  %2796 = vmatprep.subr.mxu0 0.0
  %2797 = vmatpush1.xpose.msra.mxu0 0.0
  %2798 = vmatprep.subr.mxu0 0.0
  %2799 = vmatpush1.xpose.msra.mxu0 0.0
  %2800 = vmatprep.subr.mxu0 0.0
  %2801 = vmatpush1.xpose.msra.mxu0 0.0
  %2802 = vmatprep.subr.mxu0 0.0
  %2803 = vmatpush1.xpose.msra.mxu0 0.0
  %2804 = vmatprep.subr.mxu0 0.0
  %2805 = vmatpush1.xpose.msra.mxu0 0.0
  %2806 = vmatprep.subr.mxu0 0.0
  %2807 = vmatpush1.xpose.msra.mxu0 0.0
  %2808 = vmatprep.subr.mxu0 0.0
  %2809 = vmatpush1.xpose.msra.mxu0 0.0
  %2810 = vmatprep.subr.mxu0 0.0
  %2811 = vmatpush1.xpose.msra.mxu0 0.0
  %2812 = vmatprep.subr.mxu0 0.0
  %2813 = vmatpush1.xpose.msra.mxu0 %v2780
  %2814 = vmatprep.subr.mxu0 0.0
  %2815 = vmatpush2.xpose.msra.mxu0 0.0
  %2816 = vmatprep.subr.mxu0 0.0
  %2817 = vmatpush2.xpose.msra.mxu0 0.0
  %2818 = vmatprep.subr.mxu0 0.0
  %2819 = vmatpush2.xpose.msra.mxu0 0.0
  %2820 = vmatprep.subr.mxu0 0.0
  %2821 = vmatpush2.xpose.msra.mxu0 0.0
  %2822 = vmatprep.subr.mxu0 0.0
  %2823 = vmatpush2.xpose.msra.mxu0 0.0
  %2824 = vmatprep.subr.mxu0 0.0
  %2825 = vmatpush2.xpose.msra.mxu0 0.0
  %2826 = vmatprep.subr.mxu0 0.0
  %2827 = vmatpush2.xpose.msra.mxu0 0.0
  %2828 = vmatprep.subr.mxu0 0.0
  %2829 = vmatpush2.xpose.msra.mxu0 0.0
  %2830 = vmatprep.subr.mxu0 0.0
  %2831 = vmatpush2.xpose.msra.mxu0 0.0
  %2832 = vmatprep.subr.mxu0 0.0
  %2833 = vmatpush2.xpose.msra.mxu0 0.0
  %2834 = vmatprep.subr.mxu0 0.0
  %2835 = vmatpush2.xpose.msra.mxu0 0.0
  %2836 = vmatprep.subr.mxu0 0.0
  %2837 = vmatpush2.xpose.msra.mxu0 0.0
  %2838 = vmatprep.subr.mxu0 0.0
  %2839 = vmatpush2.xpose.msra.mxu0 0.0
  %2840 = vmatprep.subr.mxu0 0.0
  %2841 = vmatpush2.xpose.msra.mxu0 0.0
  %2842 = vmatprep.subr.mxu0 0.0
  %2843 = vmatpush2.xpose.msra.mxu0 0.0
  %2844 = vmatprep.subr.mxu0 0.0
  %2845 = vmatpush2.xpose.msra.mxu0 0.0
  %2846 = vmatprep.mubr.f32.mxu0 0.0
  %2847 = vmatmul.mubr.f32.gmra.mxu0 %v2778
  %v2848 = vpop.f32.mrf.mxu0
  %v2849 = vadd.f32 0.0, %v2848
  %v2850 = vpop.f32.mrf.mxu0
  %2851 = vdwg.mxu0
  %v2852 = vmul.f32 %v2849, 0.35355338
  %v2853 = vsel %vm148, %v2852, -inf
  %2854 = vmax.xlane.f32.xlu0 %v2853
  %v2855 = vpop.xlane.xlu0 %2854
  %v2856 = vsub.f32 %v2852, %v2855
  %v2857 = vmul.f32 %v2856, 1.442695
  %v2858 = vpow.pop %v2857
  %v2859 = vsel %vm148, %v2858, 0.0
  %2860 = vadd.xlane.f32.xlu0 %v2859
  %v2861 = vpop.xlane.xlu0 %2860
  %v2862 = vrcp.pop %v2861
  %v2863 = vmul.f32 %v2858, %v2862
  %2864 = vrot.lane.b32.xlu0 %v1757, 80
  %v2865 = vpop.permute.xlu0 %2864
  %v2868 = vsel %vm148, %v2863, 0
  %2870 = vmatprep.subr.mxu0 0.0
  %2871 = vmatpush1.msra.mxu0 0.0
  %2872 = vmatprep.subr.mxu0 0.0
  %2873 = vmatpush1.msra.mxu0 0.0
  %2874 = vmatprep.subr.mxu0 0.0
  %2875 = vmatpush1.msra.mxu0 0.0
  %2876 = vmatprep.subr.mxu0 0.0
  %2877 = vmatpush1.msra.mxu0 0.0
  %2878 = vmatprep.subr.mxu0 0.0
  %2879 = vmatpush1.msra.mxu0 0.0
  %2880 = vmatprep.subr.mxu0 0.0
  %2881 = vmatpush1.msra.mxu0 0.0
  %2882 = vmatprep.subr.mxu0 0.0
  %2883 = vmatpush1.msra.mxu0 0.0
  %2884 = vmatprep.subr.mxu0 0.0
  %2885 = vmatpush1.msra.mxu0 0.0
  %2886 = vmatprep.subr.mxu0 0.0
  %2887 = vmatpush1.msra.mxu0 0.0
  %2888 = vmatprep.subr.mxu0 0.0
  %2889 = vmatpush1.msra.mxu0 0.0
  %2890 = vmatprep.subr.mxu0 0.0
  %2891 = vmatpush1.msra.mxu0 0.0
  %2892 = vmatprep.subr.mxu0 0.0
  %2893 = vmatpush1.msra.mxu0 0.0
  %2894 = vmatprep.subr.mxu0 0.0
  %2895 = vmatpush1.msra.mxu0 0.0
  %2896 = vmatprep.subr.mxu0 0.0
  %2897 = vmatpush1.msra.mxu0 0.0
  %2898 = vmatprep.subr.mxu0 0.0
  %2899 = vmatpush1.msra.mxu0 0.0
  %2900 = vmatprep.subr.mxu0 0.0
  %2901 = vmatpush1.msra.mxu0 %v2865
  %2902 = vmatprep.subr.mxu0 0.0
  %2903 = vmatpush2.msra.mxu0 0.0
  %2904 = vmatprep.subr.mxu0 0.0
  %2905 = vmatpush2.msra.mxu0 0.0
  %2906 = vmatprep.subr.mxu0 0.0
  %2907 = vmatpush2.msra.mxu0 0.0
  %2908 = vmatprep.subr.mxu0 0.0
  %2909 = vmatpush2.msra.mxu0 0.0
  %2910 = vmatprep.subr.mxu0 0.0
  %2911 = vmatpush2.msra.mxu0 0.0
  %2912 = vmatprep.subr.mxu0 0.0
  %2913 = vmatpush2.msra.mxu0 0.0
  %2914 = vmatprep.subr.mxu0 0.0
  %2915 = vmatpush2.msra.mxu0 0.0
  %2916 = vmatprep.subr.mxu0 0.0
  %2917 = vmatpush2.msra.mxu0 0.0
  %2918 = vmatprep.subr.mxu0 0.0
  %2919 = vmatpush2.msra.mxu0 0.0
  %2920 = vmatprep.subr.mxu0 0.0
  %2921 = vmatpush2.msra.mxu0 0.0
  %2922 = vmatprep.subr.mxu0 0.0
  %2923 = vmatpush2.msra.mxu0 0.0
  %2924 = vmatprep.subr.mxu0 0.0
  %2925 = vmatpush2.msra.mxu0 0.0
  %2926 = vmatprep.subr.mxu0 0.0
  %2927 = vmatpush2.msra.mxu0 0.0
  %2928 = vmatprep.subr.mxu0 0.0
  %2929 = vmatpush2.msra.mxu0 0.0
  %2930 = vmatprep.subr.mxu0 0.0
  %2931 = vmatpush2.msra.mxu0 0.0
  %2932 = vmatprep.subr.mxu0 0.0
  %2933 = vmatpush2.msra.mxu0 0.0
  %2934 = vmatprep.mubr.f32.mxu0 0.0
  %2935 = vmatmul.mubr.f32.gmra.mxu0 %v2868
  %v2936 = vpop.f32.mrf.mxu0
  %v2937 = vadd.f32 0.0, %v2936
  %v2938 = vpop.f32.mrf.mxu0
  %2939 = vdwg.mxu0
  %2941 = vrot.lane.b32.xlu0 %v2937, 16
  %v2942 = vpop.permute.xlu0 %2941
  %2944 = vst.msk [vmem:[#allocation2 + $0x8] sm:$0xff] %vm654, %v2942
  %2945 = vrot.lane.b32.xlu0 %v1689, 104
  %v2946 = vpop.permute.xlu0 %2945
  %2947 = vrot.lane.b32.xlu0 %v1757, 104
  %v2948 = vpop.permute.xlu0 %2947
  %v2949 = vsel %vm148, %v2946, 0
  %v2951 = vsel %vm148, %v2948, 0
  %2953 = vmatprep.subr.mxu0 0.0
  %2954 = vmatpush1.xpose.msra.mxu0 0.0
  %2955 = vmatprep.subr.mxu0 0.0
  %2956 = vmatpush1.xpose.msra.mxu0 0.0
  %2957 = vmatprep.subr.mxu0 0.0
  %2958 = vmatpush1.xpose.msra.mxu0 0.0
  %2959 = vmatprep.subr.mxu0 0.0
  %2960 = vmatpush1.xpose.msra.mxu0 0.0
  %2961 = vmatprep.subr.mxu0 0.0
  %2962 = vmatpush1.xpose.msra.mxu0 0.0
  %2963 = vmatprep.subr.mxu0 0.0
  %2964 = vmatpush1.xpose.msra.mxu0 0.0
  %2965 = vmatprep.subr.mxu0 0.0
  %2966 = vmatpush1.xpose.msra.mxu0 0.0
  %2967 = vmatprep.subr.mxu0 0.0
  %2968 = vmatpush1.xpose.msra.mxu0 0.0
  %2969 = vmatprep.subr.mxu0 0.0
  %2970 = vmatpush1.xpose.msra.mxu0 0.0
  %2971 = vmatprep.subr.mxu0 0.0
  %2972 = vmatpush1.xpose.msra.mxu0 0.0
  %2973 = vmatprep.subr.mxu0 0.0
  %2974 = vmatpush1.xpose.msra.mxu0 0.0
  %2975 = vmatprep.subr.mxu0 0.0
  %2976 = vmatpush1.xpose.msra.mxu0 0.0
  %2977 = vmatprep.subr.mxu0 0.0
  %2978 = vmatpush1.xpose.msra.mxu0 0.0
  %2979 = vmatprep.subr.mxu0 0.0
  %2980 = vmatpush1.xpose.msra.mxu0 0.0
  %2981 = vmatprep.subr.mxu0 0.0
  %2982 = vmatpush1.xpose.msra.mxu0 0.0
  %2983 = vmatprep.subr.mxu0 0.0
  %2984 = vmatpush1.xpose.msra.mxu0 %v2951
  %2985 = vmatprep.subr.mxu0 0.0
  %2986 = vmatpush2.xpose.msra.mxu0 0.0
  %2987 = vmatprep.subr.mxu0 0.0
  %2988 = vmatpush2.xpose.msra.mxu0 0.0
  %2989 = vmatprep.subr.mxu0 0.0
  %2990 = vmatpush2.xpose.msra.mxu0 0.0
  %2991 = vmatprep.subr.mxu0 0.0
  %2992 = vmatpush2.xpose.msra.mxu0 0.0
  %2993 = vmatprep.subr.mxu0 0.0
  %2994 = vmatpush2.xpose.msra.mxu0 0.0
  %2995 = vmatprep.subr.mxu0 0.0
  %2996 = vmatpush2.xpose.msra.mxu0 0.0
  %2997 = vmatprep.subr.mxu0 0.0
  %2998 = vmatpush2.xpose.msra.mxu0 0.0
  %2999 = vmatprep.subr.mxu0 0.0
  %3000 = vmatpush2.xpose.msra.mxu0 0.0
  %3001 = vmatprep.subr.mxu0 0.0
  %3002 = vmatpush2.xpose.msra.mxu0 0.0
  %3003 = vmatprep.subr.mxu0 0.0
  %3004 = vmatpush2.xpose.msra.mxu0 0.0
  %3005 = vmatprep.subr.mxu0 0.0
  %3006 = vmatpush2.xpose.msra.mxu0 0.0
  %3007 = vmatprep.subr.mxu0 0.0
  %3008 = vmatpush2.xpose.msra.mxu0 0.0
  %3009 = vmatprep.subr.mxu0 0.0
  %3010 = vmatpush2.xpose.msra.mxu0 0.0
  %3011 = vmatprep.subr.mxu0 0.0
  %3012 = vmatpush2.xpose.msra.mxu0 0.0
  %3013 = vmatprep.subr.mxu0 0.0
  %3014 = vmatpush2.xpose.msra.mxu0 0.0
  %3015 = vmatprep.subr.mxu0 0.0
  %3016 = vmatpush2.xpose.msra.mxu0 0.0
  %3017 = vmatprep.mubr.f32.mxu0 0.0
  %3018 = vmatmul.mubr.f32.gmra.mxu0 %v2949
  %v3019 = vpop.f32.mrf.mxu0
  %v3020 = vadd.f32 0.0, %v3019
  %v3021 = vpop.f32.mrf.mxu0
  %3022 = vdwg.mxu0
  %v3023 = vmul.f32 %v3020, 0.35355338
  %v3024 = vsel %vm148, %v3023, -inf
  %3025 = vmax.xlane.f32.xlu0 %v3024
  %v3026 = vpop.xlane.xlu0 %3025
  %v3027 = vsub.f32 %v3023, %v3026
  %v3028 = vmul.f32 %v3027, 1.442695
  %v3029 = vpow.pop %v3028
  %v3030 = vsel %vm148, %v3029, 0.0
  %3031 = vadd.xlane.f32.xlu0 %v3030
  %v3032 = vpop.xlane.xlu0 %3031
  %v3033 = vrcp.pop %v3032
  %v3034 = vmul.f32 %v3029, %v3033
  %3035 = vrot.lane.b32.xlu0 %v1757, 72
  %v3036 = vpop.permute.xlu0 %3035
  %v3039 = vsel %vm148, %v3034, 0
  %3041 = vmatprep.subr.mxu0 0.0
  %3042 = vmatpush1.msra.mxu0 0.0
  %3043 = vmatprep.subr.mxu0 0.0
  %3044 = vmatpush1.msra.mxu0 0.0
  %3045 = vmatprep.subr.mxu0 0.0
  %3046 = vmatpush1.msra.mxu0 0.0
  %3047 = vmatprep.subr.mxu0 0.0
  %3048 = vmatpush1.msra.mxu0 0.0
  %3049 = vmatprep.subr.mxu0 0.0
  %3050 = vmatpush1.msra.mxu0 0.0
  %3051 = vmatprep.subr.mxu0 0.0
  %3052 = vmatpush1.msra.mxu0 0.0
  %3053 = vmatprep.subr.mxu0 0.0
  %3054 = vmatpush1.msra.mxu0 0.0
  %3055 = vmatprep.subr.mxu0 0.0
  %3056 = vmatpush1.msra.mxu0 0.0
  %3057 = vmatprep.subr.mxu0 0.0
  %3058 = vmatpush1.msra.mxu0 0.0
  %3059 = vmatprep.subr.mxu0 0.0
  %3060 = vmatpush1.msra.mxu0 0.0
  %3061 = vmatprep.subr.mxu0 0.0
  %3062 = vmatpush1.msra.mxu0 0.0
  %3063 = vmatprep.subr.mxu0 0.0
  %3064 = vmatpush1.msra.mxu0 0.0
  %3065 = vmatprep.subr.mxu0 0.0
  %3066 = vmatpush1.msra.mxu0 0.0
  %3067 = vmatprep.subr.mxu0 0.0
  %3068 = vmatpush1.msra.mxu0 0.0
  %3069 = vmatprep.subr.mxu0 0.0
  %3070 = vmatpush1.msra.mxu0 0.0
  %3071 = vmatprep.subr.mxu0 0.0
  %3072 = vmatpush1.msra.mxu0 %v3036
  %3073 = vmatprep.subr.mxu0 0.0
  %3074 = vmatpush2.msra.mxu0 0.0
  %3075 = vmatprep.subr.mxu0 0.0
  %3076 = vmatpush2.msra.mxu0 0.0
  %3077 = vmatprep.subr.mxu0 0.0
  %3078 = vmatpush2.msra.mxu0 0.0
  %3079 = vmatprep.subr.mxu0 0.0
  %3080 = vmatpush2.msra.mxu0 0.0
  %3081 = vmatprep.subr.mxu0 0.0
  %3082 = vmatpush2.msra.mxu0 0.0
  %3083 = vmatprep.subr.mxu0 0.0
  %3084 = vmatpush2.msra.mxu0 0.0
  %3085 = vmatprep.subr.mxu0 0.0
  %3086 = vmatpush2.msra.mxu0 0.0
  %3087 = vmatprep.subr.mxu0 0.0
  %3088 = vmatpush2.msra.mxu0 0.0
  %3089 = vmatprep.subr.mxu0 0.0
  %3090 = vmatpush2.msra.mxu0 0.0
  %3091 = vmatprep.subr.mxu0 0.0
  %3092 = vmatpush2.msra.mxu0 0.0
  %3093 = vmatprep.subr.mxu0 0.0
  %3094 = vmatpush2.msra.mxu0 0.0
  %3095 = vmatprep.subr.mxu0 0.0
  %3096 = vmatpush2.msra.mxu0 0.0
  %3097 = vmatprep.subr.mxu0 0.0
  %3098 = vmatpush2.msra.mxu0 0.0
  %3099 = vmatprep.subr.mxu0 0.0
  %3100 = vmatpush2.msra.mxu0 0.0
  %3101 = vmatprep.subr.mxu0 0.0
  %3102 = vmatpush2.msra.mxu0 0.0
  %3103 = vmatprep.subr.mxu0 0.0
  %3104 = vmatpush2.msra.mxu0 0.0
  %3105 = vmatprep.mubr.f32.mxu0 0.0
  %3106 = vmatmul.mubr.f32.gmra.mxu0 %v3039
  %v3107 = vpop.f32.mrf.mxu0
  %v3108 = vadd.f32 0.0, %v3107
  %v3109 = vpop.f32.mrf.mxu0
  %3110 = vdwg.mxu0
  %3112 = vrot.lane.b32.xlu0 %v3108, 24
  %v3113 = vpop.permute.xlu0 %3112
  %3115 = vst.msk [vmem:[#allocation2 + $0x8] sm:$0xff] %vm826, %v3113
  %v3116 = vld [vmem:[#allocation2] sm:$0xff]
  %v3117 = vld [vmem:[#allocation2 + $0x8] sm:$0xff]
  %v3118 = vld [vmem:[%s12] sm:$0xf]
  %v3119 = vld [vmem:[%s12 + $0x4] sm:$0xf]
  %v3120 = vld [vmem:[%s12 + $0x8] sm:$0xf]
  %v3121 = vld [vmem:[%s12 + $0xc] sm:$0xf]
  %v3122 = vpack.c.bf16 %v3117, %v3116
  %v3123 = vld [vmem:[%s13] sm:$0x1]
  %v3125 = vlaneseq
  %v3126 = vshrl.u32 %v3125, 7
  %v3127 = vsub.s32 0, %v3126
  %v3128 = vrot.slane %v3123, %v3127
  %v3134 = vunpack.c.l.b16 %v3118
  %v3135 = vunpack.c.l.b16 %v3119
  %v3136 = vunpack.c.l.b16 %v3120
  %v3137 = vunpack.c.l.b16 %v3121
  %v3138 = vpack.c.b16 %v3135, %v3134
  %v3139 = vpack.c.b16 %v3137, %v3136
  %v3143 = vsel %vm100, %v3122, 0
  %3145 = vmatprep.subr.bf16.mxu0 0
  %3146 = vmatpush1.bf16.msra.mxu0 0
  %3147 = vmatprep.subr.bf16.mxu0 0
  %3148 = vmatpush1.bf16.msra.mxu0 0
  %3149 = vmatprep.subr.bf16.mxu0 0
  %3150 = vmatpush1.bf16.msra.mxu0 0
  %3151 = vmatprep.subr.bf16.mxu0 0
  %3152 = vmatpush1.bf16.msra.mxu0 0
  %3153 = vmatprep.subr.bf16.mxu0 0
  %3154 = vmatpush1.bf16.msra.mxu0 0
  %3155 = vmatprep.subr.bf16.mxu0 0
  %3156 = vmatpush1.bf16.msra.mxu0 0
  %3157 = vmatprep.subr.bf16.mxu0 0
  %3158 = vmatpush1.bf16.msra.mxu0 %v3139
  %3159 = vmatprep.subr.bf16.mxu0 0
  %3160 = vmatpush1.bf16.msra.mxu0 %v3138
  %3161 = vmatprep.subr.bf16.mxu0 0
  %3162 = vmatpush2.bf16.msra.mxu0 0
  %3163 = vmatprep.subr.bf16.mxu0 0
  %3164 = vmatpush2.bf16.msra.mxu0 0
  %3165 = vmatprep.subr.bf16.mxu0 0
  %3166 = vmatpush2.bf16.msra.mxu0 0
  %3167 = vmatprep.subr.bf16.mxu0 0
  %3168 = vmatpush2.bf16.msra.mxu0 0
  %3169 = vmatprep.subr.bf16.mxu0 0
  %3170 = vmatpush2.bf16.msra.mxu0 0
  %3171 = vmatprep.subr.bf16.mxu0 0
  %3172 = vmatpush2.bf16.msra.mxu0 0
  %3173 = vmatprep.subr.bf16.mxu0 0
  %3174 = vmatpush2.bf16.msra.mxu0 0
  %3175 = vmatprep.subr.bf16.mxu0 0
  %3176 = vmatpush2.bf16.msra.mxu0 0
  %3177 = vmatprep.mubr.bf16.mxu0 0
  %3178 = vmatmul.mubr.bf16.gmra.mxu0 %v3143
  %v3179 = vpop.f32.mrf.mxu0
  %v3180 = vadd.f32 %v3128, %v3179
  %v3181 = vpop.f32.mrf.mxu0
  %v3182 = vpop.f32.mrf.mxu0
  %v3183 = vadd.f32 %v3128, %v3182
  %v3184 = vpop.f32.mrf.mxu0
  %3185 = vdwg.mxu0
  %v3186 = vld [vmem:[%s14] sm:$0x1]
  %v3187 = vld [vmem:[%s15] sm:$0x1]
  %v3188 = vadd.f32 %v3180, %v1622
  %v3189 = vadd.f32 %v3183, %v1623
  %v3190 = vsel %vm100, %v3188, 0.0
  %3191 = vadd.xlane.f32.xlu0 %v3190
  %v3192 = vpop.xlane.xlu0 %3191
  %v3193 = vsel %vm100, %v3189, 0.0
  %3194 = vadd.xlane.f32.xlu0 %v3193
  %v3195 = vpop.xlane.xlu0 %3194
  %v3196 = vmul.f32 %v3192, %v1587
  %v3197 = vmul.f32 %v3195, %v1587
  %v3198 = vsub.f32 %v3188, %v3196
  %v3199 = vsub.f32 %v3189, %v3197
  %v3200 = vmul.f32 %v3198, %v3198
  %v3201 = vmul.f32 %v3199, %v3199
  %v3202 = vsel %vm100, %v3200, 0.0
  %3203 = vadd.xlane.f32.xlu0 %v3202
  %v3204 = vpop.xlane.xlu0 %3203
  %v3205 = vsel %vm100, %v3201, 0.0
  %3206 = vadd.xlane.f32.xlu0 %v3205
  %v3207 = vpop.xlane.xlu0 %3206
  %v3208 = vmul.f32 %v3204, %v1587
  %v3209 = vmul.f32 %v3207, %v1587
  %v3210 = vadd.f32 %v3208, 1e-05
  %v3211 = vadd.f32 %v3209, 1e-05
  %v3212 = vrsqrt.pop %v3210
  %v3213 = vrsqrt.pop %v3211
  %v3214 = vmul.f32 %v3198, %v3212
  %v3215 = vmul.f32 %v3199, %v3213
  %v3217 = vlaneseq
  %v3218 = vshrl.u32 %v3217, 7
  %v3219 = vsub.s32 0, %v3218
  %v3220 = vrot.slane %v3186, %v3219
  %v3222 = vmul.f32 %v3214, %v3220
  %v3223 = vmul.f32 %v3215, %v3220
  %v3225 = vlaneseq
  %v3226 = vshrl.u32 %v3225, 7
  %v3227 = vsub.s32 0, %v3226
  %v3228 = vrot.slane %v3187, %v3227
  %v3230 = vadd.f32 %v3222, %v3228
  %v3231 = vadd.f32 %v3223, %v3228
  %v3232 = vld [vmem:[%s16] sm:$0xff]
  %v3233 = vld [vmem:[%s16 + $0x8] sm:$0xff]
  %v3234 = vld [vmem:[%s16 + $0x10] sm:$0xff]
  %v3235 = vld [vmem:[%s16 + $0x18] sm:$0xff]
  %v3236 = vld [vmem:[%s16 + $0x20] sm:$0xff]
  %v3237 = vld [vmem:[%s16 + $0x28] sm:$0xff]
  %v3238 = vld [vmem:[%s16 + $0x30] sm:$0xff]
  %v3239 = vld [vmem:[%s16 + $0x38] sm:$0xff]
  %v3240 = vld [vmem:[%s16 + $0x40] sm:$0xff]
  %v3241 = vld [vmem:[%s16 + $0x48] sm:$0xff]
  %v3242 = vld [vmem:[%s16 + $0x50] sm:$0xff]
  %v3243 = vld [vmem:[%s16 + $0x58] sm:$0xff]
  %v3244 = vld [vmem:[%s16 + $0x60] sm:$0xff]
  %v3245 = vld [vmem:[%s16 + $0x68] sm:$0xff]
  %v3246 = vld [vmem:[%s16 + $0x70] sm:$0xff]
  %v3247 = vld [vmem:[%s16 + $0x78] sm:$0xff]
  %v3248 = vld [vmem:[%s16 + $0x80] sm:$0xff]
  %v3249 = vld [vmem:[%s16 + $0x88] sm:$0xff]
  %v3250 = vld [vmem:[%s16 + $0x90] sm:$0xff]
  %v3251 = vld [vmem:[%s16 + $0x98] sm:$0xff]
  %v3252 = vld [vmem:[%s16 + $0xa0] sm:$0xff]
  %v3253 = vld [vmem:[%s16 + $0xa8] sm:$0xff]
  %v3254 = vld [vmem:[%s16 + $0xb0] sm:$0xff]
  %v3255 = vld [vmem:[%s16 + $0xb8] sm:$0xff]
  %v3256 = vld [vmem:[%s16 + $0xc0] sm:$0xff]
  %v3257 = vld [vmem:[%s16 + $0xc8] sm:$0xff]
  %v3258 = vld [vmem:[%s16 + $0xd0] sm:$0xff]
  %v3259 = vld [vmem:[%s16 + $0xd8] sm:$0xff]
  %v3260 = vld [vmem:[%s16 + $0xe0] sm:$0xff]
  %v3261 = vld [vmem:[%s16 + $0xe8] sm:$0xff]
  %v3262 = vld [vmem:[%s16 + $0xf0] sm:$0xff]
  %v3263 = vld [vmem:[%s16 + $0xf8] sm:$0xff]
  %v3264 = vpack.c.bf16 %v3231, %v3230
  %v3265 = vld [vmem:[%s17] sm:$0xff]
  %v3266 = vld [vmem:[%s17 + $0x8] sm:$0xff]
  %v3269 = vlaneseq
  %v3270 = vshrl.u32 %v3269, 7
  %v3271 = vsub.s32 0, %v3270
  %v3272 = vrot.slane %v3265, %v3271
  %v3273 = vlaneseq
  %v3274 = vshrl.u32 %v3273, 7
  %v3275 = vsub.s32 1, %v3274
  %v3276 = vrot.slane %v3265, %v3275
  %v3277 = vlaneseq
  %v3278 = vshrl.u32 %v3277, 7
  %v3279 = vsub.s32 2, %v3278
  %v3280 = vrot.slane %v3265, %v3279
  %v3281 = vlaneseq
  %v3282 = vshrl.u32 %v3281, 7
  %v3283 = vsub.s32 3, %v3282
  %v3284 = vrot.slane %v3265, %v3283
  %v3285 = vlaneseq
  %v3286 = vshrl.u32 %v3285, 7
  %v3287 = vsub.s32 4, %v3286
  %v3288 = vrot.slane %v3265, %v3287
  %v3289 = vlaneseq
  %v3290 = vshrl.u32 %v3289, 7
  %v3291 = vsub.s32 5, %v3290
  %v3292 = vrot.slane %v3265, %v3291
  %v3293 = vlaneseq
  %v3294 = vshrl.u32 %v3293, 7
  %v3295 = vsub.s32 6, %v3294
  %v3296 = vrot.slane %v3265, %v3295
  %v3297 = vlaneseq
  %v3298 = vshrl.u32 %v3297, 7
  %v3299 = vsub.s32 7, %v3298
  %v3300 = vrot.slane %v3265, %v3299
  %v3301 = vlaneseq
  %v3302 = vshrl.u32 %v3301, 7
  %v3303 = vsub.s32 0, %v3302
  %v3304 = vrot.slane %v3266, %v3303
  %v3305 = vlaneseq
  %v3306 = vshrl.u32 %v3305, 7
  %v3307 = vsub.s32 1, %v3306
  %v3308 = vrot.slane %v3266, %v3307
  %v3309 = vlaneseq
  %v3310 = vshrl.u32 %v3309, 7
  %v3311 = vsub.s32 2, %v3310
  %v3312 = vrot.slane %v3266, %v3311
  %v3313 = vlaneseq
  %v3314 = vshrl.u32 %v3313, 7
  %v3315 = vsub.s32 3, %v3314
  %v3316 = vrot.slane %v3266, %v3315
  %v3317 = vlaneseq
  %v3318 = vshrl.u32 %v3317, 7
  %v3319 = vsub.s32 4, %v3318
  %v3320 = vrot.slane %v3266, %v3319
  %v3321 = vlaneseq
  %v3322 = vshrl.u32 %v3321, 7
  %v3323 = vsub.s32 5, %v3322
  %v3324 = vrot.slane %v3266, %v3323
  %v3325 = vlaneseq
  %v3326 = vshrl.u32 %v3325, 7
  %v3327 = vsub.s32 6, %v3326
  %v3328 = vrot.slane %v3266, %v3327
  %v3329 = vlaneseq
  %v3330 = vshrl.u32 %v3329, 7
  %v3331 = vsub.s32 7, %v3330
  %v3332 = vrot.slane %v3266, %v3331
  %v3381 = vunpack.c.l.b16 %v3232
  %v3382 = vunpack.c.h.b16 %v3232
  %v3383 = vunpack.c.l.b16 %v3233
  %v3384 = vunpack.c.h.b16 %v3233
  %v3385 = vunpack.c.l.b16 %v3234
  %v3386 = vunpack.c.h.b16 %v3234
  %v3387 = vunpack.c.l.b16 %v3235
  %v3388 = vunpack.c.h.b16 %v3235
  %v3389 = vunpack.c.l.b16 %v3236
  %v3390 = vunpack.c.h.b16 %v3236
  %v3391 = vunpack.c.l.b16 %v3237
  %v3392 = vunpack.c.h.b16 %v3237
  %v3393 = vunpack.c.l.b16 %v3238
  %v3394 = vunpack.c.h.b16 %v3238
  %v3395 = vunpack.c.l.b16 %v3239
  %v3396 = vunpack.c.h.b16 %v3239
  %v3397 = vunpack.c.l.b16 %v3240
  %v3398 = vunpack.c.h.b16 %v3240
  %v3399 = vunpack.c.l.b16 %v3241
  %v3400 = vunpack.c.h.b16 %v3241
  %v3401 = vunpack.c.l.b16 %v3242
  %v3402 = vunpack.c.h.b16 %v3242
  %v3403 = vunpack.c.l.b16 %v3243
  %v3404 = vunpack.c.h.b16 %v3243
  %v3405 = vunpack.c.l.b16 %v3244
  %v3406 = vunpack.c.h.b16 %v3244
  %v3407 = vunpack.c.l.b16 %v3245
  %v3408 = vunpack.c.h.b16 %v3245
  %v3409 = vunpack.c.l.b16 %v3246
  %v3410 = vunpack.c.h.b16 %v3246
  %v3411 = vunpack.c.l.b16 %v3247
  %v3412 = vunpack.c.h.b16 %v3247
  %v3413 = vunpack.c.l.b16 %v3248
  %v3414 = vunpack.c.h.b16 %v3248
  %v3415 = vunpack.c.l.b16 %v3249
  %v3416 = vunpack.c.h.b16 %v3249
  %v3417 = vunpack.c.l.b16 %v3250
  %v3418 = vunpack.c.h.b16 %v3250
  %v3419 = vunpack.c.l.b16 %v3251
  %v3420 = vunpack.c.h.b16 %v3251
  %v3421 = vunpack.c.l.b16 %v3252
  %v3422 = vunpack.c.h.b16 %v3252
  %v3423 = vunpack.c.l.b16 %v3253
  %v3424 = vunpack.c.h.b16 %v3253
  %v3425 = vunpack.c.l.b16 %v3254
  %v3426 = vunpack.c.h.b16 %v3254
  %v3427 = vunpack.c.l.b16 %v3255
  %v3428 = vunpack.c.h.b16 %v3255
  %v3429 = vunpack.c.l.b16 %v3256
  %v3430 = vunpack.c.h.b16 %v3256
  %v3431 = vunpack.c.l.b16 %v3257
  %v3432 = vunpack.c.h.b16 %v3257
  %v3433 = vunpack.c.l.b16 %v3258
  %v3434 = vunpack.c.h.b16 %v3258
  %v3435 = vunpack.c.l.b16 %v3259
  %v3436 = vunpack.c.h.b16 %v3259
  %v3437 = vunpack.c.l.b16 %v3260
  %v3438 = vunpack.c.h.b16 %v3260
  %v3439 = vunpack.c.l.b16 %v3261
  %v3440 = vunpack.c.h.b16 %v3261
  %v3441 = vunpack.c.l.b16 %v3262
  %v3442 = vunpack.c.h.b16 %v3262
  %v3443 = vunpack.c.l.b16 %v3263
  %v3444 = vunpack.c.h.b16 %v3263
  %v3445 = vpack.c.b16 %v3397, %v3381
  %v3446 = vpack.c.b16 %v3398, %v3382
  %v3447 = vpack.c.b16 %v3399, %v3383
  %v3448 = vpack.c.b16 %v3400, %v3384
  %v3449 = vpack.c.b16 %v3401, %v3385
  %v3450 = vpack.c.b16 %v3402, %v3386
  %v3451 = vpack.c.b16 %v3403, %v3387
  %v3452 = vpack.c.b16 %v3404, %v3388
  %v3453 = vpack.c.b16 %v3405, %v3389
  %v3454 = vpack.c.b16 %v3406, %v3390
  %v3455 = vpack.c.b16 %v3407, %v3391
  %v3456 = vpack.c.b16 %v3408, %v3392
  %v3457 = vpack.c.b16 %v3409, %v3393
  %v3458 = vpack.c.b16 %v3410, %v3394
  %v3459 = vpack.c.b16 %v3411, %v3395
  %v3460 = vpack.c.b16 %v3412, %v3396
  %v3461 = vpack.c.b16 %v3429, %v3413
  %v3462 = vpack.c.b16 %v3430, %v3414
  %v3463 = vpack.c.b16 %v3431, %v3415
  %v3464 = vpack.c.b16 %v3432, %v3416
  %v3465 = vpack.c.b16 %v3433, %v3417
  %v3466 = vpack.c.b16 %v3434, %v3418
  %v3467 = vpack.c.b16 %v3435, %v3419
  %v3468 = vpack.c.b16 %v3436, %v3420
  %v3469 = vpack.c.b16 %v3437, %v3421
  %v3470 = vpack.c.b16 %v3438, %v3422
  %v3471 = vpack.c.b16 %v3439, %v3423
  %v3472 = vpack.c.b16 %v3440, %v3424
  %v3473 = vpack.c.b16 %v3441, %v3425
  %v3474 = vpack.c.b16 %v3442, %v3426
  %v3475 = vpack.c.b16 %v3443, %v3427
  %v3476 = vpack.c.b16 %v3444, %v3428
  %v3510 = vsel %vm100, %v3264, 0
  %3512 = vmatprep.subr.bf16.mxu0 0
  %3513 = vmatpush1.bf16.msra.mxu0 0
  %3514 = vmatprep.subr.bf16.mxu0 0
  %3515 = vmatpush1.bf16.msra.mxu0 0
  %3516 = vmatprep.subr.bf16.mxu0 0
  %3517 = vmatpush1.bf16.msra.mxu0 0
  %3518 = vmatprep.subr.bf16.mxu0 0
  %3519 = vmatpush1.bf16.msra.mxu0 0
  %3520 = vmatprep.subr.bf16.mxu0 0
  %3521 = vmatpush1.bf16.msra.mxu0 0
  %3522 = vmatprep.subr.bf16.mxu0 0
  %3523 = vmatpush1.bf16.msra.mxu0 0
  %3524 = vmatprep.subr.bf16.mxu0 %v3462
  %3525 = vmatpush1.bf16.msra.mxu0 %v3461
  %3526 = vmatprep.subr.bf16.mxu0 %v3446
  %3527 = vmatpush1.bf16.msra.mxu0 %v3445
  %3528 = vmatprep.subr.bf16.mxu0 0
  %3529 = vmatpush2.bf16.msra.mxu0 0
  %3530 = vmatprep.subr.bf16.mxu0 0
  %3531 = vmatpush2.bf16.msra.mxu0 0
  %3532 = vmatprep.subr.bf16.mxu0 0
  %3533 = vmatpush2.bf16.msra.mxu0 0
  %3534 = vmatprep.subr.bf16.mxu0 0
  %3535 = vmatpush2.bf16.msra.mxu0 0
  %3536 = vmatprep.subr.bf16.mxu0 0
  %3537 = vmatpush2.bf16.msra.mxu0 0
  %3538 = vmatprep.subr.bf16.mxu0 0
  %3539 = vmatpush2.bf16.msra.mxu0 0
  %3540 = vmatprep.subr.bf16.mxu0 0
  %3541 = vmatpush2.bf16.msra.mxu0 0
  %3542 = vmatprep.subr.bf16.mxu0 0
  %3543 = vmatpush2.bf16.msra.mxu0 0
  %3544 = vmatprep.mubr.bf16.mxu0 0
  %3545 = vmatmul.mubr.bf16.gmra.mxu0 %v3510
  %v3546 = vpop.f32.mrf.mxu0
  %v3547 = vadd.f32 %v3272, %v3546
  %v3548 = vpop.f32.mrf.mxu0
  %v3549 = vadd.f32 %v3276, %v3548
  %v3550 = vpop.f32.mrf.mxu0
  %v3551 = vadd.f32 %v3272, %v3550
  %v3552 = vpop.f32.mrf.mxu0
  %v3553 = vadd.f32 %v3276, %v3552
  %3554 = vdwg.mxu0
  %3555 = vmatprep.subr.bf16.mxu0 0
  %3556 = vmatpush1.bf16.msra.mxu0 0
  %3557 = vmatprep.subr.bf16.mxu0 0
  %3558 = vmatpush1.bf16.msra.mxu0 0
  %3559 = vmatprep.subr.bf16.mxu0 0
  %3560 = vmatpush1.bf16.msra.mxu0 0
  %3561 = vmatprep.subr.bf16.mxu0 0
  %3562 = vmatpush1.bf16.msra.mxu0 0
  %3563 = vmatprep.subr.bf16.mxu0 0
  %3564 = vmatpush1.bf16.msra.mxu0 0
  %3565 = vmatprep.subr.bf16.mxu0 0
  %3566 = vmatpush1.bf16.msra.mxu0 0
  %3567 = vmatprep.subr.bf16.mxu0 %v3464
  %3568 = vmatpush1.bf16.msra.mxu0 %v3463
  %3569 = vmatprep.subr.bf16.mxu0 %v3448
  %3570 = vmatpush1.bf16.msra.mxu0 %v3447
  %3571 = vmatprep.subr.bf16.mxu0 0
  %3572 = vmatpush2.bf16.msra.mxu0 0
  %3573 = vmatprep.subr.bf16.mxu0 0
  %3574 = vmatpush2.bf16.msra.mxu0 0
  %3575 = vmatprep.subr.bf16.mxu0 0
  %3576 = vmatpush2.bf16.msra.mxu0 0
  %3577 = vmatprep.subr.bf16.mxu0 0
  %3578 = vmatpush2.bf16.msra.mxu0 0
  %3579 = vmatprep.subr.bf16.mxu0 0
  %3580 = vmatpush2.bf16.msra.mxu0 0
  %3581 = vmatprep.subr.bf16.mxu0 0
  %3582 = vmatpush2.bf16.msra.mxu0 0
  %3583 = vmatprep.subr.bf16.mxu0 0
  %3584 = vmatpush2.bf16.msra.mxu0 0
  %3585 = vmatprep.subr.bf16.mxu0 0
  %3586 = vmatpush2.bf16.msra.mxu0 0
  %3587 = vmatprep.mubr.bf16.mxu0 0
  %3588 = vmatmul.mubr.bf16.gmra.mxu0 %v3510
  %v3589 = vpop.f32.mrf.mxu0
  %v3590 = vadd.f32 %v3280, %v3589
  %v3591 = vpop.f32.mrf.mxu0
  %v3592 = vadd.f32 %v3284, %v3591
  %v3593 = vpop.f32.mrf.mxu0
  %v3594 = vadd.f32 %v3280, %v3593
  %v3595 = vpop.f32.mrf.mxu0
  %v3596 = vadd.f32 %v3284, %v3595
  %3597 = vdwg.mxu0
  %3598 = vmatprep.subr.bf16.mxu0 0
  %3599 = vmatpush1.bf16.msra.mxu0 0
  %3600 = vmatprep.subr.bf16.mxu0 0
  %3601 = vmatpush1.bf16.msra.mxu0 0
  %3602 = vmatprep.subr.bf16.mxu0 0
  %3603 = vmatpush1.bf16.msra.mxu0 0
  %3604 = vmatprep.subr.bf16.mxu0 0
  %3605 = vmatpush1.bf16.msra.mxu0 0
  %3606 = vmatprep.subr.bf16.mxu0 0
  %3607 = vmatpush1.bf16.msra.mxu0 0
  %3608 = vmatprep.subr.bf16.mxu0 0
  %3609 = vmatpush1.bf16.msra.mxu0 0
  %3610 = vmatprep.subr.bf16.mxu0 %v3466
  %3611 = vmatpush1.bf16.msra.mxu0 %v3465
  %3612 = vmatprep.subr.bf16.mxu0 %v3450
  %3613 = vmatpush1.bf16.msra.mxu0 %v3449
  %3614 = vmatprep.subr.bf16.mxu0 0
  %3615 = vmatpush2.bf16.msra.mxu0 0
  %3616 = vmatprep.subr.bf16.mxu0 0
  %3617 = vmatpush2.bf16.msra.mxu0 0
  %3618 = vmatprep.subr.bf16.mxu0 0
  %3619 = vmatpush2.bf16.msra.mxu0 0
  %3620 = vmatprep.subr.bf16.mxu0 0
  %3621 = vmatpush2.bf16.msra.mxu0 0
  %3622 = vmatprep.subr.bf16.mxu0 0
  %3623 = vmatpush2.bf16.msra.mxu0 0
  %3624 = vmatprep.subr.bf16.mxu0 0
  %3625 = vmatpush2.bf16.msra.mxu0 0
  %3626 = vmatprep.subr.bf16.mxu0 0
  %3627 = vmatpush2.bf16.msra.mxu0 0
  %3628 = vmatprep.subr.bf16.mxu0 0
  %3629 = vmatpush2.bf16.msra.mxu0 0
  %3630 = vmatprep.mubr.bf16.mxu0 0
  %3631 = vmatmul.mubr.bf16.gmra.mxu0 %v3510
  %v3632 = vpop.f32.mrf.mxu0
  %v3633 = vadd.f32 %v3288, %v3632
  %v3634 = vpop.f32.mrf.mxu0
  %v3635 = vadd.f32 %v3292, %v3634
  %v3636 = vpop.f32.mrf.mxu0
  %v3637 = vadd.f32 %v3288, %v3636
  %v3638 = vpop.f32.mrf.mxu0
  %v3639 = vadd.f32 %v3292, %v3638
  %3640 = vdwg.mxu0
  %3641 = vmatprep.subr.bf16.mxu0 0
  %3642 = vmatpush1.bf16.msra.mxu0 0
  %3643 = vmatprep.subr.bf16.mxu0 0
  %3644 = vmatpush1.bf16.msra.mxu0 0
  %3645 = vmatprep.subr.bf16.mxu0 0
  %3646 = vmatpush1.bf16.msra.mxu0 0
  %3647 = vmatprep.subr.bf16.mxu0 0
  %3648 = vmatpush1.bf16.msra.mxu0 0
  %3649 = vmatprep.subr.bf16.mxu0 0
  %3650 = vmatpush1.bf16.msra.mxu0 0
  %3651 = vmatprep.subr.bf16.mxu0 0
  %3652 = vmatpush1.bf16.msra.mxu0 0
  %3653 = vmatprep.subr.bf16.mxu0 %v3468
  %3654 = vmatpush1.bf16.msra.mxu0 %v3467
  %3655 = vmatprep.subr.bf16.mxu0 %v3452
  %3656 = vmatpush1.bf16.msra.mxu0 %v3451
  %3657 = vmatprep.subr.bf16.mxu0 0
  %3658 = vmatpush2.bf16.msra.mxu0 0
  %3659 = vmatprep.subr.bf16.mxu0 0
  %3660 = vmatpush2.bf16.msra.mxu0 0
  %3661 = vmatprep.subr.bf16.mxu0 0
  %3662 = vmatpush2.bf16.msra.mxu0 0
  %3663 = vmatprep.subr.bf16.mxu0 0
  %3664 = vmatpush2.bf16.msra.mxu0 0
  %3665 = vmatprep.subr.bf16.mxu0 0
  %3666 = vmatpush2.bf16.msra.mxu0 0
  %3667 = vmatprep.subr.bf16.mxu0 0
  %3668 = vmatpush2.bf16.msra.mxu0 0
  %3669 = vmatprep.subr.bf16.mxu0 0
  %3670 = vmatpush2.bf16.msra.mxu0 0
  %3671 = vmatprep.subr.bf16.mxu0 0
  %3672 = vmatpush2.bf16.msra.mxu0 0
  %3673 = vmatprep.mubr.bf16.mxu0 0
  %3674 = vmatmul.mubr.bf16.gmra.mxu0 %v3510
  %v3675 = vpop.f32.mrf.mxu0
  %v3676 = vadd.f32 %v3296, %v3675
  %v3677 = vpop.f32.mrf.mxu0
  %v3678 = vadd.f32 %v3300, %v3677
  %v3679 = vpop.f32.mrf.mxu0
  %v3680 = vadd.f32 %v3296, %v3679
  %v3681 = vpop.f32.mrf.mxu0
  %v3682 = vadd.f32 %v3300, %v3681
  %3683 = vdwg.mxu0
  %3684 = vmatprep.subr.bf16.mxu0 0
  %3685 = vmatpush1.bf16.msra.mxu0 0
  %3686 = vmatprep.subr.bf16.mxu0 0
  %3687 = vmatpush1.bf16.msra.mxu0 0
  %3688 = vmatprep.subr.bf16.mxu0 0
  %3689 = vmatpush1.bf16.msra.mxu0 0
  %3690 = vmatprep.subr.bf16.mxu0 0
  %3691 = vmatpush1.bf16.msra.mxu0 0
  %3692 = vmatprep.subr.bf16.mxu0 0
  %3693 = vmatpush1.bf16.msra.mxu0 0
  %3694 = vmatprep.subr.bf16.mxu0 0
  %3695 = vmatpush1.bf16.msra.mxu0 0
  %3696 = vmatprep.subr.bf16.mxu0 %v3470
  %3697 = vmatpush1.bf16.msra.mxu0 %v3469
  %3698 = vmatprep.subr.bf16.mxu0 %v3454
  %3699 = vmatpush1.bf16.msra.mxu0 %v3453
  %3700 = vmatprep.subr.bf16.mxu0 0
  %3701 = vmatpush2.bf16.msra.mxu0 0
  %3702 = vmatprep.subr.bf16.mxu0 0
  %3703 = vmatpush2.bf16.msra.mxu0 0
  %3704 = vmatprep.subr.bf16.mxu0 0
  %3705 = vmatpush2.bf16.msra.mxu0 0
  %3706 = vmatprep.subr.bf16.mxu0 0
  %3707 = vmatpush2.bf16.msra.mxu0 0
  %3708 = vmatprep.subr.bf16.mxu0 0
  %3709 = vmatpush2.bf16.msra.mxu0 0
  %3710 = vmatprep.subr.bf16.mxu0 0
  %3711 = vmatpush2.bf16.msra.mxu0 0
  %3712 = vmatprep.subr.bf16.mxu0 0
  %3713 = vmatpush2.bf16.msra.mxu0 0
  %3714 = vmatprep.subr.bf16.mxu0 0
  %3715 = vmatpush2.bf16.msra.mxu0 0
  %3716 = vmatprep.mubr.bf16.mxu0 0
  %3717 = vmatmul.mubr.bf16.gmra.mxu0 %v3510
  %v3718 = vpop.f32.mrf.mxu0
  %v3719 = vadd.f32 %v3304, %v3718
  %v3720 = vpop.f32.mrf.mxu0
  %v3721 = vadd.f32 %v3308, %v3720
  %v3722 = vpop.f32.mrf.mxu0
  %v3723 = vadd.f32 %v3304, %v3722
  %v3724 = vpop.f32.mrf.mxu0
  %v3725 = vadd.f32 %v3308, %v3724
  %3726 = vdwg.mxu0
  %3727 = vmatprep.subr.bf16.mxu0 0
  %3728 = vmatpush1.bf16.msra.mxu0 0
  %3729 = vmatprep.subr.bf16.mxu0 0
  %3730 = vmatpush1.bf16.msra.mxu0 0
  %3731 = vmatprep.subr.bf16.mxu0 0
  %3732 = vmatpush1.bf16.msra.mxu0 0
  %3733 = vmatprep.subr.bf16.mxu0 0
  %3734 = vmatpush1.bf16.msra.mxu0 0
  %3735 = vmatprep.subr.bf16.mxu0 0
  %3736 = vmatpush1.bf16.msra.mxu0 0
  %3737 = vmatprep.subr.bf16.mxu0 0
  %3738 = vmatpush1.bf16.msra.mxu0 0
  %3739 = vmatprep.subr.bf16.mxu0 %v3472
  %3740 = vmatpush1.bf16.msra.mxu0 %v3471
  %3741 = vmatprep.subr.bf16.mxu0 %v3456
  %3742 = vmatpush1.bf16.msra.mxu0 %v3455
  %3743 = vmatprep.subr.bf16.mxu0 0
  %3744 = vmatpush2.bf16.msra.mxu0 0
  %3745 = vmatprep.subr.bf16.mxu0 0
  %3746 = vmatpush2.bf16.msra.mxu0 0
  %3747 = vmatprep.subr.bf16.mxu0 0
  %3748 = vmatpush2.bf16.msra.mxu0 0
  %3749 = vmatprep.subr.bf16.mxu0 0
  %3750 = vmatpush2.bf16.msra.mxu0 0
  %3751 = vmatprep.subr.bf16.mxu0 0
  %3752 = vmatpush2.bf16.msra.mxu0 0
  %3753 = vmatprep.subr.bf16.mxu0 0
  %3754 = vmatpush2.bf16.msra.mxu0 0
  %3755 = vmatprep.subr.bf16.mxu0 0
  %3756 = vmatpush2.bf16.msra.mxu0 0
  %3757 = vmatprep.subr.bf16.mxu0 0
  %3758 = vmatpush2.bf16.msra.mxu0 0
  %3759 = vmatprep.mubr.bf16.mxu0 0
  %3760 = vmatmul.mubr.bf16.gmra.mxu0 %v3510
  %v3761 = vpop.f32.mrf.mxu0
  %v3762 = vadd.f32 %v3312, %v3761
  %v3763 = vpop.f32.mrf.mxu0
  %v3764 = vadd.f32 %v3316, %v3763
  %v3765 = vpop.f32.mrf.mxu0
  %v3766 = vadd.f32 %v3312, %v3765
  %v3767 = vpop.f32.mrf.mxu0
  %v3768 = vadd.f32 %v3316, %v3767
  %3769 = vdwg.mxu0
  %3770 = vmatprep.subr.bf16.mxu0 0
  %3771 = vmatpush1.bf16.msra.mxu0 0
  %3772 = vmatprep.subr.bf16.mxu0 0
  %3773 = vmatpush1.bf16.msra.mxu0 0
  %3774 = vmatprep.subr.bf16.mxu0 0
  %3775 = vmatpush1.bf16.msra.mxu0 0
  %3776 = vmatprep.subr.bf16.mxu0 0
  %3777 = vmatpush1.bf16.msra.mxu0 0
  %3778 = vmatprep.subr.bf16.mxu0 0
  %3779 = vmatpush1.bf16.msra.mxu0 0
  %3780 = vmatprep.subr.bf16.mxu0 0
  %3781 = vmatpush1.bf16.msra.mxu0 0
  %3782 = vmatprep.subr.bf16.mxu0 %v3474
  %3783 = vmatpush1.bf16.msra.mxu0 %v3473
  %3784 = vmatprep.subr.bf16.mxu0 %v3458
  %3785 = vmatpush1.bf16.msra.mxu0 %v3457
  %3786 = vmatprep.subr.bf16.mxu0 0
  %3787 = vmatpush2.bf16.msra.mxu0 0
  %3788 = vmatprep.subr.bf16.mxu0 0
  %3789 = vmatpush2.bf16.msra.mxu0 0
  %3790 = vmatprep.subr.bf16.mxu0 0
  %3791 = vmatpush2.bf16.msra.mxu0 0
  %3792 = vmatprep.subr.bf16.mxu0 0
  %3793 = vmatpush2.bf16.msra.mxu0 0
  %3794 = vmatprep.subr.bf16.mxu0 0
  %3795 = vmatpush2.bf16.msra.mxu0 0
  %3796 = vmatprep.subr.bf16.mxu0 0
  %3797 = vmatpush2.bf16.msra.mxu0 0
  %3798 = vmatprep.subr.bf16.mxu0 0
  %3799 = vmatpush2.bf16.msra.mxu0 0
  %3800 = vmatprep.subr.bf16.mxu0 0
  %3801 = vmatpush2.bf16.msra.mxu0 0
  %3802 = vmatprep.mubr.bf16.mxu0 0
  %3803 = vmatmul.mubr.bf16.gmra.mxu0 %v3510
  %v3804 = vpop.f32.mrf.mxu0
  %v3805 = vadd.f32 %v3320, %v3804
  %v3806 = vpop.f32.mrf.mxu0
  %v3807 = vadd.f32 %v3324, %v3806
  %v3808 = vpop.f32.mrf.mxu0
  %v3809 = vadd.f32 %v3320, %v3808
  %v3810 = vpop.f32.mrf.mxu0
  %v3811 = vadd.f32 %v3324, %v3810
  %3812 = vdwg.mxu0
  %3813 = vmatprep.subr.bf16.mxu0 0
  %3814 = vmatpush1.bf16.msra.mxu0 0
  %3815 = vmatprep.subr.bf16.mxu0 0
  %3816 = vmatpush1.bf16.msra.mxu0 0
  %3817 = vmatprep.subr.bf16.mxu0 0
  %3818 = vmatpush1.bf16.msra.mxu0 0
  %3819 = vmatprep.subr.bf16.mxu0 0
  %3820 = vmatpush1.bf16.msra.mxu0 0
  %3821 = vmatprep.subr.bf16.mxu0 0
  %3822 = vmatpush1.bf16.msra.mxu0 0
  %3823 = vmatprep.subr.bf16.mxu0 0
  %3824 = vmatpush1.bf16.msra.mxu0 0
  %3825 = vmatprep.subr.bf16.mxu0 %v3476
  %3826 = vmatpush1.bf16.msra.mxu0 %v3475
  %3827 = vmatprep.subr.bf16.mxu0 %v3460
  %3828 = vmatpush1.bf16.msra.mxu0 %v3459
  %3829 = vmatprep.subr.bf16.mxu0 0
  %3830 = vmatpush2.bf16.msra.mxu0 0
  %3831 = vmatprep.subr.bf16.mxu0 0
  %3832 = vmatpush2.bf16.msra.mxu0 0
  %3833 = vmatprep.subr.bf16.mxu0 0
  %3834 = vmatpush2.bf16.msra.mxu0 0
  %3835 = vmatprep.subr.bf16.mxu0 0
  %3836 = vmatpush2.bf16.msra.mxu0 0
  %3837 = vmatprep.subr.bf16.mxu0 0
  %3838 = vmatpush2.bf16.msra.mxu0 0
  %3839 = vmatprep.subr.bf16.mxu0 0
  %3840 = vmatpush2.bf16.msra.mxu0 0
  %3841 = vmatprep.subr.bf16.mxu0 0
  %3842 = vmatpush2.bf16.msra.mxu0 0
  %3843 = vmatprep.subr.bf16.mxu0 0
  %3844 = vmatpush2.bf16.msra.mxu0 0
  %3845 = vmatprep.mubr.bf16.mxu0 0
  %3846 = vmatmul.mubr.bf16.gmra.mxu0 %v3510
  %v3847 = vpop.f32.mrf.mxu0
  %v3848 = vadd.f32 %v3328, %v3847
  %v3849 = vpop.f32.mrf.mxu0
  %v3850 = vadd.f32 %v3332, %v3849
  %v3851 = vpop.f32.mrf.mxu0
  %v3852 = vadd.f32 %v3328, %v3851
  %v3853 = vpop.f32.mrf.mxu0
  %v3854 = vadd.f32 %v3332, %v3853
  %3855 = vdwg.mxu0
  %v3856 = vmax.f32 %v3547, 0.0
  %v3857 = vmax.f32 %v3549, 0.0
  %v3858 = vmax.f32 %v3590, 0.0
  %v3859 = vmax.f32 %v3592, 0.0
  %v3860 = vmax.f32 %v3633, 0.0
  %v3861 = vmax.f32 %v3635, 0.0
  %v3862 = vmax.f32 %v3676, 0.0
  %v3863 = vmax.f32 %v3678, 0.0
  %v3864 = vmax.f32 %v3719, 0.0
  %v3865 = vmax.f32 %v3721, 0.0
  %v3866 = vmax.f32 %v3762, 0.0
  %v3867 = vmax.f32 %v3764, 0.0
  %v3868 = vmax.f32 %v3805, 0.0
  %v3869 = vmax.f32 %v3807, 0.0
  %v3870 = vmax.f32 %v3848, 0.0
  %v3871 = vmax.f32 %v3850, 0.0
  %v3872 = vmax.f32 %v3551, 0.0
  %v3873 = vmax.f32 %v3553, 0.0
  %v3874 = vmax.f32 %v3594, 0.0
  %v3875 = vmax.f32 %v3596, 0.0
  %v3876 = vmax.f32 %v3637, 0.0
  %v3877 = vmax.f32 %v3639, 0.0
  %v3878 = vmax.f32 %v3680, 0.0
  %v3879 = vmax.f32 %v3682, 0.0
  %v3880 = vmax.f32 %v3723, 0.0
  %v3881 = vmax.f32 %v3725, 0.0
  %v3882 = vmax.f32 %v3766, 0.0
  %v3883 = vmax.f32 %v3768, 0.0
  %v3884 = vmax.f32 %v3809, 0.0
  %v3885 = vmax.f32 %v3811, 0.0
  %v3886 = vmax.f32 %v3852, 0.0
  %v3887 = vmax.f32 %v3854, 0.0
  %v3888 = vld [vmem:[%s18] sm:$0xf]
  %v3889 = vld [vmem:[%s18 + $0x4] sm:$0xf]
  %v3890 = vld [vmem:[%s18 + $0x8] sm:$0xf]
  %v3891 = vld [vmem:[%s18 + $0xc] sm:$0xf]
  %v3892 = vld [vmem:[%s18 + $0x10] sm:$0xf]
  %v3893 = vld [vmem:[%s18 + $0x14] sm:$0xf]
  %v3894 = vld [vmem:[%s18 + $0x18] sm:$0xf]
  %v3895 = vld [vmem:[%s18 + $0x1c] sm:$0xf]
  %v3896 = vld [vmem:[%s18 + $0x20] sm:$0xf]
  %v3897 = vld [vmem:[%s18 + $0x24] sm:$0xf]
  %v3898 = vld [vmem:[%s18 + $0x28] sm:$0xf]
  %v3899 = vld [vmem:[%s18 + $0x2c] sm:$0xf]
  %v3900 = vld [vmem:[%s18 + $0x30] sm:$0xf]
  %v3901 = vld [vmem:[%s18 + $0x34] sm:$0xf]
  %v3902 = vld [vmem:[%s18 + $0x38] sm:$0xf]
  %v3903 = vld [vmem:[%s18 + $0x3c] sm:$0xf]
  %v3904 = vld [vmem:[%s18 + $0x40] sm:$0xf]
  %v3905 = vld [vmem:[%s18 + $0x44] sm:$0xf]
  %v3906 = vld [vmem:[%s18 + $0x48] sm:$0xf]
  %v3907 = vld [vmem:[%s18 + $0x4c] sm:$0xf]
  %v3908 = vld [vmem:[%s18 + $0x50] sm:$0xf]
  %v3909 = vld [vmem:[%s18 + $0x54] sm:$0xf]
  %v3910 = vld [vmem:[%s18 + $0x58] sm:$0xf]
  %v3911 = vld [vmem:[%s18 + $0x5c] sm:$0xf]
  %v3912 = vld [vmem:[%s18 + $0x60] sm:$0xf]
  %v3913 = vld [vmem:[%s18 + $0x64] sm:$0xf]
  %v3914 = vld [vmem:[%s18 + $0x68] sm:$0xf]
  %v3915 = vld [vmem:[%s18 + $0x6c] sm:$0xf]
  %v3916 = vld [vmem:[%s18 + $0x70] sm:$0xf]
  %v3917 = vld [vmem:[%s18 + $0x74] sm:$0xf]
  %v3918 = vld [vmem:[%s18 + $0x78] sm:$0xf]
  %v3919 = vld [vmem:[%s18 + $0x7c] sm:$0xf]
  %v3920 = vld [vmem:[%s18 + $0x80] sm:$0xf]
  %v3921 = vld [vmem:[%s18 + $0x84] sm:$0xf]
  %v3922 = vld [vmem:[%s18 + $0x88] sm:$0xf]
  %v3923 = vld [vmem:[%s18 + $0x8c] sm:$0xf]
  %v3924 = vld [vmem:[%s18 + $0x90] sm:$0xf]
  %v3925 = vld [vmem:[%s18 + $0x94] sm:$0xf]
  %v3926 = vld [vmem:[%s18 + $0x98] sm:$0xf]
  %v3927 = vld [vmem:[%s18 + $0x9c] sm:$0xf]
  %v3928 = vld [vmem:[%s18 + $0xa0] sm:$0xf]
  %v3929 = vld [vmem:[%s18 + $0xa4] sm:$0xf]
  %v3930 = vld [vmem:[%s18 + $0xa8] sm:$0xf]
  %v3931 = vld [vmem:[%s18 + $0xac] sm:$0xf]
  %v3932 = vld [vmem:[%s18 + $0xb0] sm:$0xf]
  %v3933 = vld [vmem:[%s18 + $0xb4] sm:$0xf]
  %v3934 = vld [vmem:[%s18 + $0xb8] sm:$0xf]
  %v3935 = vld [vmem:[%s18 + $0xbc] sm:$0xf]
  %v3936 = vld [vmem:[%s18 + $0xc0] sm:$0xf]
  %v3937 = vld [vmem:[%s18 + $0xc4] sm:$0xf]
  %v3938 = vld [vmem:[%s18 + $0xc8] sm:$0xf]
  %v3939 = vld [vmem:[%s18 + $0xcc] sm:$0xf]
  %v3940 = vld [vmem:[%s18 + $0xd0] sm:$0xf]
  %v3941 = vld [vmem:[%s18 + $0xd4] sm:$0xf]
  %v3942 = vld [vmem:[%s18 + $0xd8] sm:$0xf]
  %v3943 = vld [vmem:[%s18 + $0xdc] sm:$0xf]
  %v3944 = vld [vmem:[%s18 + $0xe0] sm:$0xf]
  %v3945 = vld [vmem:[%s18 + $0xe4] sm:$0xf]
  %v3946 = vld [vmem:[%s18 + $0xe8] sm:$0xf]
  %v3947 = vld [vmem:[%s18 + $0xec] sm:$0xf]
  %v3948 = vld [vmem:[%s18 + $0xf0] sm:$0xf]
  %v3949 = vld [vmem:[%s18 + $0xf4] sm:$0xf]
  %v3950 = vld [vmem:[%s18 + $0xf8] sm:$0xf]
  %v3951 = vld [vmem:[%s18 + $0xfc] sm:$0xf]
  %v3952 = vld [vmem:[%s18 + $0x100] sm:$0xf]
  %v3953 = vld [vmem:[%s18 + $0x104] sm:$0xf]
  %v3954 = vld [vmem:[%s18 + $0x108] sm:$0xf]
  %v3955 = vld [vmem:[%s18 + $0x10c] sm:$0xf]
  %v3956 = vld [vmem:[%s18 + $0x110] sm:$0xf]
  %v3957 = vld [vmem:[%s18 + $0x114] sm:$0xf]
  %v3958 = vld [vmem:[%s18 + $0x118] sm:$0xf]
  %v3959 = vld [vmem:[%s18 + $0x11c] sm:$0xf]
  %v3960 = vld [vmem:[%s18 + $0x120] sm:$0xf]
  %v3961 = vld [vmem:[%s18 + $0x124] sm:$0xf]
  %v3962 = vld [vmem:[%s18 + $0x128] sm:$0xf]
  %v3963 = vld [vmem:[%s18 + $0x12c] sm:$0xf]
  %v3964 = vld [vmem:[%s18 + $0x130] sm:$0xf]
  %v3965 = vld [vmem:[%s18 + $0x134] sm:$0xf]
  %v3966 = vld [vmem:[%s18 + $0x138] sm:$0xf]
  %v3967 = vld [vmem:[%s18 + $0x13c] sm:$0xf]
  %v3968 = vld [vmem:[%s18 + $0x140] sm:$0xf]
  %v3969 = vld [vmem:[%s18 + $0x144] sm:$0xf]
  %v3970 = vld [vmem:[%s18 + $0x148] sm:$0xf]
  %v3971 = vld [vmem:[%s18 + $0x14c] sm:$0xf]
  %v3972 = vld [vmem:[%s18 + $0x150] sm:$0xf]
  %v3973 = vld [vmem:[%s18 + $0x154] sm:$0xf]
  %v3974 = vld [vmem:[%s18 + $0x158] sm:$0xf]
  %v3975 = vld [vmem:[%s18 + $0x15c] sm:$0xf]
  %v3976 = vld [vmem:[%s18 + $0x160] sm:$0xf]
  %v3977 = vld [vmem:[%s18 + $0x164] sm:$0xf]
  %v3978 = vld [vmem:[%s18 + $0x168] sm:$0xf]
  %v3979 = vld [vmem:[%s18 + $0x16c] sm:$0xf]
  %v3980 = vld [vmem:[%s18 + $0x170] sm:$0xf]
  %v3981 = vld [vmem:[%s18 + $0x174] sm:$0xf]
  %v3982 = vld [vmem:[%s18 + $0x178] sm:$0xf]
  %v3983 = vld [vmem:[%s18 + $0x17c] sm:$0xf]
  %v3984 = vld [vmem:[%s18 + $0x180] sm:$0xf]
  %v3985 = vld [vmem:[%s18 + $0x184] sm:$0xf]
  %v3986 = vld [vmem:[%s18 + $0x188] sm:$0xf]
  %v3987 = vld [vmem:[%s18 + $0x18c] sm:$0xf]
  %v3988 = vld [vmem:[%s18 + $0x190] sm:$0xf]
  %v3989 = vld [vmem:[%s18 + $0x194] sm:$0xf]
  %v3990 = vld [vmem:[%s18 + $0x198] sm:$0xf]
  %v3991 = vld [vmem:[%s18 + $0x19c] sm:$0xf]
  %v3992 = vld [vmem:[%s18 + $0x1a0] sm:$0xf]
  %v3993 = vld [vmem:[%s18 + $0x1a4] sm:$0xf]
  %v3994 = vld [vmem:[%s18 + $0x1a8] sm:$0xf]
  %v3995 = vld [vmem:[%s18 + $0x1ac] sm:$0xf]
  %v3996 = vld [vmem:[%s18 + $0x1b0] sm:$0xf]
  %v3997 = vld [vmem:[%s18 + $0x1b4] sm:$0xf]
  %v3998 = vld [vmem:[%s18 + $0x1b8] sm:$0xf]
  %v3999 = vld [vmem:[%s18 + $0x1bc] sm:$0xf]
  %v4000 = vld [vmem:[%s18 + $0x1c0] sm:$0xf]
  %v4001 = vld [vmem:[%s18 + $0x1c4] sm:$0xf]
  %v4002 = vld [vmem:[%s18 + $0x1c8] sm:$0xf]
  %v4003 = vld [vmem:[%s18 + $0x1cc] sm:$0xf]
  %v4004 = vld [vmem:[%s18 + $0x1d0] sm:$0xf]
  %v4005 = vld [vmem:[%s18 + $0x1d4] sm:$0xf]
  %v4006 = vld [vmem:[%s18 + $0x1d8] sm:$0xf]
  %v4007 = vld [vmem:[%s18 + $0x1dc] sm:$0xf]
  %v4008 = vld [vmem:[%s18 + $0x1e0] sm:$0xf]
  %v4009 = vld [vmem:[%s18 + $0x1e4] sm:$0xf]
  %v4010 = vld [vmem:[%s18 + $0x1e8] sm:$0xf]
  %v4011 = vld [vmem:[%s18 + $0x1ec] sm:$0xf]
  %v4012 = vld [vmem:[%s18 + $0x1f0] sm:$0xf]
  %v4013 = vld [vmem:[%s18 + $0x1f4] sm:$0xf]
  %v4014 = vld [vmem:[%s18 + $0x1f8] sm:$0xf]
  %v4015 = vld [vmem:[%s18 + $0x1fc] sm:$0xf]
  %v4016 = vld [vmem:[%s18 + $0x200] sm:$0xf]
  %v4017 = vld [vmem:[%s18 + $0x204] sm:$0xf]
  %v4018 = vld [vmem:[%s18 + $0x208] sm:$0xf]
  %v4019 = vld [vmem:[%s18 + $0x20c] sm:$0xf]
  %v4020 = vld [vmem:[%s18 + $0x210] sm:$0xf]
  %v4021 = vld [vmem:[%s18 + $0x214] sm:$0xf]
  %v4022 = vld [vmem:[%s18 + $0x218] sm:$0xf]
  %v4023 = vld [vmem:[%s18 + $0x21c] sm:$0xf]
  %v4024 = vld [vmem:[%s18 + $0x220] sm:$0xf]
  %v4025 = vld [vmem:[%s18 + $0x224] sm:$0xf]
  %v4026 = vld [vmem:[%s18 + $0x228] sm:$0xf]
  %v4027 = vld [vmem:[%s18 + $0x22c] sm:$0xf]
  %v4028 = vld [vmem:[%s18 + $0x230] sm:$0xf]
  %v4029 = vld [vmem:[%s18 + $0x234] sm:$0xf]
  %v4030 = vld [vmem:[%s18 + $0x238] sm:$0xf]
  %v4031 = vld [vmem:[%s18 + $0x23c] sm:$0xf]
  %v4032 = vld [vmem:[%s18 + $0x240] sm:$0xf]
  %v4033 = vld [vmem:[%s18 + $0x244] sm:$0xf]
  %v4034 = vld [vmem:[%s18 + $0x248] sm:$0xf]
  %v4035 = vld [vmem:[%s18 + $0x24c] sm:$0xf]
  %v4036 = vld [vmem:[%s18 + $0x250] sm:$0xf]
  %v4037 = vld [vmem:[%s18 + $0x254] sm:$0xf]
  %v4038 = vld [vmem:[%s18 + $0x258] sm:$0xf]
  %v4039 = vld [vmem:[%s18 + $0x25c] sm:$0xf]
  %v4040 = vld [vmem:[%s18 + $0x260] sm:$0xf]
  %v4041 = vld [vmem:[%s18 + $0x264] sm:$0xf]
  %v4042 = vld [vmem:[%s18 + $0x268] sm:$0xf]
  %v4043 = vld [vmem:[%s18 + $0x26c] sm:$0xf]
  %v4044 = vld [vmem:[%s18 + $0x270] sm:$0xf]
  %v4045 = vld [vmem:[%s18 + $0x274] sm:$0xf]
  %v4046 = vld [vmem:[%s18 + $0x278] sm:$0xf]
  %v4047 = vld [vmem:[%s18 + $0x27c] sm:$0xf]
  %v4048 = vld [vmem:[%s18 + $0x280] sm:$0xf]
  %v4049 = vld [vmem:[%s18 + $0x284] sm:$0xf]
  %v4050 = vld [vmem:[%s18 + $0x288] sm:$0xf]
  %v4051 = vld [vmem:[%s18 + $0x28c] sm:$0xf]
  %v4052 = vld [vmem:[%s18 + $0x290] sm:$0xf]
  %v4053 = vld [vmem:[%s18 + $0x294] sm:$0xf]
  %v4054 = vld [vmem:[%s18 + $0x298] sm:$0xf]
  %v4055 = vld [vmem:[%s18 + $0x29c] sm:$0xf]
  %v4056 = vld [vmem:[%s18 + $0x2a0] sm:$0xf]
  %v4057 = vld [vmem:[%s18 + $0x2a4] sm:$0xf]
  %v4058 = vld [vmem:[%s18 + $0x2a8] sm:$0xf]
  %v4059 = vld [vmem:[%s18 + $0x2ac] sm:$0xf]
  %v4060 = vld [vmem:[%s18 + $0x2b0] sm:$0xf]
  %v4061 = vld [vmem:[%s18 + $0x2b4] sm:$0xf]
  %v4062 = vld [vmem:[%s18 + $0x2b8] sm:$0xf]
  %v4063 = vld [vmem:[%s18 + $0x2bc] sm:$0xf]
  %v4064 = vld [vmem:[%s18 + $0x2c0] sm:$0xf]
  %v4065 = vld [vmem:[%s18 + $0x2c4] sm:$0xf]
  %v4066 = vld [vmem:[%s18 + $0x2c8] sm:$0xf]
  %v4067 = vld [vmem:[%s18 + $0x2cc] sm:$0xf]
  %v4068 = vld [vmem:[%s18 + $0x2d0] sm:$0xf]
  %v4069 = vld [vmem:[%s18 + $0x2d4] sm:$0xf]
  %v4070 = vld [vmem:[%s18 + $0x2d8] sm:$0xf]
  %v4071 = vld [vmem:[%s18 + $0x2dc] sm:$0xf]
  %v4072 = vld [vmem:[%s18 + $0x2e0] sm:$0xf]
  %v4073 = vld [vmem:[%s18 + $0x2e4] sm:$0xf]
  %v4074 = vld [vmem:[%s18 + $0x2e8] sm:$0xf]
  %v4075 = vld [vmem:[%s18 + $0x2ec] sm:$0xf]
  %v4076 = vld [vmem:[%s18 + $0x2f0] sm:$0xf]
  %v4077 = vld [vmem:[%s18 + $0x2f4] sm:$0xf]
  %v4078 = vld [vmem:[%s18 + $0x2f8] sm:$0xf]
  %v4079 = vld [vmem:[%s18 + $0x2fc] sm:$0xf]
  %v4080 = vld [vmem:[%s18 + $0x300] sm:$0xf]
  %v4081 = vld [vmem:[%s18 + $0x304] sm:$0xf]
  %v4082 = vld [vmem:[%s18 + $0x308] sm:$0xf]
  %v4083 = vld [vmem:[%s18 + $0x30c] sm:$0xf]
  %v4084 = vld [vmem:[%s18 + $0x310] sm:$0xf]
  %v4085 = vld [vmem:[%s18 + $0x314] sm:$0xf]
  %v4086 = vld [vmem:[%s18 + $0x318] sm:$0xf]
  %v4087 = vld [vmem:[%s18 + $0x31c] sm:$0xf]
  %v4088 = vld [vmem:[%s18 + $0x320] sm:$0xf]
  %v4089 = vld [vmem:[%s18 + $0x324] sm:$0xf]
  %v4090 = vld [vmem:[%s18 + $0x328] sm:$0xf]
  %v4091 = vld [vmem:[%s18 + $0x32c] sm:$0xf]
  %v4092 = vld [vmem:[%s18 + $0x330] sm:$0xf]
  %v4093 = vld [vmem:[%s18 + $0x334] sm:$0xf]
  %v4094 = vld [vmem:[%s18 + $0x338] sm:$0xf]
  %v4095 = vld [vmem:[%s18 + $0x33c] sm:$0xf]
  %v4096 = vld [vmem:[%s18 + $0x340] sm:$0xf]
  %v4097 = vld [vmem:[%s18 + $0x344] sm:$0xf]
  %v4098 = vld [vmem:[%s18 + $0x348] sm:$0xf]
  %v4099 = vld [vmem:[%s18 + $0x34c] sm:$0xf]
  %v4100 = vld [vmem:[%s18 + $0x350] sm:$0xf]
  %v4101 = vld [vmem:[%s18 + $0x354] sm:$0xf]
  %v4102 = vld [vmem:[%s18 + $0x358] sm:$0xf]
  %v4103 = vld [vmem:[%s18 + $0x35c] sm:$0xf]
  %v4104 = vld [vmem:[%s18 + $0x360] sm:$0xf]
  %v4105 = vld [vmem:[%s18 + $0x364] sm:$0xf]
  %v4106 = vld [vmem:[%s18 + $0x368] sm:$0xf]
  %v4107 = vld [vmem:[%s18 + $0x36c] sm:$0xf]
  %v4108 = vld [vmem:[%s18 + $0x370] sm:$0xf]
  %v4109 = vld [vmem:[%s18 + $0x374] sm:$0xf]
  %v4110 = vld [vmem:[%s18 + $0x378] sm:$0xf]
  %v4111 = vld [vmem:[%s18 + $0x37c] sm:$0xf]
  %v4112 = vld [vmem:[%s18 + $0x380] sm:$0xf]
  %v4113 = vld [vmem:[%s18 + $0x384] sm:$0xf]
  %v4114 = vld [vmem:[%s18 + $0x388] sm:$0xf]
  %v4115 = vld [vmem:[%s18 + $0x38c] sm:$0xf]
  %v4116 = vld [vmem:[%s18 + $0x390] sm:$0xf]
  %v4117 = vld [vmem:[%s18 + $0x394] sm:$0xf]
  %v4118 = vld [vmem:[%s18 + $0x398] sm:$0xf]
  %v4119 = vld [vmem:[%s18 + $0x39c] sm:$0xf]
  %v4120 = vld [vmem:[%s18 + $0x3a0] sm:$0xf]
  %v4121 = vld [vmem:[%s18 + $0x3a4] sm:$0xf]
  %v4122 = vld [vmem:[%s18 + $0x3a8] sm:$0xf]
  %v4123 = vld [vmem:[%s18 + $0x3ac] sm:$0xf]
  %v4124 = vld [vmem:[%s18 + $0x3b0] sm:$0xf]
  %v4125 = vld [vmem:[%s18 + $0x3b4] sm:$0xf]
  %v4126 = vld [vmem:[%s18 + $0x3b8] sm:$0xf]
  %v4127 = vld [vmem:[%s18 + $0x3bc] sm:$0xf]
  %v4128 = vld [vmem:[%s18 + $0x3c0] sm:$0xf]
  %v4129 = vld [vmem:[%s18 + $0x3c4] sm:$0xf]
  %v4130 = vld [vmem:[%s18 + $0x3c8] sm:$0xf]
  %v4131 = vld [vmem:[%s18 + $0x3cc] sm:$0xf]
  %v4132 = vld [vmem:[%s18 + $0x3d0] sm:$0xf]
  %v4133 = vld [vmem:[%s18 + $0x3d4] sm:$0xf]
  %v4134 = vld [vmem:[%s18 + $0x3d8] sm:$0xf]
  %v4135 = vld [vmem:[%s18 + $0x3dc] sm:$0xf]
  %v4136 = vld [vmem:[%s18 + $0x3e0] sm:$0xf]
  %v4137 = vld [vmem:[%s18 + $0x3e4] sm:$0xf]
  %v4138 = vld [vmem:[%s18 + $0x3e8] sm:$0xf]
  %v4139 = vld [vmem:[%s18 + $0x3ec] sm:$0xf]
  %v4140 = vld [vmem:[%s18 + $0x3f0] sm:$0xf]
  %v4141 = vld [vmem:[%s18 + $0x3f4] sm:$0xf]
  %v4142 = vld [vmem:[%s18 + $0x3f8] sm:$0xf]
  %v4143 = vld [vmem:[%s18 + $0x3fc] sm:$0xf]
  %v4144 = vpack.c.bf16 %v3872, %v3856
  %v4145 = vpack.c.bf16 %v3873, %v3857
  %v4146 = vpack.c.bf16 %v3874, %v3858
  %v4147 = vpack.c.bf16 %v3875, %v3859
  %v4148 = vpack.c.bf16 %v3876, %v3860
  %v4149 = vpack.c.bf16 %v3877, %v3861
  %v4150 = vpack.c.bf16 %v3878, %v3862
  %v4151 = vpack.c.bf16 %v3879, %v3863
  %v4152 = vpack.c.bf16 %v3880, %v3864
  %v4153 = vpack.c.bf16 %v3881, %v3865
  %v4154 = vpack.c.bf16 %v3882, %v3866
  %v4155 = vpack.c.bf16 %v3883, %v3867
  %v4156 = vpack.c.bf16 %v3884, %v3868
  %v4157 = vpack.c.bf16 %v3885, %v3869
  %v4158 = vpack.c.bf16 %v3886, %v3870
  %v4159 = vpack.c.bf16 %v3887, %v3871
  %v4160 = vld [vmem:[%s19] sm:$0x1]
  %v4162 = vlaneseq
  %v4163 = vshrl.u32 %v4162, 7
  %v4164 = vsub.s32 0, %v4163
  %v4165 = vrot.slane %v4160, %v4164
  %v4423 = vunpack.c.l.b16 %v3888
  %v4424 = vunpack.c.l.b16 %v3889
  %v4425 = vunpack.c.l.b16 %v3890
  %v4426 = vunpack.c.l.b16 %v3891
  %v4427 = vunpack.c.l.b16 %v3892
  %v4428 = vunpack.c.l.b16 %v3893
  %v4429 = vunpack.c.l.b16 %v3894
  %v4430 = vunpack.c.l.b16 %v3895
  %v4431 = vunpack.c.l.b16 %v3896
  %v4432 = vunpack.c.l.b16 %v3897
  %v4433 = vunpack.c.l.b16 %v3898
  %v4434 = vunpack.c.l.b16 %v3899
  %v4435 = vunpack.c.l.b16 %v3900
  %v4436 = vunpack.c.l.b16 %v3901
  %v4437 = vunpack.c.l.b16 %v3902
  %v4438 = vunpack.c.l.b16 %v3903
  %v4439 = vunpack.c.l.b16 %v3904
  %v4440 = vunpack.c.l.b16 %v3905
  %v4441 = vunpack.c.l.b16 %v3906
  %v4442 = vunpack.c.l.b16 %v3907
  %v4443 = vunpack.c.l.b16 %v3908
  %v4444 = vunpack.c.l.b16 %v3909
  %v4445 = vunpack.c.l.b16 %v3910
  %v4446 = vunpack.c.l.b16 %v3911
  %v4447 = vunpack.c.l.b16 %v3912
  %v4448 = vunpack.c.l.b16 %v3913
  %v4449 = vunpack.c.l.b16 %v3914
  %v4450 = vunpack.c.l.b16 %v3915
  %v4451 = vunpack.c.l.b16 %v3916
  %v4452 = vunpack.c.l.b16 %v3917
  %v4453 = vunpack.c.l.b16 %v3918
  %v4454 = vunpack.c.l.b16 %v3919
  %v4455 = vunpack.c.l.b16 %v3920
  %v4456 = vunpack.c.l.b16 %v3921
  %v4457 = vunpack.c.l.b16 %v3922
  %v4458 = vunpack.c.l.b16 %v3923
  %v4459 = vunpack.c.l.b16 %v3924
  %v4460 = vunpack.c.l.b16 %v3925
  %v4461 = vunpack.c.l.b16 %v3926
  %v4462 = vunpack.c.l.b16 %v3927
  %v4463 = vunpack.c.l.b16 %v3928
  %v4464 = vunpack.c.l.b16 %v3929
  %v4465 = vunpack.c.l.b16 %v3930
  %v4466 = vunpack.c.l.b16 %v3931
  %v4467 = vunpack.c.l.b16 %v3932
  %v4468 = vunpack.c.l.b16 %v3933
  %v4469 = vunpack.c.l.b16 %v3934
  %v4470 = vunpack.c.l.b16 %v3935
  %v4471 = vunpack.c.l.b16 %v3936
  %v4472 = vunpack.c.l.b16 %v3937
  %v4473 = vunpack.c.l.b16 %v3938
  %v4474 = vunpack.c.l.b16 %v3939
  %v4475 = vunpack.c.l.b16 %v3940
  %v4476 = vunpack.c.l.b16 %v3941
  %v4477 = vunpack.c.l.b16 %v3942
  %v4478 = vunpack.c.l.b16 %v3943
  %v4479 = vunpack.c.l.b16 %v3944
  %v4480 = vunpack.c.l.b16 %v3945
  %v4481 = vunpack.c.l.b16 %v3946
  %v4482 = vunpack.c.l.b16 %v3947
  %v4483 = vunpack.c.l.b16 %v3948
  %v4484 = vunpack.c.l.b16 %v3949
  %v4485 = vunpack.c.l.b16 %v3950
  %v4486 = vunpack.c.l.b16 %v3951
  %v4487 = vunpack.c.l.b16 %v3952
  %v4488 = vunpack.c.l.b16 %v3953
  %v4489 = vunpack.c.l.b16 %v3954
  %v4490 = vunpack.c.l.b16 %v3955
  %v4491 = vunpack.c.l.b16 %v3956
  %v4492 = vunpack.c.l.b16 %v3957
  %v4493 = vunpack.c.l.b16 %v3958
  %v4494 = vunpack.c.l.b16 %v3959
  %v4495 = vunpack.c.l.b16 %v3960
  %v4496 = vunpack.c.l.b16 %v3961
  %v4497 = vunpack.c.l.b16 %v3962
  %v4498 = vunpack.c.l.b16 %v3963
  %v4499 = vunpack.c.l.b16 %v3964
  %v4500 = vunpack.c.l.b16 %v3965
  %v4501 = vunpack.c.l.b16 %v3966
  %v4502 = vunpack.c.l.b16 %v3967
  %v4503 = vunpack.c.l.b16 %v3968
  %v4504 = vunpack.c.l.b16 %v3969
  %v4505 = vunpack.c.l.b16 %v3970
  %v4506 = vunpack.c.l.b16 %v3971
  %v4507 = vunpack.c.l.b16 %v3972
  %v4508 = vunpack.c.l.b16 %v3973
  %v4509 = vunpack.c.l.b16 %v3974
  %v4510 = vunpack.c.l.b16 %v3975
  %v4511 = vunpack.c.l.b16 %v3976
  %v4512 = vunpack.c.l.b16 %v3977
  %v4513 = vunpack.c.l.b16 %v3978
  %v4514 = vunpack.c.l.b16 %v3979
  %v4515 = vunpack.c.l.b16 %v3980
  %v4516 = vunpack.c.l.b16 %v3981
  %v4517 = vunpack.c.l.b16 %v3982
  %v4518 = vunpack.c.l.b16 %v3983
  %v4519 = vunpack.c.l.b16 %v3984
  %v4520 = vunpack.c.l.b16 %v3985
  %v4521 = vunpack.c.l.b16 %v3986
  %v4522 = vunpack.c.l.b16 %v3987
  %v4523 = vunpack.c.l.b16 %v3988
  %v4524 = vunpack.c.l.b16 %v3989
  %v4525 = vunpack.c.l.b16 %v3990
  %v4526 = vunpack.c.l.b16 %v3991
  %v4527 = vunpack.c.l.b16 %v3992
  %v4528 = vunpack.c.l.b16 %v3993
  %v4529 = vunpack.c.l.b16 %v3994
  %v4530 = vunpack.c.l.b16 %v3995
  %v4531 = vunpack.c.l.b16 %v3996
  %v4532 = vunpack.c.l.b16 %v3997
  %v4533 = vunpack.c.l.b16 %v3998
  %v4534 = vunpack.c.l.b16 %v3999
  %v4535 = vunpack.c.l.b16 %v4000
  %v4536 = vunpack.c.l.b16 %v4001
  %v4537 = vunpack.c.l.b16 %v4002
  %v4538 = vunpack.c.l.b16 %v4003
  %v4539 = vunpack.c.l.b16 %v4004
  %v4540 = vunpack.c.l.b16 %v4005
  %v4541 = vunpack.c.l.b16 %v4006
  %v4542 = vunpack.c.l.b16 %v4007
  %v4543 = vunpack.c.l.b16 %v4008
  %v4544 = vunpack.c.l.b16 %v4009
  %v4545 = vunpack.c.l.b16 %v4010
  %v4546 = vunpack.c.l.b16 %v4011
  %v4547 = vunpack.c.l.b16 %v4012
  %v4548 = vunpack.c.l.b16 %v4013
  %v4549 = vunpack.c.l.b16 %v4014
  %v4550 = vunpack.c.l.b16 %v4015
  %v4551 = vunpack.c.l.b16 %v4016
  %v4552 = vunpack.c.l.b16 %v4017
  %v4553 = vunpack.c.l.b16 %v4018
  %v4554 = vunpack.c.l.b16 %v4019
  %v4555 = vunpack.c.l.b16 %v4020
  %v4556 = vunpack.c.l.b16 %v4021
  %v4557 = vunpack.c.l.b16 %v4022
  %v4558 = vunpack.c.l.b16 %v4023
  %v4559 = vunpack.c.l.b16 %v4024
  %v4560 = vunpack.c.l.b16 %v4025
  %v4561 = vunpack.c.l.b16 %v4026
  %v4562 = vunpack.c.l.b16 %v4027
  %v4563 = vunpack.c.l.b16 %v4028
  %v4564 = vunpack.c.l.b16 %v4029
  %v4565 = vunpack.c.l.b16 %v4030
  %v4566 = vunpack.c.l.b16 %v4031
  %v4567 = vunpack.c.l.b16 %v4032
  %v4568 = vunpack.c.l.b16 %v4033
  %v4569 = vunpack.c.l.b16 %v4034
  %v4570 = vunpack.c.l.b16 %v4035
  %v4571 = vunpack.c.l.b16 %v4036
  %v4572 = vunpack.c.l.b16 %v4037
  %v4573 = vunpack.c.l.b16 %v4038
  %v4574 = vunpack.c.l.b16 %v4039
  %v4575 = vunpack.c.l.b16 %v4040
  %v4576 = vunpack.c.l.b16 %v4041
  %v4577 = vunpack.c.l.b16 %v4042
  %v4578 = vunpack.c.l.b16 %v4043
  %v4579 = vunpack.c.l.b16 %v4044
  %v4580 = vunpack.c.l.b16 %v4045
  %v4581 = vunpack.c.l.b16 %v4046
  %v4582 = vunpack.c.l.b16 %v4047
  %v4583 = vunpack.c.l.b16 %v4048
  %v4584 = vunpack.c.l.b16 %v4049
  %v4585 = vunpack.c.l.b16 %v4050
  %v4586 = vunpack.c.l.b16 %v4051
  %v4587 = vunpack.c.l.b16 %v4052
  %v4588 = vunpack.c.l.b16 %v4053
  %v4589 = vunpack.c.l.b16 %v4054
  %v4590 = vunpack.c.l.b16 %v4055
  %v4591 = vunpack.c.l.b16 %v4056
  %v4592 = vunpack.c.l.b16 %v4057
  %v4593 = vunpack.c.l.b16 %v4058
  %v4594 = vunpack.c.l.b16 %v4059
  %v4595 = vunpack.c.l.b16 %v4060
  %v4596 = vunpack.c.l.b16 %v4061
  %v4597 = vunpack.c.l.b16 %v4062
  %v4598 = vunpack.c.l.b16 %v4063
  %v4599 = vunpack.c.l.b16 %v4064
  %v4600 = vunpack.c.l.b16 %v4065
  %v4601 = vunpack.c.l.b16 %v4066
  %v4602 = vunpack.c.l.b16 %v4067
  %v4603 = vunpack.c.l.b16 %v4068
  %v4604 = vunpack.c.l.b16 %v4069
  %v4605 = vunpack.c.l.b16 %v4070
  %v4606 = vunpack.c.l.b16 %v4071
  %v4607 = vunpack.c.l.b16 %v4072
  %v4608 = vunpack.c.l.b16 %v4073
  %v4609 = vunpack.c.l.b16 %v4074
  %v4610 = vunpack.c.l.b16 %v4075
  %v4611 = vunpack.c.l.b16 %v4076
  %v4612 = vunpack.c.l.b16 %v4077
  %v4613 = vunpack.c.l.b16 %v4078
  %v4614 = vunpack.c.l.b16 %v4079
  %v4615 = vunpack.c.l.b16 %v4080
  %v4616 = vunpack.c.l.b16 %v4081
  %v4617 = vunpack.c.l.b16 %v4082
  %v4618 = vunpack.c.l.b16 %v4083
  %v4619 = vunpack.c.l.b16 %v4084
  %v4620 = vunpack.c.l.b16 %v4085
  %v4621 = vunpack.c.l.b16 %v4086
  %v4622 = vunpack.c.l.b16 %v4087
  %v4623 = vunpack.c.l.b16 %v4088
  %v4624 = vunpack.c.l.b16 %v4089
  %v4625 = vunpack.c.l.b16 %v4090
  %v4626 = vunpack.c.l.b16 %v4091
  %v4627 = vunpack.c.l.b16 %v4092
  %v4628 = vunpack.c.l.b16 %v4093
  %v4629 = vunpack.c.l.b16 %v4094
  %v4630 = vunpack.c.l.b16 %v4095
  %v4631 = vunpack.c.l.b16 %v4096
  %v4632 = vunpack.c.l.b16 %v4097
  %v4633 = vunpack.c.l.b16 %v4098
  %v4634 = vunpack.c.l.b16 %v4099
  %v4635 = vunpack.c.l.b16 %v4100
  %v4636 = vunpack.c.l.b16 %v4101
  %v4637 = vunpack.c.l.b16 %v4102
  %v4638 = vunpack.c.l.b16 %v4103
  %v4639 = vunpack.c.l.b16 %v4104
  %v4640 = vunpack.c.l.b16 %v4105
  %v4641 = vunpack.c.l.b16 %v4106
  %v4642 = vunpack.c.l.b16 %v4107
  %v4643 = vunpack.c.l.b16 %v4108
  %v4644 = vunpack.c.l.b16 %v4109
  %v4645 = vunpack.c.l.b16 %v4110
  %v4646 = vunpack.c.l.b16 %v4111
  %v4647 = vunpack.c.l.b16 %v4112
  %v4648 = vunpack.c.l.b16 %v4113
  %v4649 = vunpack.c.l.b16 %v4114
  %v4650 = vunpack.c.l.b16 %v4115
  %v4651 = vunpack.c.l.b16 %v4116
  %v4652 = vunpack.c.l.b16 %v4117
  %v4653 = vunpack.c.l.b16 %v4118
  %v4654 = vunpack.c.l.b16 %v4119
  %v4655 = vunpack.c.l.b16 %v4120
  %v4656 = vunpack.c.l.b16 %v4121
  %v4657 = vunpack.c.l.b16 %v4122
  %v4658 = vunpack.c.l.b16 %v4123
  %v4659 = vunpack.c.l.b16 %v4124
  %v4660 = vunpack.c.l.b16 %v4125
  %v4661 = vunpack.c.l.b16 %v4126
  %v4662 = vunpack.c.l.b16 %v4127
  %v4663 = vunpack.c.l.b16 %v4128
  %v4664 = vunpack.c.l.b16 %v4129
  %v4665 = vunpack.c.l.b16 %v4130
  %v4666 = vunpack.c.l.b16 %v4131
  %v4667 = vunpack.c.l.b16 %v4132
  %v4668 = vunpack.c.l.b16 %v4133
  %v4669 = vunpack.c.l.b16 %v4134
  %v4670 = vunpack.c.l.b16 %v4135
  %v4671 = vunpack.c.l.b16 %v4136
  %v4672 = vunpack.c.l.b16 %v4137
  %v4673 = vunpack.c.l.b16 %v4138
  %v4674 = vunpack.c.l.b16 %v4139
  %v4675 = vunpack.c.l.b16 %v4140
  %v4676 = vunpack.c.l.b16 %v4141
  %v4677 = vunpack.c.l.b16 %v4142
  %v4678 = vunpack.c.l.b16 %v4143
  %v4679 = vpack.c.b16 %v4424, %v4423
  %v4680 = vpack.c.b16 %v4426, %v4425
  %v4681 = vpack.c.b16 %v4428, %v4427
  %v4682 = vpack.c.b16 %v4430, %v4429
  %v4683 = vpack.c.b16 %v4432, %v4431
  %v4684 = vpack.c.b16 %v4434, %v4433
  %v4685 = vpack.c.b16 %v4436, %v4435
  %v4686 = vpack.c.b16 %v4438, %v4437
  %v4687 = vpack.c.b16 %v4440, %v4439
  %v4688 = vpack.c.b16 %v4442, %v4441
  %v4689 = vpack.c.b16 %v4444, %v4443
  %v4690 = vpack.c.b16 %v4446, %v4445
  %v4691 = vpack.c.b16 %v4448, %v4447
  %v4692 = vpack.c.b16 %v4450, %v4449
  %v4693 = vpack.c.b16 %v4452, %v4451
  %v4694 = vpack.c.b16 %v4454, %v4453
  %v4695 = vpack.c.b16 %v4456, %v4455
  %v4696 = vpack.c.b16 %v4458, %v4457
  %v4697 = vpack.c.b16 %v4460, %v4459
  %v4698 = vpack.c.b16 %v4462, %v4461
  %v4699 = vpack.c.b16 %v4464, %v4463
  %v4700 = vpack.c.b16 %v4466, %v4465
  %v4701 = vpack.c.b16 %v4468, %v4467
  %v4702 = vpack.c.b16 %v4470, %v4469
  %v4703 = vpack.c.b16 %v4472, %v4471
  %v4704 = vpack.c.b16 %v4474, %v4473
  %v4705 = vpack.c.b16 %v4476, %v4475
  %v4706 = vpack.c.b16 %v4478, %v4477
  %v4707 = vpack.c.b16 %v4480, %v4479
  %v4708 = vpack.c.b16 %v4482, %v4481
  %v4709 = vpack.c.b16 %v4484, %v4483
  %v4710 = vpack.c.b16 %v4486, %v4485
  %v4711 = vpack.c.b16 %v4488, %v4487
  %v4712 = vpack.c.b16 %v4490, %v4489
  %v4713 = vpack.c.b16 %v4492, %v4491
  %v4714 = vpack.c.b16 %v4494, %v4493
  %v4715 = vpack.c.b16 %v4496, %v4495
  %v4716 = vpack.c.b16 %v4498, %v4497
  %v4717 = vpack.c.b16 %v4500, %v4499
  %v4718 = vpack.c.b16 %v4502, %v4501
  %v4719 = vpack.c.b16 %v4504, %v4503
  %v4720 = vpack.c.b16 %v4506, %v4505
  %v4721 = vpack.c.b16 %v4508, %v4507
  %v4722 = vpack.c.b16 %v4510, %v4509
  %v4723 = vpack.c.b16 %v4512, %v4511
  %v4724 = vpack.c.b16 %v4514, %v4513
  %v4725 = vpack.c.b16 %v4516, %v4515
  %v4726 = vpack.c.b16 %v4518, %v4517
  %v4727 = vpack.c.b16 %v4520, %v4519
  %v4728 = vpack.c.b16 %v4522, %v4521
  %v4729 = vpack.c.b16 %v4524, %v4523
  %v4730 = vpack.c.b16 %v4526, %v4525
  %v4731 = vpack.c.b16 %v4528, %v4527
  %v4732 = vpack.c.b16 %v4530, %v4529
  %v4733 = vpack.c.b16 %v4532, %v4531
  %v4734 = vpack.c.b16 %v4534, %v4533
  %v4735 = vpack.c.b16 %v4536, %v4535
  %v4736 = vpack.c.b16 %v4538, %v4537
  %v4737 = vpack.c.b16 %v4540, %v4539
  %v4738 = vpack.c.b16 %v4542, %v4541
  %v4739 = vpack.c.b16 %v4544, %v4543
  %v4740 = vpack.c.b16 %v4546, %v4545
  %v4741 = vpack.c.b16 %v4548, %v4547
  %v4742 = vpack.c.b16 %v4550, %v4549
  %v4743 = vpack.c.b16 %v4552, %v4551
  %v4744 = vpack.c.b16 %v4554, %v4553
  %v4745 = vpack.c.b16 %v4556, %v4555
  %v4746 = vpack.c.b16 %v4558, %v4557
  %v4747 = vpack.c.b16 %v4560, %v4559
  %v4748 = vpack.c.b16 %v4562, %v4561
  %v4749 = vpack.c.b16 %v4564, %v4563
  %v4750 = vpack.c.b16 %v4566, %v4565
  %v4751 = vpack.c.b16 %v4568, %v4567
  %v4752 = vpack.c.b16 %v4570, %v4569
  %v4753 = vpack.c.b16 %v4572, %v4571
  %v4754 = vpack.c.b16 %v4574, %v4573
  %v4755 = vpack.c.b16 %v4576, %v4575
  %v4756 = vpack.c.b16 %v4578, %v4577
  %v4757 = vpack.c.b16 %v4580, %v4579
  %v4758 = vpack.c.b16 %v4582, %v4581
  %v4759 = vpack.c.b16 %v4584, %v4583
  %v4760 = vpack.c.b16 %v4586, %v4585
  %v4761 = vpack.c.b16 %v4588, %v4587
  %v4762 = vpack.c.b16 %v4590, %v4589
  %v4763 = vpack.c.b16 %v4592, %v4591
  %v4764 = vpack.c.b16 %v4594, %v4593
  %v4765 = vpack.c.b16 %v4596, %v4595
  %v4766 = vpack.c.b16 %v4598, %v4597
  %v4767 = vpack.c.b16 %v4600, %v4599
  %v4768 = vpack.c.b16 %v4602, %v4601
  %v4769 = vpack.c.b16 %v4604, %v4603
  %v4770 = vpack.c.b16 %v4606, %v4605
  %v4771 = vpack.c.b16 %v4608, %v4607
  %v4772 = vpack.c.b16 %v4610, %v4609
  %v4773 = vpack.c.b16 %v4612, %v4611
  %v4774 = vpack.c.b16 %v4614, %v4613
  %v4775 = vpack.c.b16 %v4616, %v4615
  %v4776 = vpack.c.b16 %v4618, %v4617
  %v4777 = vpack.c.b16 %v4620, %v4619
  %v4778 = vpack.c.b16 %v4622, %v4621
  %v4779 = vpack.c.b16 %v4624, %v4623
  %v4780 = vpack.c.b16 %v4626, %v4625
  %v4781 = vpack.c.b16 %v4628, %v4627
  %v4782 = vpack.c.b16 %v4630, %v4629
  %v4783 = vpack.c.b16 %v4632, %v4631
  %v4784 = vpack.c.b16 %v4634, %v4633
  %v4785 = vpack.c.b16 %v4636, %v4635
  %v4786 = vpack.c.b16 %v4638, %v4637
  %v4787 = vpack.c.b16 %v4640, %v4639
  %v4788 = vpack.c.b16 %v4642, %v4641
  %v4789 = vpack.c.b16 %v4644, %v4643
  %v4790 = vpack.c.b16 %v4646, %v4645
  %v4791 = vpack.c.b16 %v4648, %v4647
  %v4792 = vpack.c.b16 %v4650, %v4649
  %v4793 = vpack.c.b16 %v4652, %v4651
  %v4794 = vpack.c.b16 %v4654, %v4653
  %v4795 = vpack.c.b16 %v4656, %v4655
  %v4796 = vpack.c.b16 %v4658, %v4657
  %v4797 = vpack.c.b16 %v4660, %v4659
  %v4798 = vpack.c.b16 %v4662, %v4661
  %v4799 = vpack.c.b16 %v4664, %v4663
  %v4800 = vpack.c.b16 %v4666, %v4665
  %v4801 = vpack.c.b16 %v4668, %v4667
  %v4802 = vpack.c.b16 %v4670, %v4669
  %v4803 = vpack.c.b16 %v4672, %v4671
  %v4804 = vpack.c.b16 %v4674, %v4673
  %v4805 = vpack.c.b16 %v4676, %v4675
  %v4806 = vpack.c.b16 %v4678, %v4677
  %4935 = vmatprep.subr.bf16.mxu0 0
  %4936 = vmatpush1.bf16.msra.mxu0 %v4686
  %4937 = vmatprep.subr.bf16.mxu0 0
  %4938 = vmatpush1.bf16.msra.mxu0 %v4685
  %4939 = vmatprep.subr.bf16.mxu0 0
  %4940 = vmatpush1.bf16.msra.mxu0 %v4684
  %4941 = vmatprep.subr.bf16.mxu0 0
  %4942 = vmatpush1.bf16.msra.mxu0 %v4683
  %4943 = vmatprep.subr.bf16.mxu0 0
  %4944 = vmatpush1.bf16.msra.mxu0 %v4682
  %4945 = vmatprep.subr.bf16.mxu0 0
  %4946 = vmatpush1.bf16.msra.mxu0 %v4681
  %4947 = vmatprep.subr.bf16.mxu0 0
  %4948 = vmatpush1.bf16.msra.mxu0 %v4680
  %4949 = vmatprep.subr.bf16.mxu0 0
  %4950 = vmatpush1.bf16.msra.mxu0 %v4679
  %4951 = vmatprep.subr.bf16.mxu0 0
  %4952 = vmatpush2.bf16.msra.mxu0 %v4694
  %4953 = vmatprep.subr.bf16.mxu0 0
  %4954 = vmatpush2.bf16.msra.mxu0 %v4693
  %4955 = vmatprep.subr.bf16.mxu0 0
  %4956 = vmatpush2.bf16.msra.mxu0 %v4692
  %4957 = vmatprep.subr.bf16.mxu0 0
  %4958 = vmatpush2.bf16.msra.mxu0 %v4691
  %4959 = vmatprep.subr.bf16.mxu0 0
  %4960 = vmatpush2.bf16.msra.mxu0 %v4690
  %4961 = vmatprep.subr.bf16.mxu0 0
  %4962 = vmatpush2.bf16.msra.mxu0 %v4689
  %4963 = vmatprep.subr.bf16.mxu0 0
  %4964 = vmatpush2.bf16.msra.mxu0 %v4688
  %4965 = vmatprep.subr.bf16.mxu0 0
  %4966 = vmatpush2.bf16.msra.mxu0 %v4687
  %4967 = vmatprep.mubr.bf16.mxu0 %v4145
  %4968 = vmatmul.mubr.bf16.gmra.mxu0 %v4144
  %v4969 = vpop.f32.mrf.mxu0
  %v4970 = vadd.f32 %v4165, %v4969
  %v4971 = vpop.f32.mrf.mxu0
  %v4972 = vpop.f32.mrf.mxu0
  %v4973 = vadd.f32 %v4165, %v4972
  %v4974 = vpop.f32.mrf.mxu0
  %4975 = vdwg.mxu0
  %4976 = vmatprep.subr.bf16.mxu0 0
  %4977 = vmatpush1.bf16.msra.mxu0 %v4702
  %4978 = vmatprep.subr.bf16.mxu0 0
  %4979 = vmatpush1.bf16.msra.mxu0 %v4701
  %4980 = vmatprep.subr.bf16.mxu0 0
  %4981 = vmatpush1.bf16.msra.mxu0 %v4700
  %4982 = vmatprep.subr.bf16.mxu0 0
  %4983 = vmatpush1.bf16.msra.mxu0 %v4699
  %4984 = vmatprep.subr.bf16.mxu0 0
  %4985 = vmatpush1.bf16.msra.mxu0 %v4698
  %4986 = vmatprep.subr.bf16.mxu0 0
  %4987 = vmatpush1.bf16.msra.mxu0 %v4697
  %4988 = vmatprep.subr.bf16.mxu0 0
  %4989 = vmatpush1.bf16.msra.mxu0 %v4696
  %4990 = vmatprep.subr.bf16.mxu0 0
  %4991 = vmatpush1.bf16.msra.mxu0 %v4695
  %4992 = vmatprep.subr.bf16.mxu0 0
  %4993 = vmatpush2.bf16.msra.mxu0 %v4710
  %4994 = vmatprep.subr.bf16.mxu0 0
  %4995 = vmatpush2.bf16.msra.mxu0 %v4709
  %4996 = vmatprep.subr.bf16.mxu0 0
  %4997 = vmatpush2.bf16.msra.mxu0 %v4708
  %4998 = vmatprep.subr.bf16.mxu0 0
  %4999 = vmatpush2.bf16.msra.mxu0 %v4707
  %5000 = vmatprep.subr.bf16.mxu0 0
  %5001 = vmatpush2.bf16.msra.mxu0 %v4706
  %5002 = vmatprep.subr.bf16.mxu0 0
  %5003 = vmatpush2.bf16.msra.mxu0 %v4705
  %5004 = vmatprep.subr.bf16.mxu0 0
  %5005 = vmatpush2.bf16.msra.mxu0 %v4704
  %5006 = vmatprep.subr.bf16.mxu0 0
  %5007 = vmatpush2.bf16.msra.mxu0 %v4703
  %5008 = vmatprep.mubr.bf16.mxu0 %v4147
  %5009 = vmatmul.mubr.bf16.gmra.mxu0 %v4146
  %v5010 = vpop.f32.mrf.mxu0
  %v5011 = vadd.f32 %v4970, %v5010
  %v5012 = vpop.f32.mrf.mxu0
  %v5013 = vpop.f32.mrf.mxu0
  %v5014 = vadd.f32 %v4973, %v5013
  %v5015 = vpop.f32.mrf.mxu0
  %5016 = vdwg.mxu0
  %5017 = vmatprep.subr.bf16.mxu0 0
  %5018 = vmatpush1.bf16.msra.mxu0 %v4718
  %5019 = vmatprep.subr.bf16.mxu0 0
  %5020 = vmatpush1.bf16.msra.mxu0 %v4717
  %5021 = vmatprep.subr.bf16.mxu0 0
  %5022 = vmatpush1.bf16.msra.mxu0 %v4716
  %5023 = vmatprep.subr.bf16.mxu0 0
  %5024 = vmatpush1.bf16.msra.mxu0 %v4715
  %5025 = vmatprep.subr.bf16.mxu0 0
  %5026 = vmatpush1.bf16.msra.mxu0 %v4714
  %5027 = vmatprep.subr.bf16.mxu0 0
  %5028 = vmatpush1.bf16.msra.mxu0 %v4713
  %5029 = vmatprep.subr.bf16.mxu0 0
  %5030 = vmatpush1.bf16.msra.mxu0 %v4712
  %5031 = vmatprep.subr.bf16.mxu0 0
  %5032 = vmatpush1.bf16.msra.mxu0 %v4711
  %5033 = vmatprep.subr.bf16.mxu0 0
  %5034 = vmatpush2.bf16.msra.mxu0 %v4726
  %5035 = vmatprep.subr.bf16.mxu0 0
  %5036 = vmatpush2.bf16.msra.mxu0 %v4725
  %5037 = vmatprep.subr.bf16.mxu0 0
  %5038 = vmatpush2.bf16.msra.mxu0 %v4724
  %5039 = vmatprep.subr.bf16.mxu0 0
  %5040 = vmatpush2.bf16.msra.mxu0 %v4723
  %5041 = vmatprep.subr.bf16.mxu0 0
  %5042 = vmatpush2.bf16.msra.mxu0 %v4722
  %5043 = vmatprep.subr.bf16.mxu0 0
  %5044 = vmatpush2.bf16.msra.mxu0 %v4721
  %5045 = vmatprep.subr.bf16.mxu0 0
  %5046 = vmatpush2.bf16.msra.mxu0 %v4720
  %5047 = vmatprep.subr.bf16.mxu0 0
  %5048 = vmatpush2.bf16.msra.mxu0 %v4719
  %5049 = vmatprep.mubr.bf16.mxu0 %v4149
  %5050 = vmatmul.mubr.bf16.gmra.mxu0 %v4148
  %v5051 = vpop.f32.mrf.mxu0
  %v5052 = vadd.f32 %v5011, %v5051
  %v5053 = vpop.f32.mrf.mxu0
  %v5054 = vpop.f32.mrf.mxu0
  %v5055 = vadd.f32 %v5014, %v5054
  %v5056 = vpop.f32.mrf.mxu0
  %5057 = vdwg.mxu0
  %5058 = vmatprep.subr.bf16.mxu0 0
  %5059 = vmatpush1.bf16.msra.mxu0 %v4734
  %5060 = vmatprep.subr.bf16.mxu0 0
  %5061 = vmatpush1.bf16.msra.mxu0 %v4733
  %5062 = vmatprep.subr.bf16.mxu0 0
  %5063 = vmatpush1.bf16.msra.mxu0 %v4732
  %5064 = vmatprep.subr.bf16.mxu0 0
  %5065 = vmatpush1.bf16.msra.mxu0 %v4731
  %5066 = vmatprep.subr.bf16.mxu0 0
  %5067 = vmatpush1.bf16.msra.mxu0 %v4730
  %5068 = vmatprep.subr.bf16.mxu0 0
  %5069 = vmatpush1.bf16.msra.mxu0 %v4729
  %5070 = vmatprep.subr.bf16.mxu0 0
  %5071 = vmatpush1.bf16.msra.mxu0 %v4728
  %5072 = vmatprep.subr.bf16.mxu0 0
  %5073 = vmatpush1.bf16.msra.mxu0 %v4727
  %5074 = vmatprep.subr.bf16.mxu0 0
  %5075 = vmatpush2.bf16.msra.mxu0 %v4742
  %5076 = vmatprep.subr.bf16.mxu0 0
  %5077 = vmatpush2.bf16.msra.mxu0 %v4741
  %5078 = vmatprep.subr.bf16.mxu0 0
  %5079 = vmatpush2.bf16.msra.mxu0 %v4740
  %5080 = vmatprep.subr.bf16.mxu0 0
  %5081 = vmatpush2.bf16.msra.mxu0 %v4739
  %5082 = vmatprep.subr.bf16.mxu0 0
  %5083 = vmatpush2.bf16.msra.mxu0 %v4738
  %5084 = vmatprep.subr.bf16.mxu0 0
  %5085 = vmatpush2.bf16.msra.mxu0 %v4737
  %5086 = vmatprep.subr.bf16.mxu0 0
  %5087 = vmatpush2.bf16.msra.mxu0 %v4736
  %5088 = vmatprep.subr.bf16.mxu0 0
  %5089 = vmatpush2.bf16.msra.mxu0 %v4735
  %5090 = vmatprep.mubr.bf16.mxu0 %v4151
  %5091 = vmatmul.mubr.bf16.gmra.mxu0 %v4150
  %v5092 = vpop.f32.mrf.mxu0
  %v5093 = vadd.f32 %v5052, %v5092
  %v5094 = vpop.f32.mrf.mxu0
  %v5095 = vpop.f32.mrf.mxu0
  %v5096 = vadd.f32 %v5055, %v5095
  %v5097 = vpop.f32.mrf.mxu0
  %5098 = vdwg.mxu0
  %5099 = vmatprep.subr.bf16.mxu0 0
  %5100 = vmatpush1.bf16.msra.mxu0 %v4750
  %5101 = vmatprep.subr.bf16.mxu0 0
  %5102 = vmatpush1.bf16.msra.mxu0 %v4749
  %5103 = vmatprep.subr.bf16.mxu0 0
  %5104 = vmatpush1.bf16.msra.mxu0 %v4748
  %5105 = vmatprep.subr.bf16.mxu0 0
  %5106 = vmatpush1.bf16.msra.mxu0 %v4747
  %5107 = vmatprep.subr.bf16.mxu0 0
  %5108 = vmatpush1.bf16.msra.mxu0 %v4746
  %5109 = vmatprep.subr.bf16.mxu0 0
  %5110 = vmatpush1.bf16.msra.mxu0 %v4745
  %5111 = vmatprep.subr.bf16.mxu0 0
  %5112 = vmatpush1.bf16.msra.mxu0 %v4744
  %5113 = vmatprep.subr.bf16.mxu0 0
  %5114 = vmatpush1.bf16.msra.mxu0 %v4743
  %5115 = vmatprep.subr.bf16.mxu0 0
  %5116 = vmatpush2.bf16.msra.mxu0 %v4758
  %5117 = vmatprep.subr.bf16.mxu0 0
  %5118 = vmatpush2.bf16.msra.mxu0 %v4757
  %5119 = vmatprep.subr.bf16.mxu0 0
  %5120 = vmatpush2.bf16.msra.mxu0 %v4756
  %5121 = vmatprep.subr.bf16.mxu0 0
  %5122 = vmatpush2.bf16.msra.mxu0 %v4755
  %5123 = vmatprep.subr.bf16.mxu0 0
  %5124 = vmatpush2.bf16.msra.mxu0 %v4754
  %5125 = vmatprep.subr.bf16.mxu0 0
  %5126 = vmatpush2.bf16.msra.mxu0 %v4753
  %5127 = vmatprep.subr.bf16.mxu0 0
  %5128 = vmatpush2.bf16.msra.mxu0 %v4752
  %5129 = vmatprep.subr.bf16.mxu0 0
  %5130 = vmatpush2.bf16.msra.mxu0 %v4751
  %5131 = vmatprep.mubr.bf16.mxu0 %v4153
  %5132 = vmatmul.mubr.bf16.gmra.mxu0 %v4152
  %v5133 = vpop.f32.mrf.mxu0
  %v5134 = vadd.f32 %v5093, %v5133
  %v5135 = vpop.f32.mrf.mxu0
  %v5136 = vpop.f32.mrf.mxu0
  %v5137 = vadd.f32 %v5096, %v5136
  %v5138 = vpop.f32.mrf.mxu0
  %5139 = vdwg.mxu0
  %5140 = vmatprep.subr.bf16.mxu0 0
  %5141 = vmatpush1.bf16.msra.mxu0 %v4766
  %5142 = vmatprep.subr.bf16.mxu0 0
  %5143 = vmatpush1.bf16.msra.mxu0 %v4765
  %5144 = vmatprep.subr.bf16.mxu0 0
  %5145 = vmatpush1.bf16.msra.mxu0 %v4764
  %5146 = vmatprep.subr.bf16.mxu0 0
  %5147 = vmatpush1.bf16.msra.mxu0 %v4763
  %5148 = vmatprep.subr.bf16.mxu0 0
  %5149 = vmatpush1.bf16.msra.mxu0 %v4762
  %5150 = vmatprep.subr.bf16.mxu0 0
  %5151 = vmatpush1.bf16.msra.mxu0 %v4761
  %5152 = vmatprep.subr.bf16.mxu0 0
  %5153 = vmatpush1.bf16.msra.mxu0 %v4760
  %5154 = vmatprep.subr.bf16.mxu0 0
  %5155 = vmatpush1.bf16.msra.mxu0 %v4759
  %5156 = vmatprep.subr.bf16.mxu0 0
  %5157 = vmatpush2.bf16.msra.mxu0 %v4774
  %5158 = vmatprep.subr.bf16.mxu0 0
  %5159 = vmatpush2.bf16.msra.mxu0 %v4773
  %5160 = vmatprep.subr.bf16.mxu0 0
  %5161 = vmatpush2.bf16.msra.mxu0 %v4772
  %5162 = vmatprep.subr.bf16.mxu0 0
  %5163 = vmatpush2.bf16.msra.mxu0 %v4771
  %5164 = vmatprep.subr.bf16.mxu0 0
  %5165 = vmatpush2.bf16.msra.mxu0 %v4770
  %5166 = vmatprep.subr.bf16.mxu0 0
  %5167 = vmatpush2.bf16.msra.mxu0 %v4769
  %5168 = vmatprep.subr.bf16.mxu0 0
  %5169 = vmatpush2.bf16.msra.mxu0 %v4768
  %5170 = vmatprep.subr.bf16.mxu0 0
  %5171 = vmatpush2.bf16.msra.mxu0 %v4767
  %5172 = vmatprep.mubr.bf16.mxu0 %v4155
  %5173 = vmatmul.mubr.bf16.gmra.mxu0 %v4154
  %v5174 = vpop.f32.mrf.mxu0
  %v5175 = vadd.f32 %v5134, %v5174
  %v5176 = vpop.f32.mrf.mxu0
  %v5177 = vpop.f32.mrf.mxu0
  %v5178 = vadd.f32 %v5137, %v5177
  %v5179 = vpop.f32.mrf.mxu0
  %5180 = vdwg.mxu0
  %5181 = vmatprep.subr.bf16.mxu0 0
  %5182 = vmatpush1.bf16.msra.mxu0 %v4782
  %5183 = vmatprep.subr.bf16.mxu0 0
  %5184 = vmatpush1.bf16.msra.mxu0 %v4781
  %5185 = vmatprep.subr.bf16.mxu0 0
  %5186 = vmatpush1.bf16.msra.mxu0 %v4780
  %5187 = vmatprep.subr.bf16.mxu0 0
  %5188 = vmatpush1.bf16.msra.mxu0 %v4779
  %5189 = vmatprep.subr.bf16.mxu0 0
  %5190 = vmatpush1.bf16.msra.mxu0 %v4778
  %5191 = vmatprep.subr.bf16.mxu0 0
  %5192 = vmatpush1.bf16.msra.mxu0 %v4777
  %5193 = vmatprep.subr.bf16.mxu0 0
  %5194 = vmatpush1.bf16.msra.mxu0 %v4776
  %5195 = vmatprep.subr.bf16.mxu0 0
  %5196 = vmatpush1.bf16.msra.mxu0 %v4775
  %5197 = vmatprep.subr.bf16.mxu0 0
  %5198 = vmatpush2.bf16.msra.mxu0 %v4790
  %5199 = vmatprep.subr.bf16.mxu0 0
  %5200 = vmatpush2.bf16.msra.mxu0 %v4789
  %5201 = vmatprep.subr.bf16.mxu0 0
  %5202 = vmatpush2.bf16.msra.mxu0 %v4788
  %5203 = vmatprep.subr.bf16.mxu0 0
  %5204 = vmatpush2.bf16.msra.mxu0 %v4787
  %5205 = vmatprep.subr.bf16.mxu0 0
  %5206 = vmatpush2.bf16.msra.mxu0 %v4786
  %5207 = vmatprep.subr.bf16.mxu0 0
  %5208 = vmatpush2.bf16.msra.mxu0 %v4785
  %5209 = vmatprep.subr.bf16.mxu0 0
  %5210 = vmatpush2.bf16.msra.mxu0 %v4784
  %5211 = vmatprep.subr.bf16.mxu0 0
  %5212 = vmatpush2.bf16.msra.mxu0 %v4783
  %5213 = vmatprep.mubr.bf16.mxu0 %v4157
  %5214 = vmatmul.mubr.bf16.gmra.mxu0 %v4156
  %v5215 = vpop.f32.mrf.mxu0
  %v5216 = vadd.f32 %v5175, %v5215
  %v5217 = vpop.f32.mrf.mxu0
  %v5218 = vpop.f32.mrf.mxu0
  %v5219 = vadd.f32 %v5178, %v5218
  %v5220 = vpop.f32.mrf.mxu0
  %5221 = vdwg.mxu0
  %5222 = vmatprep.subr.bf16.mxu0 0
  %5223 = vmatpush1.bf16.msra.mxu0 %v4798
  %5224 = vmatprep.subr.bf16.mxu0 0
  %5225 = vmatpush1.bf16.msra.mxu0 %v4797
  %5226 = vmatprep.subr.bf16.mxu0 0
  %5227 = vmatpush1.bf16.msra.mxu0 %v4796
  %5228 = vmatprep.subr.bf16.mxu0 0
  %5229 = vmatpush1.bf16.msra.mxu0 %v4795
  %5230 = vmatprep.subr.bf16.mxu0 0
  %5231 = vmatpush1.bf16.msra.mxu0 %v4794
  %5232 = vmatprep.subr.bf16.mxu0 0
  %5233 = vmatpush1.bf16.msra.mxu0 %v4793
  %5234 = vmatprep.subr.bf16.mxu0 0
  %5235 = vmatpush1.bf16.msra.mxu0 %v4792
  %5236 = vmatprep.subr.bf16.mxu0 0
  %5237 = vmatpush1.bf16.msra.mxu0 %v4791
  %5238 = vmatprep.subr.bf16.mxu0 0
  %5239 = vmatpush2.bf16.msra.mxu0 %v4806
  %5240 = vmatprep.subr.bf16.mxu0 0
  %5241 = vmatpush2.bf16.msra.mxu0 %v4805
  %5242 = vmatprep.subr.bf16.mxu0 0
  %5243 = vmatpush2.bf16.msra.mxu0 %v4804
  %5244 = vmatprep.subr.bf16.mxu0 0
  %5245 = vmatpush2.bf16.msra.mxu0 %v4803
  %5246 = vmatprep.subr.bf16.mxu0 0
  %5247 = vmatpush2.bf16.msra.mxu0 %v4802
  %5248 = vmatprep.subr.bf16.mxu0 0
  %5249 = vmatpush2.bf16.msra.mxu0 %v4801
  %5250 = vmatprep.subr.bf16.mxu0 0
  %5251 = vmatpush2.bf16.msra.mxu0 %v4800
  %5252 = vmatprep.subr.bf16.mxu0 0
  %5253 = vmatpush2.bf16.msra.mxu0 %v4799
  %5254 = vmatprep.mubr.bf16.mxu0 %v4159
  %5255 = vmatmul.mubr.bf16.gmra.mxu0 %v4158
  %v5256 = vpop.f32.mrf.mxu0
  %v5257 = vadd.f32 %v5216, %v5256
  %v5258 = vpop.f32.mrf.mxu0
  %v5259 = vpop.f32.mrf.mxu0
  %v5260 = vadd.f32 %v5219, %v5259
  %v5261 = vpop.f32.mrf.mxu0
  %5262 = vdwg.mxu0
  %v5263 = vld [vmem:[%s20] sm:$0x1]
  %v5264 = vld [vmem:[%s21] sm:$0x1]
  %v5265 = vadd.f32 %v5257, %v3230
  %v5266 = vadd.f32 %v5260, %v3231
  %v5267 = vsel %vm100, %v5265, 0.0
  %5268 = vadd.xlane.f32.xlu0 %v5267
  %v5269 = vpop.xlane.xlu0 %5268
  %v5270 = vsel %vm100, %v5266, 0.0
  %5271 = vadd.xlane.f32.xlu0 %v5270
  %v5272 = vpop.xlane.xlu0 %5271
  %v5273 = vmul.f32 %v5269, %v1587
  %v5274 = vmul.f32 %v5272, %v1587
  %v5275 = vsub.f32 %v5265, %v5273
  %v5276 = vsub.f32 %v5266, %v5274
  %v5277 = vmul.f32 %v5275, %v5275
  %v5278 = vmul.f32 %v5276, %v5276
  %v5279 = vsel %vm100, %v5277, 0.0
  %5280 = vadd.xlane.f32.xlu0 %v5279
  %v5281 = vpop.xlane.xlu0 %5280
  %v5282 = vsel %vm100, %v5278, 0.0
  %5283 = vadd.xlane.f32.xlu0 %v5282
  %v5284 = vpop.xlane.xlu0 %5283
  %v5285 = vmul.f32 %v5281, %v1587
  %v5286 = vmul.f32 %v5284, %v1587
  %v5287 = vadd.f32 %v5285, 1e-05
  %v5288 = vadd.f32 %v5286, 1e-05
  %v5289 = vrsqrt.pop %v5287
  %v5290 = vrsqrt.pop %v5288
  %v5291 = vmul.f32 %v5275, %v5289
  %v5292 = vmul.f32 %v5276, %v5290
  %v5294 = vlaneseq
  %v5295 = vshrl.u32 %v5294, 7
  %v5296 = vsub.s32 0, %v5295
  %v5297 = vrot.slane %v5263, %v5296
  %v5299 = vmul.f32 %v5291, %v5297
  %v5300 = vmul.f32 %v5292, %v5297
  %v5302 = vlaneseq
  %v5303 = vshrl.u32 %v5302, 7
  %v5304 = vsub.s32 0, %v5303
  %v5305 = vrot.slane %v5264, %v5304
  %v5307 = vadd.f32 %v5299, %v5305
  %v5308 = vadd.f32 %v5300, %v5305
  %5309 = vst.msk [vmem:[%s22] sm:$0xff] %vm100, %v5307
  %5310 = vst.msk [vmem:[%s22 + $0x8] sm:$0xff] %vm100, %v5308
  // Predicated region
  $region90: #{transformer_forward.13} parent=0 // pred_check
    _
  $region91: #{transformer_forward.13} parent=0 // pred_check_branch
    %5312 = sbr.rel (0) target = $region93
  $region92: #{transformer_forward.13} parent=0 // pred_region
    _
  $region93: #{transformer_forward.13} parent=0 // pred_fallthru
    _
  // Predicated region
  $region94: #{transformer_forward.13} parent=0 // pred_check
    _
  $region95: #{transformer_forward.13} parent=0 // pred_check_branch
    %5314 = sbr.rel (0) target = $region97
  $region96: #{transformer_forward.13} parent=0 // pred_region
    _
  $region97: #{transformer_forward.13} parent=0 // pred_fallthru
    _

</llo_original>
